<compile_context>
chip_gen: v6e
topology: v6e:2x2x1
jax: 0.10.0
libtpu: 0.0.40
codegen_flags: <defaults>
</compile_context>

<pallas_src>
import jax
import jax.numpy as jnp
from jax.experimental import pallas as pl
from jax.experimental.pallas import tpu as pltpu

# ---------------- problem sizes (small, consistent with the module) ----------------
N_ENT = 16        # number of entities (all_ent / eval_ent)
N_DIM = 32        # n_dim
N_REL = 8         # eval_rel -> output logits per (h, t) pair
ALL_REL = 9       # relation types in the KG tensors (KG.shape[2] in torch)
N_LAYER = 2       # L
N_EXPERT = 2
BATCH = 4         # number of (h, t) queries
ATTN_HID = 5      # hidden width of relation_linear

B_PAD = 8                     # batch rows padded to a full sublane tile
HALF = BATCH * N_DIM          # 128: one direction's flattened (batch, dim) feature width
REL_PAD = 128                 # lane-dense padded logits width
SLAB_COLS = 128               # packed weight-slab lane width


# ---------------- static layout of the packed weight/constant slab ----------------
def _slab_layout():
    items = [
        ('ent', (N_ENT, N_DIM)), ('entT', (N_DIM, N_ENT)),
        ('gw1h', (N_DIM, N_DIM)), ('gw1t', (N_DIM, N_DIM)),
        ('gb1', (1, N_DIM)), ('gw2', (N_DIM, N_EXPERT)), ('gb2', (1, N_EXPERT)),
        ('sel', (B_PAD, HALF)), ('dsel', (N_DIM, HALF)),
        ('w_h', (N_DIM, REL_PAD)), ('w_t', (N_DIM, REL_PAD)),
        ('w_hh', (HALF, REL_PAD)), ('w_th', (HALF, REL_PAD)),
        ('br', (1, REL_PAD)),
    ]
    for l in range(N_LAYER):
        items += [
            (f'rlwh{l}', (ATTN_HID, N_DIM)), (f'rlwt{l}', (ATTN_HID, N_DIM)),
            (f'rlb{l}', (ATTN_HID, 1)),
            (f'arw{l}', (ALL_REL, ATTN_HID)), (f'arb{l}', (ALL_REL, 1)),
            (f'relt{l}', (ALL_REL, HALF)),
            (f'lin{l}', (HALF, HALF)), (f'linb{l}', (1, HALF)),
        ]
    offs, row = {}, 0
    for name, (r, c) in items:
        offs[name] = (row, r, c)
        row += (r + 7) // 8 * 8          # keep every block sublane-aligned
    return offs, row


SLAB_OFFS, SLAB_ROWS = _slab_layout()


# ---------------- fused kernel (single invocation, no grid) ----------------
def moe_fused_kernel(kg_ref, idx_row_ref, idx_col_ref, slab_ref, out_ref):
    f32 = jnp.float32

    def S(name):                       # static, zero-cost window into the packed slab
        r, nr, nc = SLAB_OFFS[name]
        return slab_ref[r:r + nr, 0:nc]

    def mm(a, b):
        return jnp.dot(a, b, preferred_element_type=f32)

    # ---- selectors / gathers built in-kernel from the raw indices (no XLA scatter/one_hot)
    idx_col = idx_col_ref[...]                          # (B_PAD, 2) int32, col0 = h, col1 = t
    idx_row = idx_row_ref[...]                          # (2, B_PAD) int32
    h_col, t_col = idx_col[:, 0:1], idx_col[:, 1:2]
    h_row, t_row = idx_row[0:1, :], idx_row[1:2, :]
    iota_bn = jax.lax.broadcasted_iota(jnp.int32, (B_PAD, N_ENT), 1)
    iota_nb = jax.lax.broadcasted_iota(jnp.int32, (N_ENT, B_PAD), 0)
    g_head = (iota_bn == h_col).astype(f32)             # (B_PAD, N)
    g_tail = (iota_bn == t_col).astype(f32)
    g_headT = (iota_nb == h_row).astype(f32)            # (N, B_PAD)
    g_tailT = (iota_nb == t_row).astype(f32)

    h_emb = mm(g_head, S('ent'))                        # (B_PAD, D)
    t_emb = mm(g_tail, S('ent'))
    h_embT = mm(S('entT'), g_headT)                     # (D, B_PAD)
    t_embT = mm(S('entT'), g_tailT)

    # ---- gate: alpha = softmax(W2 relu(W1 [h,t])) ; dropout = eval identity ----
    g1 = jnp.maximum(mm(h_emb, S('gw1h')) + mm(t_emb, S('gw1t')) + S('gb1'), 0.0)
    glog = mm(g1, S('gw2')) + S('gb2')                  # (B_PAD, E)
    gmax = jnp.max(glog, axis=-1, keepdims=True)
    gexp = jnp.exp(glog - gmax)
    alpha = gexp / jnp.sum(gexp, axis=-1, keepdims=True)

    sel = S('sel')                                      # (B_PAD, 128) per-batch 32-col block mask

    # ---- expert-invariant per-layer relation attention (computed once) ----
    ri_layers = []
    for l in range(N_LAYER):
        hqT = jnp.maximum(mm(S(f'rlwh{l}'), h_embT) + mm(S(f'rlwt{l}'), t_embT)
                          + S(f'rlb{l}'), 0.0)                             # (5, B_PAD)
        relwT = jax.nn.sigmoid(mm(S(f'arw{l}'), hqT) + S(f'arb{l}'))       # (R, B_PAD)
        # rel_in[r, c] = rel_w[b(c), r] * rel_emb[r, d(c)]
        ri_layers.append(mm(relwT, sel) * S(f'relt{l}'))                   # (R, 128)

    # ---- expert-invariant initial hidden states (both directions) and Wr "base" ----
    e_h = mm(h_emb, S('dsel'))                          # e_h[b, c] = h_emb[b, c % D]
    e_t = mm(t_emb, S('dsel'))
    hid0_a = mm(g_headT, sel * e_h)                     # head-initialised direction (N, 128)
    hid0_b = mm(g_tailT, sel * e_t)                     # tail-initialised direction (N, 128)
    base = mm(h_emb, S('w_h')) + mm(t_emb, S('w_t')) + S('br')             # (B_PAD, 128)

    # ---- per-expert propagation + combine (alpha-weighted sum done in-kernel) ----
    out = jnp.zeros((B_PAD, REL_PAD), f32)
    for e in range(N_EXPERT):                           # static unroll (2)
        hid_a, hid_b = hid0_a, hid0_b
        for l in range(N_LAYER):                        # static unroll (2)
            ri = ri_layers[l]
            acc_a = jnp.zeros((N_ENT, HALF), f32)
            acc_b = jnp.zeros((N_ENT, HALF), f32)
            # per-relation K-chunked aggregation: independent (16,16)@(16,128) MXU pushes,
            # no (144,256) intermediates, no srep/trep expansion matmuls.
            for r in range(ALL_REL):
                kg_r = kg_ref[e, r]                     # (N, N)
                ri_r = ri[r:r + 1, :]                   # (1, 128)
                acc_a = acc_a + mm(kg_r, hid_a * ri_r)
                acc_b = acc_b + mm(kg_r, hid_b * ri_r)
            # per-(entity,batch) Linear as a shared (128,128) block-diagonal kron(I_B, lin_w^T)
            lw, lb = S(f'lin{l}'), S(f'linb{l}')
            hid_a = jnp.maximum(mm(acc_a, lw) + lb, 0.0)
            hid_b = jnp.maximum(mm(acc_b, lw) + lb, 0.0)
        tail_part = mm(g_tail, hid_a) * sel             # tail_hid (from head-init direction)
        head_part = mm(g_head, hid_b) * sel             # head_hid (from tail-init direction)
        logits = base + mm(tail_part, S('w_th')) + mm(head_part, S('w_hh'))
        out = out + alpha[:, e:e + 1] * logits
    out_ref[...] = out


# ---------------- parameter init (deterministic, synthetic) ----------------
def _xavier(key, shape):
    fan_out, fan_in = shape
    b = (6.0 / (fan_in + fan_out)) ** 0.5
    return jax.random.uniform(key, shape, jnp.float32, -b, b)


def init_params(key):
    keys = list(jax.random.split(key, 32))
    it = iter(keys)
    p = {}
    p['ent_emb'] = _xavier(next(it), (N_ENT, N_DIM))
    p['gate_w1'] = _xavier(next(it), (N_DIM, 2 * N_DIM))
    p['gate_b1'] = 0.01 * jax.random.normal(next(it), (N_DIM,), jnp.float32)
    p['gate_w2'] = _xavier(next(it), (N_EXPERT, N_DIM))
    p['gate_b2'] = 0.01 * jax.random.normal(next(it), (N_EXPERT,), jnp.float32)
    p['wr_w'] = _xavier(next(it), (N_REL, 4 * N_DIM))
    p['wr_b'] = 0.01 * jax.random.normal(next(it), (N_REL,), jnp.float32)
    p['rel_kg'] = jnp.stack([_xavier(next(it), (ALL_REL, N_DIM)) for _ in range(N_LAYER)])
    p['lin_w'] = jnp.stack([_xavier(next(it), (N_DIM, N_DIM)) for _ in range(N_LAYER)])
    p['lin_b'] = jnp.stack([0.01 * jax.random.normal(next(it), (N_DIM,), jnp.float32)
                            for _ in range(N_LAYER)])
    p['rl_w'] = jnp.stack([_xavier(next(it), (ATTN_HID, 2 * N_DIM)) for _ in range(N_LAYER)])
    p['rl_b'] = jnp.stack([0.01 * jax.random.normal(next(it), (ATTN_HID,), jnp.float32)
                           for _ in range(N_LAYER)])
    p['ar_w'] = jnp.stack([_xavier(next(it), (ALL_REL, ATTN_HID)) for _ in range(N_LAYER)])
    p['ar_b'] = jnp.stack([0.01 * jax.random.normal(next(it), (ALL_REL,), jnp.float32)
                           for _ in range(N_LAYER)])
    return p


# ---------------- one-time weight preprocessing into ONE packed slab ----------------
def prepare_params(p):
    D = N_DIM
    c = jnp.arange(HALF)
    sel = ((c // D)[None, :] == jnp.arange(B_PAD)[:, None]).astype(jnp.float32)   # (B_PAD,128)
    dsel = (jnp.arange(D)[:, None] == (c % D)[None, :]).astype(jnp.float32)       # (D,128)

    wrT = p['wr_w'].T                                                             # (4D, N_REL)
    wrT_pad = jnp.pad(wrT, ((0, 0), (0, REL_PAD - N_REL)))                        # (4D, 128)
    br = jnp.pad(p['wr_b'], (0, REL_PAD - N_REL))[None, :]                        # (1, 128)

    vals = {
        'ent': p['ent_emb'],
        'entT': p['ent_emb'].T,
        'gw1h': p['gate_w1'].T[:D], 'gw1t': p['gate_w1'].T[D:],
        'gb1': p['gate_b1'][None, :],
        'gw2': p['gate_w2'].T, 'gb2': p['gate_b2'][None, :],
        'sel': sel, 'dsel': dsel,
        'w_h': wrT_pad[:D], 'w_t': wrT_pad[D:2 * D],
        'w_hh': jnp.tile(wrT_pad[2 * D:3 * D], (BATCH, 1)),
        'w_th': jnp.tile(wrT_pad[3 * D:], (BATCH, 1)),
        'br': br,
    }
    for l in range(N_LAYER):
        vals[f'rlwh{l}'] = p['rl_w'][l][:, :D]
        vals[f'rlwt{l}'] = p['rl_w'][l][:, D:]
        vals[f'rlb{l}'] = p['rl_b'][l][:, None]
        vals[f'arw{l}'] = p['ar_w'][l]
        vals[f'arb{l}'] = p['ar_b'][l][:, None]
        vals[f'relt{l}'] = jnp.tile(p['rel_kg'][l], (1, BATCH))
        vals[f'lin{l}'] = jnp.kron(jnp.eye(BATCH, dtype=jnp.float32), p['lin_w'][l].T)
        vals[f'linb{l}'] = jnp.tile(p['lin_b'][l], (BATCH,))[None, :]

    slab = jnp.zeros((SLAB_ROWS, SLAB_COLS), jnp.float32)
    for name, arr in vals.items():
        r, nr, nc = SLAB_OFFS[name]
        assert arr.shape == (nr, nc), (name, arr.shape, (nr, nc))
        slab = slab.at[r:r + nr, 0:nc].set(arr.astype(jnp.float32))
    return slab


# ---------------- MoE forward: thin jitted wrapper around ONE grid-less pallas_call ----------------
@jax.jit
def moe_forward(slab, h_idx, t_idx, ddi_adj, kg_stack):
    # KG stays in its native (E, R, N, N) layout; only one add in XLA.
    kg4 = ddi_adj[None] + kg_stack                                   # (E, R, N, N)

    pad = jnp.full((B_PAD - BATCH,), -1, jnp.int32)                  # padded rows select nothing
    hp = jnp.concatenate([h_idx.astype(jnp.int32), pad])
    tp = jnp.concatenate([t_idx.astype(jnp.int32), pad])
    idx_row = jnp.stack([hp, tp])                                    # (2, B_PAD)
    idx_col = jnp.stack([hp, tp], axis=1)                            # (B_PAD, 2)

    vmem = pltpu.MemorySpace.VMEM
    out = pl.pallas_call(
        moe_fused_kernel,
        out_shape=jax.ShapeDtypeStruct((B_PAD, REL_PAD), jnp.float32),
        in_specs=[pl.BlockSpec(memory_space=vmem)] * 4,
        out_specs=pl.BlockSpec(memory_space=vmem),
    )(kg4, idx_row, idx_col, slab)

    return out[:BATCH, :N_REL]        # drop row/lane padding (padded weight cols are zero)


# ---------------- pure-JAX reference (for correctness check) ----------------
def moe_forward_ref(params, h_idx, t_idx, ddi_adj, kg_list):
    ent = params['ent_emb']
    h_emb, t_emb = ent[h_idx], ent[t_idx]
    ht = jnp.concatenate([h_emb, t_emb], -1)
    g = jnp.maximum(ht @ params['gate_w1'].T + params['gate_b1'], 0.0)
    alpha = jax.nn.softmax(g @ params['gate_w2'].T + params['gate_b2'], axis=-1)

    def propagate(kg, init_idx, init_emb):
        hid = jnp.zeros((N_ENT, BATCH, N_DIM)).at[init_idx, jnp.arange(BATCH)].set(init_emb)
        for l in range(N_LAYER):
            a = jnp.maximum(ht @ params['rl_w'][l].T + params['rl_b'][l], 0.0)
            rel_w = jax.nn.sigmoid(a @ params['ar_w'][l].T + params['ar_b'][l])   # (B, R)
            rel_in = rel_w.T[:, :, None] * params['rel_kg'][l][:, None, :]        # (R, B, D)
            msg = rel_in[:, None, :, :] * hid[None, :, :, :]                      # (R, j, B, D)
            out = jnp.einsum('rij,rjbd->ibd', kg, msg)
            hid = jnp.maximum(out @ params['lin_w'][l].T + params['lin_b'][l], 0.0)
        return hid

    logits = []
    for e in range(N_EXPERT):
        kg = ddi_adj + kg_list[e]
        tail_hid = propagate(kg, h_idx, h_emb)[t_idx, jnp.arange(BATCH)]
        head_hid = propagate(kg, t_idx, t_emb)[h_idx, jnp.arange(BATCH)]
        emb = jnp.concatenate([h_emb, t_emb, head_hid, tail_hid], -1)
        logits.append(emb @ params['wr_w'].T + params['wr_b'])
    logits = jnp.stack(logits, 1)
    return jnp.sum(alpha[:, :, None] * logits, axis=1)


# ---------------- main ----------------
if __name__ == "__main__":
    key = jax.random.PRNGKey(0)
    kp, kd, kh, kt, kg1, kg2 = jax.random.split(key, 6)
    params = init_params(kp)
    slab = prepare_params(params)          # one-time packed weight/constant slab

    h_idx = jax.random.randint(kh, (BATCH,), 0, N_ENT)
    t_idx = jax.random.randint(kt, (BATCH,), 0, N_ENT)

    def rand_kg(k):
        # torch layout (n_ent, n_ent, R) -> kernel layout (R, n_ent, n_ent)
        dense = jax.random.uniform(k, (N_ENT, N_ENT, ALL_REL), jnp.float32)
        mask = (dense > 0.8).astype(jnp.float32)
        return jnp.transpose(dense * mask, (2, 0, 1))

    ddi_adj = rand_kg(kd)
    kg_stack = jnp.stack([rand_kg(kg1), rand_kg(kg2)])

    out = moe_forward(slab, h_idx, t_idx, ddi_adj, kg_stack)
    out = jax.block_until_ready(out)

    ref = moe_forward_ref(params, h_idx, t_idx, ddi_adj, [kg_stack[0], kg_stack[1]])
    assert out.shape == (BATCH, N_REL)
    assert jnp.allclose(out, ref, atol=1e-4, rtol=1e-4)
    print("KERNEL_OK")
</pallas_src>

<mosaic_0001>
module attributes {stable_mosaic.version = 11 : i64} {
  func.func @moe_fused_kernel(%arg0: memref<2x9x16x16xf32, #tpu.memory_space<vmem>>, %arg1: memref<2x8xi32, #tpu.memory_space<vmem>>, %arg2: memref<8x2xi32, #tpu.memory_space<vmem>>, %arg3: memref<944x128xf32, #tpu.memory_space<vmem>>, %arg4: memref<8x128xf32, #tpu.memory_space<vmem>>) attributes {dimension_semantics = [], scalar_prefetch = 0 : i64, scratch_operands = 0 : i64, tpu.core_type = #tpu.core_type<tc>} {
    %c0 = arith.constant 0 : index
    %c0_0 = arith.constant 0 : index
    %0 = vector.load %arg2[%c0, %c0_0] : memref<8x2xi32, #tpu.memory_space<vmem>>, vector<8x2xi32>
    %c0_1 = arith.constant 0 : index
    %c0_2 = arith.constant 0 : index
    %1 = vector.load %arg1[%c0_1, %c0_2] : memref<2x8xi32, #tpu.memory_space<vmem>>, vector<2x8xi32>
    %2 = vector.extract_strided_slice %0 {offsets = [0, 0], sizes = [8, 1], strides = [1, 1]} : vector<8x2xi32> to vector<8x1xi32>
    %3 = vector.extract_strided_slice %0 {offsets = [0, 1], sizes = [8, 1], strides = [1, 1]} : vector<8x2xi32> to vector<8x1xi32>
    %4 = vector.extract_strided_slice %1 {offsets = [0, 0], sizes = [1, 8], strides = [1, 1]} : vector<2x8xi32> to vector<1x8xi32>
    %5 = vector.extract_strided_slice %1 {offsets = [1, 0], sizes = [1, 8], strides = [1, 1]} : vector<2x8xi32> to vector<1x8xi32>
    %6 = tpu.iota {dimensions = array<i32: 1>} : vector<8x16xi32>
    %7 = tpu.iota {dimensions = array<i32: 0>} : vector<16x8xi32>
    %8 = vector.broadcast %2 : vector<8x1xi32> to vector<8x16xi32>
    %9 = arith.cmpi eq, %6, %8 : vector<8x16xi32>
    %10 = arith.extui %9 : vector<8x16xi1> to vector<8x16xi32>
    %11 = arith.sitofp %10 : vector<8x16xi32> to vector<8x16xf32>
    %12 = vector.broadcast %3 : vector<8x1xi32> to vector<8x16xi32>
    %13 = arith.cmpi eq, %6, %12 : vector<8x16xi32>
    %14 = arith.extui %13 : vector<8x16xi1> to vector<8x16xi32>
    %15 = arith.sitofp %14 : vector<8x16xi32> to vector<8x16xf32>
    %16 = vector.broadcast %4 : vector<1x8xi32> to vector<16x8xi32>
    %17 = arith.cmpi eq, %7, %16 : vector<16x8xi32>
    %18 = arith.extui %17 : vector<16x8xi1> to vector<16x8xi32>
    %19 = arith.sitofp %18 : vector<16x8xi32> to vector<16x8xf32>
    %20 = vector.broadcast %5 : vector<1x8xi32> to vector<16x8xi32>
    %21 = arith.cmpi eq, %7, %20 : vector<16x8xi32>
    %22 = arith.extui %21 : vector<16x8xi1> to vector<16x8xi32>
    %23 = arith.sitofp %22 : vector<16x8xi32> to vector<16x8xf32>
    %c0_3 = arith.constant 0 : index
    %c0_4 = arith.constant 0 : index
    %24 = vector.load %arg3[%c0_3, %c0_4] : memref<944x128xf32, #tpu.memory_space<vmem>>, vector<16x32xf32>
    %cst = arith.constant dense<0.000000e+00> : vector<8x32xf32>
    %25 = tpu.matmul %11, %24, %cst {dimension_numbers = #tpu.dot_dimension_numbers<[1], [0], [0], [1], [0, 0, 1, 1], [], []>} : vector<8x16xf32>, vector<16x32xf32>, vector<8x32xf32> -> vector<8x32xf32>
    %c0_5 = arith.constant 0 : index
    %c0_6 = arith.constant 0 : index
    %26 = vector.load %arg3[%c0_5, %c0_6] : memref<944x128xf32, #tpu.memory_space<vmem>>, vector<16x32xf32>
    %cst_7 = arith.constant dense<0.000000e+00> : vector<8x32xf32>
    %27 = tpu.matmul %15, %26, %cst_7 {dimension_numbers = #tpu.dot_dimension_numbers<[1], [0], [0], [1], [0, 0, 1, 1], [], []>} : vector<8x16xf32>, vector<16x32xf32>, vector<8x32xf32> -> vector<8x32xf32>
    %c16 = arith.constant 16 : index
    %c0_8 = arith.constant 0 : index
    %28 = vector.load %arg3[%c16, %c0_8] : memref<944x128xf32, #tpu.memory_space<vmem>>, vector<32x16xf32>
    %cst_9 = arith.constant dense<0.000000e+00> : vector<32x8xf32>
    %29 = tpu.matmul %28, %19, %cst_9 {dimension_numbers = #tpu.dot_dimension_numbers<[1], [0], [0], [1], [0, 0, 1, 1], [], []>} : vector<32x16xf32>, vector<16x8xf32>, vector<32x8xf32> -> vector<32x8xf32>
    %c16_10 = arith.constant 16 : index
    %c0_11 = arith.constant 0 : index
    %30 = vector.load %arg3[%c16_10, %c0_11] : memref<944x128xf32, #tpu.memory_space<vmem>>, vector<32x16xf32>
    %cst_12 = arith.constant dense<0.000000e+00> : vector<32x8xf32>
    %31 = tpu.matmul %30, %23, %cst_12 {dimension_numbers = #tpu.dot_dimension_numbers<[1], [0], [0], [1], [0, 0, 1, 1], [], []>} : vector<32x16xf32>, vector<16x8xf32>, vector<32x8xf32> -> vector<32x8xf32>
    %c48 = arith.constant 48 : index
    %c0_13 = arith.constant 0 : index
    %32 = vector.load %arg3[%c48, %c0_13] : memref<944x128xf32, #tpu.memory_space<vmem>>, vector<32x32xf32>
    %cst_14 = arith.constant dense<0.000000e+00> : vector<8x32xf32>
    %33 = tpu.matmul %25, %32, %cst_14 {dimension_numbers = #tpu.dot_dimension_numbers<[1], [0], [0], [1], [0, 0, 1, 1], [], []>} : vector<8x32xf32>, vector<32x32xf32>, vector<8x32xf32> -> vector<8x32xf32>
    %c80 = arith.constant 80 : index
    %c0_15 = arith.constant 0 : index
    %34 = vector.load %arg3[%c80, %c0_15] : memref<944x128xf32, #tpu.memory_space<vmem>>, vector<32x32xf32>
    %cst_16 = arith.constant dense<0.000000e+00> : vector<8x32xf32>
    %35 = tpu.matmul %27, %34, %cst_16 {dimension_numbers = #tpu.dot_dimension_numbers<[1], [0], [0], [1], [0, 0, 1, 1], [], []>} : vector<8x32xf32>, vector<32x32xf32>, vector<8x32xf32> -> vector<8x32xf32>
    %36 = arith.addf %33, %35 : vector<8x32xf32>
    %c112 = arith.constant 112 : index
    %c0_17 = arith.constant 0 : index
    %37 = vector.load %arg3[%c112, %c0_17] : memref<944x128xf32, #tpu.memory_space<vmem>>, vector<1x32xf32>
    %38 = vector.broadcast %37 : vector<1x32xf32> to vector<8x32xf32>
    %39 = arith.addf %36, %38 : vector<8x32xf32>
    %cst_18 = arith.constant 0.000000e+00 : f32
    %40 = vector.broadcast %cst_18 : f32 to vector<8x32xf32>
    %41 = arith.maximumf %39, %40 : vector<8x32xf32>
    %c120 = arith.constant 120 : index
    %c0_19 = arith.constant 0 : index
    %42 = vector.load %arg3[%c120, %c0_19] : memref<944x128xf32, #tpu.memory_space<vmem>>, vector<32x2xf32>
    %cst_20 = arith.constant dense<0.000000e+00> : vector<8x2xf32>
    %43 = tpu.matmul %41, %42, %cst_20 {dimension_numbers = #tpu.dot_dimension_numbers<[1], [0], [0], [1], [0, 0, 1, 1], [], []>} : vector<8x32xf32>, vector<32x2xf32>, vector<8x2xf32> -> vector<8x2xf32>
    %c152 = arith.constant 152 : index
    %c0_21 = arith.constant 0 : index
    %44 = vector.load %arg3[%c152, %c0_21] : memref<944x128xf32, #tpu.memory_space<vmem>>, vector<1x2xf32>
    %45 = vector.broadcast %44 : vector<1x2xf32> to vector<8x2xf32>
    %46 = arith.addf %43, %45 : vector<8x2xf32>
    %cst_22 = arith.constant dense<0xFF800000> : vector<8xf32>
    %47 = vector.multi_reduction <maximumf>, %46, %cst_22 [1] : vector<8x2xf32> to vector<8xf32>
    %48 = vector.shape_cast %47 : vector<8xf32> to vector<8x1xf32>
    %49 = vector.broadcast %48 : vector<8x1xf32> to vector<8x2xf32>
    %50 = arith.subf %46, %49 : vector<8x2xf32>
    %51 = math.exp %50 : vector<8x2xf32>
    %cst_23 = arith.constant dense<0.000000e+00> : vector<8xf32>
    %52 = vector.multi_reduction <add>, %51, %cst_23 [1] : vector<8x2xf32> to vector<8xf32>
    %53 = vector.shape_cast %52 : vector<8xf32> to vector<8x1xf32>
    %54 = vector.broadcast %53 : vector<8x1xf32> to vector<8x2xf32>
    %55 = arith.divf %51, %54 : vector<8x2xf32>
    %c160 = arith.constant 160 : index
    %c0_24 = arith.constant 0 : index
    %56 = vector.load %arg3[%c160, %c0_24] : memref<944x128xf32, #tpu.memory_space<vmem>>, vector<8x128xf32>
    %c528 = arith.constant 528 : index
    %c0_25 = arith.constant 0 : index
    %57 = vector.load %arg3[%c528, %c0_25] : memref<944x128xf32, #tpu.memory_space<vmem>>, vector<5x32xf32>
    %cst_26 = arith.constant dense<0.000000e+00> : vector<5x8xf32>
    %58 = tpu.matmul %57, %29, %cst_26 {dimension_numbers = #tpu.dot_dimension_numbers<[1], [0], [0], [1], [0, 0, 1, 1], [], []>} : vector<5x32xf32>, vector<32x8xf32>, vector<5x8xf32> -> vector<5x8xf32>
    %c536 = arith.constant 536 : index
    %c0_27 = arith.constant 0 : index
    %59 = vector.load %arg3[%c536, %c0_27] : memref<944x128xf32, #tpu.memory_space<vmem>>, vector<5x32xf32>
    %cst_28 = arith.constant dense<0.000000e+00> : vector<5x8xf32>
    %60 = tpu.matmul %59, %31, %cst_28 {dimension_numbers = #tpu.dot_dimension_numbers<[1], [0], [0], [1], [0, 0, 1, 1], [], []>} : vector<5x32xf32>, vector<32x8xf32>, vector<5x8xf32> -> vector<5x8xf32>
    %61 = arith.addf %58, %60 : vector<5x8xf32>
    %c544 = arith.constant 544 : index
    %c0_29 = arith.constant 0 : index
    %62 = vector.load %arg3[%c544, %c0_29] : memref<944x128xf32, #tpu.memory_space<vmem>>, vector<5x1xf32>
    %63 = vector.broadcast %62 : vector<5x1xf32> to vector<5x8xf32>
    %64 = arith.addf %61, %63 : vector<5x8xf32>
    %cst_30 = arith.constant 0.000000e+00 : f32
    %65 = vector.broadcast %cst_30 : f32 to vector<5x8xf32>
    %66 = arith.maximumf %64, %65 : vector<5x8xf32>
    %c552 = arith.constant 552 : index
    %c0_31 = arith.constant 0 : index
    %67 = vector.load %arg3[%c552, %c0_31] : memref<944x128xf32, #tpu.memory_space<vmem>>, vector<9x5xf32>
    %cst_32 = arith.constant dense<0.000000e+00> : vector<9x8xf32>
    %68 = tpu.matmul %67, %66, %cst_32 {dimension_numbers = #tpu.dot_dimension_numbers<[1], [0], [0], [1], [0, 0, 1, 1], [], []>} : vector<9x5xf32>, vector<5x8xf32>, vector<9x8xf32> -> vector<9x8xf32>
    %c568 = arith.constant 568 : index
    %c0_33 = arith.constant 0 : index
    %69 = vector.load %arg3[%c568, %c0_33] : memref<944x128xf32, #tpu.memory_space<vmem>>, vector<9x1xf32>
    %70 = vector.broadcast %69 : vector<9x1xf32> to vector<9x8xf32>
    %71 = arith.addf %68, %70 : vector<9x8xf32>
    %72 = arith.negf %71 : vector<9x8xf32>
    %73 = math.exp %72 : vector<9x8xf32>
    %cst_34 = arith.constant 1.000000e+00 : f32
    %74 = vector.broadcast %cst_34 : f32 to vector<9x8xf32>
    %75 = arith.addf %74, %73 : vector<9x8xf32>
    %76 = arith.divf %74, %75 : vector<9x8xf32>
    %cst_35 = arith.constant dense<0.000000e+00> : vector<9x128xf32>
    %77 = tpu.matmul %76, %56, %cst_35 {dimension_numbers = #tpu.dot_dimension_numbers<[1], [0], [0], [1], [0, 0, 1, 1], [], []>} : vector<9x8xf32>, vector<8x128xf32>, vector<9x128xf32> -> vector<9x128xf32>
    %c584 = arith.constant 584 : index
    %c0_36 = arith.constant 0 : index
    %78 = vector.load %arg3[%c584, %c0_36] : memref<944x128xf32, #tpu.memory_space<vmem>>, vector<9x128xf32>
    %79 = arith.mulf %77, %78 : vector<9x128xf32>
    %c736 = arith.constant 736 : index
    %c0_37 = arith.constant 0 : index
    %80 = vector.load %arg3[%c736, %c0_37] : memref<944x128xf32, #tpu.memory_space<vmem>>, vector<5x32xf32>
    %cst_38 = arith.constant dense<0.000000e+00> : vector<5x8xf32>
    %81 = tpu.matmul %80, %29, %cst_38 {dimension_numbers = #tpu.dot_dimension_numbers<[1], [0], [0], [1], [0, 0, 1, 1], [], []>} : vector<5x32xf32>, vector<32x8xf32>, vector<5x8xf32> -> vector<5x8xf32>
    %c744 = arith.constant 744 : index
    %c0_39 = arith.constant 0 : index
    %82 = vector.load %arg3[%c744, %c0_39] : memref<944x128xf32, #tpu.memory_space<vmem>>, vector<5x32xf32>
    %cst_40 = arith.constant dense<0.000000e+00> : vector<5x8xf32>
    %83 = tpu.matmul %82, %31, %cst_40 {dimension_numbers = #tpu.dot_dimension_numbers<[1], [0], [0], [1], [0, 0, 1, 1], [], []>} : vector<5x32xf32>, vector<32x8xf32>, vector<5x8xf32> -> vector<5x8xf32>
    %84 = arith.addf %81, %83 : vector<5x8xf32>
    %c752 = arith.constant 752 : index
    %c0_41 = arith.constant 0 : index
    %85 = vector.load %arg3[%c752, %c0_41] : memref<944x128xf32, #tpu.memory_space<vmem>>, vector<5x1xf32>
    %86 = vector.broadcast %85 : vector<5x1xf32> to vector<5x8xf32>
    %87 = arith.addf %84, %86 : vector<5x8xf32>
    %cst_42 = arith.constant 0.000000e+00 : f32
    %88 = vector.broadcast %cst_42 : f32 to vector<5x8xf32>
    %89 = arith.maximumf %87, %88 : vector<5x8xf32>
    %c760 = arith.constant 760 : index
    %c0_43 = arith.constant 0 : index
    %90 = vector.load %arg3[%c760, %c0_43] : memref<944x128xf32, #tpu.memory_space<vmem>>, vector<9x5xf32>
    %cst_44 = arith.constant dense<0.000000e+00> : vector<9x8xf32>
    %91 = tpu.matmul %90, %89, %cst_44 {dimension_numbers = #tpu.dot_dimension_numbers<[1], [0], [0], [1], [0, 0, 1, 1], [], []>} : vector<9x5xf32>, vector<5x8xf32>, vector<9x8xf32> -> vector<9x8xf32>
    %c776 = arith.constant 776 : index
    %c0_45 = arith.constant 0 : index
    %92 = vector.load %arg3[%c776, %c0_45] : memref<944x128xf32, #tpu.memory_space<vmem>>, vector<9x1xf32>
    %93 = vector.broadcast %92 : vector<9x1xf32> to vector<9x8xf32>
    %94 = arith.addf %91, %93 : vector<9x8xf32>
    %95 = arith.negf %94 : vector<9x8xf32>
    %96 = math.exp %95 : vector<9x8xf32>
    %cst_46 = arith.constant 1.000000e+00 : f32
    %97 = vector.broadcast %cst_46 : f32 to vector<9x8xf32>
    %98 = arith.addf %97, %96 : vector<9x8xf32>
    %99 = arith.divf %97, %98 : vector<9x8xf32>
    %cst_47 = arith.constant dense<0.000000e+00> : vector<9x128xf32>
    %100 = tpu.matmul %99, %56, %cst_47 {dimension_numbers = #tpu.dot_dimension_numbers<[1], [0], [0], [1], [0, 0, 1, 1], [], []>} : vector<9x8xf32>, vector<8x128xf32>, vector<9x128xf32> -> vector<9x128xf32>
    %c792 = arith.constant 792 : index
    %c0_48 = arith.constant 0 : index
    %101 = vector.load %arg3[%c792, %c0_48] : memref<944x128xf32, #tpu.memory_space<vmem>>, vector<9x128xf32>
    %102 = arith.mulf %100, %101 : vector<9x128xf32>
    %c168 = arith.constant 168 : index
    %c0_49 = arith.constant 0 : index
    %103 = vector.load %arg3[%c168, %c0_49] : memref<944x128xf32, #tpu.memory_space<vmem>>, vector<32x128xf32>
    %cst_50 = arith.constant dense<0.000000e+00> : vector<8x128xf32>
    %104 = tpu.matmul %25, %103, %cst_50 {dimension_numbers = #tpu.dot_dimension_numbers<[1], [0], [0], [1], [0, 0, 1, 1], [], []>} : vector<8x32xf32>, vector<32x128xf32>, vector<8x128xf32> -> vector<8x128xf32>
    %c168_51 = arith.constant 168 : index
    %c0_52 = arith.constant 0 : index
    %105 = vector.load %arg3[%c168_51, %c0_52] : memref<944x128xf32, #tpu.memory_space<vmem>>, vector<32x128xf32>
    %cst_53 = arith.constant dense<0.000000e+00> : vector<8x128xf32>
    %106 = tpu.matmul %27, %105, %cst_53 {dimension_numbers = #tpu.dot_dimension_numbers<[1], [0], [0], [1], [0, 0, 1, 1], [], []>} : vector<8x32xf32>, vector<32x128xf32>, vector<8x128xf32> -> vector<8x128xf32>
    %107 = arith.mulf %56, %104 : vector<8x128xf32>
    %cst_54 = arith.constant dense<0.000000e+00> : vector<16x128xf32>
    %108 = tpu.matmul %19, %107, %cst_54 {dimension_numbers = #tpu.dot_dimension_numbers<[1], [0], [0], [1], [0, 0, 1, 1], [], []>} : vector<16x8xf32>, vector<8x128xf32>, vector<16x128xf32> -> vector<16x128xf32>
    %109 = arith.mulf %56, %106 : vector<8x128xf32>
    %cst_55 = arith.constant dense<0.000000e+00> : vector<16x128xf32>
    %110 = tpu.matmul %23, %109, %cst_55 {dimension_numbers = #tpu.dot_dimension_numbers<[1], [0], [0], [1], [0, 0, 1, 1], [], []>} : vector<16x8xf32>, vector<8x128xf32>, vector<16x128xf32> -> vector<16x128xf32>
    %c200 = arith.constant 200 : index
    %c0_56 = arith.constant 0 : index
    %111 = vector.load %arg3[%c200, %c0_56] : memref<944x128xf32, #tpu.memory_space<vmem>>, vector<32x128xf32>
    %cst_57 = arith.constant dense<0.000000e+00> : vector<8x128xf32>
    %112 = tpu.matmul %25, %111, %cst_57 {dimension_numbers = #tpu.dot_dimension_numbers<[1], [0], [0], [1], [0, 0, 1, 1], [], []>} : vector<8x32xf32>, vector<32x128xf32>, vector<8x128xf32> -> vector<8x128xf32>
    %c232 = arith.constant 232 : index
    %c0_58 = arith.constant 0 : index
    %113 = vector.load %arg3[%c232, %c0_58] : memref<944x128xf32, #tpu.memory_space<vmem>>, vector<32x128xf32>
    %cst_59 = arith.constant dense<0.000000e+00> : vector<8x128xf32>
    %114 = tpu.matmul %27, %113, %cst_59 {dimension_numbers = #tpu.dot_dimension_numbers<[1], [0], [0], [1], [0, 0, 1, 1], [], []>} : vector<8x32xf32>, vector<32x128xf32>, vector<8x128xf32> -> vector<8x128xf32>
    %115 = arith.addf %112, %114 : vector<8x128xf32>
    %c520 = arith.constant 520 : index
    %c0_60 = arith.constant 0 : index
    %116 = vector.load %arg3[%c520, %c0_60] : memref<944x128xf32, #tpu.memory_space<vmem>>, vector<1x128xf32>
    %117 = vector.broadcast %116 : vector<1x128xf32> to vector<8x128xf32>
    %118 = arith.addf %115, %117 : vector<8x128xf32>
    %cst_61 = arith.constant 0.000000e+00 : f32
    %119 = vector.broadcast %cst_61 : f32 to vector<8x128xf32>
    %cst_62 = arith.constant 0.000000e+00 : f32
    %120 = vector.broadcast %cst_62 : f32 to vector<16x128xf32>
    %cst_63 = arith.constant 0.000000e+00 : f32
    %121 = vector.broadcast %cst_63 : f32 to vector<16x128xf32>
    %c0_64 = arith.constant 0 : index
    %c0_65 = arith.constant 0 : index
    %c0_66 = arith.constant 0 : index
    %c0_67 = arith.constant 0 : index
    %122 = vector.load %arg0[%c0_64, %c0_65, %c0_66, %c0_67] : memref<2x9x16x16xf32, #tpu.memory_space<vmem>>, vector<1x1x16x16xf32>
    %123 = vector.shape_cast %122 : vector<1x1x16x16xf32> to vector<16x16xf32>
    %124 = vector.extract_strided_slice %79 {offsets = [0, 0], sizes = [1, 128], strides = [1, 1]} : vector<9x128xf32> to vector<1x128xf32>
    %125 = vector.broadcast %124 : vector<1x128xf32> to vector<16x128xf32>
    %126 = arith.mulf %108, %125 : vector<16x128xf32>
    %cst_68 = arith.constant dense<0.000000e+00> : vector<16x128xf32>
    %127 = tpu.matmul %123, %126, %cst_68 {dimension_numbers = #tpu.dot_dimension_numbers<[1], [0], [0], [1], [0, 0, 1, 1], [], []>} : vector<16x16xf32>, vector<16x128xf32>, vector<16x128xf32> -> vector<16x128xf32>
    %128 = arith.addf %120, %127 : vector<16x128xf32>
    %129 = vector.broadcast %124 : vector<1x128xf32> to vector<16x128xf32>
    %130 = arith.mulf %110, %129 : vector<16x128xf32>
    %cst_69 = arith.constant dense<0.000000e+00> : vector<16x128xf32>
    %131 = tpu.matmul %123, %130, %cst_69 {dimension_numbers = #tpu.dot_dimension_numbers<[1], [0], [0], [1], [0, 0, 1, 1], [], []>} : vector<16x16xf32>, vector<16x128xf32>, vector<16x128xf32> -> vector<16x128xf32>
    %132 = arith.addf %121, %131 : vector<16x128xf32>
    %c0_70 = arith.constant 0 : index
    %c1 = arith.constant 1 : index
    %c0_71 = arith.constant 0 : index
    %c0_72 = arith.constant 0 : index
    %133 = vector.load %arg0[%c0_70, %c1, %c0_71, %c0_72] : memref<2x9x16x16xf32, #tpu.memory_space<vmem>>, vector<1x1x16x16xf32>
    %134 = vector.shape_cast %133 : vector<1x1x16x16xf32> to vector<16x16xf32>
    %135 = vector.extract_strided_slice %79 {offsets = [1, 0], sizes = [1, 128], strides = [1, 1]} : vector<9x128xf32> to vector<1x128xf32>
    %136 = vector.broadcast %135 : vector<1x128xf32> to vector<16x128xf32>
    %137 = arith.mulf %108, %136 : vector<16x128xf32>
    %cst_73 = arith.constant dense<0.000000e+00> : vector<16x128xf32>
    %138 = tpu.matmul %134, %137, %cst_73 {dimension_numbers = #tpu.dot_dimension_numbers<[1], [0], [0], [1], [0, 0, 1, 1], [], []>} : vector<16x16xf32>, vector<16x128xf32>, vector<16x128xf32> -> vector<16x128xf32>
    %139 = arith.addf %128, %138 : vector<16x128xf32>
    %140 = vector.broadcast %135 : vector<1x128xf32> to vector<16x128xf32>
    %141 = arith.mulf %110, %140 : vector<16x128xf32>
    %cst_74 = arith.constant dense<0.000000e+00> : vector<16x128xf32>
    %142 = tpu.matmul %134, %141, %cst_74 {dimension_numbers = #tpu.dot_dimension_numbers<[1], [0], [0], [1], [0, 0, 1, 1], [], []>} : vector<16x16xf32>, vector<16x128xf32>, vector<16x128xf32> -> vector<16x128xf32>
    %143 = arith.addf %132, %142 : vector<16x128xf32>
    %c0_75 = arith.constant 0 : index
    %c2 = arith.constant 2 : index
    %c0_76 = arith.constant 0 : index
    %c0_77 = arith.constant 0 : index
    %144 = vector.load %arg0[%c0_75, %c2, %c0_76, %c0_77] : memref<2x9x16x16xf32, #tpu.memory_space<vmem>>, vector<1x1x16x16xf32>
    %145 = vector.shape_cast %144 : vector<1x1x16x16xf32> to vector<16x16xf32>
    %146 = vector.extract_strided_slice %79 {offsets = [2, 0], sizes = [1, 128], strides = [1, 1]} : vector<9x128xf32> to vector<1x128xf32>
    %147 = vector.broadcast %146 : vector<1x128xf32> to vector<16x128xf32>
    %148 = arith.mulf %108, %147 : vector<16x128xf32>
    %cst_78 = arith.constant dense<0.000000e+00> : vector<16x128xf32>
    %149 = tpu.matmul %145, %148, %cst_78 {dimension_numbers = #tpu.dot_dimension_numbers<[1], [0], [0], [1], [0, 0, 1, 1], [], []>} : vector<16x16xf32>, vector<16x128xf32>, vector<16x128xf32> -> vector<16x128xf32>
    %150 = arith.addf %139, %149 : vector<16x128xf32>
    %151 = vector.broadcast %146 : vector<1x128xf32> to vector<16x128xf32>
    %152 = arith.mulf %110, %151 : vector<16x128xf32>
    %cst_79 = arith.constant dense<0.000000e+00> : vector<16x128xf32>
    %153 = tpu.matmul %145, %152, %cst_79 {dimension_numbers = #tpu.dot_dimension_numbers<[1], [0], [0], [1], [0, 0, 1, 1], [], []>} : vector<16x16xf32>, vector<16x128xf32>, vector<16x128xf32> -> vector<16x128xf32>
    %154 = arith.addf %143, %153 : vector<16x128xf32>
    %c0_80 = arith.constant 0 : index
    %c3 = arith.constant 3 : index
    %c0_81 = arith.constant 0 : index
    %c0_82 = arith.constant 0 : index
    %155 = vector.load %arg0[%c0_80, %c3, %c0_81, %c0_82] : memref<2x9x16x16xf32, #tpu.memory_space<vmem>>, vector<1x1x16x16xf32>
    %156 = vector.shape_cast %155 : vector<1x1x16x16xf32> to vector<16x16xf32>
    %157 = vector.extract_strided_slice %79 {offsets = [3, 0], sizes = [1, 128], strides = [1, 1]} : vector<9x128xf32> to vector<1x128xf32>
    %158 = vector.broadcast %157 : vector<1x128xf32> to vector<16x128xf32>
    %159 = arith.mulf %108, %158 : vector<16x128xf32>
    %cst_83 = arith.constant dense<0.000000e+00> : vector<16x128xf32>
    %160 = tpu.matmul %156, %159, %cst_83 {dimension_numbers = #tpu.dot_dimension_numbers<[1], [0], [0], [1], [0, 0, 1, 1], [], []>} : vector<16x16xf32>, vector<16x128xf32>, vector<16x128xf32> -> vector<16x128xf32>
    %161 = arith.addf %150, %160 : vector<16x128xf32>
    %162 = vector.broadcast %157 : vector<1x128xf32> to vector<16x128xf32>
    %163 = arith.mulf %110, %162 : vector<16x128xf32>
    %cst_84 = arith.constant dense<0.000000e+00> : vector<16x128xf32>
    %164 = tpu.matmul %156, %163, %cst_84 {dimension_numbers = #tpu.dot_dimension_numbers<[1], [0], [0], [1], [0, 0, 1, 1], [], []>} : vector<16x16xf32>, vector<16x128xf32>, vector<16x128xf32> -> vector<16x128xf32>
    %165 = arith.addf %154, %164 : vector<16x128xf32>
    %c0_85 = arith.constant 0 : index
    %c4 = arith.constant 4 : index
    %c0_86 = arith.constant 0 : index
    %c0_87 = arith.constant 0 : index
    %166 = vector.load %arg0[%c0_85, %c4, %c0_86, %c0_87] : memref<2x9x16x16xf32, #tpu.memory_space<vmem>>, vector<1x1x16x16xf32>
    %167 = vector.shape_cast %166 : vector<1x1x16x16xf32> to vector<16x16xf32>
    %168 = vector.extract_strided_slice %79 {offsets = [4, 0], sizes = [1, 128], strides = [1, 1]} : vector<9x128xf32> to vector<1x128xf32>
    %169 = vector.broadcast %168 : vector<1x128xf32> to vector<16x128xf32>
    %170 = arith.mulf %108, %169 : vector<16x128xf32>
    %cst_88 = arith.constant dense<0.000000e+00> : vector<16x128xf32>
    %171 = tpu.matmul %167, %170, %cst_88 {dimension_numbers = #tpu.dot_dimension_numbers<[1], [0], [0], [1], [0, 0, 1, 1], [], []>} : vector<16x16xf32>, vector<16x128xf32>, vector<16x128xf32> -> vector<16x128xf32>
    %172 = arith.addf %161, %171 : vector<16x128xf32>
    %173 = vector.broadcast %168 : vector<1x128xf32> to vector<16x128xf32>
    %174 = arith.mulf %110, %173 : vector<16x128xf32>
    %cst_89 = arith.constant dense<0.000000e+00> : vector<16x128xf32>
    %175 = tpu.matmul %167, %174, %cst_89 {dimension_numbers = #tpu.dot_dimension_numbers<[1], [0], [0], [1], [0, 0, 1, 1], [], []>} : vector<16x16xf32>, vector<16x128xf32>, vector<16x128xf32> -> vector<16x128xf32>
    %176 = arith.addf %165, %175 : vector<16x128xf32>
    %c0_90 = arith.constant 0 : index
    %c5 = arith.constant 5 : index
    %c0_91 = arith.constant 0 : index
    %c0_92 = arith.constant 0 : index
    %177 = vector.load %arg0[%c0_90, %c5, %c0_91, %c0_92] : memref<2x9x16x16xf32, #tpu.memory_space<vmem>>, vector<1x1x16x16xf32>
    %178 = vector.shape_cast %177 : vector<1x1x16x16xf32> to vector<16x16xf32>
    %179 = vector.extract_strided_slice %79 {offsets = [5, 0], sizes = [1, 128], strides = [1, 1]} : vector<9x128xf32> to vector<1x128xf32>
    %180 = vector.broadcast %179 : vector<1x128xf32> to vector<16x128xf32>
    %181 = arith.mulf %108, %180 : vector<16x128xf32>
    %cst_93 = arith.constant dense<0.000000e+00> : vector<16x128xf32>
    %182 = tpu.matmul %178, %181, %cst_93 {dimension_numbers = #tpu.dot_dimension_numbers<[1], [0], [0], [1], [0, 0, 1, 1], [], []>} : vector<16x16xf32>, vector<16x128xf32>, vector<16x128xf32> -> vector<16x128xf32>
    %183 = arith.addf %172, %182 : vector<16x128xf32>
    %184 = vector.broadcast %179 : vector<1x128xf32> to vector<16x128xf32>
    %185 = arith.mulf %110, %184 : vector<16x128xf32>
    %cst_94 = arith.constant dense<0.000000e+00> : vector<16x128xf32>
    %186 = tpu.matmul %178, %185, %cst_94 {dimension_numbers = #tpu.dot_dimension_numbers<[1], [0], [0], [1], [0, 0, 1, 1], [], []>} : vector<16x16xf32>, vector<16x128xf32>, vector<16x128xf32> -> vector<16x128xf32>
    %187 = arith.addf %176, %186 : vector<16x128xf32>
    %c0_95 = arith.constant 0 : index
    %c6 = arith.constant 6 : index
    %c0_96 = arith.constant 0 : index
    %c0_97 = arith.constant 0 : index
    %188 = vector.load %arg0[%c0_95, %c6, %c0_96, %c0_97] : memref<2x9x16x16xf32, #tpu.memory_space<vmem>>, vector<1x1x16x16xf32>
    %189 = vector.shape_cast %188 : vector<1x1x16x16xf32> to vector<16x16xf32>
    %190 = vector.extract_strided_slice %79 {offsets = [6, 0], sizes = [1, 128], strides = [1, 1]} : vector<9x128xf32> to vector<1x128xf32>
    %191 = vector.broadcast %190 : vector<1x128xf32> to vector<16x128xf32>
    %192 = arith.mulf %108, %191 : vector<16x128xf32>
    %cst_98 = arith.constant dense<0.000000e+00> : vector<16x128xf32>
    %193 = tpu.matmul %189, %192, %cst_98 {dimension_numbers = #tpu.dot_dimension_numbers<[1], [0], [0], [1], [0, 0, 1, 1], [], []>} : vector<16x16xf32>, vector<16x128xf32>, vector<16x128xf32> -> vector<16x128xf32>
    %194 = arith.addf %183, %193 : vector<16x128xf32>
    %195 = vector.broadcast %190 : vector<1x128xf32> to vector<16x128xf32>
    %196 = arith.mulf %110, %195 : vector<16x128xf32>
    %cst_99 = arith.constant dense<0.000000e+00> : vector<16x128xf32>
    %197 = tpu.matmul %189, %196, %cst_99 {dimension_numbers = #tpu.dot_dimension_numbers<[1], [0], [0], [1], [0, 0, 1, 1], [], []>} : vector<16x16xf32>, vector<16x128xf32>, vector<16x128xf32> -> vector<16x128xf32>
    %198 = arith.addf %187, %197 : vector<16x128xf32>
    %c0_100 = arith.constant 0 : index
    %c7 = arith.constant 7 : index
    %c0_101 = arith.constant 0 : index
    %c0_102 = arith.constant 0 : index
    %199 = vector.load %arg0[%c0_100, %c7, %c0_101, %c0_102] : memref<2x9x16x16xf32, #tpu.memory_space<vmem>>, vector<1x1x16x16xf32>
    %200 = vector.shape_cast %199 : vector<1x1x16x16xf32> to vector<16x16xf32>
    %201 = vector.extract_strided_slice %79 {offsets = [7, 0], sizes = [1, 128], strides = [1, 1]} : vector<9x128xf32> to vector<1x128xf32>
    %202 = vector.broadcast %201 : vector<1x128xf32> to vector<16x128xf32>
    %203 = arith.mulf %108, %202 : vector<16x128xf32>
    %cst_103 = arith.constant dense<0.000000e+00> : vector<16x128xf32>
    %204 = tpu.matmul %200, %203, %cst_103 {dimension_numbers = #tpu.dot_dimension_numbers<[1], [0], [0], [1], [0, 0, 1, 1], [], []>} : vector<16x16xf32>, vector<16x128xf32>, vector<16x128xf32> -> vector<16x128xf32>
    %205 = arith.addf %194, %204 : vector<16x128xf32>
    %206 = vector.broadcast %201 : vector<1x128xf32> to vector<16x128xf32>
    %207 = arith.mulf %110, %206 : vector<16x128xf32>
    %cst_104 = arith.constant dense<0.000000e+00> : vector<16x128xf32>
    %208 = tpu.matmul %200, %207, %cst_104 {dimension_numbers = #tpu.dot_dimension_numbers<[1], [0], [0], [1], [0, 0, 1, 1], [], []>} : vector<16x16xf32>, vector<16x128xf32>, vector<16x128xf32> -> vector<16x128xf32>
    %209 = arith.addf %198, %208 : vector<16x128xf32>
    %c0_105 = arith.constant 0 : index
    %c8 = arith.constant 8 : index
    %c0_106 = arith.constant 0 : index
    %c0_107 = arith.constant 0 : index
    %210 = vector.load %arg0[%c0_105, %c8, %c0_106, %c0_107] : memref<2x9x16x16xf32, #tpu.memory_space<vmem>>, vector<1x1x16x16xf32>
    %211 = vector.shape_cast %210 : vector<1x1x16x16xf32> to vector<16x16xf32>
    %212 = vector.extract_strided_slice %79 {offsets = [8, 0], sizes = [1, 128], strides = [1, 1]} : vector<9x128xf32> to vector<1x128xf32>
    %213 = vector.broadcast %212 : vector<1x128xf32> to vector<16x128xf32>
    %214 = arith.mulf %108, %213 : vector<16x128xf32>
    %cst_108 = arith.constant dense<0.000000e+00> : vector<16x128xf32>
    %215 = tpu.matmul %211, %214, %cst_108 {dimension_numbers = #tpu.dot_dimension_numbers<[1], [0], [0], [1], [0, 0, 1, 1], [], []>} : vector<16x16xf32>, vector<16x128xf32>, vector<16x128xf32> -> vector<16x128xf32>
    %216 = arith.addf %205, %215 : vector<16x128xf32>
    %217 = vector.broadcast %212 : vector<1x128xf32> to vector<16x128xf32>
    %218 = arith.mulf %110, %217 : vector<16x128xf32>
    %cst_109 = arith.constant dense<0.000000e+00> : vector<16x128xf32>
    %219 = tpu.matmul %211, %218, %cst_109 {dimension_numbers = #tpu.dot_dimension_numbers<[1], [0], [0], [1], [0, 0, 1, 1], [], []>} : vector<16x16xf32>, vector<16x128xf32>, vector<16x128xf32> -> vector<16x128xf32>
    %220 = arith.addf %209, %219 : vector<16x128xf32>
    %c600 = arith.constant 600 : index
    %c0_110 = arith.constant 0 : index
    %221 = vector.load %arg3[%c600, %c0_110] : memref<944x128xf32, #tpu.memory_space<vmem>>, vector<128x128xf32>
    %c728 = arith.constant 728 : index
    %c0_111 = arith.constant 0 : index
    %222 = vector.load %arg3[%c728, %c0_111] : memref<944x128xf32, #tpu.memory_space<vmem>>, vector<1x128xf32>
    %cst_112 = arith.constant dense<0.000000e+00> : vector<16x128xf32>
    %223 = tpu.matmul %216, %221, %cst_112 {dimension_numbers = #tpu.dot_dimension_numbers<[1], [0], [0], [1], [0, 0, 1, 1], [], []>} : vector<16x128xf32>, vector<128x128xf32>, vector<16x128xf32> -> vector<16x128xf32>
    %224 = vector.broadcast %222 : vector<1x128xf32> to vector<16x128xf32>
    %225 = arith.addf %223, %224 : vector<16x128xf32>
    %cst_113 = arith.constant 0.000000e+00 : f32
    %226 = vector.broadcast %cst_113 : f32 to vector<16x128xf32>
    %227 = arith.maximumf %225, %226 : vector<16x128xf32>
    %cst_114 = arith.constant dense<0.000000e+00> : vector<16x128xf32>
    %228 = tpu.matmul %220, %221, %cst_114 {dimension_numbers = #tpu.dot_dimension_numbers<[1], [0], [0], [1], [0, 0, 1, 1], [], []>} : vector<16x128xf32>, vector<128x128xf32>, vector<16x128xf32> -> vector<16x128xf32>
    %229 = vector.broadcast %222 : vector<1x128xf32> to vector<16x128xf32>
    %230 = arith.addf %228, %229 : vector<16x128xf32>
    %cst_115 = arith.constant 0.000000e+00 : f32
    %231 = vector.broadcast %cst_115 : f32 to vector<16x128xf32>
    %232 = arith.maximumf %230, %231 : vector<16x128xf32>
    %cst_116 = arith.constant 0.000000e+00 : f32
    %233 = vector.broadcast %cst_116 : f32 to vector<16x128xf32>
    %cst_117 = arith.constant 0.000000e+00 : f32
    %234 = vector.broadcast %cst_117 : f32 to vector<16x128xf32>
    %c0_118 = arith.constant 0 : index
    %c0_119 = arith.constant 0 : index
    %c0_120 = arith.constant 0 : index
    %c0_121 = arith.constant 0 : index
    %235 = vector.load %arg0[%c0_118, %c0_119, %c0_120, %c0_121] : memref<2x9x16x16xf32, #tpu.memory_space<vmem>>, vector<1x1x16x16xf32>
    %236 = vector.shape_cast %235 : vector<1x1x16x16xf32> to vector<16x16xf32>
    %237 = vector.extract_strided_slice %102 {offsets = [0, 0], sizes = [1, 128], strides = [1, 1]} : vector<9x128xf32> to vector<1x128xf32>
    %238 = vector.broadcast %237 : vector<1x128xf32> to vector<16x128xf32>
    %239 = arith.mulf %227, %238 : vector<16x128xf32>
    %cst_122 = arith.constant dense<0.000000e+00> : vector<16x128xf32>
    %240 = tpu.matmul %236, %239, %cst_122 {dimension_numbers = #tpu.dot_dimension_numbers<[1], [0], [0], [1], [0, 0, 1, 1], [], []>} : vector<16x16xf32>, vector<16x128xf32>, vector<16x128xf32> -> vector<16x128xf32>
    %241 = arith.addf %233, %240 : vector<16x128xf32>
    %242 = vector.broadcast %237 : vector<1x128xf32> to vector<16x128xf32>
    %243 = arith.mulf %232, %242 : vector<16x128xf32>
    %cst_123 = arith.constant dense<0.000000e+00> : vector<16x128xf32>
    %244 = tpu.matmul %236, %243, %cst_123 {dimension_numbers = #tpu.dot_dimension_numbers<[1], [0], [0], [1], [0, 0, 1, 1], [], []>} : vector<16x16xf32>, vector<16x128xf32>, vector<16x128xf32> -> vector<16x128xf32>
    %245 = arith.addf %234, %244 : vector<16x128xf32>
    %c0_124 = arith.constant 0 : index
    %c1_125 = arith.constant 1 : index
    %c0_126 = arith.constant 0 : index
    %c0_127 = arith.constant 0 : index
    %246 = vector.load %arg0[%c0_124, %c1_125, %c0_126, %c0_127] : memref<2x9x16x16xf32, #tpu.memory_space<vmem>>, vector<1x1x16x16xf32>
    %247 = vector.shape_cast %246 : vector<1x1x16x16xf32> to vector<16x16xf32>
    %248 = vector.extract_strided_slice %102 {offsets = [1, 0], sizes = [1, 128], strides = [1, 1]} : vector<9x128xf32> to vector<1x128xf32>
    %249 = vector.broadcast %248 : vector<1x128xf32> to vector<16x128xf32>
    %250 = arith.mulf %227, %249 : vector<16x128xf32>
    %cst_128 = arith.constant dense<0.000000e+00> : vector<16x128xf32>
    %251 = tpu.matmul %247, %250, %cst_128 {dimension_numbers = #tpu.dot_dimension_numbers<[1], [0], [0], [1], [0, 0, 1, 1], [], []>} : vector<16x16xf32>, vector<16x128xf32>, vector<16x128xf32> -> vector<16x128xf32>
    %252 = arith.addf %241, %251 : vector<16x128xf32>
    %253 = vector.broadcast %248 : vector<1x128xf32> to vector<16x128xf32>
    %254 = arith.mulf %232, %253 : vector<16x128xf32>
    %cst_129 = arith.constant dense<0.000000e+00> : vector<16x128xf32>
    %255 = tpu.matmul %247, %254, %cst_129 {dimension_numbers = #tpu.dot_dimension_numbers<[1], [0], [0], [1], [0, 0, 1, 1], [], []>} : vector<16x16xf32>, vector<16x128xf32>, vector<16x128xf32> -> vector<16x128xf32>
    %256 = arith.addf %245, %255 : vector<16x128xf32>
    %c0_130 = arith.constant 0 : index
    %c2_131 = arith.constant 2 : index
    %c0_132 = arith.constant 0 : index
    %c0_133 = arith.constant 0 : index
    %257 = vector.load %arg0[%c0_130, %c2_131, %c0_132, %c0_133] : memref<2x9x16x16xf32, #tpu.memory_space<vmem>>, vector<1x1x16x16xf32>
    %258 = vector.shape_cast %257 : vector<1x1x16x16xf32> to vector<16x16xf32>
    %259 = vector.extract_strided_slice %102 {offsets = [2, 0], sizes = [1, 128], strides = [1, 1]} : vector<9x128xf32> to vector<1x128xf32>
    %260 = vector.broadcast %259 : vector<1x128xf32> to vector<16x128xf32>
    %261 = arith.mulf %227, %260 : vector<16x128xf32>
    %cst_134 = arith.constant dense<0.000000e+00> : vector<16x128xf32>
    %262 = tpu.matmul %258, %261, %cst_134 {dimension_numbers = #tpu.dot_dimension_numbers<[1], [0], [0], [1], [0, 0, 1, 1], [], []>} : vector<16x16xf32>, vector<16x128xf32>, vector<16x128xf32> -> vector<16x128xf32>
    %263 = arith.addf %252, %262 : vector<16x128xf32>
    %264 = vector.broadcast %259 : vector<1x128xf32> to vector<16x128xf32>
    %265 = arith.mulf %232, %264 : vector<16x128xf32>
    %cst_135 = arith.constant dense<0.000000e+00> : vector<16x128xf32>
    %266 = tpu.matmul %258, %265, %cst_135 {dimension_numbers = #tpu.dot_dimension_numbers<[1], [0], [0], [1], [0, 0, 1, 1], [], []>} : vector<16x16xf32>, vector<16x128xf32>, vector<16x128xf32> -> vector<16x128xf32>
    %267 = arith.addf %256, %266 : vector<16x128xf32>
    %c0_136 = arith.constant 0 : index
    %c3_137 = arith.constant 3 : index
    %c0_138 = arith.constant 0 : index
    %c0_139 = arith.constant 0 : index
    %268 = vector.load %arg0[%c0_136, %c3_137, %c0_138, %c0_139] : memref<2x9x16x16xf32, #tpu.memory_space<vmem>>, vector<1x1x16x16xf32>
    %269 = vector.shape_cast %268 : vector<1x1x16x16xf32> to vector<16x16xf32>
    %270 = vector.extract_strided_slice %102 {offsets = [3, 0], sizes = [1, 128], strides = [1, 1]} : vector<9x128xf32> to vector<1x128xf32>
    %271 = vector.broadcast %270 : vector<1x128xf32> to vector<16x128xf32>
    %272 = arith.mulf %227, %271 : vector<16x128xf32>
    %cst_140 = arith.constant dense<0.000000e+00> : vector<16x128xf32>
    %273 = tpu.matmul %269, %272, %cst_140 {dimension_numbers = #tpu.dot_dimension_numbers<[1], [0], [0], [1], [0, 0, 1, 1], [], []>} : vector<16x16xf32>, vector<16x128xf32>, vector<16x128xf32> -> vector<16x128xf32>
    %274 = arith.addf %263, %273 : vector<16x128xf32>
    %275 = vector.broadcast %270 : vector<1x128xf32> to vector<16x128xf32>
    %276 = arith.mulf %232, %275 : vector<16x128xf32>
    %cst_141 = arith.constant dense<0.000000e+00> : vector<16x128xf32>
    %277 = tpu.matmul %269, %276, %cst_141 {dimension_numbers = #tpu.dot_dimension_numbers<[1], [0], [0], [1], [0, 0, 1, 1], [], []>} : vector<16x16xf32>, vector<16x128xf32>, vector<16x128xf32> -> vector<16x128xf32>
    %278 = arith.addf %267, %277 : vector<16x128xf32>
    %c0_142 = arith.constant 0 : index
    %c4_143 = arith.constant 4 : index
    %c0_144 = arith.constant 0 : index
    %c0_145 = arith.constant 0 : index
    %279 = vector.load %arg0[%c0_142, %c4_143, %c0_144, %c0_145] : memref<2x9x16x16xf32, #tpu.memory_space<vmem>>, vector<1x1x16x16xf32>
    %280 = vector.shape_cast %279 : vector<1x1x16x16xf32> to vector<16x16xf32>
    %281 = vector.extract_strided_slice %102 {offsets = [4, 0], sizes = [1, 128], strides = [1, 1]} : vector<9x128xf32> to vector<1x128xf32>
    %282 = vector.broadcast %281 : vector<1x128xf32> to vector<16x128xf32>
    %283 = arith.mulf %227, %282 : vector<16x128xf32>
    %cst_146 = arith.constant dense<0.000000e+00> : vector<16x128xf32>
    %284 = tpu.matmul %280, %283, %cst_146 {dimension_numbers = #tpu.dot_dimension_numbers<[1], [0], [0], [1], [0, 0, 1, 1], [], []>} : vector<16x16xf32>, vector<16x128xf32>, vector<16x128xf32> -> vector<16x128xf32>
    %285 = arith.addf %274, %284 : vector<16x128xf32>
    %286 = vector.broadcast %281 : vector<1x128xf32> to vector<16x128xf32>
    %287 = arith.mulf %232, %286 : vector<16x128xf32>
    %cst_147 = arith.constant dense<0.000000e+00> : vector<16x128xf32>
    %288 = tpu.matmul %280, %287, %cst_147 {dimension_numbers = #tpu.dot_dimension_numbers<[1], [0], [0], [1], [0, 0, 1, 1], [], []>} : vector<16x16xf32>, vector<16x128xf32>, vector<16x128xf32> -> vector<16x128xf32>
    %289 = arith.addf %278, %288 : vector<16x128xf32>
    %c0_148 = arith.constant 0 : index
    %c5_149 = arith.constant 5 : index
    %c0_150 = arith.constant 0 : index
    %c0_151 = arith.constant 0 : index
    %290 = vector.load %arg0[%c0_148, %c5_149, %c0_150, %c0_151] : memref<2x9x16x16xf32, #tpu.memory_space<vmem>>, vector<1x1x16x16xf32>
    %291 = vector.shape_cast %290 : vector<1x1x16x16xf32> to vector<16x16xf32>
    %292 = vector.extract_strided_slice %102 {offsets = [5, 0], sizes = [1, 128], strides = [1, 1]} : vector<9x128xf32> to vector<1x128xf32>
    %293 = vector.broadcast %292 : vector<1x128xf32> to vector<16x128xf32>
    %294 = arith.mulf %227, %293 : vector<16x128xf32>
    %cst_152 = arith.constant dense<0.000000e+00> : vector<16x128xf32>
    %295 = tpu.matmul %291, %294, %cst_152 {dimension_numbers = #tpu.dot_dimension_numbers<[1], [0], [0], [1], [0, 0, 1, 1], [], []>} : vector<16x16xf32>, vector<16x128xf32>, vector<16x128xf32> -> vector<16x128xf32>
    %296 = arith.addf %285, %295 : vector<16x128xf32>
    %297 = vector.broadcast %292 : vector<1x128xf32> to vector<16x128xf32>
    %298 = arith.mulf %232, %297 : vector<16x128xf32>
    %cst_153 = arith.constant dense<0.000000e+00> : vector<16x128xf32>
    %299 = tpu.matmul %291, %298, %cst_153 {dimension_numbers = #tpu.dot_dimension_numbers<[1], [0], [0], [1], [0, 0, 1, 1], [], []>} : vector<16x16xf32>, vector<16x128xf32>, vector<16x128xf32> -> vector<16x128xf32>
    %300 = arith.addf %289, %299 : vector<16x128xf32>
    %c0_154 = arith.constant 0 : index
    %c6_155 = arith.constant 6 : index
    %c0_156 = arith.constant 0 : index
    %c0_157 = arith.constant 0 : index
    %301 = vector.load %arg0[%c0_154, %c6_155, %c0_156, %c0_157] : memref<2x9x16x16xf32, #tpu.memory_space<vmem>>, vector<1x1x16x16xf32>
    %302 = vector.shape_cast %301 : vector<1x1x16x16xf32> to vector<16x16xf32>
    %303 = vector.extract_strided_slice %102 {offsets = [6, 0], sizes = [1, 128], strides = [1, 1]} : vector<9x128xf32> to vector<1x128xf32>
    %304 = vector.broadcast %303 : vector<1x128xf32> to vector<16x128xf32>
    %305 = arith.mulf %227, %304 : vector<16x128xf32>
    %cst_158 = arith.constant dense<0.000000e+00> : vector<16x128xf32>
    %306 = tpu.matmul %302, %305, %cst_158 {dimension_numbers = #tpu.dot_dimension_numbers<[1], [0], [0], [1], [0, 0, 1, 1], [], []>} : vector<16x16xf32>, vector<16x128xf32>, vector<16x128xf32> -> vector<16x128xf32>
    %307 = arith.addf %296, %306 : vector<16x128xf32>
    %308 = vector.broadcast %303 : vector<1x128xf32> to vector<16x128xf32>
    %309 = arith.mulf %232, %308 : vector<16x128xf32>
    %cst_159 = arith.constant dense<0.000000e+00> : vector<16x128xf32>
    %310 = tpu.matmul %302, %309, %cst_159 {dimension_numbers = #tpu.dot_dimension_numbers<[1], [0], [0], [1], [0, 0, 1, 1], [], []>} : vector<16x16xf32>, vector<16x128xf32>, vector<16x128xf32> -> vector<16x128xf32>
    %311 = arith.addf %300, %310 : vector<16x128xf32>
    %c0_160 = arith.constant 0 : index
    %c7_161 = arith.constant 7 : index
    %c0_162 = arith.constant 0 : index
    %c0_163 = arith.constant 0 : index
    %312 = vector.load %arg0[%c0_160, %c7_161, %c0_162, %c0_163] : memref<2x9x16x16xf32, #tpu.memory_space<vmem>>, vector<1x1x16x16xf32>
    %313 = vector.shape_cast %312 : vector<1x1x16x16xf32> to vector<16x16xf32>
    %314 = vector.extract_strided_slice %102 {offsets = [7, 0], sizes = [1, 128], strides = [1, 1]} : vector<9x128xf32> to vector<1x128xf32>
    %315 = vector.broadcast %314 : vector<1x128xf32> to vector<16x128xf32>
    %316 = arith.mulf %227, %315 : vector<16x128xf32>
    %cst_164 = arith.constant dense<0.000000e+00> : vector<16x128xf32>
    %317 = tpu.matmul %313, %316, %cst_164 {dimension_numbers = #tpu.dot_dimension_numbers<[1], [0], [0], [1], [0, 0, 1, 1], [], []>} : vector<16x16xf32>, vector<16x128xf32>, vector<16x128xf32> -> vector<16x128xf32>
    %318 = arith.addf %307, %317 : vector<16x128xf32>
    %319 = vector.broadcast %314 : vector<1x128xf32> to vector<16x128xf32>
    %320 = arith.mulf %232, %319 : vector<16x128xf32>
    %cst_165 = arith.constant dense<0.000000e+00> : vector<16x128xf32>
    %321 = tpu.matmul %313, %320, %cst_165 {dimension_numbers = #tpu.dot_dimension_numbers<[1], [0], [0], [1], [0, 0, 1, 1], [], []>} : vector<16x16xf32>, vector<16x128xf32>, vector<16x128xf32> -> vector<16x128xf32>
    %322 = arith.addf %311, %321 : vector<16x128xf32>
    %c0_166 = arith.constant 0 : index
    %c8_167 = arith.constant 8 : index
    %c0_168 = arith.constant 0 : index
    %c0_169 = arith.constant 0 : index
    %323 = vector.load %arg0[%c0_166, %c8_167, %c0_168, %c0_169] : memref<2x9x16x16xf32, #tpu.memory_space<vmem>>, vector<1x1x16x16xf32>
    %324 = vector.shape_cast %323 : vector<1x1x16x16xf32> to vector<16x16xf32>
    %325 = vector.extract_strided_slice %102 {offsets = [8, 0], sizes = [1, 128], strides = [1, 1]} : vector<9x128xf32> to vector<1x128xf32>
    %326 = vector.broadcast %325 : vector<1x128xf32> to vector<16x128xf32>
    %327 = arith.mulf %227, %326 : vector<16x128xf32>
    %cst_170 = arith.constant dense<0.000000e+00> : vector<16x128xf32>
    %328 = tpu.matmul %324, %327, %cst_170 {dimension_numbers = #tpu.dot_dimension_numbers<[1], [0], [0], [1], [0, 0, 1, 1], [], []>} : vector<16x16xf32>, vector<16x128xf32>, vector<16x128xf32> -> vector<16x128xf32>
    %329 = arith.addf %318, %328 : vector<16x128xf32>
    %330 = vector.broadcast %325 : vector<1x128xf32> to vector<16x128xf32>
    %331 = arith.mulf %232, %330 : vector<16x128xf32>
    %cst_171 = arith.constant dense<0.000000e+00> : vector<16x128xf32>
    %332 = tpu.matmul %324, %331, %cst_171 {dimension_numbers = #tpu.dot_dimension_numbers<[1], [0], [0], [1], [0, 0, 1, 1], [], []>} : vector<16x16xf32>, vector<16x128xf32>, vector<16x128xf32> -> vector<16x128xf32>
    %333 = arith.addf %322, %332 : vector<16x128xf32>
    %c808 = arith.constant 808 : index
    %c0_172 = arith.constant 0 : index
    %334 = vector.load %arg3[%c808, %c0_172] : memref<944x128xf32, #tpu.memory_space<vmem>>, vector<128x128xf32>
    %c936 = arith.constant 936 : index
    %c0_173 = arith.constant 0 : index
    %335 = vector.load %arg3[%c936, %c0_173] : memref<944x128xf32, #tpu.memory_space<vmem>>, vector<1x128xf32>
    %cst_174 = arith.constant dense<0.000000e+00> : vector<16x128xf32>
    %336 = tpu.matmul %329, %334, %cst_174 {dimension_numbers = #tpu.dot_dimension_numbers<[1], [0], [0], [1], [0, 0, 1, 1], [], []>} : vector<16x128xf32>, vector<128x128xf32>, vector<16x128xf32> -> vector<16x128xf32>
    %337 = vector.broadcast %335 : vector<1x128xf32> to vector<16x128xf32>
    %338 = arith.addf %336, %337 : vector<16x128xf32>
    %cst_175 = arith.constant 0.000000e+00 : f32
    %339 = vector.broadcast %cst_175 : f32 to vector<16x128xf32>
    %340 = arith.maximumf %338, %339 : vector<16x128xf32>
    %cst_176 = arith.constant dense<0.000000e+00> : vector<16x128xf32>
    %341 = tpu.matmul %333, %334, %cst_176 {dimension_numbers = #tpu.dot_dimension_numbers<[1], [0], [0], [1], [0, 0, 1, 1], [], []>} : vector<16x128xf32>, vector<128x128xf32>, vector<16x128xf32> -> vector<16x128xf32>
    %342 = vector.broadcast %335 : vector<1x128xf32> to vector<16x128xf32>
    %343 = arith.addf %341, %342 : vector<16x128xf32>
    %cst_177 = arith.constant 0.000000e+00 : f32
    %344 = vector.broadcast %cst_177 : f32 to vector<16x128xf32>
    %345 = arith.maximumf %343, %344 : vector<16x128xf32>
    %cst_178 = arith.constant dense<0.000000e+00> : vector<8x128xf32>
    %346 = tpu.matmul %15, %340, %cst_178 {dimension_numbers = #tpu.dot_dimension_numbers<[1], [0], [0], [1], [0, 0, 1, 1], [], []>} : vector<8x16xf32>, vector<16x128xf32>, vector<8x128xf32> -> vector<8x128xf32>
    %347 = arith.mulf %346, %56 : vector<8x128xf32>
    %cst_179 = arith.constant dense<0.000000e+00> : vector<8x128xf32>
    %348 = tpu.matmul %11, %345, %cst_179 {dimension_numbers = #tpu.dot_dimension_numbers<[1], [0], [0], [1], [0, 0, 1, 1], [], []>} : vector<8x16xf32>, vector<16x128xf32>, vector<8x128xf32> -> vector<8x128xf32>
    %349 = arith.mulf %348, %56 : vector<8x128xf32>
    %c392 = arith.constant 392 : index
    %c0_180 = arith.constant 0 : index
    %350 = vector.load %arg3[%c392, %c0_180] : memref<944x128xf32, #tpu.memory_space<vmem>>, vector<128x128xf32>
    %cst_181 = arith.constant dense<0.000000e+00> : vector<8x128xf32>
    %351 = tpu.matmul %347, %350, %cst_181 {dimension_numbers = #tpu.dot_dimension_numbers<[1], [0], [0], [1], [0, 0, 1, 1], [], []>} : vector<8x128xf32>, vector<128x128xf32>, vector<8x128xf32> -> vector<8x128xf32>
    %352 = arith.addf %118, %351 : vector<8x128xf32>
    %c264 = arith.constant 264 : index
    %c0_182 = arith.constant 0 : index
    %353 = vector.load %arg3[%c264, %c0_182] : memref<944x128xf32, #tpu.memory_space<vmem>>, vector<128x128xf32>
    %cst_183 = arith.constant dense<0.000000e+00> : vector<8x128xf32>
    %354 = tpu.matmul %349, %353, %cst_183 {dimension_numbers = #tpu.dot_dimension_numbers<[1], [0], [0], [1], [0, 0, 1, 1], [], []>} : vector<8x128xf32>, vector<128x128xf32>, vector<8x128xf32> -> vector<8x128xf32>
    %355 = arith.addf %352, %354 : vector<8x128xf32>
    %356 = vector.extract_strided_slice %55 {offsets = [0, 0], sizes = [8, 1], strides = [1, 1]} : vector<8x2xf32> to vector<8x1xf32>
    %357 = vector.broadcast %356 : vector<8x1xf32> to vector<8x128xf32>
    %358 = arith.mulf %357, %355 : vector<8x128xf32>
    %359 = arith.addf %119, %358 : vector<8x128xf32>
    %cst_184 = arith.constant 0.000000e+00 : f32
    %360 = vector.broadcast %cst_184 : f32 to vector<16x128xf32>
    %cst_185 = arith.constant 0.000000e+00 : f32
    %361 = vector.broadcast %cst_185 : f32 to vector<16x128xf32>
    %c1_186 = arith.constant 1 : index
    %c0_187 = arith.constant 0 : index
    %c0_188 = arith.constant 0 : index
    %c0_189 = arith.constant 0 : index
    %362 = vector.load %arg0[%c1_186, %c0_187, %c0_188, %c0_189] : memref<2x9x16x16xf32, #tpu.memory_space<vmem>>, vector<1x1x16x16xf32>
    %363 = vector.shape_cast %362 : vector<1x1x16x16xf32> to vector<16x16xf32>
    %364 = vector.extract_strided_slice %79 {offsets = [0, 0], sizes = [1, 128], strides = [1, 1]} : vector<9x128xf32> to vector<1x128xf32>
    %365 = vector.broadcast %364 : vector<1x128xf32> to vector<16x128xf32>
    %366 = arith.mulf %108, %365 : vector<16x128xf32>
    %cst_190 = arith.constant dense<0.000000e+00> : vector<16x128xf32>
    %367 = tpu.matmul %363, %366, %cst_190 {dimension_numbers = #tpu.dot_dimension_numbers<[1], [0], [0], [1], [0, 0, 1, 1], [], []>} : vector<16x16xf32>, vector<16x128xf32>, vector<16x128xf32> -> vector<16x128xf32>
    %368 = arith.addf %360, %367 : vector<16x128xf32>
    %369 = vector.broadcast %364 : vector<1x128xf32> to vector<16x128xf32>
    %370 = arith.mulf %110, %369 : vector<16x128xf32>
    %cst_191 = arith.constant dense<0.000000e+00> : vector<16x128xf32>
    %371 = tpu.matmul %363, %370, %cst_191 {dimension_numbers = #tpu.dot_dimension_numbers<[1], [0], [0], [1], [0, 0, 1, 1], [], []>} : vector<16x16xf32>, vector<16x128xf32>, vector<16x128xf32> -> vector<16x128xf32>
    %372 = arith.addf %361, %371 : vector<16x128xf32>
    %c1_192 = arith.constant 1 : index
    %c1_193 = arith.constant 1 : index
    %c0_194 = arith.constant 0 : index
    %c0_195 = arith.constant 0 : index
    %373 = vector.load %arg0[%c1_192, %c1_193, %c0_194, %c0_195] : memref<2x9x16x16xf32, #tpu.memory_space<vmem>>, vector<1x1x16x16xf32>
    %374 = vector.shape_cast %373 : vector<1x1x16x16xf32> to vector<16x16xf32>
    %375 = vector.extract_strided_slice %79 {offsets = [1, 0], sizes = [1, 128], strides = [1, 1]} : vector<9x128xf32> to vector<1x128xf32>
    %376 = vector.broadcast %375 : vector<1x128xf32> to vector<16x128xf32>
    %377 = arith.mulf %108, %376 : vector<16x128xf32>
    %cst_196 = arith.constant dense<0.000000e+00> : vector<16x128xf32>
    %378 = tpu.matmul %374, %377, %cst_196 {dimension_numbers = #tpu.dot_dimension_numbers<[1], [0], [0], [1], [0, 0, 1, 1], [], []>} : vector<16x16xf32>, vector<16x128xf32>, vector<16x128xf32> -> vector<16x128xf32>
    %379 = arith.addf %368, %378 : vector<16x128xf32>
    %380 = vector.broadcast %375 : vector<1x128xf32> to vector<16x128xf32>
    %381 = arith.mulf %110, %380 : vector<16x128xf32>
    %cst_197 = arith.constant dense<0.000000e+00> : vector<16x128xf32>
    %382 = tpu.matmul %374, %381, %cst_197 {dimension_numbers = #tpu.dot_dimension_numbers<[1], [0], [0], [1], [0, 0, 1, 1], [], []>} : vector<16x16xf32>, vector<16x128xf32>, vector<16x128xf32> -> vector<16x128xf32>
    %383 = arith.addf %372, %382 : vector<16x128xf32>
    %c1_198 = arith.constant 1 : index
    %c2_199 = arith.constant 2 : index
    %c0_200 = arith.constant 0 : index
    %c0_201 = arith.constant 0 : index
    %384 = vector.load %arg0[%c1_198, %c2_199, %c0_200, %c0_201] : memref<2x9x16x16xf32, #tpu.memory_space<vmem>>, vector<1x1x16x16xf32>
    %385 = vector.shape_cast %384 : vector<1x1x16x16xf32> to vector<16x16xf32>
    %386 = vector.extract_strided_slice %79 {offsets = [2, 0], sizes = [1, 128], strides = [1, 1]} : vector<9x128xf32> to vector<1x128xf32>
    %387 = vector.broadcast %386 : vector<1x128xf32> to vector<16x128xf32>
    %388 = arith.mulf %108, %387 : vector<16x128xf32>
    %cst_202 = arith.constant dense<0.000000e+00> : vector<16x128xf32>
    %389 = tpu.matmul %385, %388, %cst_202 {dimension_numbers = #tpu.dot_dimension_numbers<[1], [0], [0], [1], [0, 0, 1, 1], [], []>} : vector<16x16xf32>, vector<16x128xf32>, vector<16x128xf32> -> vector<16x128xf32>
    %390 = arith.addf %379, %389 : vector<16x128xf32>
    %391 = vector.broadcast %386 : vector<1x128xf32> to vector<16x128xf32>
    %392 = arith.mulf %110, %391 : vector<16x128xf32>
    %cst_203 = arith.constant dense<0.000000e+00> : vector<16x128xf32>
    %393 = tpu.matmul %385, %392, %cst_203 {dimension_numbers = #tpu.dot_dimension_numbers<[1], [0], [0], [1], [0, 0, 1, 1], [], []>} : vector<16x16xf32>, vector<16x128xf32>, vector<16x128xf32> -> vector<16x128xf32>
    %394 = arith.addf %383, %393 : vector<16x128xf32>
    %c1_204 = arith.constant 1 : index
    %c3_205 = arith.constant 3 : index
    %c0_206 = arith.constant 0 : index
    %c0_207 = arith.constant 0 : index
    %395 = vector.load %arg0[%c1_204, %c3_205, %c0_206, %c0_207] : memref<2x9x16x16xf32, #tpu.memory_space<vmem>>, vector<1x1x16x16xf32>
    %396 = vector.shape_cast %395 : vector<1x1x16x16xf32> to vector<16x16xf32>
    %397 = vector.extract_strided_slice %79 {offsets = [3, 0], sizes = [1, 128], strides = [1, 1]} : vector<9x128xf32> to vector<1x128xf32>
    %398 = vector.broadcast %397 : vector<1x128xf32> to vector<16x128xf32>
    %399 = arith.mulf %108, %398 : vector<16x128xf32>
    %cst_208 = arith.constant dense<0.000000e+00> : vector<16x128xf32>
    %400 = tpu.matmul %396, %399, %cst_208 {dimension_numbers = #tpu.dot_dimension_numbers<[1], [0], [0], [1], [0, 0, 1, 1], [], []>} : vector<16x16xf32>, vector<16x128xf32>, vector<16x128xf32> -> vector<16x128xf32>
    %401 = arith.addf %390, %400 : vector<16x128xf32>
    %402 = vector.broadcast %397 : vector<1x128xf32> to vector<16x128xf32>
    %403 = arith.mulf %110, %402 : vector<16x128xf32>
    %cst_209 = arith.constant dense<0.000000e+00> : vector<16x128xf32>
    %404 = tpu.matmul %396, %403, %cst_209 {dimension_numbers = #tpu.dot_dimension_numbers<[1], [0], [0], [1], [0, 0, 1, 1], [], []>} : vector<16x16xf32>, vector<16x128xf32>, vector<16x128xf32> -> vector<16x128xf32>
    %405 = arith.addf %394, %404 : vector<16x128xf32>
    %c1_210 = arith.constant 1 : index
    %c4_211 = arith.constant 4 : index
    %c0_212 = arith.constant 0 : index
    %c0_213 = arith.constant 0 : index
    %406 = vector.load %arg0[%c1_210, %c4_211, %c0_212, %c0_213] : memref<2x9x16x16xf32, #tpu.memory_space<vmem>>, vector<1x1x16x16xf32>
    %407 = vector.shape_cast %406 : vector<1x1x16x16xf32> to vector<16x16xf32>
    %408 = vector.extract_strided_slice %79 {offsets = [4, 0], sizes = [1, 128], strides = [1, 1]} : vector<9x128xf32> to vector<1x128xf32>
    %409 = vector.broadcast %408 : vector<1x128xf32> to vector<16x128xf32>
    %410 = arith.mulf %108, %409 : vector<16x128xf32>
    %cst_214 = arith.constant dense<0.000000e+00> : vector<16x128xf32>
    %411 = tpu.matmul %407, %410, %cst_214 {dimension_numbers = #tpu.dot_dimension_numbers<[1], [0], [0], [1], [0, 0, 1, 1], [], []>} : vector<16x16xf32>, vector<16x128xf32>, vector<16x128xf32> -> vector<16x128xf32>
    %412 = arith.addf %401, %411 : vector<16x128xf32>
    %413 = vector.broadcast %408 : vector<1x128xf32> to vector<16x128xf32>
    %414 = arith.mulf %110, %413 : vector<16x128xf32>
    %cst_215 = arith.constant dense<0.000000e+00> : vector<16x128xf32>
    %415 = tpu.matmul %407, %414, %cst_215 {dimension_numbers = #tpu.dot_dimension_numbers<[1], [0], [0], [1], [0, 0, 1, 1], [], []>} : vector<16x16xf32>, vector<16x128xf32>, vector<16x128xf32> -> vector<16x128xf32>
    %416 = arith.addf %405, %415 : vector<16x128xf32>
    %c1_216 = arith.constant 1 : index
    %c5_217 = arith.constant 5 : index
    %c0_218 = arith.constant 0 : index
    %c0_219 = arith.constant 0 : index
    %417 = vector.load %arg0[%c1_216, %c5_217, %c0_218, %c0_219] : memref<2x9x16x16xf32, #tpu.memory_space<vmem>>, vector<1x1x16x16xf32>
    %418 = vector.shape_cast %417 : vector<1x1x16x16xf32> to vector<16x16xf32>
    %419 = vector.extract_strided_slice %79 {offsets = [5, 0], sizes = [1, 128], strides = [1, 1]} : vector<9x128xf32> to vector<1x128xf32>
    %420 = vector.broadcast %419 : vector<1x128xf32> to vector<16x128xf32>
    %421 = arith.mulf %108, %420 : vector<16x128xf32>
    %cst_220 = arith.constant dense<0.000000e+00> : vector<16x128xf32>
    %422 = tpu.matmul %418, %421, %cst_220 {dimension_numbers = #tpu.dot_dimension_numbers<[1], [0], [0], [1], [0, 0, 1, 1], [], []>} : vector<16x16xf32>, vector<16x128xf32>, vector<16x128xf32> -> vector<16x128xf32>
    %423 = arith.addf %412, %422 : vector<16x128xf32>
    %424 = vector.broadcast %419 : vector<1x128xf32> to vector<16x128xf32>
    %425 = arith.mulf %110, %424 : vector<16x128xf32>
    %cst_221 = arith.constant dense<0.000000e+00> : vector<16x128xf32>
    %426 = tpu.matmul %418, %425, %cst_221 {dimension_numbers = #tpu.dot_dimension_numbers<[1], [0], [0], [1], [0, 0, 1, 1], [], []>} : vector<16x16xf32>, vector<16x128xf32>, vector<16x128xf32> -> vector<16x128xf32>
    %427 = arith.addf %416, %426 : vector<16x128xf32>
    %c1_222 = arith.constant 1 : index
    %c6_223 = arith.constant 6 : index
    %c0_224 = arith.constant 0 : index
    %c0_225 = arith.constant 0 : index
    %428 = vector.load %arg0[%c1_222, %c6_223, %c0_224, %c0_225] : memref<2x9x16x16xf32, #tpu.memory_space<vmem>>, vector<1x1x16x16xf32>
    %429 = vector.shape_cast %428 : vector<1x1x16x16xf32> to vector<16x16xf32>
    %430 = vector.extract_strided_slice %79 {offsets = [6, 0], sizes = [1, 128], strides = [1, 1]} : vector<9x128xf32> to vector<1x128xf32>
    %431 = vector.broadcast %430 : vector<1x128xf32> to vector<16x128xf32>
    %432 = arith.mulf %108, %431 : vector<16x128xf32>
    %cst_226 = arith.constant dense<0.000000e+00> : vector<16x128xf32>
    %433 = tpu.matmul %429, %432, %cst_226 {dimension_numbers = #tpu.dot_dimension_numbers<[1], [0], [0], [1], [0, 0, 1, 1], [], []>} : vector<16x16xf32>, vector<16x128xf32>, vector<16x128xf32> -> vector<16x128xf32>
    %434 = arith.addf %423, %433 : vector<16x128xf32>
    %435 = vector.broadcast %430 : vector<1x128xf32> to vector<16x128xf32>
    %436 = arith.mulf %110, %435 : vector<16x128xf32>
    %cst_227 = arith.constant dense<0.000000e+00> : vector<16x128xf32>
    %437 = tpu.matmul %429, %436, %cst_227 {dimension_numbers = #tpu.dot_dimension_numbers<[1], [0], [0], [1], [0, 0, 1, 1], [], []>} : vector<16x16xf32>, vector<16x128xf32>, vector<16x128xf32> -> vector<16x128xf32>
    %438 = arith.addf %427, %437 : vector<16x128xf32>
    %c1_228 = arith.constant 1 : index
    %c7_229 = arith.constant 7 : index
    %c0_230 = arith.constant 0 : index
    %c0_231 = arith.constant 0 : index
    %439 = vector.load %arg0[%c1_228, %c7_229, %c0_230, %c0_231] : memref<2x9x16x16xf32, #tpu.memory_space<vmem>>, vector<1x1x16x16xf32>
    %440 = vector.shape_cast %439 : vector<1x1x16x16xf32> to vector<16x16xf32>
    %441 = vector.extract_strided_slice %79 {offsets = [7, 0], sizes = [1, 128], strides = [1, 1]} : vector<9x128xf32> to vector<1x128xf32>
    %442 = vector.broadcast %441 : vector<1x128xf32> to vector<16x128xf32>
    %443 = arith.mulf %108, %442 : vector<16x128xf32>
    %cst_232 = arith.constant dense<0.000000e+00> : vector<16x128xf32>
    %444 = tpu.matmul %440, %443, %cst_232 {dimension_numbers = #tpu.dot_dimension_numbers<[1], [0], [0], [1], [0, 0, 1, 1], [], []>} : vector<16x16xf32>, vector<16x128xf32>, vector<16x128xf32> -> vector<16x128xf32>
    %445 = arith.addf %434, %444 : vector<16x128xf32>
    %446 = vector.broadcast %441 : vector<1x128xf32> to vector<16x128xf32>
    %447 = arith.mulf %110, %446 : vector<16x128xf32>
    %cst_233 = arith.constant dense<0.000000e+00> : vector<16x128xf32>
    %448 = tpu.matmul %440, %447, %cst_233 {dimension_numbers = #tpu.dot_dimension_numbers<[1], [0], [0], [1], [0, 0, 1, 1], [], []>} : vector<16x16xf32>, vector<16x128xf32>, vector<16x128xf32> -> vector<16x128xf32>
    %449 = arith.addf %438, %448 : vector<16x128xf32>
    %c1_234 = arith.constant 1 : index
    %c8_235 = arith.constant 8 : index
    %c0_236 = arith.constant 0 : index
    %c0_237 = arith.constant 0 : index
    %450 = vector.load %arg0[%c1_234, %c8_235, %c0_236, %c0_237] : memref<2x9x16x16xf32, #tpu.memory_space<vmem>>, vector<1x1x16x16xf32>
    %451 = vector.shape_cast %450 : vector<1x1x16x16xf32> to vector<16x16xf32>
    %452 = vector.extract_strided_slice %79 {offsets = [8, 0], sizes = [1, 128], strides = [1, 1]} : vector<9x128xf32> to vector<1x128xf32>
    %453 = vector.broadcast %452 : vector<1x128xf32> to vector<16x128xf32>
    %454 = arith.mulf %108, %453 : vector<16x128xf32>
    %cst_238 = arith.constant dense<0.000000e+00> : vector<16x128xf32>
    %455 = tpu.matmul %451, %454, %cst_238 {dimension_numbers = #tpu.dot_dimension_numbers<[1], [0], [0], [1], [0, 0, 1, 1], [], []>} : vector<16x16xf32>, vector<16x128xf32>, vector<16x128xf32> -> vector<16x128xf32>
    %456 = arith.addf %445, %455 : vector<16x128xf32>
    %457 = vector.broadcast %452 : vector<1x128xf32> to vector<16x128xf32>
    %458 = arith.mulf %110, %457 : vector<16x128xf32>
    %cst_239 = arith.constant dense<0.000000e+00> : vector<16x128xf32>
    %459 = tpu.matmul %451, %458, %cst_239 {dimension_numbers = #tpu.dot_dimension_numbers<[1], [0], [0], [1], [0, 0, 1, 1], [], []>} : vector<16x16xf32>, vector<16x128xf32>, vector<16x128xf32> -> vector<16x128xf32>
    %460 = arith.addf %449, %459 : vector<16x128xf32>
    %c600_240 = arith.constant 600 : index
    %c0_241 = arith.constant 0 : index
    %461 = vector.load %arg3[%c600_240, %c0_241] : memref<944x128xf32, #tpu.memory_space<vmem>>, vector<128x128xf32>
    %c728_242 = arith.constant 728 : index
    %c0_243 = arith.constant 0 : index
    %462 = vector.load %arg3[%c728_242, %c0_243] : memref<944x128xf32, #tpu.memory_space<vmem>>, vector<1x128xf32>
    %cst_244 = arith.constant dense<0.000000e+00> : vector<16x128xf32>
    %463 = tpu.matmul %456, %461, %cst_244 {dimension_numbers = #tpu.dot_dimension_numbers<[1], [0], [0], [1], [0, 0, 1, 1], [], []>} : vector<16x128xf32>, vector<128x128xf32>, vector<16x128xf32> -> vector<16x128xf32>
    %464 = vector.broadcast %462 : vector<1x128xf32> to vector<16x128xf32>
    %465 = arith.addf %463, %464 : vector<16x128xf32>
    %cst_245 = arith.constant 0.000000e+00 : f32
    %466 = vector.broadcast %cst_245 : f32 to vector<16x128xf32>
    %467 = arith.maximumf %465, %466 : vector<16x128xf32>
    %cst_246 = arith.constant dense<0.000000e+00> : vector<16x128xf32>
    %468 = tpu.matmul %460, %461, %cst_246 {dimension_numbers = #tpu.dot_dimension_numbers<[1], [0], [0], [1], [0, 0, 1, 1], [], []>} : vector<16x128xf32>, vector<128x128xf32>, vector<16x128xf32> -> vector<16x128xf32>
    %469 = vector.broadcast %462 : vector<1x128xf32> to vector<16x128xf32>
    %470 = arith.addf %468, %469 : vector<16x128xf32>
    %cst_247 = arith.constant 0.000000e+00 : f32
    %471 = vector.broadcast %cst_247 : f32 to vector<16x128xf32>
    %472 = arith.maximumf %470, %471 : vector<16x128xf32>
    %cst_248 = arith.constant 0.000000e+00 : f32
    %473 = vector.broadcast %cst_248 : f32 to vector<16x128xf32>
    %cst_249 = arith.constant 0.000000e+00 : f32
    %474 = vector.broadcast %cst_249 : f32 to vector<16x128xf32>
    %c1_250 = arith.constant 1 : index
    %c0_251 = arith.constant 0 : index
    %c0_252 = arith.constant 0 : index
    %c0_253 = arith.constant 0 : index
    %475 = vector.load %arg0[%c1_250, %c0_251, %c0_252, %c0_253] : memref<2x9x16x16xf32, #tpu.memory_space<vmem>>, vector<1x1x16x16xf32>
    %476 = vector.shape_cast %475 : vector<1x1x16x16xf32> to vector<16x16xf32>
    %477 = vector.extract_strided_slice %102 {offsets = [0, 0], sizes = [1, 128], strides = [1, 1]} : vector<9x128xf32> to vector<1x128xf32>
    %478 = vector.broadcast %477 : vector<1x128xf32> to vector<16x128xf32>
    %479 = arith.mulf %467, %478 : vector<16x128xf32>
    %cst_254 = arith.constant dense<0.000000e+00> : vector<16x128xf32>
    %480 = tpu.matmul %476, %479, %cst_254 {dimension_numbers = #tpu.dot_dimension_numbers<[1], [0], [0], [1], [0, 0, 1, 1], [], []>} : vector<16x16xf32>, vector<16x128xf32>, vector<16x128xf32> -> vector<16x128xf32>
    %481 = arith.addf %473, %480 : vector<16x128xf32>
    %482 = vector.broadcast %477 : vector<1x128xf32> to vector<16x128xf32>
    %483 = arith.mulf %472, %482 : vector<16x128xf32>
    %cst_255 = arith.constant dense<0.000000e+00> : vector<16x128xf32>
    %484 = tpu.matmul %476, %483, %cst_255 {dimension_numbers = #tpu.dot_dimension_numbers<[1], [0], [0], [1], [0, 0, 1, 1], [], []>} : vector<16x16xf32>, vector<16x128xf32>, vector<16x128xf32> -> vector<16x128xf32>
    %485 = arith.addf %474, %484 : vector<16x128xf32>
    %c1_256 = arith.constant 1 : index
    %c1_257 = arith.constant 1 : index
    %c0_258 = arith.constant 0 : index
    %c0_259 = arith.constant 0 : index
    %486 = vector.load %arg0[%c1_256, %c1_257, %c0_258, %c0_259] : memref<2x9x16x16xf32, #tpu.memory_space<vmem>>, vector<1x1x16x16xf32>
    %487 = vector.shape_cast %486 : vector<1x1x16x16xf32> to vector<16x16xf32>
    %488 = vector.extract_strided_slice %102 {offsets = [1, 0], sizes = [1, 128], strides = [1, 1]} : vector<9x128xf32> to vector<1x128xf32>
    %489 = vector.broadcast %488 : vector<1x128xf32> to vector<16x128xf32>
    %490 = arith.mulf %467, %489 : vector<16x128xf32>
    %cst_260 = arith.constant dense<0.000000e+00> : vector<16x128xf32>
    %491 = tpu.matmul %487, %490, %cst_260 {dimension_numbers = #tpu.dot_dimension_numbers<[1], [0], [0], [1], [0, 0, 1, 1], [], []>} : vector<16x16xf32>, vector<16x128xf32>, vector<16x128xf32> -> vector<16x128xf32>
    %492 = arith.addf %481, %491 : vector<16x128xf32>
    %493 = vector.broadcast %488 : vector<1x128xf32> to vector<16x128xf32>
    %494 = arith.mulf %472, %493 : vector<16x128xf32>
    %cst_261 = arith.constant dense<0.000000e+00> : vector<16x128xf32>
    %495 = tpu.matmul %487, %494, %cst_261 {dimension_numbers = #tpu.dot_dimension_numbers<[1], [0], [0], [1], [0, 0, 1, 1], [], []>} : vector<16x16xf32>, vector<16x128xf32>, vector<16x128xf32> -> vector<16x128xf32>
    %496 = arith.addf %485, %495 : vector<16x128xf32>
    %c1_262 = arith.constant 1 : index
    %c2_263 = arith.constant 2 : index
    %c0_264 = arith.constant 0 : index
    %c0_265 = arith.constant 0 : index
    %497 = vector.load %arg0[%c1_262, %c2_263, %c0_264, %c0_265] : memref<2x9x16x16xf32, #tpu.memory_space<vmem>>, vector<1x1x16x16xf32>
    %498 = vector.shape_cast %497 : vector<1x1x16x16xf32> to vector<16x16xf32>
    %499 = vector.extract_strided_slice %102 {offsets = [2, 0], sizes = [1, 128], strides = [1, 1]} : vector<9x128xf32> to vector<1x128xf32>
    %500 = vector.broadcast %499 : vector<1x128xf32> to vector<16x128xf32>
    %501 = arith.mulf %467, %500 : vector<16x128xf32>
    %cst_266 = arith.constant dense<0.000000e+00> : vector<16x128xf32>
    %502 = tpu.matmul %498, %501, %cst_266 {dimension_numbers = #tpu.dot_dimension_numbers<[1], [0], [0], [1], [0, 0, 1, 1], [], []>} : vector<16x16xf32>, vector<16x128xf32>, vector<16x128xf32> -> vector<16x128xf32>
    %503 = arith.addf %492, %502 : vector<16x128xf32>
    %504 = vector.broadcast %499 : vector<1x128xf32> to vector<16x128xf32>
    %505 = arith.mulf %472, %504 : vector<16x128xf32>
    %cst_267 = arith.constant dense<0.000000e+00> : vector<16x128xf32>
    %506 = tpu.matmul %498, %505, %cst_267 {dimension_numbers = #tpu.dot_dimension_numbers<[1], [0], [0], [1], [0, 0, 1, 1], [], []>} : vector<16x16xf32>, vector<16x128xf32>, vector<16x128xf32> -> vector<16x128xf32>
    %507 = arith.addf %496, %506 : vector<16x128xf32>
    %c1_268 = arith.constant 1 : index
    %c3_269 = arith.constant 3 : index
    %c0_270 = arith.constant 0 : index
    %c0_271 = arith.constant 0 : index
    %508 = vector.load %arg0[%c1_268, %c3_269, %c0_270, %c0_271] : memref<2x9x16x16xf32, #tpu.memory_space<vmem>>, vector<1x1x16x16xf32>
    %509 = vector.shape_cast %508 : vector<1x1x16x16xf32> to vector<16x16xf32>
    %510 = vector.extract_strided_slice %102 {offsets = [3, 0], sizes = [1, 128], strides = [1, 1]} : vector<9x128xf32> to vector<1x128xf32>
    %511 = vector.broadcast %510 : vector<1x128xf32> to vector<16x128xf32>
    %512 = arith.mulf %467, %511 : vector<16x128xf32>
    %cst_272 = arith.constant dense<0.000000e+00> : vector<16x128xf32>
    %513 = tpu.matmul %509, %512, %cst_272 {dimension_numbers = #tpu.dot_dimension_numbers<[1], [0], [0], [1], [0, 0, 1, 1], [], []>} : vector<16x16xf32>, vector<16x128xf32>, vector<16x128xf32> -> vector<16x128xf32>
    %514 = arith.addf %503, %513 : vector<16x128xf32>
    %515 = vector.broadcast %510 : vector<1x128xf32> to vector<16x128xf32>
    %516 = arith.mulf %472, %515 : vector<16x128xf32>
    %cst_273 = arith.constant dense<0.000000e+00> : vector<16x128xf32>
    %517 = tpu.matmul %509, %516, %cst_273 {dimension_numbers = #tpu.dot_dimension_numbers<[1], [0], [0], [1], [0, 0, 1, 1], [], []>} : vector<16x16xf32>, vector<16x128xf32>, vector<16x128xf32> -> vector<16x128xf32>
    %518 = arith.addf %507, %517 : vector<16x128xf32>
    %c1_274 = arith.constant 1 : index
    %c4_275 = arith.constant 4 : index
    %c0_276 = arith.constant 0 : index
    %c0_277 = arith.constant 0 : index
    %519 = vector.load %arg0[%c1_274, %c4_275, %c0_276, %c0_277] : memref<2x9x16x16xf32, #tpu.memory_space<vmem>>, vector<1x1x16x16xf32>
    %520 = vector.shape_cast %519 : vector<1x1x16x16xf32> to vector<16x16xf32>
    %521 = vector.extract_strided_slice %102 {offsets = [4, 0], sizes = [1, 128], strides = [1, 1]} : vector<9x128xf32> to vector<1x128xf32>
    %522 = vector.broadcast %521 : vector<1x128xf32> to vector<16x128xf32>
    %523 = arith.mulf %467, %522 : vector<16x128xf32>
    %cst_278 = arith.constant dense<0.000000e+00> : vector<16x128xf32>
    %524 = tpu.matmul %520, %523, %cst_278 {dimension_numbers = #tpu.dot_dimension_numbers<[1], [0], [0], [1], [0, 0, 1, 1], [], []>} : vector<16x16xf32>, vector<16x128xf32>, vector<16x128xf32> -> vector<16x128xf32>
    %525 = arith.addf %514, %524 : vector<16x128xf32>
    %526 = vector.broadcast %521 : vector<1x128xf32> to vector<16x128xf32>
    %527 = arith.mulf %472, %526 : vector<16x128xf32>
    %cst_279 = arith.constant dense<0.000000e+00> : vector<16x128xf32>
    %528 = tpu.matmul %520, %527, %cst_279 {dimension_numbers = #tpu.dot_dimension_numbers<[1], [0], [0], [1], [0, 0, 1, 1], [], []>} : vector<16x16xf32>, vector<16x128xf32>, vector<16x128xf32> -> vector<16x128xf32>
    %529 = arith.addf %518, %528 : vector<16x128xf32>
    %c1_280 = arith.constant 1 : index
    %c5_281 = arith.constant 5 : index
    %c0_282 = arith.constant 0 : index
    %c0_283 = arith.constant 0 : index
    %530 = vector.load %arg0[%c1_280, %c5_281, %c0_282, %c0_283] : memref<2x9x16x16xf32, #tpu.memory_space<vmem>>, vector<1x1x16x16xf32>
    %531 = vector.shape_cast %530 : vector<1x1x16x16xf32> to vector<16x16xf32>
    %532 = vector.extract_strided_slice %102 {offsets = [5, 0], sizes = [1, 128], strides = [1, 1]} : vector<9x128xf32> to vector<1x128xf32>
    %533 = vector.broadcast %532 : vector<1x128xf32> to vector<16x128xf32>
    %534 = arith.mulf %467, %533 : vector<16x128xf32>
    %cst_284 = arith.constant dense<0.000000e+00> : vector<16x128xf32>
    %535 = tpu.matmul %531, %534, %cst_284 {dimension_numbers = #tpu.dot_dimension_numbers<[1], [0], [0], [1], [0, 0, 1, 1], [], []>} : vector<16x16xf32>, vector<16x128xf32>, vector<16x128xf32> -> vector<16x128xf32>
    %536 = arith.addf %525, %535 : vector<16x128xf32>
    %537 = vector.broadcast %532 : vector<1x128xf32> to vector<16x128xf32>
    %538 = arith.mulf %472, %537 : vector<16x128xf32>
    %cst_285 = arith.constant dense<0.000000e+00> : vector<16x128xf32>
    %539 = tpu.matmul %531, %538, %cst_285 {dimension_numbers = #tpu.dot_dimension_numbers<[1], [0], [0], [1], [0, 0, 1, 1], [], []>} : vector<16x16xf32>, vector<16x128xf32>, vector<16x128xf32> -> vector<16x128xf32>
    %540 = arith.addf %529, %539 : vector<16x128xf32>
    %c1_286 = arith.constant 1 : index
    %c6_287 = arith.constant 6 : index
    %c0_288 = arith.constant 0 : index
    %c0_289 = arith.constant 0 : index
    %541 = vector.load %arg0[%c1_286, %c6_287, %c0_288, %c0_289] : memref<2x9x16x16xf32, #tpu.memory_space<vmem>>, vector<1x1x16x16xf32>
    %542 = vector.shape_cast %541 : vector<1x1x16x16xf32> to vector<16x16xf32>
    %543 = vector.extract_strided_slice %102 {offsets = [6, 0], sizes = [1, 128], strides = [1, 1]} : vector<9x128xf32> to vector<1x128xf32>
    %544 = vector.broadcast %543 : vector<1x128xf32> to vector<16x128xf32>
    %545 = arith.mulf %467, %544 : vector<16x128xf32>
    %cst_290 = arith.constant dense<0.000000e+00> : vector<16x128xf32>
    %546 = tpu.matmul %542, %545, %cst_290 {dimension_numbers = #tpu.dot_dimension_numbers<[1], [0], [0], [1], [0, 0, 1, 1], [], []>} : vector<16x16xf32>, vector<16x128xf32>, vector<16x128xf32> -> vector<16x128xf32>
    %547 = arith.addf %536, %546 : vector<16x128xf32>
    %548 = vector.broadcast %543 : vector<1x128xf32> to vector<16x128xf32>
    %549 = arith.mulf %472, %548 : vector<16x128xf32>
    %cst_291 = arith.constant dense<0.000000e+00> : vector<16x128xf32>
    %550 = tpu.matmul %542, %549, %cst_291 {dimension_numbers = #tpu.dot_dimension_numbers<[1], [0], [0], [1], [0, 0, 1, 1], [], []>} : vector<16x16xf32>, vector<16x128xf32>, vector<16x128xf32> -> vector<16x128xf32>
    %551 = arith.addf %540, %550 : vector<16x128xf32>
    %c1_292 = arith.constant 1 : index
    %c7_293 = arith.constant 7 : index
    %c0_294 = arith.constant 0 : index
    %c0_295 = arith.constant 0 : index
    %552 = vector.load %arg0[%c1_292, %c7_293, %c0_294, %c0_295] : memref<2x9x16x16xf32, #tpu.memory_space<vmem>>, vector<1x1x16x16xf32>
    %553 = vector.shape_cast %552 : vector<1x1x16x16xf32> to vector<16x16xf32>
    %554 = vector.extract_strided_slice %102 {offsets = [7, 0], sizes = [1, 128], strides = [1, 1]} : vector<9x128xf32> to vector<1x128xf32>
    %555 = vector.broadcast %554 : vector<1x128xf32> to vector<16x128xf32>
    %556 = arith.mulf %467, %555 : vector<16x128xf32>
    %cst_296 = arith.constant dense<0.000000e+00> : vector<16x128xf32>
    %557 = tpu.matmul %553, %556, %cst_296 {dimension_numbers = #tpu.dot_dimension_numbers<[1], [0], [0], [1], [0, 0, 1, 1], [], []>} : vector<16x16xf32>, vector<16x128xf32>, vector<16x128xf32> -> vector<16x128xf32>
    %558 = arith.addf %547, %557 : vector<16x128xf32>
    %559 = vector.broadcast %554 : vector<1x128xf32> to vector<16x128xf32>
    %560 = arith.mulf %472, %559 : vector<16x128xf32>
    %cst_297 = arith.constant dense<0.000000e+00> : vector<16x128xf32>
    %561 = tpu.matmul %553, %560, %cst_297 {dimension_numbers = #tpu.dot_dimension_numbers<[1], [0], [0], [1], [0, 0, 1, 1], [], []>} : vector<16x16xf32>, vector<16x128xf32>, vector<16x128xf32> -> vector<16x128xf32>
    %562 = arith.addf %551, %561 : vector<16x128xf32>
    %c1_298 = arith.constant 1 : index
    %c8_299 = arith.constant 8 : index
    %c0_300 = arith.constant 0 : index
    %c0_301 = arith.constant 0 : index
    %563 = vector.load %arg0[%c1_298, %c8_299, %c0_300, %c0_301] : memref<2x9x16x16xf32, #tpu.memory_space<vmem>>, vector<1x1x16x16xf32>
    %564 = vector.shape_cast %563 : vector<1x1x16x16xf32> to vector<16x16xf32>
    %565 = vector.extract_strided_slice %102 {offsets = [8, 0], sizes = [1, 128], strides = [1, 1]} : vector<9x128xf32> to vector<1x128xf32>
    %566 = vector.broadcast %565 : vector<1x128xf32> to vector<16x128xf32>
    %567 = arith.mulf %467, %566 : vector<16x128xf32>
    %cst_302 = arith.constant dense<0.000000e+00> : vector<16x128xf32>
    %568 = tpu.matmul %564, %567, %cst_302 {dimension_numbers = #tpu.dot_dimension_numbers<[1], [0], [0], [1], [0, 0, 1, 1], [], []>} : vector<16x16xf32>, vector<16x128xf32>, vector<16x128xf32> -> vector<16x128xf32>
    %569 = arith.addf %558, %568 : vector<16x128xf32>
    %570 = vector.broadcast %565 : vector<1x128xf32> to vector<16x128xf32>
    %571 = arith.mulf %472, %570 : vector<16x128xf32>
    %cst_303 = arith.constant dense<0.000000e+00> : vector<16x128xf32>
    %572 = tpu.matmul %564, %571, %cst_303 {dimension_numbers = #tpu.dot_dimension_numbers<[1], [0], [0], [1], [0, 0, 1, 1], [], []>} : vector<16x16xf32>, vector<16x128xf32>, vector<16x128xf32> -> vector<16x128xf32>
    %573 = arith.addf %562, %572 : vector<16x128xf32>
    %c808_304 = arith.constant 808 : index
    %c0_305 = arith.constant 0 : index
    %574 = vector.load %arg3[%c808_304, %c0_305] : memref<944x128xf32, #tpu.memory_space<vmem>>, vector<128x128xf32>
    %c936_306 = arith.constant 936 : index
    %c0_307 = arith.constant 0 : index
    %575 = vector.load %arg3[%c936_306, %c0_307] : memref<944x128xf32, #tpu.memory_space<vmem>>, vector<1x128xf32>
    %cst_308 = arith.constant dense<0.000000e+00> : vector<16x128xf32>
    %576 = tpu.matmul %569, %574, %cst_308 {dimension_numbers = #tpu.dot_dimension_numbers<[1], [0], [0], [1], [0, 0, 1, 1], [], []>} : vector<16x128xf32>, vector<128x128xf32>, vector<16x128xf32> -> vector<16x128xf32>
    %577 = vector.broadcast %575 : vector<1x128xf32> to vector<16x128xf32>
    %578 = arith.addf %576, %577 : vector<16x128xf32>
    %cst_309 = arith.constant 0.000000e+00 : f32
    %579 = vector.broadcast %cst_309 : f32 to vector<16x128xf32>
    %580 = arith.maximumf %578, %579 : vector<16x128xf32>
    %cst_310 = arith.constant dense<0.000000e+00> : vector<16x128xf32>
    %581 = tpu.matmul %573, %574, %cst_310 {dimension_numbers = #tpu.dot_dimension_numbers<[1], [0], [0], [1], [0, 0, 1, 1], [], []>} : vector<16x128xf32>, vector<128x128xf32>, vector<16x128xf32> -> vector<16x128xf32>
    %582 = vector.broadcast %575 : vector<1x128xf32> to vector<16x128xf32>
    %583 = arith.addf %581, %582 : vector<16x128xf32>
    %cst_311 = arith.constant 0.000000e+00 : f32
    %584 = vector.broadcast %cst_311 : f32 to vector<16x128xf32>
    %585 = arith.maximumf %583, %584 : vector<16x128xf32>
    %cst_312 = arith.constant dense<0.000000e+00> : vector<8x128xf32>
    %586 = tpu.matmul %15, %580, %cst_312 {dimension_numbers = #tpu.dot_dimension_numbers<[1], [0], [0], [1], [0, 0, 1, 1], [], []>} : vector<8x16xf32>, vector<16x128xf32>, vector<8x128xf32> -> vector<8x128xf32>
    %587 = arith.mulf %586, %56 : vector<8x128xf32>
    %cst_313 = arith.constant dense<0.000000e+00> : vector<8x128xf32>
    %588 = tpu.matmul %11, %585, %cst_313 {dimension_numbers = #tpu.dot_dimension_numbers<[1], [0], [0], [1], [0, 0, 1, 1], [], []>} : vector<8x16xf32>, vector<16x128xf32>, vector<8x128xf32> -> vector<8x128xf32>
    %589 = arith.mulf %588, %56 : vector<8x128xf32>
    %c392_314 = arith.constant 392 : index
    %c0_315 = arith.constant 0 : index
    %590 = vector.load %arg3[%c392_314, %c0_315] : memref<944x128xf32, #tpu.memory_space<vmem>>, vector<128x128xf32>
    %cst_316 = arith.constant dense<0.000000e+00> : vector<8x128xf32>
    %591 = tpu.matmul %587, %590, %cst_316 {dimension_numbers = #tpu.dot_dimension_numbers<[1], [0], [0], [1], [0, 0, 1, 1], [], []>} : vector<8x128xf32>, vector<128x128xf32>, vector<8x128xf32> -> vector<8x128xf32>
    %592 = arith.addf %118, %591 : vector<8x128xf32>
    %c264_317 = arith.constant 264 : index
    %c0_318 = arith.constant 0 : index
    %593 = vector.load %arg3[%c264_317, %c0_318] : memref<944x128xf32, #tpu.memory_space<vmem>>, vector<128x128xf32>
    %cst_319 = arith.constant dense<0.000000e+00> : vector<8x128xf32>
    %594 = tpu.matmul %589, %593, %cst_319 {dimension_numbers = #tpu.dot_dimension_numbers<[1], [0], [0], [1], [0, 0, 1, 1], [], []>} : vector<8x128xf32>, vector<128x128xf32>, vector<8x128xf32> -> vector<8x128xf32>
    %595 = arith.addf %592, %594 : vector<8x128xf32>
    %596 = vector.extract_strided_slice %55 {offsets = [0, 1], sizes = [8, 1], strides = [1, 1]} : vector<8x2xf32> to vector<8x1xf32>
    %597 = vector.broadcast %596 : vector<8x1xf32> to vector<8x128xf32>
    %598 = arith.mulf %597, %595 : vector<8x128xf32>
    %599 = arith.addf %359, %598 : vector<8x128xf32>
    %c0_320 = arith.constant 0 : index
    %c0_321 = arith.constant 0 : index
    %600 = vector.load %arg4[%c0_320, %c0_321] : memref<8x128xf32, #tpu.memory_space<vmem>>, vector<8x128xf32>
    tpu.vector_store %arg4[%c0_320, %c0_321], %599 {strides = array<i32>} : memref<8x128xf32, #tpu.memory_space<vmem>>, vector<8x128xf32>,
    return
  }
}

</mosaic_0001>

<llo_original>
// kernel: moe_forward.1
$region0: #{moe_forward.1}
  #allocation0 [shape = 'u32[]', space=smem, size = 0x4, offset = 0x4, fixed_abs, tag = 'smem constant byte address 0x4 - core index']
  #allocation1 [shape = 'u32[144,128]{1,0:T(1,128)}', space=vmem, size = 0x12000, scoped, tag = 'internal scratch']
  %s0 = inlined_call_operand.vmem [shape: f32[2,9,16,16], index: 0, kind: input, shape index: {}]
  %s1 = inlined_call_operand.vmem [shape: s32[2,8], index: 1, kind: input, shape index: {}]
  %s2 = inlined_call_operand.vmem [shape: s32[8,2], index: 2, kind: input, shape index: {}]
  %s3 = inlined_call_operand.hbm [shape: f32[944,128], index: 3, kind: input, shape index: {}]
  %s4 = inlined_call_operand.vmem [shape: f32[8,128], index: 4, kind: output, shape index: {}]
  %s5 = sld [smem:[#allocation0]]
  $region30: #{moe_forward.1} parent=0
    _
  %s7 = ssub.s32 1, %s5
  %s8 = scalar_select 0, %s7, %s5
  $region1: #{moe_forward.1} parent=0
    #allocation2 [shape = 'u8[483328]{0}', space=vmem, size = 0x76000, scoped, tag = 'input window, operand 3, single buffered']
    #allocation3 [shape = 's32[1]{0}', space=sflag, size = 0x4, scoped, tag = 'scoped memory for moe_forward.1']
    %9 = vsyncpa [#allocation3], 0
    // Predicated region
    $region2: #{moe_forward.1} parent=1 // pred_check
      _
    $region3: #{moe_forward.1} parent=1 // pred_check_branch
      %11 = sbr.rel (0) target = $region5
    $region4: #{moe_forward.1} parent=1 // pred_region
      _
    $region5: #{moe_forward.1} parent=1 // pred_fallthru
      _
    // Predicated region
    $region6: #{moe_forward.1} parent=1 // pred_check
      _
    $region7: #{moe_forward.1} parent=1 // pred_check_branch
      %13 = sbr.rel (0) target = $region9
    $region8: #{moe_forward.1} parent=1 // pred_region
      _
    $region9: #{moe_forward.1} parent=1 // pred_fallthru
      _
    // Predicated region
    $region10: #{moe_forward.1} parent=1 // pred_check
      _
    $region11: #{moe_forward.1} parent=1 // pred_check_branch
      %15 = sbr.rel (0) target = $region13
    $region12: #{moe_forward.1} parent=1 // pred_region
      _
    $region13: #{moe_forward.1} parent=1 // pred_fallthru
      _
    // Predicated region
    $region14: #{moe_forward.1} parent=1 // pred_check
      _
    $region15: #{moe_forward.1} parent=1 // pred_check_branch
      %17 = sbr.rel (0) target = $region17
    $region16: #{moe_forward.1} parent=1 // pred_region
      %s19 = ssub.s32 15104, 15104
      %20 = vsyncadd [#allocation3], %s19
      %s21 = sshll.u32 [#allocation2], 4
      %s22 = int_to_ptr.vmem [resolvable:$true] %s21
      %27 = dma.hbm_to_vmem [thread:$0]  %s3, 15104, %s22, [#allocation3], 128, 128, 8
    $region17: #{moe_forward.1} parent=1 // pred_fallthru
      _
    // Predicated region
    $region18: #{moe_forward.1} parent=1 // pred_check
      _
    $region19: #{moe_forward.1} parent=1 // pred_check_branch
      %29 = sbr.rel (0) target = $region21
    $region20: #{moe_forward.1} parent=1 // pred_region
      %30 = dma.done [#allocation3], 15104
    $region21: #{moe_forward.1} parent=1 // pred_fallthru
      _
    %v31 = vld [vmem:[%s2] sm:$0xff]
    %v32 = vld [vmem:[%s1] sm:$0x3]
    %v33 = vlaneseq
    %v34 = vand.u32 %v33, 127
    %v35 = vlaneseq
    %v36 = vshrl.u32 %v35, 7
    %v37 = vadd.s32 %v36, 8
    %38 = vset.pattern.permute.xlu0 0
    %39 = vperm.xlu0 %38, %v31
    %v40 = vpop.permute.xlu0 %39
    %vm41 = vcmp.eq.s32.totalorder %v34, %v40
    %v42 = vsel %vm41, 1, 0
    %v43 = vcvt.s32.f32 %v42
    %44 = vset.pattern.permute.xlu0 1
    %45 = vperm.xlu0 %44, %v31
    %v46 = vpop.permute.xlu0 %45
    %vm47 = vcmp.eq.s32.totalorder %v34, %v46
    %v48 = vsel %vm47, 1, 0
    %v49 = vcvt.s32.f32 %v48
    %v50 = vlaneseq
    %v51 = vshrl.u32 %v50, 7
    %v52 = vsub.s32 0, %v51
    %v53 = vrot.slane %v32, %v52
    %vm54 = vcmp.eq.s32.totalorder %v36, %v53
    %vm55 = vcmp.eq.s32.totalorder %v37, %v53
    %v56 = vsel %vm54, 1, 0
    %v57 = vsel %vm55, 1, 0
    %v58 = vcvt.s32.f32 %v56
    %v59 = vcvt.s32.f32 %v57
    %v60 = vlaneseq
    %v61 = vshrl.u32 %v60, 7
    %v62 = vsub.s32 1, %v61
    %v63 = vrot.slane %v32, %v62
    %vm64 = vcmp.eq.s32.totalorder %v36, %v63
    %vm65 = vcmp.eq.s32.totalorder %v37, %v63
    %v66 = vsel %vm64, 1, 0
    %v67 = vsel %vm65, 1, 0
    %v68 = vcvt.s32.f32 %v66
    %v69 = vcvt.s32.f32 %v67
    %v70 = vld [vmem:[#allocation2] sm:$0xff]
    %v71 = vld [vmem:[#allocation2 + $0x8] sm:$0xff]
    %vm72 = vcmask 130048
    %v74 = vsel %vm72, %v43, 0
    %76 = vmatprep.subr.mxu0 0.0
    %77 = vmatpush1.msra.mxu0 0.0
    %78 = vmatprep.subr.mxu0 0.0
    %79 = vmatpush1.msra.mxu0 0.0
    %80 = vmatprep.subr.mxu0 0.0
    %81 = vmatpush1.msra.mxu0 0.0
    %82 = vmatprep.subr.mxu0 0.0
    %83 = vmatpush1.msra.mxu0 0.0
    %84 = vmatprep.subr.mxu0 0.0
    %85 = vmatpush1.msra.mxu0 0.0
    %86 = vmatprep.subr.mxu0 0.0
    %87 = vmatpush1.msra.mxu0 0.0
    %88 = vmatprep.subr.mxu0 0.0
    %89 = vmatpush1.msra.mxu0 0.0
    %90 = vmatprep.subr.mxu0 0.0
    %91 = vmatpush1.msra.mxu0 0.0
    %92 = vmatprep.subr.mxu0 0.0
    %93 = vmatpush1.msra.mxu0 0.0
    %94 = vmatprep.subr.mxu0 0.0
    %95 = vmatpush1.msra.mxu0 0.0
    %96 = vmatprep.subr.mxu0 0.0
    %97 = vmatpush1.msra.mxu0 0.0
    %98 = vmatprep.subr.mxu0 0.0
    %99 = vmatpush1.msra.mxu0 0.0
    %100 = vmatprep.subr.mxu0 0.0
    %101 = vmatpush1.msra.mxu0 0.0
    %102 = vmatprep.subr.mxu0 0.0
    %103 = vmatpush1.msra.mxu0 0.0
    %104 = vmatprep.subr.mxu0 0.0
    %105 = vmatpush1.msra.mxu0 %v71
    %106 = vmatprep.subr.mxu0 0.0
    %107 = vmatpush1.msra.mxu0 %v70
    %108 = vmatprep.subr.mxu0 0.0
    %109 = vmatpush2.msra.mxu0 0.0
    %110 = vmatprep.subr.mxu0 0.0
    %111 = vmatpush2.msra.mxu0 0.0
    %112 = vmatprep.subr.mxu0 0.0
    %113 = vmatpush2.msra.mxu0 0.0
    %114 = vmatprep.subr.mxu0 0.0
    %115 = vmatpush2.msra.mxu0 0.0
    %116 = vmatprep.subr.mxu0 0.0
    %117 = vmatpush2.msra.mxu0 0.0
    %118 = vmatprep.subr.mxu0 0.0
    %119 = vmatpush2.msra.mxu0 0.0
    %120 = vmatprep.subr.mxu0 0.0
    %121 = vmatpush2.msra.mxu0 0.0
    %122 = vmatprep.subr.mxu0 0.0
    %123 = vmatpush2.msra.mxu0 0.0
    %124 = vmatprep.subr.mxu0 0.0
    %125 = vmatpush2.msra.mxu0 0.0
    %126 = vmatprep.subr.mxu0 0.0
    %127 = vmatpush2.msra.mxu0 0.0
    %128 = vmatprep.subr.mxu0 0.0
    %129 = vmatpush2.msra.mxu0 0.0
    %130 = vmatprep.subr.mxu0 0.0
    %131 = vmatpush2.msra.mxu0 0.0
    %132 = vmatprep.subr.mxu0 0.0
    %133 = vmatpush2.msra.mxu0 0.0
    %134 = vmatprep.subr.mxu0 0.0
    %135 = vmatpush2.msra.mxu0 0.0
    %136 = vmatprep.subr.mxu0 0.0
    %137 = vmatpush2.msra.mxu0 0.0
    %138 = vmatprep.subr.mxu0 0.0
    %139 = vmatpush2.msra.mxu0 0.0
    %140 = vmatprep.mubr.f32.mxu0 0.0
    %141 = vmatmul.mubr.f32.gmra.mxu0 %v74
    %v142 = vpop.f32.mrf.mxu0
    %v143 = vadd.f32 0.0, %v142
    %v144 = vpop.f32.mrf.mxu0
    %145 = vdwg.mxu0
    %v147 = vsel %vm72, %v49, 0
    %149 = vmatprep.subr.mxu0 0.0
    %150 = vmatpush1.msra.mxu0 0.0
    %151 = vmatprep.subr.mxu0 0.0
    %152 = vmatpush1.msra.mxu0 0.0
    %153 = vmatprep.subr.mxu0 0.0
    %154 = vmatpush1.msra.mxu0 0.0
    %155 = vmatprep.subr.mxu0 0.0
    %156 = vmatpush1.msra.mxu0 0.0
    %157 = vmatprep.subr.mxu0 0.0
    %158 = vmatpush1.msra.mxu0 0.0
    %159 = vmatprep.subr.mxu0 0.0
    %160 = vmatpush1.msra.mxu0 0.0
    %161 = vmatprep.subr.mxu0 0.0
    %162 = vmatpush1.msra.mxu0 0.0
    %163 = vmatprep.subr.mxu0 0.0
    %164 = vmatpush1.msra.mxu0 0.0
    %165 = vmatprep.subr.mxu0 0.0
    %166 = vmatpush1.msra.mxu0 0.0
    %167 = vmatprep.subr.mxu0 0.0
    %168 = vmatpush1.msra.mxu0 0.0
    %169 = vmatprep.subr.mxu0 0.0
    %170 = vmatpush1.msra.mxu0 0.0
    %171 = vmatprep.subr.mxu0 0.0
    %172 = vmatpush1.msra.mxu0 0.0
    %173 = vmatprep.subr.mxu0 0.0
    %174 = vmatpush1.msra.mxu0 0.0
    %175 = vmatprep.subr.mxu0 0.0
    %176 = vmatpush1.msra.mxu0 0.0
    %177 = vmatprep.subr.mxu0 0.0
    %178 = vmatpush1.msra.mxu0 %v71
    %179 = vmatprep.subr.mxu0 0.0
    %180 = vmatpush1.msra.mxu0 %v70
    %181 = vmatprep.subr.mxu0 0.0
    %182 = vmatpush2.msra.mxu0 0.0
    %183 = vmatprep.subr.mxu0 0.0
    %184 = vmatpush2.msra.mxu0 0.0
    %185 = vmatprep.subr.mxu0 0.0
    %186 = vmatpush2.msra.mxu0 0.0
    %187 = vmatprep.subr.mxu0 0.0
    %188 = vmatpush2.msra.mxu0 0.0
    %189 = vmatprep.subr.mxu0 0.0
    %190 = vmatpush2.msra.mxu0 0.0
    %191 = vmatprep.subr.mxu0 0.0
    %192 = vmatpush2.msra.mxu0 0.0
    %193 = vmatprep.subr.mxu0 0.0
    %194 = vmatpush2.msra.mxu0 0.0
    %195 = vmatprep.subr.mxu0 0.0
    %196 = vmatpush2.msra.mxu0 0.0
    %197 = vmatprep.subr.mxu0 0.0
    %198 = vmatpush2.msra.mxu0 0.0
    %199 = vmatprep.subr.mxu0 0.0
    %200 = vmatpush2.msra.mxu0 0.0
    %201 = vmatprep.subr.mxu0 0.0
    %202 = vmatpush2.msra.mxu0 0.0
    %203 = vmatprep.subr.mxu0 0.0
    %204 = vmatpush2.msra.mxu0 0.0
    %205 = vmatprep.subr.mxu0 0.0
    %206 = vmatpush2.msra.mxu0 0.0
    %207 = vmatprep.subr.mxu0 0.0
    %208 = vmatpush2.msra.mxu0 0.0
    %209 = vmatprep.subr.mxu0 0.0
    %210 = vmatpush2.msra.mxu0 0.0
    %211 = vmatprep.subr.mxu0 0.0
    %212 = vmatpush2.msra.mxu0 0.0
    %213 = vmatprep.mubr.f32.mxu0 0.0
    %214 = vmatmul.mubr.f32.gmra.mxu0 %v147
    %v215 = vpop.f32.mrf.mxu0
    %v216 = vadd.f32 0.0, %v215
    %v217 = vpop.f32.mrf.mxu0
    %218 = vdwg.mxu0
    %v219 = vld [vmem:[#allocation2 + $0x10] sm:$0xff]
    %v220 = vld [vmem:[#allocation2 + $0x18] sm:$0xff]
    %v221 = vld [vmem:[#allocation2 + $0x20] sm:$0xff]
    %v222 = vld [vmem:[#allocation2 + $0x28] sm:$0xff]
    %v224 = vsel %vm72, %v219, 0
    %v227 = vsel %vm72, %v220, 0
    %v230 = vsel %vm72, %v221, 0
    %v233 = vsel %vm72, %v222, 0
    %235 = vmatprep.subr.mxu0 0.0
    %236 = vmatpush1.msra.mxu0 0.0
    %237 = vmatprep.subr.mxu0 0.0
    %238 = vmatpush1.msra.mxu0 0.0
    %239 = vmatprep.subr.mxu0 0.0
    %240 = vmatpush1.msra.mxu0 0.0
    %241 = vmatprep.subr.mxu0 0.0
    %242 = vmatpush1.msra.mxu0 0.0
    %243 = vmatprep.subr.mxu0 0.0
    %244 = vmatpush1.msra.mxu0 0.0
    %245 = vmatprep.subr.mxu0 0.0
    %246 = vmatpush1.msra.mxu0 0.0
    %247 = vmatprep.subr.mxu0 0.0
    %248 = vmatpush1.msra.mxu0 0.0
    %249 = vmatprep.subr.mxu0 0.0
    %250 = vmatpush1.msra.mxu0 0.0
    %251 = vmatprep.subr.mxu0 0.0
    %252 = vmatpush1.msra.mxu0 0.0
    %253 = vmatprep.subr.mxu0 0.0
    %254 = vmatpush1.msra.mxu0 0.0
    %255 = vmatprep.subr.mxu0 0.0
    %256 = vmatpush1.msra.mxu0 0.0
    %257 = vmatprep.subr.mxu0 0.0
    %258 = vmatpush1.msra.mxu0 0.0
    %259 = vmatprep.subr.mxu0 0.0
    %260 = vmatpush1.msra.mxu0 0.0
    %261 = vmatprep.subr.mxu0 0.0
    %262 = vmatpush1.msra.mxu0 0.0
    %263 = vmatprep.subr.mxu0 0.0
    %264 = vmatpush1.msra.mxu0 %v59
    %265 = vmatprep.subr.mxu0 0.0
    %266 = vmatpush1.msra.mxu0 %v58
    %267 = vmatprep.subr.mxu0 0.0
    %268 = vmatpush2.msra.mxu0 0.0
    %269 = vmatprep.subr.mxu0 0.0
    %270 = vmatpush2.msra.mxu0 0.0
    %271 = vmatprep.subr.mxu0 0.0
    %272 = vmatpush2.msra.mxu0 0.0
    %273 = vmatprep.subr.mxu0 0.0
    %274 = vmatpush2.msra.mxu0 0.0
    %275 = vmatprep.subr.mxu0 0.0
    %276 = vmatpush2.msra.mxu0 0.0
    %277 = vmatprep.subr.mxu0 0.0
    %278 = vmatpush2.msra.mxu0 0.0
    %279 = vmatprep.subr.mxu0 0.0
    %280 = vmatpush2.msra.mxu0 0.0
    %281 = vmatprep.subr.mxu0 0.0
    %282 = vmatpush2.msra.mxu0 0.0
    %283 = vmatprep.subr.mxu0 0.0
    %284 = vmatpush2.msra.mxu0 0.0
    %285 = vmatprep.subr.mxu0 0.0
    %286 = vmatpush2.msra.mxu0 0.0
    %287 = vmatprep.subr.mxu0 0.0
    %288 = vmatpush2.msra.mxu0 0.0
    %289 = vmatprep.subr.mxu0 0.0
    %290 = vmatpush2.msra.mxu0 0.0
    %291 = vmatprep.subr.mxu0 0.0
    %292 = vmatpush2.msra.mxu0 0.0
    %293 = vmatprep.subr.mxu0 0.0
    %294 = vmatpush2.msra.mxu0 0.0
    %295 = vmatprep.subr.mxu0 0.0
    %296 = vmatpush2.msra.mxu0 0.0
    %297 = vmatprep.subr.mxu0 0.0
    %298 = vmatpush2.msra.mxu0 0.0
    %299 = vmatprep.mubr.f32.mxu0 0.0
    %300 = vmatmul.mubr.f32.gmra.mxu0 %v224
    %v301 = vpop.f32.mrf.mxu0
    %v302 = vadd.f32 0.0, %v301
    %v303 = vpop.f32.mrf.mxu0
    %304 = vmatprep.mubr.f32.mxu0 0.0
    %305 = vmatmul.mubr.f32.gmra.mxu0 %v227
    %v306 = vpop.f32.mrf.mxu0
    %v307 = vadd.f32 0.0, %v306
    %v308 = vpop.f32.mrf.mxu0
    %309 = vmatprep.mubr.f32.mxu0 0.0
    %310 = vmatmul.mubr.f32.gmra.mxu0 %v230
    %v311 = vpop.f32.mrf.mxu0
    %v312 = vadd.f32 0.0, %v311
    %v313 = vpop.f32.mrf.mxu0
    %314 = vmatprep.mubr.f32.mxu0 0.0
    %315 = vmatmul.mubr.f32.gmra.mxu0 %v233
    %v316 = vpop.f32.mrf.mxu0
    %v317 = vadd.f32 0.0, %v316
    %v318 = vpop.f32.mrf.mxu0
    %319 = vdwg.mxu0
    %320 = vmatprep.subr.mxu0 0.0
    %321 = vmatpush1.msra.mxu0 0.0
    %322 = vmatprep.subr.mxu0 0.0
    %323 = vmatpush1.msra.mxu0 0.0
    %324 = vmatprep.subr.mxu0 0.0
    %325 = vmatpush1.msra.mxu0 0.0
    %326 = vmatprep.subr.mxu0 0.0
    %327 = vmatpush1.msra.mxu0 0.0
    %328 = vmatprep.subr.mxu0 0.0
    %329 = vmatpush1.msra.mxu0 0.0
    %330 = vmatprep.subr.mxu0 0.0
    %331 = vmatpush1.msra.mxu0 0.0
    %332 = vmatprep.subr.mxu0 0.0
    %333 = vmatpush1.msra.mxu0 0.0
    %334 = vmatprep.subr.mxu0 0.0
    %335 = vmatpush1.msra.mxu0 0.0
    %336 = vmatprep.subr.mxu0 0.0
    %337 = vmatpush1.msra.mxu0 0.0
    %338 = vmatprep.subr.mxu0 0.0
    %339 = vmatpush1.msra.mxu0 0.0
    %340 = vmatprep.subr.mxu0 0.0
    %341 = vmatpush1.msra.mxu0 0.0
    %342 = vmatprep.subr.mxu0 0.0
    %343 = vmatpush1.msra.mxu0 0.0
    %344 = vmatprep.subr.mxu0 0.0
    %345 = vmatpush1.msra.mxu0 0.0
    %346 = vmatprep.subr.mxu0 0.0
    %347 = vmatpush1.msra.mxu0 0.0
    %348 = vmatprep.subr.mxu0 0.0
    %349 = vmatpush1.msra.mxu0 %v69
    %350 = vmatprep.subr.mxu0 0.0
    %351 = vmatpush1.msra.mxu0 %v68
    %352 = vmatprep.subr.mxu0 0.0
    %353 = vmatpush2.msra.mxu0 0.0
    %354 = vmatprep.subr.mxu0 0.0
    %355 = vmatpush2.msra.mxu0 0.0
    %356 = vmatprep.subr.mxu0 0.0
    %357 = vmatpush2.msra.mxu0 0.0
    %358 = vmatprep.subr.mxu0 0.0
    %359 = vmatpush2.msra.mxu0 0.0
    %360 = vmatprep.subr.mxu0 0.0
    %361 = vmatpush2.msra.mxu0 0.0
    %362 = vmatprep.subr.mxu0 0.0
    %363 = vmatpush2.msra.mxu0 0.0
    %364 = vmatprep.subr.mxu0 0.0
    %365 = vmatpush2.msra.mxu0 0.0
    %366 = vmatprep.subr.mxu0 0.0
    %367 = vmatpush2.msra.mxu0 0.0
    %368 = vmatprep.subr.mxu0 0.0
    %369 = vmatpush2.msra.mxu0 0.0
    %370 = vmatprep.subr.mxu0 0.0
    %371 = vmatpush2.msra.mxu0 0.0
    %372 = vmatprep.subr.mxu0 0.0
    %373 = vmatpush2.msra.mxu0 0.0
    %374 = vmatprep.subr.mxu0 0.0
    %375 = vmatpush2.msra.mxu0 0.0
    %376 = vmatprep.subr.mxu0 0.0
    %377 = vmatpush2.msra.mxu0 0.0
    %378 = vmatprep.subr.mxu0 0.0
    %379 = vmatpush2.msra.mxu0 0.0
    %380 = vmatprep.subr.mxu0 0.0
    %381 = vmatpush2.msra.mxu0 0.0
    %382 = vmatprep.subr.mxu0 0.0
    %383 = vmatpush2.msra.mxu0 0.0
    %384 = vmatprep.mubr.f32.mxu0 0.0
    %385 = vmatmul.mubr.f32.gmra.mxu0 %v224
    %v386 = vpop.f32.mrf.mxu0
    %v387 = vadd.f32 0.0, %v386
    %v388 = vpop.f32.mrf.mxu0
    %389 = vmatprep.mubr.f32.mxu0 0.0
    %390 = vmatmul.mubr.f32.gmra.mxu0 %v227
    %v391 = vpop.f32.mrf.mxu0
    %v392 = vadd.f32 0.0, %v391
    %v393 = vpop.f32.mrf.mxu0
    %394 = vmatprep.mubr.f32.mxu0 0.0
    %395 = vmatmul.mubr.f32.gmra.mxu0 %v230
    %v396 = vpop.f32.mrf.mxu0
    %v397 = vadd.f32 0.0, %v396
    %v398 = vpop.f32.mrf.mxu0
    %399 = vmatprep.mubr.f32.mxu0 0.0
    %400 = vmatmul.mubr.f32.gmra.mxu0 %v233
    %v401 = vpop.f32.mrf.mxu0
    %v402 = vadd.f32 0.0, %v401
    %v403 = vpop.f32.mrf.mxu0
    %404 = vdwg.mxu0
    %v405 = vld [vmem:[#allocation2 + $0x30] sm:$0xff]
    %v406 = vld [vmem:[#allocation2 + $0x38] sm:$0xff]
    %v407 = vld [vmem:[#allocation2 + $0x40] sm:$0xff]
    %v408 = vld [vmem:[#allocation2 + $0x48] sm:$0xff]
    %v409 = vld [vmem:[#allocation2 + $0x50] sm:$0xff]
    %v410 = vld [vmem:[#allocation2 + $0x58] sm:$0xff]
    %v411 = vld [vmem:[#allocation2 + $0x60] sm:$0xff]
    %v412 = vld [vmem:[#allocation2 + $0x68] sm:$0xff]
    %vm413 = vcmask 261120
    %v415 = vsel %vm413, %v216, 0
    %417 = vmatprep.subr.mxu0 0.0
    %418 = vmatpush1.msra.mxu0 0.0
    %419 = vmatprep.subr.mxu0 0.0
    %420 = vmatpush1.msra.mxu0 0.0
    %421 = vmatprep.subr.mxu0 0.0
    %422 = vmatpush1.msra.mxu0 0.0
    %423 = vmatprep.subr.mxu0 0.0
    %424 = vmatpush1.msra.mxu0 0.0
    %425 = vmatprep.subr.mxu0 0.0
    %426 = vmatpush1.msra.mxu0 0.0
    %427 = vmatprep.subr.mxu0 0.0
    %428 = vmatpush1.msra.mxu0 0.0
    %429 = vmatprep.subr.mxu0 0.0
    %430 = vmatpush1.msra.mxu0 0.0
    %431 = vmatprep.subr.mxu0 0.0
    %432 = vmatpush1.msra.mxu0 0.0
    %433 = vmatprep.subr.mxu0 0.0
    %434 = vmatpush1.msra.mxu0 0.0
    %435 = vmatprep.subr.mxu0 0.0
    %436 = vmatpush1.msra.mxu0 0.0
    %437 = vmatprep.subr.mxu0 0.0
    %438 = vmatpush1.msra.mxu0 0.0
    %439 = vmatprep.subr.mxu0 0.0
    %440 = vmatpush1.msra.mxu0 0.0
    %441 = vmatprep.subr.mxu0 0.0
    %442 = vmatpush1.msra.mxu0 %v412
    %443 = vmatprep.subr.mxu0 0.0
    %444 = vmatpush1.msra.mxu0 %v411
    %445 = vmatprep.subr.mxu0 0.0
    %446 = vmatpush1.msra.mxu0 %v410
    %447 = vmatprep.subr.mxu0 0.0
    %448 = vmatpush1.msra.mxu0 %v409
    %449 = vmatprep.subr.mxu0 0.0
    %450 = vmatpush2.msra.mxu0 0.0
    %451 = vmatprep.subr.mxu0 0.0
    %452 = vmatpush2.msra.mxu0 0.0
    %453 = vmatprep.subr.mxu0 0.0
    %454 = vmatpush2.msra.mxu0 0.0
    %455 = vmatprep.subr.mxu0 0.0
    %456 = vmatpush2.msra.mxu0 0.0
    %457 = vmatprep.subr.mxu0 0.0
    %458 = vmatpush2.msra.mxu0 0.0
    %459 = vmatprep.subr.mxu0 0.0
    %460 = vmatpush2.msra.mxu0 0.0
    %461 = vmatprep.subr.mxu0 0.0
    %462 = vmatpush2.msra.mxu0 0.0
    %463 = vmatprep.subr.mxu0 0.0
    %464 = vmatpush2.msra.mxu0 0.0
    %465 = vmatprep.subr.mxu0 0.0
    %466 = vmatpush2.msra.mxu0 0.0
    %467 = vmatprep.subr.mxu0 0.0
    %468 = vmatpush2.msra.mxu0 0.0
    %469 = vmatprep.subr.mxu0 0.0
    %470 = vmatpush2.msra.mxu0 0.0
    %471 = vmatprep.subr.mxu0 0.0
    %472 = vmatpush2.msra.mxu0 0.0
    %473 = vmatprep.subr.mxu0 0.0
    %474 = vmatpush2.msra.mxu0 0.0
    %475 = vmatprep.subr.mxu0 0.0
    %476 = vmatpush2.msra.mxu0 0.0
    %477 = vmatprep.subr.mxu0 0.0
    %478 = vmatpush2.msra.mxu0 0.0
    %479 = vmatprep.subr.mxu0 0.0
    %480 = vmatpush2.msra.mxu0 0.0
    %481 = vmatprep.mubr.f32.mxu0 0.0
    %482 = vmatmul.mubr.f32.gmra.mxu0 %v415
    %v483 = vpop.f32.mrf.mxu0
    %v484 = vadd.f32 0.0, %v483
    %v485 = vpop.f32.mrf.mxu0
    %486 = vdwg.mxu0
    %v488 = vsel %vm413, %v143, 0
    %490 = vmatprep.subr.mxu0 0.0
    %491 = vmatpush1.msra.mxu0 0.0
    %492 = vmatprep.subr.mxu0 0.0
    %493 = vmatpush1.msra.mxu0 0.0
    %494 = vmatprep.subr.mxu0 0.0
    %495 = vmatpush1.msra.mxu0 0.0
    %496 = vmatprep.subr.mxu0 0.0
    %497 = vmatpush1.msra.mxu0 0.0
    %498 = vmatprep.subr.mxu0 0.0
    %499 = vmatpush1.msra.mxu0 0.0
    %500 = vmatprep.subr.mxu0 0.0
    %501 = vmatpush1.msra.mxu0 0.0
    %502 = vmatprep.subr.mxu0 0.0
    %503 = vmatpush1.msra.mxu0 0.0
    %504 = vmatprep.subr.mxu0 0.0
    %505 = vmatpush1.msra.mxu0 0.0
    %506 = vmatprep.subr.mxu0 0.0
    %507 = vmatpush1.msra.mxu0 0.0
    %508 = vmatprep.subr.mxu0 0.0
    %509 = vmatpush1.msra.mxu0 0.0
    %510 = vmatprep.subr.mxu0 0.0
    %511 = vmatpush1.msra.mxu0 0.0
    %512 = vmatprep.subr.mxu0 0.0
    %513 = vmatpush1.msra.mxu0 0.0
    %514 = vmatprep.subr.mxu0 0.0
    %515 = vmatpush1.msra.mxu0 %v408
    %516 = vmatprep.subr.mxu0 0.0
    %517 = vmatpush1.msra.mxu0 %v407
    %518 = vmatprep.subr.mxu0 0.0
    %519 = vmatpush1.msra.mxu0 %v406
    %520 = vmatprep.subr.mxu0 0.0
    %521 = vmatpush1.msra.mxu0 %v405
    %522 = vmatprep.subr.mxu0 0.0
    %523 = vmatpush2.msra.mxu0 0.0
    %524 = vmatprep.subr.mxu0 0.0
    %525 = vmatpush2.msra.mxu0 0.0
    %526 = vmatprep.subr.mxu0 0.0
    %527 = vmatpush2.msra.mxu0 0.0
    %528 = vmatprep.subr.mxu0 0.0
    %529 = vmatpush2.msra.mxu0 0.0
    %530 = vmatprep.subr.mxu0 0.0
    %531 = vmatpush2.msra.mxu0 0.0
    %532 = vmatprep.subr.mxu0 0.0
    %533 = vmatpush2.msra.mxu0 0.0
    %534 = vmatprep.subr.mxu0 0.0
    %535 = vmatpush2.msra.mxu0 0.0
    %536 = vmatprep.subr.mxu0 0.0
    %537 = vmatpush2.msra.mxu0 0.0
    %538 = vmatprep.subr.mxu0 0.0
    %539 = vmatpush2.msra.mxu0 0.0
    %540 = vmatprep.subr.mxu0 0.0
    %541 = vmatpush2.msra.mxu0 0.0
    %542 = vmatprep.subr.mxu0 0.0
    %543 = vmatpush2.msra.mxu0 0.0
    %544 = vmatprep.subr.mxu0 0.0
    %545 = vmatpush2.msra.mxu0 0.0
    %546 = vmatprep.subr.mxu0 0.0
    %547 = vmatpush2.msra.mxu0 0.0
    %548 = vmatprep.subr.mxu0 0.0
    %549 = vmatpush2.msra.mxu0 0.0
    %550 = vmatprep.subr.mxu0 0.0
    %551 = vmatpush2.msra.mxu0 0.0
    %552 = vmatprep.subr.mxu0 0.0
    %553 = vmatpush2.msra.mxu0 0.0
    %554 = vmatprep.mubr.f32.mxu0 0.0
    %555 = vmatmul.mubr.f32.gmra.mxu0 %v488
    %v556 = vpop.f32.mrf.mxu0
    %v557 = vadd.f32 %v484, %v556
    %v558 = vpop.f32.mrf.mxu0
    %559 = vdwg.mxu0
    %v560 = vld [vmem:[#allocation2 + $0x70] sm:$0x1]
    %v561 = vlaneseq
    %v562 = vshrl.u32 %v561, 7
    %v563 = vsub.s32 0, %v562
    %v564 = vrot.slane %v560, %v563
    %v565 = vadd.f32 %v557, %v564
    %v566 = vmax.f32 %v565, 0.0
    %v567 = vld [vmem:[#allocation2 + $0x78] sm:$0xff]
    %v568 = vld [vmem:[#allocation2 + $0x80] sm:$0xff]
    %v569 = vld [vmem:[#allocation2 + $0x88] sm:$0xff]
    %v570 = vld [vmem:[#allocation2 + $0x90] sm:$0xff]
    %v571 = vld [vmem:[#allocation2 + $0x98] sm:$0x1]
    %v572 = vlaneseq
    %v573 = vshrl.u32 %v572, 7
    %v574 = vsub.s32 0, %v573
    %v575 = vrot.slane %v571, %v574
    %v577 = vsel %vm413, %v566, 0
    %579 = vmatprep.subr.mxu0 0.0
    %580 = vmatpush1.msra.mxu0 0.0
    %581 = vmatprep.subr.mxu0 0.0
    %582 = vmatpush1.msra.mxu0 0.0
    %583 = vmatprep.subr.mxu0 0.0
    %584 = vmatpush1.msra.mxu0 0.0
    %585 = vmatprep.subr.mxu0 0.0
    %586 = vmatpush1.msra.mxu0 0.0
    %587 = vmatprep.subr.mxu0 0.0
    %588 = vmatpush1.msra.mxu0 0.0
    %589 = vmatprep.subr.mxu0 0.0
    %590 = vmatpush1.msra.mxu0 0.0
    %591 = vmatprep.subr.mxu0 0.0
    %592 = vmatpush1.msra.mxu0 0.0
    %593 = vmatprep.subr.mxu0 0.0
    %594 = vmatpush1.msra.mxu0 0.0
    %595 = vmatprep.subr.mxu0 0.0
    %596 = vmatpush1.msra.mxu0 0.0
    %597 = vmatprep.subr.mxu0 0.0
    %598 = vmatpush1.msra.mxu0 0.0
    %599 = vmatprep.subr.mxu0 0.0
    %600 = vmatpush1.msra.mxu0 0.0
    %601 = vmatprep.subr.mxu0 0.0
    %602 = vmatpush1.msra.mxu0 0.0
    %603 = vmatprep.subr.mxu0 0.0
    %604 = vmatpush1.msra.mxu0 %v570
    %605 = vmatprep.subr.mxu0 0.0
    %606 = vmatpush1.msra.mxu0 %v569
    %607 = vmatprep.subr.mxu0 0.0
    %608 = vmatpush1.msra.mxu0 %v568
    %609 = vmatprep.subr.mxu0 0.0
    %610 = vmatpush1.msra.mxu0 %v567
    %611 = vmatprep.subr.mxu0 0.0
    %612 = vmatpush2.msra.mxu0 0.0
    %613 = vmatprep.subr.mxu0 0.0
    %614 = vmatpush2.msra.mxu0 0.0
    %615 = vmatprep.subr.mxu0 0.0
    %616 = vmatpush2.msra.mxu0 0.0
    %617 = vmatprep.subr.mxu0 0.0
    %618 = vmatpush2.msra.mxu0 0.0
    %619 = vmatprep.subr.mxu0 0.0
    %620 = vmatpush2.msra.mxu0 0.0
    %621 = vmatprep.subr.mxu0 0.0
    %622 = vmatpush2.msra.mxu0 0.0
    %623 = vmatprep.subr.mxu0 0.0
    %624 = vmatpush2.msra.mxu0 0.0
    %625 = vmatprep.subr.mxu0 0.0
    %626 = vmatpush2.msra.mxu0 0.0
    %627 = vmatprep.subr.mxu0 0.0
    %628 = vmatpush2.msra.mxu0 0.0
    %629 = vmatprep.subr.mxu0 0.0
    %630 = vmatpush2.msra.mxu0 0.0
    %631 = vmatprep.subr.mxu0 0.0
    %632 = vmatpush2.msra.mxu0 0.0
    %633 = vmatprep.subr.mxu0 0.0
    %634 = vmatpush2.msra.mxu0 0.0
    %635 = vmatprep.subr.mxu0 0.0
    %636 = vmatpush2.msra.mxu0 0.0
    %637 = vmatprep.subr.mxu0 0.0
    %638 = vmatpush2.msra.mxu0 0.0
    %639 = vmatprep.subr.mxu0 0.0
    %640 = vmatpush2.msra.mxu0 0.0
    %641 = vmatprep.subr.mxu0 0.0
    %642 = vmatpush2.msra.mxu0 0.0
    %643 = vmatprep.mubr.f32.mxu0 0.0
    %644 = vmatmul.mubr.f32.gmra.mxu0 %v577
    %v645 = vpop.f32.mrf.mxu0
    %v646 = vadd.f32 %v575, %v645
    %v647 = vpop.f32.mrf.mxu0
    %648 = vdwg.mxu0
    %vm649 = vcmask 15360
    %v650 = vsel %vm649, %v646, -inf
    %651 = vmax.xlane.f32.xlu0 %v650
    %v652 = vpop.xlane.xlu0 %651
    %v653 = vsub.f32 %v646, %v652
    %v654 = vmul.f32 %v653, 1.442695
    %v655 = vpow.pop %v654
    %v656 = vsel %vm649, %v655, 0.0
    %657 = vadd.xlane.f32.xlu0 %v656
    %v658 = vpop.xlane.xlu0 %657
    %v659 = vrcp.pop %v658
    %v660 = vmul.f32 %v655, %v659
    %v661 = vld [vmem:[#allocation2 + $0xa0] sm:$0xff]
    %v662 = vld [vmem:[#allocation2 + $0x210] sm:$0x1f]
    %v663 = vld [vmem:[#allocation2 + $0x218] sm:$0x1f]
    %v665 = vsel %vm413, %v663, 0
    %667 = vmatprep.subr.mxu0 0.0
    %668 = vmatpush1.msra.mxu0 0.0
    %669 = vmatprep.subr.mxu0 0.0
    %670 = vmatpush1.msra.mxu0 0.0
    %671 = vmatprep.subr.mxu0 0.0
    %672 = vmatpush1.msra.mxu0 0.0
    %673 = vmatprep.subr.mxu0 0.0
    %674 = vmatpush1.msra.mxu0 0.0
    %675 = vmatprep.subr.mxu0 0.0
    %676 = vmatpush1.msra.mxu0 0.0
    %677 = vmatprep.subr.mxu0 0.0
    %678 = vmatpush1.msra.mxu0 0.0
    %679 = vmatprep.subr.mxu0 0.0
    %680 = vmatpush1.msra.mxu0 0.0
    %681 = vmatprep.subr.mxu0 0.0
    %682 = vmatpush1.msra.mxu0 0.0
    %683 = vmatprep.subr.mxu0 0.0
    %684 = vmatpush1.msra.mxu0 0.0
    %685 = vmatprep.subr.mxu0 0.0
    %686 = vmatpush1.msra.mxu0 0.0
    %687 = vmatprep.subr.mxu0 0.0
    %688 = vmatpush1.msra.mxu0 0.0
    %689 = vmatprep.subr.mxu0 0.0
    %690 = vmatpush1.msra.mxu0 0.0
    %691 = vmatprep.subr.mxu0 0.0
    %692 = vmatpush1.msra.mxu0 %v402
    %693 = vmatprep.subr.mxu0 0.0
    %694 = vmatpush1.msra.mxu0 %v397
    %695 = vmatprep.subr.mxu0 0.0
    %696 = vmatpush1.msra.mxu0 %v392
    %697 = vmatprep.subr.mxu0 0.0
    %698 = vmatpush1.msra.mxu0 %v387
    %699 = vmatprep.subr.mxu0 0.0
    %700 = vmatpush2.msra.mxu0 0.0
    %701 = vmatprep.subr.mxu0 0.0
    %702 = vmatpush2.msra.mxu0 0.0
    %703 = vmatprep.subr.mxu0 0.0
    %704 = vmatpush2.msra.mxu0 0.0
    %705 = vmatprep.subr.mxu0 0.0
    %706 = vmatpush2.msra.mxu0 0.0
    %707 = vmatprep.subr.mxu0 0.0
    %708 = vmatpush2.msra.mxu0 0.0
    %709 = vmatprep.subr.mxu0 0.0
    %710 = vmatpush2.msra.mxu0 0.0
    %711 = vmatprep.subr.mxu0 0.0
    %712 = vmatpush2.msra.mxu0 0.0
    %713 = vmatprep.subr.mxu0 0.0
    %714 = vmatpush2.msra.mxu0 0.0
    %715 = vmatprep.subr.mxu0 0.0
    %716 = vmatpush2.msra.mxu0 0.0
    %717 = vmatprep.subr.mxu0 0.0
    %718 = vmatpush2.msra.mxu0 0.0
    %719 = vmatprep.subr.mxu0 0.0
    %720 = vmatpush2.msra.mxu0 0.0
    %721 = vmatprep.subr.mxu0 0.0
    %722 = vmatpush2.msra.mxu0 0.0
    %723 = vmatprep.subr.mxu0 0.0
    %724 = vmatpush2.msra.mxu0 0.0
    %725 = vmatprep.subr.mxu0 0.0
    %726 = vmatpush2.msra.mxu0 0.0
    %727 = vmatprep.subr.mxu0 0.0
    %728 = vmatpush2.msra.mxu0 0.0
    %729 = vmatprep.subr.mxu0 0.0
    %730 = vmatpush2.msra.mxu0 0.0
    %731 = vmatprep.mubr.f32.mxu0 0.0
    %732 = vmatmul.mubr.f32.gmra.mxu0 %v665
    %v733 = vpop.f32.mrf.mxu0
    %v734 = vadd.f32 0.0, %v733
    %v735 = vpop.f32.mrf.mxu0
    %736 = vdwg.mxu0
    %v738 = vsel %vm413, %v662, 0
    %740 = vmatprep.subr.mxu0 0.0
    %741 = vmatpush1.msra.mxu0 0.0
    %742 = vmatprep.subr.mxu0 0.0
    %743 = vmatpush1.msra.mxu0 0.0
    %744 = vmatprep.subr.mxu0 0.0
    %745 = vmatpush1.msra.mxu0 0.0
    %746 = vmatprep.subr.mxu0 0.0
    %747 = vmatpush1.msra.mxu0 0.0
    %748 = vmatprep.subr.mxu0 0.0
    %749 = vmatpush1.msra.mxu0 0.0
    %750 = vmatprep.subr.mxu0 0.0
    %751 = vmatpush1.msra.mxu0 0.0
    %752 = vmatprep.subr.mxu0 0.0
    %753 = vmatpush1.msra.mxu0 0.0
    %754 = vmatprep.subr.mxu0 0.0
    %755 = vmatpush1.msra.mxu0 0.0
    %756 = vmatprep.subr.mxu0 0.0
    %757 = vmatpush1.msra.mxu0 0.0
    %758 = vmatprep.subr.mxu0 0.0
    %759 = vmatpush1.msra.mxu0 0.0
    %760 = vmatprep.subr.mxu0 0.0
    %761 = vmatpush1.msra.mxu0 0.0
    %762 = vmatprep.subr.mxu0 0.0
    %763 = vmatpush1.msra.mxu0 0.0
    %764 = vmatprep.subr.mxu0 0.0
    %765 = vmatpush1.msra.mxu0 %v317
    %766 = vmatprep.subr.mxu0 0.0
    %767 = vmatpush1.msra.mxu0 %v312
    %768 = vmatprep.subr.mxu0 0.0
    %769 = vmatpush1.msra.mxu0 %v307
    %770 = vmatprep.subr.mxu0 0.0
    %771 = vmatpush1.msra.mxu0 %v302
    %772 = vmatprep.subr.mxu0 0.0
    %773 = vmatpush2.msra.mxu0 0.0
    %774 = vmatprep.subr.mxu0 0.0
    %775 = vmatpush2.msra.mxu0 0.0
    %776 = vmatprep.subr.mxu0 0.0
    %777 = vmatpush2.msra.mxu0 0.0
    %778 = vmatprep.subr.mxu0 0.0
    %779 = vmatpush2.msra.mxu0 0.0
    %780 = vmatprep.subr.mxu0 0.0
    %781 = vmatpush2.msra.mxu0 0.0
    %782 = vmatprep.subr.mxu0 0.0
    %783 = vmatpush2.msra.mxu0 0.0
    %784 = vmatprep.subr.mxu0 0.0
    %785 = vmatpush2.msra.mxu0 0.0
    %786 = vmatprep.subr.mxu0 0.0
    %787 = vmatpush2.msra.mxu0 0.0
    %788 = vmatprep.subr.mxu0 0.0
    %789 = vmatpush2.msra.mxu0 0.0
    %790 = vmatprep.subr.mxu0 0.0
    %791 = vmatpush2.msra.mxu0 0.0
    %792 = vmatprep.subr.mxu0 0.0
    %793 = vmatpush2.msra.mxu0 0.0
    %794 = vmatprep.subr.mxu0 0.0
    %795 = vmatpush2.msra.mxu0 0.0
    %796 = vmatprep.subr.mxu0 0.0
    %797 = vmatpush2.msra.mxu0 0.0
    %798 = vmatprep.subr.mxu0 0.0
    %799 = vmatpush2.msra.mxu0 0.0
    %800 = vmatprep.subr.mxu0 0.0
    %801 = vmatpush2.msra.mxu0 0.0
    %802 = vmatprep.subr.mxu0 0.0
    %803 = vmatpush2.msra.mxu0 0.0
    %804 = vmatprep.mubr.f32.mxu0 0.0
    %805 = vmatmul.mubr.f32.gmra.mxu0 %v738
    %v806 = vpop.f32.mrf.mxu0
    %v807 = vadd.f32 %v734, %v806
    %v808 = vpop.f32.mrf.mxu0
    %809 = vdwg.mxu0
    %v810 = vld [vmem:[#allocation2 + $0x220] sm:$0x1f]
    %812 = vset.pattern.permute.xlu0 0
    %813 = vperm.xlu0 %812, %v810
    %v814 = vpop.permute.xlu0 %813
    %v816 = vadd.f32 %v807, %v814
    %v817 = vmax.f32 %v816, 0.0
    %v818 = vld [vmem:[#allocation2 + $0x228] sm:$0xff]
    %v819 = vld [vmem:[#allocation2 + $0x230] sm:$0x1]
    %v820 = vld [vmem:[#allocation2 + $0x238] sm:$0xff]
    %v821 = vld [vmem:[#allocation2 + $0x240] sm:$0x1]
    %823 = vset.pattern.permute.xlu0 0
    %824 = vperm.xlu0 %823, %v820
    %v825 = vpop.permute.xlu0 %824
    %828 = vset.pattern.permute.xlu0 0
    %829 = vperm.xlu0 %828, %v821
    %v830 = vpop.permute.xlu0 %829
    %vm832 = vcmask 39936
    %v834 = vsel %vm832, %v818, 0
    %v837 = vsel %vm832, %v819, 0
    %vm839 = vcmask 1044480
    %v841 = vsel %vm839, %v817, 0
    %843 = vmatprep.subr.mxu0 0.0
    %844 = vmatpush1.msra.mxu0 0.0
    %845 = vmatprep.subr.mxu0 0.0
    %846 = vmatpush1.msra.mxu0 0.0
    %847 = vmatprep.subr.mxu0 0.0
    %848 = vmatpush1.msra.mxu0 0.0
    %849 = vmatprep.subr.mxu0 0.0
    %850 = vmatpush1.msra.mxu0 0.0
    %851 = vmatprep.subr.mxu0 0.0
    %852 = vmatpush1.msra.mxu0 0.0
    %853 = vmatprep.subr.mxu0 0.0
    %854 = vmatpush1.msra.mxu0 0.0
    %855 = vmatprep.subr.mxu0 0.0
    %856 = vmatpush1.msra.mxu0 0.0
    %857 = vmatprep.subr.mxu0 0.0
    %858 = vmatpush1.msra.mxu0 0.0
    %859 = vmatprep.subr.mxu0 0.0
    %860 = vmatpush1.msra.mxu0 0.0
    %861 = vmatprep.subr.mxu0 0.0
    %862 = vmatpush1.msra.mxu0 0.0
    %863 = vmatprep.subr.mxu0 0.0
    %864 = vmatpush1.msra.mxu0 0.0
    %865 = vmatprep.subr.mxu0 0.0
    %866 = vmatpush1.msra.mxu0 0.0
    %867 = vmatprep.subr.mxu0 0.0
    %868 = vmatpush1.msra.mxu0 0.0
    %869 = vmatprep.subr.mxu0 0.0
    %870 = vmatpush1.msra.mxu0 0.0
    %871 = vmatprep.subr.mxu0 0.0
    %872 = vmatpush1.msra.mxu0 0.0
    %873 = vmatprep.subr.mxu0 0.0
    %874 = vmatpush1.msra.mxu0 %v841
    %875 = vmatprep.subr.mxu0 0.0
    %876 = vmatpush2.msra.mxu0 0.0
    %877 = vmatprep.subr.mxu0 0.0
    %878 = vmatpush2.msra.mxu0 0.0
    %879 = vmatprep.subr.mxu0 0.0
    %880 = vmatpush2.msra.mxu0 0.0
    %881 = vmatprep.subr.mxu0 0.0
    %882 = vmatpush2.msra.mxu0 0.0
    %883 = vmatprep.subr.mxu0 0.0
    %884 = vmatpush2.msra.mxu0 0.0
    %885 = vmatprep.subr.mxu0 0.0
    %886 = vmatpush2.msra.mxu0 0.0
    %887 = vmatprep.subr.mxu0 0.0
    %888 = vmatpush2.msra.mxu0 0.0
    %889 = vmatprep.subr.mxu0 0.0
    %890 = vmatpush2.msra.mxu0 0.0
    %891 = vmatprep.subr.mxu0 0.0
    %892 = vmatpush2.msra.mxu0 0.0
    %893 = vmatprep.subr.mxu0 0.0
    %894 = vmatpush2.msra.mxu0 0.0
    %895 = vmatprep.subr.mxu0 0.0
    %896 = vmatpush2.msra.mxu0 0.0
    %897 = vmatprep.subr.mxu0 0.0
    %898 = vmatpush2.msra.mxu0 0.0
    %899 = vmatprep.subr.mxu0 0.0
    %900 = vmatpush2.msra.mxu0 0.0
    %901 = vmatprep.subr.mxu0 0.0
    %902 = vmatpush2.msra.mxu0 0.0
    %903 = vmatprep.subr.mxu0 0.0
    %904 = vmatpush2.msra.mxu0 0.0
    %905 = vmatprep.subr.mxu0 0.0
    %906 = vmatpush2.msra.mxu0 0.0
    %907 = vmatprep.mubr.f32.mxu0 0.0
    %908 = vmatmul.mubr.f32.gmra.mxu0 %v834
    %v909 = vpop.f32.mrf.mxu0
    %v910 = vadd.f32 %v825, %v909
    %v911 = vpop.f32.mrf.mxu0
    %912 = vmatprep.mubr.f32.mxu0 0.0
    %913 = vmatmul.mubr.f32.gmra.mxu0 %v837
    %v914 = vpop.f32.mrf.mxu0
    %v915 = vadd.f32 %v830, %v914
    %v916 = vpop.f32.mrf.mxu0
    %917 = vdwg.mxu0
    %v918 = vxor.u32 %v910, 2147483648
    %v919 = vxor.u32 %v915, 2147483648
    %v920 = vmul.f32 %v918, 1.442695
    %v921 = vpow.pop %v920
    %v922 = vmul.f32 %v919, 1.442695
    %v923 = vpow.pop %v922
    %v924 = vadd.f32 %v921, 1.0
    %v925 = vadd.f32 %v923, 1.0
    %v926 = vrcp.pop %v924
    %v927 = vmul.f32 1.0, %v926
    %v928 = vrcp.pop %v925
    %v929 = vmul.f32 1.0, %v928
    %vm930 = vcmask 64512
    %v932 = vsel %vm930, %v927, 0
    %v935 = vsel %vm930, %v929, 0
    %937 = vmatprep.subr.mxu0 0.0
    %938 = vmatpush1.msra.mxu0 0.0
    %939 = vmatprep.subr.mxu0 0.0
    %940 = vmatpush1.msra.mxu0 0.0
    %941 = vmatprep.subr.mxu0 0.0
    %942 = vmatpush1.msra.mxu0 0.0
    %943 = vmatprep.subr.mxu0 0.0
    %944 = vmatpush1.msra.mxu0 0.0
    %945 = vmatprep.subr.mxu0 0.0
    %946 = vmatpush1.msra.mxu0 0.0
    %947 = vmatprep.subr.mxu0 0.0
    %948 = vmatpush1.msra.mxu0 0.0
    %949 = vmatprep.subr.mxu0 0.0
    %950 = vmatpush1.msra.mxu0 0.0
    %951 = vmatprep.subr.mxu0 0.0
    %952 = vmatpush1.msra.mxu0 0.0
    %953 = vmatprep.subr.mxu0 0.0
    %954 = vmatpush1.msra.mxu0 0.0
    %955 = vmatprep.subr.mxu0 0.0
    %956 = vmatpush1.msra.mxu0 0.0
    %957 = vmatprep.subr.mxu0 0.0
    %958 = vmatpush1.msra.mxu0 0.0
    %959 = vmatprep.subr.mxu0 0.0
    %960 = vmatpush1.msra.mxu0 0.0
    %961 = vmatprep.subr.mxu0 0.0
    %962 = vmatpush1.msra.mxu0 0.0
    %963 = vmatprep.subr.mxu0 0.0
    %964 = vmatpush1.msra.mxu0 0.0
    %965 = vmatprep.subr.mxu0 0.0
    %966 = vmatpush1.msra.mxu0 0.0
    %967 = vmatprep.subr.mxu0 0.0
    %968 = vmatpush1.msra.mxu0 %v661
    %969 = vmatprep.subr.mxu0 0.0
    %970 = vmatpush2.msra.mxu0 0.0
    %971 = vmatprep.subr.mxu0 0.0
    %972 = vmatpush2.msra.mxu0 0.0
    %973 = vmatprep.subr.mxu0 0.0
    %974 = vmatpush2.msra.mxu0 0.0
    %975 = vmatprep.subr.mxu0 0.0
    %976 = vmatpush2.msra.mxu0 0.0
    %977 = vmatprep.subr.mxu0 0.0
    %978 = vmatpush2.msra.mxu0 0.0
    %979 = vmatprep.subr.mxu0 0.0
    %980 = vmatpush2.msra.mxu0 0.0
    %981 = vmatprep.subr.mxu0 0.0
    %982 = vmatpush2.msra.mxu0 0.0
    %983 = vmatprep.subr.mxu0 0.0
    %984 = vmatpush2.msra.mxu0 0.0
    %985 = vmatprep.subr.mxu0 0.0
    %986 = vmatpush2.msra.mxu0 0.0
    %987 = vmatprep.subr.mxu0 0.0
    %988 = vmatpush2.msra.mxu0 0.0
    %989 = vmatprep.subr.mxu0 0.0
    %990 = vmatpush2.msra.mxu0 0.0
    %991 = vmatprep.subr.mxu0 0.0
    %992 = vmatpush2.msra.mxu0 0.0
    %993 = vmatprep.subr.mxu0 0.0
    %994 = vmatpush2.msra.mxu0 0.0
    %995 = vmatprep.subr.mxu0 0.0
    %996 = vmatpush2.msra.mxu0 0.0
    %997 = vmatprep.subr.mxu0 0.0
    %998 = vmatpush2.msra.mxu0 0.0
    %999 = vmatprep.subr.mxu0 0.0
    %1000 = vmatpush2.msra.mxu0 0.0
    %1001 = vmatprep.mubr.f32.mxu0 0.0
    %1002 = vmatmul.mubr.f32.gmra.mxu0 %v932
    %v1003 = vpop.f32.mrf.mxu0
    %v1004 = vadd.f32 0.0, %v1003
    %v1005 = vpop.f32.mrf.mxu0
    %1006 = vmatprep.mubr.f32.mxu0 0.0
    %1007 = vmatmul.mubr.f32.gmra.mxu0 %v935
    %v1008 = vpop.f32.mrf.mxu0
    %v1009 = vadd.f32 0.0, %v1008
    %v1010 = vpop.f32.mrf.mxu0
    %1011 = vdwg.mxu0
    %v1012 = vld [vmem:[#allocation2 + $0x248] sm:$0xff]
    %v1013 = vld [vmem:[#allocation2 + $0x250] sm:$0x1]
    %v1014 = vmul.f32 %v1004, %v1012
    %v1015 = vmul.f32 %v1009, %v1013
    %v1016 = vld [vmem:[#allocation2 + $0x2e0] sm:$0x1f]
    %v1017 = vld [vmem:[#allocation2 + $0x2e8] sm:$0x1f]
    %v1019 = vsel %vm413, %v1017, 0
    %1021 = vmatprep.subr.mxu0 0.0
    %1022 = vmatpush1.msra.mxu0 0.0
    %1023 = vmatprep.subr.mxu0 0.0
    %1024 = vmatpush1.msra.mxu0 0.0
    %1025 = vmatprep.subr.mxu0 0.0
    %1026 = vmatpush1.msra.mxu0 0.0
    %1027 = vmatprep.subr.mxu0 0.0
    %1028 = vmatpush1.msra.mxu0 0.0
    %1029 = vmatprep.subr.mxu0 0.0
    %1030 = vmatpush1.msra.mxu0 0.0
    %1031 = vmatprep.subr.mxu0 0.0
    %1032 = vmatpush1.msra.mxu0 0.0
    %1033 = vmatprep.subr.mxu0 0.0
    %1034 = vmatpush1.msra.mxu0 0.0
    %1035 = vmatprep.subr.mxu0 0.0
    %1036 = vmatpush1.msra.mxu0 0.0
    %1037 = vmatprep.subr.mxu0 0.0
    %1038 = vmatpush1.msra.mxu0 0.0
    %1039 = vmatprep.subr.mxu0 0.0
    %1040 = vmatpush1.msra.mxu0 0.0
    %1041 = vmatprep.subr.mxu0 0.0
    %1042 = vmatpush1.msra.mxu0 0.0
    %1043 = vmatprep.subr.mxu0 0.0
    %1044 = vmatpush1.msra.mxu0 0.0
    %1045 = vmatprep.subr.mxu0 0.0
    %1046 = vmatpush1.msra.mxu0 %v402
    %1047 = vmatprep.subr.mxu0 0.0
    %1048 = vmatpush1.msra.mxu0 %v397
    %1049 = vmatprep.subr.mxu0 0.0
    %1050 = vmatpush1.msra.mxu0 %v392
    %1051 = vmatprep.subr.mxu0 0.0
    %1052 = vmatpush1.msra.mxu0 %v387
    %1053 = vmatprep.subr.mxu0 0.0
    %1054 = vmatpush2.msra.mxu0 0.0
    %1055 = vmatprep.subr.mxu0 0.0
    %1056 = vmatpush2.msra.mxu0 0.0
    %1057 = vmatprep.subr.mxu0 0.0
    %1058 = vmatpush2.msra.mxu0 0.0
    %1059 = vmatprep.subr.mxu0 0.0
    %1060 = vmatpush2.msra.mxu0 0.0
    %1061 = vmatprep.subr.mxu0 0.0
    %1062 = vmatpush2.msra.mxu0 0.0
    %1063 = vmatprep.subr.mxu0 0.0
    %1064 = vmatpush2.msra.mxu0 0.0
    %1065 = vmatprep.subr.mxu0 0.0
    %1066 = vmatpush2.msra.mxu0 0.0
    %1067 = vmatprep.subr.mxu0 0.0
    %1068 = vmatpush2.msra.mxu0 0.0
    %1069 = vmatprep.subr.mxu0 0.0
    %1070 = vmatpush2.msra.mxu0 0.0
    %1071 = vmatprep.subr.mxu0 0.0
    %1072 = vmatpush2.msra.mxu0 0.0
    %1073 = vmatprep.subr.mxu0 0.0
    %1074 = vmatpush2.msra.mxu0 0.0
    %1075 = vmatprep.subr.mxu0 0.0
    %1076 = vmatpush2.msra.mxu0 0.0
    %1077 = vmatprep.subr.mxu0 0.0
    %1078 = vmatpush2.msra.mxu0 0.0
    %1079 = vmatprep.subr.mxu0 0.0
    %1080 = vmatpush2.msra.mxu0 0.0
    %1081 = vmatprep.subr.mxu0 0.0
    %1082 = vmatpush2.msra.mxu0 0.0
    %1083 = vmatprep.subr.mxu0 0.0
    %1084 = vmatpush2.msra.mxu0 0.0
    %1085 = vmatprep.mubr.f32.mxu0 0.0
    %1086 = vmatmul.mubr.f32.gmra.mxu0 %v1019
    %v1087 = vpop.f32.mrf.mxu0
    %v1088 = vadd.f32 0.0, %v1087
    %v1089 = vpop.f32.mrf.mxu0
    %1090 = vdwg.mxu0
    %v1092 = vsel %vm413, %v1016, 0
    %1094 = vmatprep.subr.mxu0 0.0
    %1095 = vmatpush1.msra.mxu0 0.0
    %1096 = vmatprep.subr.mxu0 0.0
    %1097 = vmatpush1.msra.mxu0 0.0
    %1098 = vmatprep.subr.mxu0 0.0
    %1099 = vmatpush1.msra.mxu0 0.0
    %1100 = vmatprep.subr.mxu0 0.0
    %1101 = vmatpush1.msra.mxu0 0.0
    %1102 = vmatprep.subr.mxu0 0.0
    %1103 = vmatpush1.msra.mxu0 0.0
    %1104 = vmatprep.subr.mxu0 0.0
    %1105 = vmatpush1.msra.mxu0 0.0
    %1106 = vmatprep.subr.mxu0 0.0
    %1107 = vmatpush1.msra.mxu0 0.0
    %1108 = vmatprep.subr.mxu0 0.0
    %1109 = vmatpush1.msra.mxu0 0.0
    %1110 = vmatprep.subr.mxu0 0.0
    %1111 = vmatpush1.msra.mxu0 0.0
    %1112 = vmatprep.subr.mxu0 0.0
    %1113 = vmatpush1.msra.mxu0 0.0
    %1114 = vmatprep.subr.mxu0 0.0
    %1115 = vmatpush1.msra.mxu0 0.0
    %1116 = vmatprep.subr.mxu0 0.0
    %1117 = vmatpush1.msra.mxu0 0.0
    %1118 = vmatprep.subr.mxu0 0.0
    %1119 = vmatpush1.msra.mxu0 %v317
    %1120 = vmatprep.subr.mxu0 0.0
    %1121 = vmatpush1.msra.mxu0 %v312
    %1122 = vmatprep.subr.mxu0 0.0
    %1123 = vmatpush1.msra.mxu0 %v307
    %1124 = vmatprep.subr.mxu0 0.0
    %1125 = vmatpush1.msra.mxu0 %v302
    %1126 = vmatprep.subr.mxu0 0.0
    %1127 = vmatpush2.msra.mxu0 0.0
    %1128 = vmatprep.subr.mxu0 0.0
    %1129 = vmatpush2.msra.mxu0 0.0
    %1130 = vmatprep.subr.mxu0 0.0
    %1131 = vmatpush2.msra.mxu0 0.0
    %1132 = vmatprep.subr.mxu0 0.0
    %1133 = vmatpush2.msra.mxu0 0.0
    %1134 = vmatprep.subr.mxu0 0.0
    %1135 = vmatpush2.msra.mxu0 0.0
    %1136 = vmatprep.subr.mxu0 0.0
    %1137 = vmatpush2.msra.mxu0 0.0
    %1138 = vmatprep.subr.mxu0 0.0
    %1139 = vmatpush2.msra.mxu0 0.0
    %1140 = vmatprep.subr.mxu0 0.0
    %1141 = vmatpush2.msra.mxu0 0.0
    %1142 = vmatprep.subr.mxu0 0.0
    %1143 = vmatpush2.msra.mxu0 0.0
    %1144 = vmatprep.subr.mxu0 0.0
    %1145 = vmatpush2.msra.mxu0 0.0
    %1146 = vmatprep.subr.mxu0 0.0
    %1147 = vmatpush2.msra.mxu0 0.0
    %1148 = vmatprep.subr.mxu0 0.0
    %1149 = vmatpush2.msra.mxu0 0.0
    %1150 = vmatprep.subr.mxu0 0.0
    %1151 = vmatpush2.msra.mxu0 0.0
    %1152 = vmatprep.subr.mxu0 0.0
    %1153 = vmatpush2.msra.mxu0 0.0
    %1154 = vmatprep.subr.mxu0 0.0
    %1155 = vmatpush2.msra.mxu0 0.0
    %1156 = vmatprep.subr.mxu0 0.0
    %1157 = vmatpush2.msra.mxu0 0.0
    %1158 = vmatprep.mubr.f32.mxu0 0.0
    %1159 = vmatmul.mubr.f32.gmra.mxu0 %v1092
    %v1160 = vpop.f32.mrf.mxu0
    %v1161 = vadd.f32 %v1088, %v1160
    %v1162 = vpop.f32.mrf.mxu0
    %1163 = vdwg.mxu0
    %v1164 = vld [vmem:[#allocation2 + $0x2f0] sm:$0x1f]
    %1166 = vset.pattern.permute.xlu0 0
    %1167 = vperm.xlu0 %1166, %v1164
    %v1168 = vpop.permute.xlu0 %1167
    %v1170 = vadd.f32 %v1161, %v1168
    %v1171 = vmax.f32 %v1170, 0.0
    %v1172 = vld [vmem:[#allocation2 + $0x2f8] sm:$0xff]
    %v1173 = vld [vmem:[#allocation2 + $0x300] sm:$0x1]
    %v1174 = vld [vmem:[#allocation2 + $0x308] sm:$0xff]
    %v1175 = vld [vmem:[#allocation2 + $0x310] sm:$0x1]
    %1177 = vset.pattern.permute.xlu0 0
    %1178 = vperm.xlu0 %1177, %v1174
    %v1179 = vpop.permute.xlu0 %1178
    %1182 = vset.pattern.permute.xlu0 0
    %1183 = vperm.xlu0 %1182, %v1175
    %v1184 = vpop.permute.xlu0 %1183
    %v1187 = vsel %vm832, %v1172, 0
    %v1190 = vsel %vm832, %v1173, 0
    %v1193 = vsel %vm839, %v1171, 0
    %1195 = vmatprep.subr.mxu0 0.0
    %1196 = vmatpush1.msra.mxu0 0.0
    %1197 = vmatprep.subr.mxu0 0.0
    %1198 = vmatpush1.msra.mxu0 0.0
    %1199 = vmatprep.subr.mxu0 0.0
    %1200 = vmatpush1.msra.mxu0 0.0
    %1201 = vmatprep.subr.mxu0 0.0
    %1202 = vmatpush1.msra.mxu0 0.0
    %1203 = vmatprep.subr.mxu0 0.0
    %1204 = vmatpush1.msra.mxu0 0.0
    %1205 = vmatprep.subr.mxu0 0.0
    %1206 = vmatpush1.msra.mxu0 0.0
    %1207 = vmatprep.subr.mxu0 0.0
    %1208 = vmatpush1.msra.mxu0 0.0
    %1209 = vmatprep.subr.mxu0 0.0
    %1210 = vmatpush1.msra.mxu0 0.0
    %1211 = vmatprep.subr.mxu0 0.0
    %1212 = vmatpush1.msra.mxu0 0.0
    %1213 = vmatprep.subr.mxu0 0.0
    %1214 = vmatpush1.msra.mxu0 0.0
    %1215 = vmatprep.subr.mxu0 0.0
    %1216 = vmatpush1.msra.mxu0 0.0
    %1217 = vmatprep.subr.mxu0 0.0
    %1218 = vmatpush1.msra.mxu0 0.0
    %1219 = vmatprep.subr.mxu0 0.0
    %1220 = vmatpush1.msra.mxu0 0.0
    %1221 = vmatprep.subr.mxu0 0.0
    %1222 = vmatpush1.msra.mxu0 0.0
    %1223 = vmatprep.subr.mxu0 0.0
    %1224 = vmatpush1.msra.mxu0 0.0
    %1225 = vmatprep.subr.mxu0 0.0
    %1226 = vmatpush1.msra.mxu0 %v1193
    %1227 = vmatprep.subr.mxu0 0.0
    %1228 = vmatpush2.msra.mxu0 0.0
    %1229 = vmatprep.subr.mxu0 0.0
    %1230 = vmatpush2.msra.mxu0 0.0
    %1231 = vmatprep.subr.mxu0 0.0
    %1232 = vmatpush2.msra.mxu0 0.0
    %1233 = vmatprep.subr.mxu0 0.0
    %1234 = vmatpush2.msra.mxu0 0.0
    %1235 = vmatprep.subr.mxu0 0.0
    %1236 = vmatpush2.msra.mxu0 0.0
    %1237 = vmatprep.subr.mxu0 0.0
    %1238 = vmatpush2.msra.mxu0 0.0
    %1239 = vmatprep.subr.mxu0 0.0
    %1240 = vmatpush2.msra.mxu0 0.0
    %1241 = vmatprep.subr.mxu0 0.0
    %1242 = vmatpush2.msra.mxu0 0.0
    %1243 = vmatprep.subr.mxu0 0.0
    %1244 = vmatpush2.msra.mxu0 0.0
    %1245 = vmatprep.subr.mxu0 0.0
    %1246 = vmatpush2.msra.mxu0 0.0
    %1247 = vmatprep.subr.mxu0 0.0
    %1248 = vmatpush2.msra.mxu0 0.0
    %1249 = vmatprep.subr.mxu0 0.0
    %1250 = vmatpush2.msra.mxu0 0.0
    %1251 = vmatprep.subr.mxu0 0.0
    %1252 = vmatpush2.msra.mxu0 0.0
    %1253 = vmatprep.subr.mxu0 0.0
    %1254 = vmatpush2.msra.mxu0 0.0
    %1255 = vmatprep.subr.mxu0 0.0
    %1256 = vmatpush2.msra.mxu0 0.0
    %1257 = vmatprep.subr.mxu0 0.0
    %1258 = vmatpush2.msra.mxu0 0.0
    %1259 = vmatprep.mubr.f32.mxu0 0.0
    %1260 = vmatmul.mubr.f32.gmra.mxu0 %v1187
    %v1261 = vpop.f32.mrf.mxu0
    %v1262 = vadd.f32 %v1179, %v1261
    %v1263 = vpop.f32.mrf.mxu0
    %1264 = vmatprep.mubr.f32.mxu0 0.0
    %1265 = vmatmul.mubr.f32.gmra.mxu0 %v1190
    %v1266 = vpop.f32.mrf.mxu0
    %v1267 = vadd.f32 %v1184, %v1266
    %v1268 = vpop.f32.mrf.mxu0
    %1269 = vdwg.mxu0
    %v1270 = vxor.u32 %v1262, 2147483648
    %v1271 = vxor.u32 %v1267, 2147483648
    %v1272 = vmul.f32 %v1270, 1.442695
    %v1273 = vpow.pop %v1272
    %v1274 = vmul.f32 %v1271, 1.442695
    %v1275 = vpow.pop %v1274
    %v1276 = vadd.f32 %v1273, 1.0
    %v1277 = vadd.f32 %v1275, 1.0
    %v1278 = vrcp.pop %v1276
    %v1279 = vmul.f32 1.0, %v1278
    %v1280 = vrcp.pop %v1277
    %v1281 = vmul.f32 1.0, %v1280
    %v1283 = vsel %vm930, %v1279, 0
    %v1286 = vsel %vm930, %v1281, 0
    %1288 = vmatprep.subr.mxu0 0.0
    %1289 = vmatpush1.msra.mxu0 0.0
    %1290 = vmatprep.subr.mxu0 0.0
    %1291 = vmatpush1.msra.mxu0 0.0
    %1292 = vmatprep.subr.mxu0 0.0
    %1293 = vmatpush1.msra.mxu0 0.0
    %1294 = vmatprep.subr.mxu0 0.0
    %1295 = vmatpush1.msra.mxu0 0.0
    %1296 = vmatprep.subr.mxu0 0.0
    %1297 = vmatpush1.msra.mxu0 0.0
    %1298 = vmatprep.subr.mxu0 0.0
    %1299 = vmatpush1.msra.mxu0 0.0
    %1300 = vmatprep.subr.mxu0 0.0
    %1301 = vmatpush1.msra.mxu0 0.0
    %1302 = vmatprep.subr.mxu0 0.0
    %1303 = vmatpush1.msra.mxu0 0.0
    %1304 = vmatprep.subr.mxu0 0.0
    %1305 = vmatpush1.msra.mxu0 0.0
    %1306 = vmatprep.subr.mxu0 0.0
    %1307 = vmatpush1.msra.mxu0 0.0
    %1308 = vmatprep.subr.mxu0 0.0
    %1309 = vmatpush1.msra.mxu0 0.0
    %1310 = vmatprep.subr.mxu0 0.0
    %1311 = vmatpush1.msra.mxu0 0.0
    %1312 = vmatprep.subr.mxu0 0.0
    %1313 = vmatpush1.msra.mxu0 0.0
    %1314 = vmatprep.subr.mxu0 0.0
    %1315 = vmatpush1.msra.mxu0 0.0
    %1316 = vmatprep.subr.mxu0 0.0
    %1317 = vmatpush1.msra.mxu0 0.0
    %1318 = vmatprep.subr.mxu0 0.0
    %1319 = vmatpush1.msra.mxu0 %v661
    %1320 = vmatprep.subr.mxu0 0.0
    %1321 = vmatpush2.msra.mxu0 0.0
    %1322 = vmatprep.subr.mxu0 0.0
    %1323 = vmatpush2.msra.mxu0 0.0
    %1324 = vmatprep.subr.mxu0 0.0
    %1325 = vmatpush2.msra.mxu0 0.0
    %1326 = vmatprep.subr.mxu0 0.0
    %1327 = vmatpush2.msra.mxu0 0.0
    %1328 = vmatprep.subr.mxu0 0.0
    %1329 = vmatpush2.msra.mxu0 0.0
    %1330 = vmatprep.subr.mxu0 0.0
    %1331 = vmatpush2.msra.mxu0 0.0
    %1332 = vmatprep.subr.mxu0 0.0
    %1333 = vmatpush2.msra.mxu0 0.0
    %1334 = vmatprep.subr.mxu0 0.0
    %1335 = vmatpush2.msra.mxu0 0.0
    %1336 = vmatprep.subr.mxu0 0.0
    %1337 = vmatpush2.msra.mxu0 0.0
    %1338 = vmatprep.subr.mxu0 0.0
    %1339 = vmatpush2.msra.mxu0 0.0
    %1340 = vmatprep.subr.mxu0 0.0
    %1341 = vmatpush2.msra.mxu0 0.0
    %1342 = vmatprep.subr.mxu0 0.0
    %1343 = vmatpush2.msra.mxu0 0.0
    %1344 = vmatprep.subr.mxu0 0.0
    %1345 = vmatpush2.msra.mxu0 0.0
    %1346 = vmatprep.subr.mxu0 0.0
    %1347 = vmatpush2.msra.mxu0 0.0
    %1348 = vmatprep.subr.mxu0 0.0
    %1349 = vmatpush2.msra.mxu0 0.0
    %1350 = vmatprep.subr.mxu0 0.0
    %1351 = vmatpush2.msra.mxu0 0.0
    %1352 = vmatprep.mubr.f32.mxu0 0.0
    %1353 = vmatmul.mubr.f32.gmra.mxu0 %v1283
    %v1354 = vpop.f32.mrf.mxu0
    %v1355 = vadd.f32 0.0, %v1354
    %v1356 = vpop.f32.mrf.mxu0
    %1357 = vmatprep.mubr.f32.mxu0 0.0
    %1358 = vmatmul.mubr.f32.gmra.mxu0 %v1286
    %v1359 = vpop.f32.mrf.mxu0
    %v1360 = vadd.f32 0.0, %v1359
    %v1361 = vpop.f32.mrf.mxu0
    %1362 = vdwg.mxu0
    %v1363 = vld [vmem:[#allocation2 + $0x318] sm:$0xff]
    %v1364 = vld [vmem:[#allocation2 + $0x320] sm:$0x1]
    %v1365 = vmul.f32 %v1355, %v1363
    %v1366 = vmul.f32 %v1360, %v1364
    %v1367 = vld [vmem:[#allocation2 + $0xa8] sm:$0xff]
    %v1368 = vld [vmem:[#allocation2 + $0xb0] sm:$0xff]
    %v1369 = vld [vmem:[#allocation2 + $0xb8] sm:$0xff]
    %v1370 = vld [vmem:[#allocation2 + $0xc0] sm:$0xff]
    %1371 = vmatprep.subr.mxu0 0.0
    %1372 = vmatpush1.msra.mxu0 0.0
    %1373 = vmatprep.subr.mxu0 0.0
    %1374 = vmatpush1.msra.mxu0 0.0
    %1375 = vmatprep.subr.mxu0 0.0
    %1376 = vmatpush1.msra.mxu0 0.0
    %1377 = vmatprep.subr.mxu0 0.0
    %1378 = vmatpush1.msra.mxu0 0.0
    %1379 = vmatprep.subr.mxu0 0.0
    %1380 = vmatpush1.msra.mxu0 0.0
    %1381 = vmatprep.subr.mxu0 0.0
    %1382 = vmatpush1.msra.mxu0 0.0
    %1383 = vmatprep.subr.mxu0 0.0
    %1384 = vmatpush1.msra.mxu0 0.0
    %1385 = vmatprep.subr.mxu0 0.0
    %1386 = vmatpush1.msra.mxu0 0.0
    %1387 = vmatprep.subr.mxu0 0.0
    %1388 = vmatpush1.msra.mxu0 0.0
    %1389 = vmatprep.subr.mxu0 0.0
    %1390 = vmatpush1.msra.mxu0 0.0
    %1391 = vmatprep.subr.mxu0 0.0
    %1392 = vmatpush1.msra.mxu0 0.0
    %1393 = vmatprep.subr.mxu0 0.0
    %1394 = vmatpush1.msra.mxu0 0.0
    %1395 = vmatprep.subr.mxu0 0.0
    %1396 = vmatpush1.msra.mxu0 %v1370
    %1397 = vmatprep.subr.mxu0 0.0
    %1398 = vmatpush1.msra.mxu0 %v1369
    %1399 = vmatprep.subr.mxu0 0.0
    %1400 = vmatpush1.msra.mxu0 %v1368
    %1401 = vmatprep.subr.mxu0 0.0
    %1402 = vmatpush1.msra.mxu0 %v1367
    %1403 = vmatprep.subr.mxu0 0.0
    %1404 = vmatpush2.msra.mxu0 0.0
    %1405 = vmatprep.subr.mxu0 0.0
    %1406 = vmatpush2.msra.mxu0 0.0
    %1407 = vmatprep.subr.mxu0 0.0
    %1408 = vmatpush2.msra.mxu0 0.0
    %1409 = vmatprep.subr.mxu0 0.0
    %1410 = vmatpush2.msra.mxu0 0.0
    %1411 = vmatprep.subr.mxu0 0.0
    %1412 = vmatpush2.msra.mxu0 0.0
    %1413 = vmatprep.subr.mxu0 0.0
    %1414 = vmatpush2.msra.mxu0 0.0
    %1415 = vmatprep.subr.mxu0 0.0
    %1416 = vmatpush2.msra.mxu0 0.0
    %1417 = vmatprep.subr.mxu0 0.0
    %1418 = vmatpush2.msra.mxu0 0.0
    %1419 = vmatprep.subr.mxu0 0.0
    %1420 = vmatpush2.msra.mxu0 0.0
    %1421 = vmatprep.subr.mxu0 0.0
    %1422 = vmatpush2.msra.mxu0 0.0
    %1423 = vmatprep.subr.mxu0 0.0
    %1424 = vmatpush2.msra.mxu0 0.0
    %1425 = vmatprep.subr.mxu0 0.0
    %1426 = vmatpush2.msra.mxu0 0.0
    %1427 = vmatprep.subr.mxu0 0.0
    %1428 = vmatpush2.msra.mxu0 0.0
    %1429 = vmatprep.subr.mxu0 0.0
    %1430 = vmatpush2.msra.mxu0 0.0
    %1431 = vmatprep.subr.mxu0 0.0
    %1432 = vmatpush2.msra.mxu0 0.0
    %1433 = vmatprep.subr.mxu0 0.0
    %1434 = vmatpush2.msra.mxu0 0.0
    %1435 = vmatprep.mubr.f32.mxu0 0.0
    %1436 = vmatmul.mubr.f32.gmra.mxu0 %v488
    %v1437 = vpop.f32.mrf.mxu0
    %v1438 = vadd.f32 0.0, %v1437
    %v1439 = vpop.f32.mrf.mxu0
    %1440 = vdwg.mxu0
    %1441 = vmatprep.subr.mxu0 0.0
    %1442 = vmatpush1.msra.mxu0 0.0
    %1443 = vmatprep.subr.mxu0 0.0
    %1444 = vmatpush1.msra.mxu0 0.0
    %1445 = vmatprep.subr.mxu0 0.0
    %1446 = vmatpush1.msra.mxu0 0.0
    %1447 = vmatprep.subr.mxu0 0.0
    %1448 = vmatpush1.msra.mxu0 0.0
    %1449 = vmatprep.subr.mxu0 0.0
    %1450 = vmatpush1.msra.mxu0 0.0
    %1451 = vmatprep.subr.mxu0 0.0
    %1452 = vmatpush1.msra.mxu0 0.0
    %1453 = vmatprep.subr.mxu0 0.0
    %1454 = vmatpush1.msra.mxu0 0.0
    %1455 = vmatprep.subr.mxu0 0.0
    %1456 = vmatpush1.msra.mxu0 0.0
    %1457 = vmatprep.subr.mxu0 0.0
    %1458 = vmatpush1.msra.mxu0 0.0
    %1459 = vmatprep.subr.mxu0 0.0
    %1460 = vmatpush1.msra.mxu0 0.0
    %1461 = vmatprep.subr.mxu0 0.0
    %1462 = vmatpush1.msra.mxu0 0.0
    %1463 = vmatprep.subr.mxu0 0.0
    %1464 = vmatpush1.msra.mxu0 0.0
    %1465 = vmatprep.subr.mxu0 0.0
    %1466 = vmatpush1.msra.mxu0 %v1370
    %1467 = vmatprep.subr.mxu0 0.0
    %1468 = vmatpush1.msra.mxu0 %v1369
    %1469 = vmatprep.subr.mxu0 0.0
    %1470 = vmatpush1.msra.mxu0 %v1368
    %1471 = vmatprep.subr.mxu0 0.0
    %1472 = vmatpush1.msra.mxu0 %v1367
    %1473 = vmatprep.subr.mxu0 0.0
    %1474 = vmatpush2.msra.mxu0 0.0
    %1475 = vmatprep.subr.mxu0 0.0
    %1476 = vmatpush2.msra.mxu0 0.0
    %1477 = vmatprep.subr.mxu0 0.0
    %1478 = vmatpush2.msra.mxu0 0.0
    %1479 = vmatprep.subr.mxu0 0.0
    %1480 = vmatpush2.msra.mxu0 0.0
    %1481 = vmatprep.subr.mxu0 0.0
    %1482 = vmatpush2.msra.mxu0 0.0
    %1483 = vmatprep.subr.mxu0 0.0
    %1484 = vmatpush2.msra.mxu0 0.0
    %1485 = vmatprep.subr.mxu0 0.0
    %1486 = vmatpush2.msra.mxu0 0.0
    %1487 = vmatprep.subr.mxu0 0.0
    %1488 = vmatpush2.msra.mxu0 0.0
    %1489 = vmatprep.subr.mxu0 0.0
    %1490 = vmatpush2.msra.mxu0 0.0
    %1491 = vmatprep.subr.mxu0 0.0
    %1492 = vmatpush2.msra.mxu0 0.0
    %1493 = vmatprep.subr.mxu0 0.0
    %1494 = vmatpush2.msra.mxu0 0.0
    %1495 = vmatprep.subr.mxu0 0.0
    %1496 = vmatpush2.msra.mxu0 0.0
    %1497 = vmatprep.subr.mxu0 0.0
    %1498 = vmatpush2.msra.mxu0 0.0
    %1499 = vmatprep.subr.mxu0 0.0
    %1500 = vmatpush2.msra.mxu0 0.0
    %1501 = vmatprep.subr.mxu0 0.0
    %1502 = vmatpush2.msra.mxu0 0.0
    %1503 = vmatprep.subr.mxu0 0.0
    %1504 = vmatpush2.msra.mxu0 0.0
    %1505 = vmatprep.mubr.f32.mxu0 0.0
    %1506 = vmatmul.mubr.f32.gmra.mxu0 %v415
    %v1507 = vpop.f32.mrf.mxu0
    %v1508 = vadd.f32 0.0, %v1507
    %v1509 = vpop.f32.mrf.mxu0
    %1510 = vdwg.mxu0
    %v1511 = vmul.f32 %v661, %v1438
    %v1513 = vsel %vm930, %v58, 0
    %v1516 = vsel %vm930, %v59, 0
    %1518 = vmatprep.subr.mxu0 0.0
    %1519 = vmatpush1.msra.mxu0 0.0
    %1520 = vmatprep.subr.mxu0 0.0
    %1521 = vmatpush1.msra.mxu0 0.0
    %1522 = vmatprep.subr.mxu0 0.0
    %1523 = vmatpush1.msra.mxu0 0.0
    %1524 = vmatprep.subr.mxu0 0.0
    %1525 = vmatpush1.msra.mxu0 0.0
    %1526 = vmatprep.subr.mxu0 0.0
    %1527 = vmatpush1.msra.mxu0 0.0
    %1528 = vmatprep.subr.mxu0 0.0
    %1529 = vmatpush1.msra.mxu0 0.0
    %1530 = vmatprep.subr.mxu0 0.0
    %1531 = vmatpush1.msra.mxu0 0.0
    %1532 = vmatprep.subr.mxu0 0.0
    %1533 = vmatpush1.msra.mxu0 0.0
    %1534 = vmatprep.subr.mxu0 0.0
    %1535 = vmatpush1.msra.mxu0 0.0
    %1536 = vmatprep.subr.mxu0 0.0
    %1537 = vmatpush1.msra.mxu0 0.0
    %1538 = vmatprep.subr.mxu0 0.0
    %1539 = vmatpush1.msra.mxu0 0.0
    %1540 = vmatprep.subr.mxu0 0.0
    %1541 = vmatpush1.msra.mxu0 0.0
    %1542 = vmatprep.subr.mxu0 0.0
    %1543 = vmatpush1.msra.mxu0 0.0
    %1544 = vmatprep.subr.mxu0 0.0
    %1545 = vmatpush1.msra.mxu0 0.0
    %1546 = vmatprep.subr.mxu0 0.0
    %1547 = vmatpush1.msra.mxu0 0.0
    %1548 = vmatprep.subr.mxu0 0.0
    %1549 = vmatpush1.msra.mxu0 %v1511
    %1550 = vmatprep.subr.mxu0 0.0
    %1551 = vmatpush2.msra.mxu0 0.0
    %1552 = vmatprep.subr.mxu0 0.0
    %1553 = vmatpush2.msra.mxu0 0.0
    %1554 = vmatprep.subr.mxu0 0.0
    %1555 = vmatpush2.msra.mxu0 0.0
    %1556 = vmatprep.subr.mxu0 0.0
    %1557 = vmatpush2.msra.mxu0 0.0
    %1558 = vmatprep.subr.mxu0 0.0
    %1559 = vmatpush2.msra.mxu0 0.0
    %1560 = vmatprep.subr.mxu0 0.0
    %1561 = vmatpush2.msra.mxu0 0.0
    %1562 = vmatprep.subr.mxu0 0.0
    %1563 = vmatpush2.msra.mxu0 0.0
    %1564 = vmatprep.subr.mxu0 0.0
    %1565 = vmatpush2.msra.mxu0 0.0
    %1566 = vmatprep.subr.mxu0 0.0
    %1567 = vmatpush2.msra.mxu0 0.0
    %1568 = vmatprep.subr.mxu0 0.0
    %1569 = vmatpush2.msra.mxu0 0.0
    %1570 = vmatprep.subr.mxu0 0.0
    %1571 = vmatpush2.msra.mxu0 0.0
    %1572 = vmatprep.subr.mxu0 0.0
    %1573 = vmatpush2.msra.mxu0 0.0
    %1574 = vmatprep.subr.mxu0 0.0
    %1575 = vmatpush2.msra.mxu0 0.0
    %1576 = vmatprep.subr.mxu0 0.0
    %1577 = vmatpush2.msra.mxu0 0.0
    %1578 = vmatprep.subr.mxu0 0.0
    %1579 = vmatpush2.msra.mxu0 0.0
    %1580 = vmatprep.subr.mxu0 0.0
    %1581 = vmatpush2.msra.mxu0 0.0
    %1582 = vmatprep.mubr.f32.mxu0 0.0
    %1583 = vmatmul.mubr.f32.gmra.mxu0 %v1513
    %v1584 = vpop.f32.mrf.mxu0
    %v1585 = vadd.f32 0.0, %v1584
    %v1586 = vpop.f32.mrf.mxu0
    %1587 = vmatprep.mubr.f32.mxu0 0.0
    %1588 = vmatmul.mubr.f32.gmra.mxu0 %v1516
    %v1589 = vpop.f32.mrf.mxu0
    %v1590 = vadd.f32 0.0, %v1589
    %v1591 = vpop.f32.mrf.mxu0
    %1592 = vdwg.mxu0
    %v1593 = vmul.f32 %v661, %v1508
    %v1595 = vsel %vm930, %v68, 0
    %v1598 = vsel %vm930, %v69, 0
    %1600 = vmatprep.subr.mxu0 0.0
    %1601 = vmatpush1.msra.mxu0 0.0
    %1602 = vmatprep.subr.mxu0 0.0
    %1603 = vmatpush1.msra.mxu0 0.0
    %1604 = vmatprep.subr.mxu0 0.0
    %1605 = vmatpush1.msra.mxu0 0.0
    %1606 = vmatprep.subr.mxu0 0.0
    %1607 = vmatpush1.msra.mxu0 0.0
    %1608 = vmatprep.subr.mxu0 0.0
    %1609 = vmatpush1.msra.mxu0 0.0
    %1610 = vmatprep.subr.mxu0 0.0
    %1611 = vmatpush1.msra.mxu0 0.0
    %1612 = vmatprep.subr.mxu0 0.0
    %1613 = vmatpush1.msra.mxu0 0.0
    %1614 = vmatprep.subr.mxu0 0.0
    %1615 = vmatpush1.msra.mxu0 0.0
    %1616 = vmatprep.subr.mxu0 0.0
    %1617 = vmatpush1.msra.mxu0 0.0
    %1618 = vmatprep.subr.mxu0 0.0
    %1619 = vmatpush1.msra.mxu0 0.0
    %1620 = vmatprep.subr.mxu0 0.0
    %1621 = vmatpush1.msra.mxu0 0.0
    %1622 = vmatprep.subr.mxu0 0.0
    %1623 = vmatpush1.msra.mxu0 0.0
    %1624 = vmatprep.subr.mxu0 0.0
    %1625 = vmatpush1.msra.mxu0 0.0
    %1626 = vmatprep.subr.mxu0 0.0
    %1627 = vmatpush1.msra.mxu0 0.0
    %1628 = vmatprep.subr.mxu0 0.0
    %1629 = vmatpush1.msra.mxu0 0.0
    %1630 = vmatprep.subr.mxu0 0.0
    %1631 = vmatpush1.msra.mxu0 %v1593
    %1632 = vmatprep.subr.mxu0 0.0
    %1633 = vmatpush2.msra.mxu0 0.0
    %1634 = vmatprep.subr.mxu0 0.0
    %1635 = vmatpush2.msra.mxu0 0.0
    %1636 = vmatprep.subr.mxu0 0.0
    %1637 = vmatpush2.msra.mxu0 0.0
    %1638 = vmatprep.subr.mxu0 0.0
    %1639 = vmatpush2.msra.mxu0 0.0
    %1640 = vmatprep.subr.mxu0 0.0
    %1641 = vmatpush2.msra.mxu0 0.0
    %1642 = vmatprep.subr.mxu0 0.0
    %1643 = vmatpush2.msra.mxu0 0.0
    %1644 = vmatprep.subr.mxu0 0.0
    %1645 = vmatpush2.msra.mxu0 0.0
    %1646 = vmatprep.subr.mxu0 0.0
    %1647 = vmatpush2.msra.mxu0 0.0
    %1648 = vmatprep.subr.mxu0 0.0
    %1649 = vmatpush2.msra.mxu0 0.0
    %1650 = vmatprep.subr.mxu0 0.0
    %1651 = vmatpush2.msra.mxu0 0.0
    %1652 = vmatprep.subr.mxu0 0.0
    %1653 = vmatpush2.msra.mxu0 0.0
    %1654 = vmatprep.subr.mxu0 0.0
    %1655 = vmatpush2.msra.mxu0 0.0
    %1656 = vmatprep.subr.mxu0 0.0
    %1657 = vmatpush2.msra.mxu0 0.0
    %1658 = vmatprep.subr.mxu0 0.0
    %1659 = vmatpush2.msra.mxu0 0.0
    %1660 = vmatprep.subr.mxu0 0.0
    %1661 = vmatpush2.msra.mxu0 0.0
    %1662 = vmatprep.subr.mxu0 0.0
    %1663 = vmatpush2.msra.mxu0 0.0
    %1664 = vmatprep.mubr.f32.mxu0 0.0
    %1665 = vmatmul.mubr.f32.gmra.mxu0 %v1595
    %v1666 = vpop.f32.mrf.mxu0
    %v1667 = vadd.f32 0.0, %v1666
    %v1668 = vpop.f32.mrf.mxu0
    %1669 = vmatprep.mubr.f32.mxu0 0.0
    %1670 = vmatmul.mubr.f32.gmra.mxu0 %v1598
    %v1671 = vpop.f32.mrf.mxu0
    %v1672 = vadd.f32 0.0, %v1671
    %v1673 = vpop.f32.mrf.mxu0
    %1674 = vdwg.mxu0
    %v1675 = vld [vmem:[#allocation2 + $0xc8] sm:$0xff]
    %v1676 = vld [vmem:[#allocation2 + $0xd0] sm:$0xff]
    %v1677 = vld [vmem:[#allocation2 + $0xd8] sm:$0xff]
    %v1678 = vld [vmem:[#allocation2 + $0xe0] sm:$0xff]
    %v1679 = vld [vmem:[#allocation2 + $0xe8] sm:$0xff]
    %v1680 = vld [vmem:[#allocation2 + $0xf0] sm:$0xff]
    %v1681 = vld [vmem:[#allocation2 + $0xf8] sm:$0xff]
    %v1682 = vld [vmem:[#allocation2 + $0x100] sm:$0xff]
    %1683 = vmatprep.subr.mxu0 0.0
    %1684 = vmatpush1.msra.mxu0 0.0
    %1685 = vmatprep.subr.mxu0 0.0
    %1686 = vmatpush1.msra.mxu0 0.0
    %1687 = vmatprep.subr.mxu0 0.0
    %1688 = vmatpush1.msra.mxu0 0.0
    %1689 = vmatprep.subr.mxu0 0.0
    %1690 = vmatpush1.msra.mxu0 0.0
    %1691 = vmatprep.subr.mxu0 0.0
    %1692 = vmatpush1.msra.mxu0 0.0
    %1693 = vmatprep.subr.mxu0 0.0
    %1694 = vmatpush1.msra.mxu0 0.0
    %1695 = vmatprep.subr.mxu0 0.0
    %1696 = vmatpush1.msra.mxu0 0.0
    %1697 = vmatprep.subr.mxu0 0.0
    %1698 = vmatpush1.msra.mxu0 0.0
    %1699 = vmatprep.subr.mxu0 0.0
    %1700 = vmatpush1.msra.mxu0 0.0
    %1701 = vmatprep.subr.mxu0 0.0
    %1702 = vmatpush1.msra.mxu0 0.0
    %1703 = vmatprep.subr.mxu0 0.0
    %1704 = vmatpush1.msra.mxu0 0.0
    %1705 = vmatprep.subr.mxu0 0.0
    %1706 = vmatpush1.msra.mxu0 0.0
    %1707 = vmatprep.subr.mxu0 0.0
    %1708 = vmatpush1.msra.mxu0 %v1682
    %1709 = vmatprep.subr.mxu0 0.0
    %1710 = vmatpush1.msra.mxu0 %v1681
    %1711 = vmatprep.subr.mxu0 0.0
    %1712 = vmatpush1.msra.mxu0 %v1680
    %1713 = vmatprep.subr.mxu0 0.0
    %1714 = vmatpush1.msra.mxu0 %v1679
    %1715 = vmatprep.subr.mxu0 0.0
    %1716 = vmatpush2.msra.mxu0 0.0
    %1717 = vmatprep.subr.mxu0 0.0
    %1718 = vmatpush2.msra.mxu0 0.0
    %1719 = vmatprep.subr.mxu0 0.0
    %1720 = vmatpush2.msra.mxu0 0.0
    %1721 = vmatprep.subr.mxu0 0.0
    %1722 = vmatpush2.msra.mxu0 0.0
    %1723 = vmatprep.subr.mxu0 0.0
    %1724 = vmatpush2.msra.mxu0 0.0
    %1725 = vmatprep.subr.mxu0 0.0
    %1726 = vmatpush2.msra.mxu0 0.0
    %1727 = vmatprep.subr.mxu0 0.0
    %1728 = vmatpush2.msra.mxu0 0.0
    %1729 = vmatprep.subr.mxu0 0.0
    %1730 = vmatpush2.msra.mxu0 0.0
    %1731 = vmatprep.subr.mxu0 0.0
    %1732 = vmatpush2.msra.mxu0 0.0
    %1733 = vmatprep.subr.mxu0 0.0
    %1734 = vmatpush2.msra.mxu0 0.0
    %1735 = vmatprep.subr.mxu0 0.0
    %1736 = vmatpush2.msra.mxu0 0.0
    %1737 = vmatprep.subr.mxu0 0.0
    %1738 = vmatpush2.msra.mxu0 0.0
    %1739 = vmatprep.subr.mxu0 0.0
    %1740 = vmatpush2.msra.mxu0 0.0
    %1741 = vmatprep.subr.mxu0 0.0
    %1742 = vmatpush2.msra.mxu0 0.0
    %1743 = vmatprep.subr.mxu0 0.0
    %1744 = vmatpush2.msra.mxu0 0.0
    %1745 = vmatprep.subr.mxu0 0.0
    %1746 = vmatpush2.msra.mxu0 0.0
    %1747 = vmatprep.mubr.f32.mxu0 0.0
    %1748 = vmatmul.mubr.f32.gmra.mxu0 %v415
    %v1749 = vpop.f32.mrf.mxu0
    %v1750 = vadd.f32 0.0, %v1749
    %v1751 = vpop.f32.mrf.mxu0
    %1752 = vdwg.mxu0
    %1753 = vmatprep.subr.mxu0 0.0
    %1754 = vmatpush1.msra.mxu0 0.0
    %1755 = vmatprep.subr.mxu0 0.0
    %1756 = vmatpush1.msra.mxu0 0.0
    %1757 = vmatprep.subr.mxu0 0.0
    %1758 = vmatpush1.msra.mxu0 0.0
    %1759 = vmatprep.subr.mxu0 0.0
    %1760 = vmatpush1.msra.mxu0 0.0
    %1761 = vmatprep.subr.mxu0 0.0
    %1762 = vmatpush1.msra.mxu0 0.0
    %1763 = vmatprep.subr.mxu0 0.0
    %1764 = vmatpush1.msra.mxu0 0.0
    %1765 = vmatprep.subr.mxu0 0.0
    %1766 = vmatpush1.msra.mxu0 0.0
    %1767 = vmatprep.subr.mxu0 0.0
    %1768 = vmatpush1.msra.mxu0 0.0
    %1769 = vmatprep.subr.mxu0 0.0
    %1770 = vmatpush1.msra.mxu0 0.0
    %1771 = vmatprep.subr.mxu0 0.0
    %1772 = vmatpush1.msra.mxu0 0.0
    %1773 = vmatprep.subr.mxu0 0.0
    %1774 = vmatpush1.msra.mxu0 0.0
    %1775 = vmatprep.subr.mxu0 0.0
    %1776 = vmatpush1.msra.mxu0 0.0
    %1777 = vmatprep.subr.mxu0 0.0
    %1778 = vmatpush1.msra.mxu0 %v1678
    %1779 = vmatprep.subr.mxu0 0.0
    %1780 = vmatpush1.msra.mxu0 %v1677
    %1781 = vmatprep.subr.mxu0 0.0
    %1782 = vmatpush1.msra.mxu0 %v1676
    %1783 = vmatprep.subr.mxu0 0.0
    %1784 = vmatpush1.msra.mxu0 %v1675
    %1785 = vmatprep.subr.mxu0 0.0
    %1786 = vmatpush2.msra.mxu0 0.0
    %1787 = vmatprep.subr.mxu0 0.0
    %1788 = vmatpush2.msra.mxu0 0.0
    %1789 = vmatprep.subr.mxu0 0.0
    %1790 = vmatpush2.msra.mxu0 0.0
    %1791 = vmatprep.subr.mxu0 0.0
    %1792 = vmatpush2.msra.mxu0 0.0
    %1793 = vmatprep.subr.mxu0 0.0
    %1794 = vmatpush2.msra.mxu0 0.0
    %1795 = vmatprep.subr.mxu0 0.0
    %1796 = vmatpush2.msra.mxu0 0.0
    %1797 = vmatprep.subr.mxu0 0.0
    %1798 = vmatpush2.msra.mxu0 0.0
    %1799 = vmatprep.subr.mxu0 0.0
    %1800 = vmatpush2.msra.mxu0 0.0
    %1801 = vmatprep.subr.mxu0 0.0
    %1802 = vmatpush2.msra.mxu0 0.0
    %1803 = vmatprep.subr.mxu0 0.0
    %1804 = vmatpush2.msra.mxu0 0.0
    %1805 = vmatprep.subr.mxu0 0.0
    %1806 = vmatpush2.msra.mxu0 0.0
    %1807 = vmatprep.subr.mxu0 0.0
    %1808 = vmatpush2.msra.mxu0 0.0
    %1809 = vmatprep.subr.mxu0 0.0
    %1810 = vmatpush2.msra.mxu0 0.0
    %1811 = vmatprep.subr.mxu0 0.0
    %1812 = vmatpush2.msra.mxu0 0.0
    %1813 = vmatprep.subr.mxu0 0.0
    %1814 = vmatpush2.msra.mxu0 0.0
    %1815 = vmatprep.subr.mxu0 0.0
    %1816 = vmatpush2.msra.mxu0 0.0
    %1817 = vmatprep.mubr.f32.mxu0 0.0
    %1818 = vmatmul.mubr.f32.gmra.mxu0 %v488
    %v1819 = vpop.f32.mrf.mxu0
    %v1820 = vadd.f32 %v1750, %v1819
    %v1821 = vpop.f32.mrf.mxu0
    %1822 = vdwg.mxu0
    %v1823 = vld [vmem:[#allocation2 + $0x208] sm:$0x1]
    %v1824 = vlaneseq
    %v1825 = vshrl.u32 %v1824, 7
    %v1826 = vsub.s32 0, %v1825
    %v1827 = vrot.slane %v1823, %v1826
    %v1828 = vadd.f32 %v1820, %v1827
    %v1829 = vld [vmem:[%s0] sm:$0xff]
    %v1830 = vld [vmem:[%s0 + $0x8] sm:$0xff]
    %v1831 = vlaneseq
    %v1832 = vshrl.u32 %v1831, 7
    %v1833 = vsub.s32 0, %v1832
    %v1834 = vrot.slane %v1014, %v1833
    %v1835 = vmul.f32 %v1585, %v1834
    %v1836 = vmul.f32 %v1590, %v1834
    %v1837 = vmul.f32 %v1667, %v1834
    %v1838 = vmul.f32 %v1672, %v1834
    %s1839 = scalar_lea.vmem %s0, 16
    %v1840 = vld [vmem:[%s1839] sm:$0xff]
    %v1841 = vld [vmem:[%s1839 + $0x8] sm:$0xff]
    %v1842 = vlaneseq
    %v1843 = vshrl.u32 %v1842, 7
    %v1844 = vsub.s32 1, %v1843
    %v1845 = vrot.slane %v1014, %v1844
    %v1846 = vmul.f32 %v1585, %v1845
    %v1847 = vmul.f32 %v1590, %v1845
    %v1849 = vsel %vm72, %v1840, 0
    %v1852 = vsel %vm72, %v1841, 0
    %1854 = vmatprep.subr.mxu0 0.0
    %1855 = vmatpush1.msra.mxu0 0.0
    %1856 = vmatprep.subr.mxu0 0.0
    %1857 = vmatpush1.msra.mxu0 0.0
    %1858 = vmatprep.subr.mxu0 0.0
    %1859 = vmatpush1.msra.mxu0 0.0
    %1860 = vmatprep.subr.mxu0 0.0
    %1861 = vmatpush1.msra.mxu0 0.0
    %1862 = vmatprep.subr.mxu0 0.0
    %1863 = vmatpush1.msra.mxu0 0.0
    %1864 = vmatprep.subr.mxu0 0.0
    %1865 = vmatpush1.msra.mxu0 0.0
    %1866 = vmatprep.subr.mxu0 0.0
    %1867 = vmatpush1.msra.mxu0 0.0
    %1868 = vmatprep.subr.mxu0 0.0
    %1869 = vmatpush1.msra.mxu0 0.0
    %1870 = vmatprep.subr.mxu0 0.0
    %1871 = vmatpush1.msra.mxu0 0.0
    %1872 = vmatprep.subr.mxu0 0.0
    %1873 = vmatpush1.msra.mxu0 0.0
    %1874 = vmatprep.subr.mxu0 0.0
    %1875 = vmatpush1.msra.mxu0 0.0
    %1876 = vmatprep.subr.mxu0 0.0
    %1877 = vmatpush1.msra.mxu0 0.0
    %1878 = vmatprep.subr.mxu0 0.0
    %1879 = vmatpush1.msra.mxu0 0.0
    %1880 = vmatprep.subr.mxu0 0.0
    %1881 = vmatpush1.msra.mxu0 0.0
    %1882 = vmatprep.subr.mxu0 0.0
    %1883 = vmatpush1.msra.mxu0 %v1847
    %1884 = vmatprep.subr.mxu0 0.0
    %1885 = vmatpush1.msra.mxu0 %v1846
    %1886 = vmatprep.subr.mxu0 0.0
    %1887 = vmatpush2.msra.mxu0 0.0
    %1888 = vmatprep.subr.mxu0 0.0
    %1889 = vmatpush2.msra.mxu0 0.0
    %1890 = vmatprep.subr.mxu0 0.0
    %1891 = vmatpush2.msra.mxu0 0.0
    %1892 = vmatprep.subr.mxu0 0.0
    %1893 = vmatpush2.msra.mxu0 0.0
    %1894 = vmatprep.subr.mxu0 0.0
    %1895 = vmatpush2.msra.mxu0 0.0
    %1896 = vmatprep.subr.mxu0 0.0
    %1897 = vmatpush2.msra.mxu0 0.0
    %1898 = vmatprep.subr.mxu0 0.0
    %1899 = vmatpush2.msra.mxu0 0.0
    %1900 = vmatprep.subr.mxu0 0.0
    %1901 = vmatpush2.msra.mxu0 0.0
    %1902 = vmatprep.subr.mxu0 0.0
    %1903 = vmatpush2.msra.mxu0 0.0
    %1904 = vmatprep.subr.mxu0 0.0
    %1905 = vmatpush2.msra.mxu0 0.0
    %1906 = vmatprep.subr.mxu0 0.0
    %1907 = vmatpush2.msra.mxu0 0.0
    %1908 = vmatprep.subr.mxu0 0.0
    %1909 = vmatpush2.msra.mxu0 0.0
    %1910 = vmatprep.subr.mxu0 0.0
    %1911 = vmatpush2.msra.mxu0 0.0
    %1912 = vmatprep.subr.mxu0 0.0
    %1913 = vmatpush2.msra.mxu0 0.0
    %1914 = vmatprep.subr.mxu0 0.0
    %1915 = vmatpush2.msra.mxu0 0.0
    %1916 = vmatprep.subr.mxu0 0.0
    %1917 = vmatpush2.msra.mxu0 0.0
    %1918 = vmatprep.mubr.f32.mxu0 0.0
    %1919 = vmatmul.mubr.f32.gmra.mxu0 %v1849
    %v1920 = vpop.f32.mrf.mxu0
    %v1921 = vadd.f32 0.0, %v1920
    %v1922 = vpop.f32.mrf.mxu0
    %1923 = vmatprep.mubr.f32.mxu0 0.0
    %1924 = vmatmul.mubr.f32.gmra.mxu0 %v1852
    %v1925 = vpop.f32.mrf.mxu0
    %v1926 = vadd.f32 0.0, %v1925
    %v1927 = vpop.f32.mrf.mxu0
    %1928 = vdwg.mxu0
    %v1930 = vsel %vm72, %v1829, 0
    %v1933 = vsel %vm72, %v1830, 0
    %1935 = vmatprep.subr.mxu0 0.0
    %1936 = vmatpush1.msra.mxu0 0.0
    %1937 = vmatprep.subr.mxu0 0.0
    %1938 = vmatpush1.msra.mxu0 0.0
    %1939 = vmatprep.subr.mxu0 0.0
    %1940 = vmatpush1.msra.mxu0 0.0
    %1941 = vmatprep.subr.mxu0 0.0
    %1942 = vmatpush1.msra.mxu0 0.0
    %1943 = vmatprep.subr.mxu0 0.0
    %1944 = vmatpush1.msra.mxu0 0.0
    %1945 = vmatprep.subr.mxu0 0.0
    %1946 = vmatpush1.msra.mxu0 0.0
    %1947 = vmatprep.subr.mxu0 0.0
    %1948 = vmatpush1.msra.mxu0 0.0
    %1949 = vmatprep.subr.mxu0 0.0
    %1950 = vmatpush1.msra.mxu0 0.0
    %1951 = vmatprep.subr.mxu0 0.0
    %1952 = vmatpush1.msra.mxu0 0.0
    %1953 = vmatprep.subr.mxu0 0.0
    %1954 = vmatpush1.msra.mxu0 0.0
    %1955 = vmatprep.subr.mxu0 0.0
    %1956 = vmatpush1.msra.mxu0 0.0
    %1957 = vmatprep.subr.mxu0 0.0
    %1958 = vmatpush1.msra.mxu0 0.0
    %1959 = vmatprep.subr.mxu0 0.0
    %1960 = vmatpush1.msra.mxu0 0.0
    %1961 = vmatprep.subr.mxu0 0.0
    %1962 = vmatpush1.msra.mxu0 0.0
    %1963 = vmatprep.subr.mxu0 0.0
    %1964 = vmatpush1.msra.mxu0 %v1836
    %1965 = vmatprep.subr.mxu0 0.0
    %1966 = vmatpush1.msra.mxu0 %v1835
    %1967 = vmatprep.subr.mxu0 0.0
    %1968 = vmatpush2.msra.mxu0 0.0
    %1969 = vmatprep.subr.mxu0 0.0
    %1970 = vmatpush2.msra.mxu0 0.0
    %1971 = vmatprep.subr.mxu0 0.0
    %1972 = vmatpush2.msra.mxu0 0.0
    %1973 = vmatprep.subr.mxu0 0.0
    %1974 = vmatpush2.msra.mxu0 0.0
    %1975 = vmatprep.subr.mxu0 0.0
    %1976 = vmatpush2.msra.mxu0 0.0
    %1977 = vmatprep.subr.mxu0 0.0
    %1978 = vmatpush2.msra.mxu0 0.0
    %1979 = vmatprep.subr.mxu0 0.0
    %1980 = vmatpush2.msra.mxu0 0.0
    %1981 = vmatprep.subr.mxu0 0.0
    %1982 = vmatpush2.msra.mxu0 0.0
    %1983 = vmatprep.subr.mxu0 0.0
    %1984 = vmatpush2.msra.mxu0 0.0
    %1985 = vmatprep.subr.mxu0 0.0
    %1986 = vmatpush2.msra.mxu0 0.0
    %1987 = vmatprep.subr.mxu0 0.0
    %1988 = vmatpush2.msra.mxu0 0.0
    %1989 = vmatprep.subr.mxu0 0.0
    %1990 = vmatpush2.msra.mxu0 0.0
    %1991 = vmatprep.subr.mxu0 0.0
    %1992 = vmatpush2.msra.mxu0 0.0
    %1993 = vmatprep.subr.mxu0 0.0
    %1994 = vmatpush2.msra.mxu0 0.0
    %1995 = vmatprep.subr.mxu0 0.0
    %1996 = vmatpush2.msra.mxu0 0.0
    %1997 = vmatprep.subr.mxu0 0.0
    %1998 = vmatpush2.msra.mxu0 0.0
    %1999 = vmatprep.mubr.f32.mxu0 0.0
    %2000 = vmatmul.mubr.f32.gmra.mxu0 %v1930
    %v2001 = vpop.f32.mrf.mxu0
    %v2002 = vadd.f32 %v1921, %v2001
    %v2003 = vpop.f32.mrf.mxu0
    %2004 = vmatprep.mubr.f32.mxu0 0.0
    %2005 = vmatmul.mubr.f32.gmra.mxu0 %v1933
    %v2006 = vpop.f32.mrf.mxu0
    %v2007 = vadd.f32 %v1926, %v2006
    %v2008 = vpop.f32.mrf.mxu0
    %2009 = vdwg.mxu0
    %v2010 = vmul.f32 %v1667, %v1845
    %v2011 = vmul.f32 %v1672, %v1845
    %2012 = vmatprep.subr.mxu0 0.0
    %2013 = vmatpush1.msra.mxu0 0.0
    %2014 = vmatprep.subr.mxu0 0.0
    %2015 = vmatpush1.msra.mxu0 0.0
    %2016 = vmatprep.subr.mxu0 0.0
    %2017 = vmatpush1.msra.mxu0 0.0
    %2018 = vmatprep.subr.mxu0 0.0
    %2019 = vmatpush1.msra.mxu0 0.0
    %2020 = vmatprep.subr.mxu0 0.0
    %2021 = vmatpush1.msra.mxu0 0.0
    %2022 = vmatprep.subr.mxu0 0.0
    %2023 = vmatpush1.msra.mxu0 0.0
    %2024 = vmatprep.subr.mxu0 0.0
    %2025 = vmatpush1.msra.mxu0 0.0
    %2026 = vmatprep.subr.mxu0 0.0
    %2027 = vmatpush1.msra.mxu0 0.0
    %2028 = vmatprep.subr.mxu0 0.0
    %2029 = vmatpush1.msra.mxu0 0.0
    %2030 = vmatprep.subr.mxu0 0.0
    %2031 = vmatpush1.msra.mxu0 0.0
    %2032 = vmatprep.subr.mxu0 0.0
    %2033 = vmatpush1.msra.mxu0 0.0
    %2034 = vmatprep.subr.mxu0 0.0
    %2035 = vmatpush1.msra.mxu0 0.0
    %2036 = vmatprep.subr.mxu0 0.0
    %2037 = vmatpush1.msra.mxu0 0.0
    %2038 = vmatprep.subr.mxu0 0.0
    %2039 = vmatpush1.msra.mxu0 0.0
    %2040 = vmatprep.subr.mxu0 0.0
    %2041 = vmatpush1.msra.mxu0 %v2011
    %2042 = vmatprep.subr.mxu0 0.0
    %2043 = vmatpush1.msra.mxu0 %v2010
    %2044 = vmatprep.subr.mxu0 0.0
    %2045 = vmatpush2.msra.mxu0 0.0
    %2046 = vmatprep.subr.mxu0 0.0
    %2047 = vmatpush2.msra.mxu0 0.0
    %2048 = vmatprep.subr.mxu0 0.0
    %2049 = vmatpush2.msra.mxu0 0.0
    %2050 = vmatprep.subr.mxu0 0.0
    %2051 = vmatpush2.msra.mxu0 0.0
    %2052 = vmatprep.subr.mxu0 0.0
    %2053 = vmatpush2.msra.mxu0 0.0
    %2054 = vmatprep.subr.mxu0 0.0
    %2055 = vmatpush2.msra.mxu0 0.0
    %2056 = vmatprep.subr.mxu0 0.0
    %2057 = vmatpush2.msra.mxu0 0.0
    %2058 = vmatprep.subr.mxu0 0.0
    %2059 = vmatpush2.msra.mxu0 0.0
    %2060 = vmatprep.subr.mxu0 0.0
    %2061 = vmatpush2.msra.mxu0 0.0
    %2062 = vmatprep.subr.mxu0 0.0
    %2063 = vmatpush2.msra.mxu0 0.0
    %2064 = vmatprep.subr.mxu0 0.0
    %2065 = vmatpush2.msra.mxu0 0.0
    %2066 = vmatprep.subr.mxu0 0.0
    %2067 = vmatpush2.msra.mxu0 0.0
    %2068 = vmatprep.subr.mxu0 0.0
    %2069 = vmatpush2.msra.mxu0 0.0
    %2070 = vmatprep.subr.mxu0 0.0
    %2071 = vmatpush2.msra.mxu0 0.0
    %2072 = vmatprep.subr.mxu0 0.0
    %2073 = vmatpush2.msra.mxu0 0.0
    %2074 = vmatprep.subr.mxu0 0.0
    %2075 = vmatpush2.msra.mxu0 0.0
    %2076 = vmatprep.mubr.f32.mxu0 0.0
    %2077 = vmatmul.mubr.f32.gmra.mxu0 %v1849
    %v2078 = vpop.f32.mrf.mxu0
    %v2079 = vadd.f32 0.0, %v2078
    %v2080 = vpop.f32.mrf.mxu0
    %2081 = vmatprep.mubr.f32.mxu0 0.0
    %2082 = vmatmul.mubr.f32.gmra.mxu0 %v1852
    %v2083 = vpop.f32.mrf.mxu0
    %v2084 = vadd.f32 0.0, %v2083
    %v2085 = vpop.f32.mrf.mxu0
    %2086 = vdwg.mxu0
    %2087 = vmatprep.subr.mxu0 0.0
    %2088 = vmatpush1.msra.mxu0 0.0
    %2089 = vmatprep.subr.mxu0 0.0
    %2090 = vmatpush1.msra.mxu0 0.0
    %2091 = vmatprep.subr.mxu0 0.0
    %2092 = vmatpush1.msra.mxu0 0.0
    %2093 = vmatprep.subr.mxu0 0.0
    %2094 = vmatpush1.msra.mxu0 0.0
    %2095 = vmatprep.subr.mxu0 0.0
    %2096 = vmatpush1.msra.mxu0 0.0
    %2097 = vmatprep.subr.mxu0 0.0
    %2098 = vmatpush1.msra.mxu0 0.0
    %2099 = vmatprep.subr.mxu0 0.0
    %2100 = vmatpush1.msra.mxu0 0.0
    %2101 = vmatprep.subr.mxu0 0.0
    %2102 = vmatpush1.msra.mxu0 0.0
    %2103 = vmatprep.subr.mxu0 0.0
    %2104 = vmatpush1.msra.mxu0 0.0
    %2105 = vmatprep.subr.mxu0 0.0
    %2106 = vmatpush1.msra.mxu0 0.0
    %2107 = vmatprep.subr.mxu0 0.0
    %2108 = vmatpush1.msra.mxu0 0.0
    %2109 = vmatprep.subr.mxu0 0.0
    %2110 = vmatpush1.msra.mxu0 0.0
    %2111 = vmatprep.subr.mxu0 0.0
    %2112 = vmatpush1.msra.mxu0 0.0
    %2113 = vmatprep.subr.mxu0 0.0
    %2114 = vmatpush1.msra.mxu0 0.0
    %2115 = vmatprep.subr.mxu0 0.0
    %2116 = vmatpush1.msra.mxu0 %v1838
    %2117 = vmatprep.subr.mxu0 0.0
    %2118 = vmatpush1.msra.mxu0 %v1837
    %2119 = vmatprep.subr.mxu0 0.0
    %2120 = vmatpush2.msra.mxu0 0.0
    %2121 = vmatprep.subr.mxu0 0.0
    %2122 = vmatpush2.msra.mxu0 0.0
    %2123 = vmatprep.subr.mxu0 0.0
    %2124 = vmatpush2.msra.mxu0 0.0
    %2125 = vmatprep.subr.mxu0 0.0
    %2126 = vmatpush2.msra.mxu0 0.0
    %2127 = vmatprep.subr.mxu0 0.0
    %2128 = vmatpush2.msra.mxu0 0.0
    %2129 = vmatprep.subr.mxu0 0.0
    %2130 = vmatpush2.msra.mxu0 0.0
    %2131 = vmatprep.subr.mxu0 0.0
    %2132 = vmatpush2.msra.mxu0 0.0
    %2133 = vmatprep.subr.mxu0 0.0
    %2134 = vmatpush2.msra.mxu0 0.0
    %2135 = vmatprep.subr.mxu0 0.0
    %2136 = vmatpush2.msra.mxu0 0.0
    %2137 = vmatprep.subr.mxu0 0.0
    %2138 = vmatpush2.msra.mxu0 0.0
    %2139 = vmatprep.subr.mxu0 0.0
    %2140 = vmatpush2.msra.mxu0 0.0
    %2141 = vmatprep.subr.mxu0 0.0
    %2142 = vmatpush2.msra.mxu0 0.0
    %2143 = vmatprep.subr.mxu0 0.0
    %2144 = vmatpush2.msra.mxu0 0.0
    %2145 = vmatprep.subr.mxu0 0.0
    %2146 = vmatpush2.msra.mxu0 0.0
    %2147 = vmatprep.subr.mxu0 0.0
    %2148 = vmatpush2.msra.mxu0 0.0
    %2149 = vmatprep.subr.mxu0 0.0
    %2150 = vmatpush2.msra.mxu0 0.0
    %2151 = vmatprep.mubr.f32.mxu0 0.0
    %2152 = vmatmul.mubr.f32.gmra.mxu0 %v1930
    %v2153 = vpop.f32.mrf.mxu0
    %v2154 = vadd.f32 %v2079, %v2153
    %v2155 = vpop.f32.mrf.mxu0
    %2156 = vmatprep.mubr.f32.mxu0 0.0
    %2157 = vmatmul.mubr.f32.gmra.mxu0 %v1933
    %v2158 = vpop.f32.mrf.mxu0
    %v2159 = vadd.f32 %v2084, %v2158
    %v2160 = vpop.f32.mrf.mxu0
    %2161 = vdwg.mxu0
    %s2162 = scalar_lea.vmem %s0, 32
    %v2163 = vld [vmem:[%s2162] sm:$0xff]
    %v2164 = vld [vmem:[%s2162 + $0x8] sm:$0xff]
    %v2165 = vlaneseq
    %v2166 = vshrl.u32 %v2165, 7
    %v2167 = vsub.s32 2, %v2166
    %v2168 = vrot.slane %v1014, %v2167
    %v2169 = vmul.f32 %v1585, %v2168
    %v2170 = vmul.f32 %v1590, %v2168
    %v2172 = vsel %vm72, %v2163, 0
    %v2175 = vsel %vm72, %v2164, 0
    %2177 = vmatprep.subr.mxu0 0.0
    %2178 = vmatpush1.msra.mxu0 0.0
    %2179 = vmatprep.subr.mxu0 0.0
    %2180 = vmatpush1.msra.mxu0 0.0
    %2181 = vmatprep.subr.mxu0 0.0
    %2182 = vmatpush1.msra.mxu0 0.0
    %2183 = vmatprep.subr.mxu0 0.0
    %2184 = vmatpush1.msra.mxu0 0.0
    %2185 = vmatprep.subr.mxu0 0.0
    %2186 = vmatpush1.msra.mxu0 0.0
    %2187 = vmatprep.subr.mxu0 0.0
    %2188 = vmatpush1.msra.mxu0 0.0
    %2189 = vmatprep.subr.mxu0 0.0
    %2190 = vmatpush1.msra.mxu0 0.0
    %2191 = vmatprep.subr.mxu0 0.0
    %2192 = vmatpush1.msra.mxu0 0.0
    %2193 = vmatprep.subr.mxu0 0.0
    %2194 = vmatpush1.msra.mxu0 0.0
    %2195 = vmatprep.subr.mxu0 0.0
    %2196 = vmatpush1.msra.mxu0 0.0
    %2197 = vmatprep.subr.mxu0 0.0
    %2198 = vmatpush1.msra.mxu0 0.0
    %2199 = vmatprep.subr.mxu0 0.0
    %2200 = vmatpush1.msra.mxu0 0.0
    %2201 = vmatprep.subr.mxu0 0.0
    %2202 = vmatpush1.msra.mxu0 0.0
    %2203 = vmatprep.subr.mxu0 0.0
    %2204 = vmatpush1.msra.mxu0 0.0
    %2205 = vmatprep.subr.mxu0 0.0
    %2206 = vmatpush1.msra.mxu0 %v2170
    %2207 = vmatprep.subr.mxu0 0.0
    %2208 = vmatpush1.msra.mxu0 %v2169
    %2209 = vmatprep.subr.mxu0 0.0
    %2210 = vmatpush2.msra.mxu0 0.0
    %2211 = vmatprep.subr.mxu0 0.0
    %2212 = vmatpush2.msra.mxu0 0.0
    %2213 = vmatprep.subr.mxu0 0.0
    %2214 = vmatpush2.msra.mxu0 0.0
    %2215 = vmatprep.subr.mxu0 0.0
    %2216 = vmatpush2.msra.mxu0 0.0
    %2217 = vmatprep.subr.mxu0 0.0
    %2218 = vmatpush2.msra.mxu0 0.0
    %2219 = vmatprep.subr.mxu0 0.0
    %2220 = vmatpush2.msra.mxu0 0.0
    %2221 = vmatprep.subr.mxu0 0.0
    %2222 = vmatpush2.msra.mxu0 0.0
    %2223 = vmatprep.subr.mxu0 0.0
    %2224 = vmatpush2.msra.mxu0 0.0
    %2225 = vmatprep.subr.mxu0 0.0
    %2226 = vmatpush2.msra.mxu0 0.0
    %2227 = vmatprep.subr.mxu0 0.0
    %2228 = vmatpush2.msra.mxu0 0.0
    %2229 = vmatprep.subr.mxu0 0.0
    %2230 = vmatpush2.msra.mxu0 0.0
    %2231 = vmatprep.subr.mxu0 0.0
    %2232 = vmatpush2.msra.mxu0 0.0
    %2233 = vmatprep.subr.mxu0 0.0
    %2234 = vmatpush2.msra.mxu0 0.0
    %2235 = vmatprep.subr.mxu0 0.0
    %2236 = vmatpush2.msra.mxu0 0.0
    %2237 = vmatprep.subr.mxu0 0.0
    %2238 = vmatpush2.msra.mxu0 0.0
    %2239 = vmatprep.subr.mxu0 0.0
    %2240 = vmatpush2.msra.mxu0 0.0
    %2241 = vmatprep.mubr.f32.mxu0 0.0
    %2242 = vmatmul.mubr.f32.gmra.mxu0 %v2172
    %v2243 = vpop.f32.mrf.mxu0
    %v2244 = vadd.f32 0.0, %v2243
    %v2245 = vpop.f32.mrf.mxu0
    %2246 = vmatprep.mubr.f32.mxu0 0.0
    %2247 = vmatmul.mubr.f32.gmra.mxu0 %v2175
    %v2248 = vpop.f32.mrf.mxu0
    %v2249 = vadd.f32 0.0, %v2248
    %v2250 = vpop.f32.mrf.mxu0
    %2251 = vdwg.mxu0
    %v2252 = vadd.f32 %v2002, %v2244
    %v2253 = vadd.f32 %v2007, %v2249
    %v2254 = vmul.f32 %v1667, %v2168
    %v2255 = vmul.f32 %v1672, %v2168
    %2256 = vmatprep.subr.mxu0 0.0
    %2257 = vmatpush1.msra.mxu0 0.0
    %2258 = vmatprep.subr.mxu0 0.0
    %2259 = vmatpush1.msra.mxu0 0.0
    %2260 = vmatprep.subr.mxu0 0.0
    %2261 = vmatpush1.msra.mxu0 0.0
    %2262 = vmatprep.subr.mxu0 0.0
    %2263 = vmatpush1.msra.mxu0 0.0
    %2264 = vmatprep.subr.mxu0 0.0
    %2265 = vmatpush1.msra.mxu0 0.0
    %2266 = vmatprep.subr.mxu0 0.0
    %2267 = vmatpush1.msra.mxu0 0.0
    %2268 = vmatprep.subr.mxu0 0.0
    %2269 = vmatpush1.msra.mxu0 0.0
    %2270 = vmatprep.subr.mxu0 0.0
    %2271 = vmatpush1.msra.mxu0 0.0
    %2272 = vmatprep.subr.mxu0 0.0
    %2273 = vmatpush1.msra.mxu0 0.0
    %2274 = vmatprep.subr.mxu0 0.0
    %2275 = vmatpush1.msra.mxu0 0.0
    %2276 = vmatprep.subr.mxu0 0.0
    %2277 = vmatpush1.msra.mxu0 0.0
    %2278 = vmatprep.subr.mxu0 0.0
    %2279 = vmatpush1.msra.mxu0 0.0
    %2280 = vmatprep.subr.mxu0 0.0
    %2281 = vmatpush1.msra.mxu0 0.0
    %2282 = vmatprep.subr.mxu0 0.0
    %2283 = vmatpush1.msra.mxu0 0.0
    %2284 = vmatprep.subr.mxu0 0.0
    %2285 = vmatpush1.msra.mxu0 %v2255
    %2286 = vmatprep.subr.mxu0 0.0
    %2287 = vmatpush1.msra.mxu0 %v2254
    %2288 = vmatprep.subr.mxu0 0.0
    %2289 = vmatpush2.msra.mxu0 0.0
    %2290 = vmatprep.subr.mxu0 0.0
    %2291 = vmatpush2.msra.mxu0 0.0
    %2292 = vmatprep.subr.mxu0 0.0
    %2293 = vmatpush2.msra.mxu0 0.0
    %2294 = vmatprep.subr.mxu0 0.0
    %2295 = vmatpush2.msra.mxu0 0.0
    %2296 = vmatprep.subr.mxu0 0.0
    %2297 = vmatpush2.msra.mxu0 0.0
    %2298 = vmatprep.subr.mxu0 0.0
    %2299 = vmatpush2.msra.mxu0 0.0
    %2300 = vmatprep.subr.mxu0 0.0
    %2301 = vmatpush2.msra.mxu0 0.0
    %2302 = vmatprep.subr.mxu0 0.0
    %2303 = vmatpush2.msra.mxu0 0.0
    %2304 = vmatprep.subr.mxu0 0.0
    %2305 = vmatpush2.msra.mxu0 0.0
    %2306 = vmatprep.subr.mxu0 0.0
    %2307 = vmatpush2.msra.mxu0 0.0
    %2308 = vmatprep.subr.mxu0 0.0
    %2309 = vmatpush2.msra.mxu0 0.0
    %2310 = vmatprep.subr.mxu0 0.0
    %2311 = vmatpush2.msra.mxu0 0.0
    %2312 = vmatprep.subr.mxu0 0.0
    %2313 = vmatpush2.msra.mxu0 0.0
    %2314 = vmatprep.subr.mxu0 0.0
    %2315 = vmatpush2.msra.mxu0 0.0
    %2316 = vmatprep.subr.mxu0 0.0
    %2317 = vmatpush2.msra.mxu0 0.0
    %2318 = vmatprep.subr.mxu0 0.0
    %2319 = vmatpush2.msra.mxu0 0.0
    %2320 = vmatprep.mubr.f32.mxu0 0.0
    %2321 = vmatmul.mubr.f32.gmra.mxu0 %v2172
    %v2322 = vpop.f32.mrf.mxu0
    %v2323 = vadd.f32 0.0, %v2322
    %v2324 = vpop.f32.mrf.mxu0
    %2325 = vmatprep.mubr.f32.mxu0 0.0
    %2326 = vmatmul.mubr.f32.gmra.mxu0 %v2175
    %v2327 = vpop.f32.mrf.mxu0
    %v2328 = vadd.f32 0.0, %v2327
    %v2329 = vpop.f32.mrf.mxu0
    %2330 = vdwg.mxu0
    %v2331 = vadd.f32 %v2154, %v2323
    %v2332 = vadd.f32 %v2159, %v2328
    %s2333 = scalar_lea.vmem %s0, 48
    %v2334 = vld [vmem:[%s2333] sm:$0xff]
    %v2335 = vld [vmem:[%s2333 + $0x8] sm:$0xff]
    %v2336 = vlaneseq
    %v2337 = vshrl.u32 %v2336, 7
    %v2338 = vsub.s32 3, %v2337
    %v2339 = vrot.slane %v1014, %v2338
    %v2340 = vmul.f32 %v1585, %v2339
    %v2341 = vmul.f32 %v1590, %v2339
    %v2343 = vsel %vm72, %v2334, 0
    %v2346 = vsel %vm72, %v2335, 0
    %2348 = vmatprep.subr.mxu0 0.0
    %2349 = vmatpush1.msra.mxu0 0.0
    %2350 = vmatprep.subr.mxu0 0.0
    %2351 = vmatpush1.msra.mxu0 0.0
    %2352 = vmatprep.subr.mxu0 0.0
    %2353 = vmatpush1.msra.mxu0 0.0
    %2354 = vmatprep.subr.mxu0 0.0
    %2355 = vmatpush1.msra.mxu0 0.0
    %2356 = vmatprep.subr.mxu0 0.0
    %2357 = vmatpush1.msra.mxu0 0.0
    %2358 = vmatprep.subr.mxu0 0.0
    %2359 = vmatpush1.msra.mxu0 0.0
    %2360 = vmatprep.subr.mxu0 0.0
    %2361 = vmatpush1.msra.mxu0 0.0
    %2362 = vmatprep.subr.mxu0 0.0
    %2363 = vmatpush1.msra.mxu0 0.0
    %2364 = vmatprep.subr.mxu0 0.0
    %2365 = vmatpush1.msra.mxu0 0.0
    %2366 = vmatprep.subr.mxu0 0.0
    %2367 = vmatpush1.msra.mxu0 0.0
    %2368 = vmatprep.subr.mxu0 0.0
    %2369 = vmatpush1.msra.mxu0 0.0
    %2370 = vmatprep.subr.mxu0 0.0
    %2371 = vmatpush1.msra.mxu0 0.0
    %2372 = vmatprep.subr.mxu0 0.0
    %2373 = vmatpush1.msra.mxu0 0.0
    %2374 = vmatprep.subr.mxu0 0.0
    %2375 = vmatpush1.msra.mxu0 0.0
    %2376 = vmatprep.subr.mxu0 0.0
    %2377 = vmatpush1.msra.mxu0 %v2341
    %2378 = vmatprep.subr.mxu0 0.0
    %2379 = vmatpush1.msra.mxu0 %v2340
    %2380 = vmatprep.subr.mxu0 0.0
    %2381 = vmatpush2.msra.mxu0 0.0
    %2382 = vmatprep.subr.mxu0 0.0
    %2383 = vmatpush2.msra.mxu0 0.0
    %2384 = vmatprep.subr.mxu0 0.0
    %2385 = vmatpush2.msra.mxu0 0.0
    %2386 = vmatprep.subr.mxu0 0.0
    %2387 = vmatpush2.msra.mxu0 0.0
    %2388 = vmatprep.subr.mxu0 0.0
    %2389 = vmatpush2.msra.mxu0 0.0
    %2390 = vmatprep.subr.mxu0 0.0
    %2391 = vmatpush2.msra.mxu0 0.0
    %2392 = vmatprep.subr.mxu0 0.0
    %2393 = vmatpush2.msra.mxu0 0.0
    %2394 = vmatprep.subr.mxu0 0.0
    %2395 = vmatpush2.msra.mxu0 0.0
    %2396 = vmatprep.subr.mxu0 0.0
    %2397 = vmatpush2.msra.mxu0 0.0
    %2398 = vmatprep.subr.mxu0 0.0
    %2399 = vmatpush2.msra.mxu0 0.0
    %2400 = vmatprep.subr.mxu0 0.0
    %2401 = vmatpush2.msra.mxu0 0.0
    %2402 = vmatprep.subr.mxu0 0.0
    %2403 = vmatpush2.msra.mxu0 0.0
    %2404 = vmatprep.subr.mxu0 0.0
    %2405 = vmatpush2.msra.mxu0 0.0
    %2406 = vmatprep.subr.mxu0 0.0
    %2407 = vmatpush2.msra.mxu0 0.0
    %2408 = vmatprep.subr.mxu0 0.0
    %2409 = vmatpush2.msra.mxu0 0.0
    %2410 = vmatprep.subr.mxu0 0.0
    %2411 = vmatpush2.msra.mxu0 0.0
    %2412 = vmatprep.mubr.f32.mxu0 0.0
    %2413 = vmatmul.mubr.f32.gmra.mxu0 %v2343
    %v2414 = vpop.f32.mrf.mxu0
    %v2415 = vadd.f32 0.0, %v2414
    %v2416 = vpop.f32.mrf.mxu0
    %2417 = vmatprep.mubr.f32.mxu0 0.0
    %2418 = vmatmul.mubr.f32.gmra.mxu0 %v2346
    %v2419 = vpop.f32.mrf.mxu0
    %v2420 = vadd.f32 0.0, %v2419
    %v2421 = vpop.f32.mrf.mxu0
    %2422 = vdwg.mxu0
    %v2423 = vadd.f32 %v2252, %v2415
    %v2424 = vadd.f32 %v2253, %v2420
    %v2425 = vmul.f32 %v1667, %v2339
    %v2426 = vmul.f32 %v1672, %v2339
    %2427 = vmatprep.subr.mxu0 0.0
    %2428 = vmatpush1.msra.mxu0 0.0
    %2429 = vmatprep.subr.mxu0 0.0
    %2430 = vmatpush1.msra.mxu0 0.0
    %2431 = vmatprep.subr.mxu0 0.0
    %2432 = vmatpush1.msra.mxu0 0.0
    %2433 = vmatprep.subr.mxu0 0.0
    %2434 = vmatpush1.msra.mxu0 0.0
    %2435 = vmatprep.subr.mxu0 0.0
    %2436 = vmatpush1.msra.mxu0 0.0
    %2437 = vmatprep.subr.mxu0 0.0
    %2438 = vmatpush1.msra.mxu0 0.0
    %2439 = vmatprep.subr.mxu0 0.0
    %2440 = vmatpush1.msra.mxu0 0.0
    %2441 = vmatprep.subr.mxu0 0.0
    %2442 = vmatpush1.msra.mxu0 0.0
    %2443 = vmatprep.subr.mxu0 0.0
    %2444 = vmatpush1.msra.mxu0 0.0
    %2445 = vmatprep.subr.mxu0 0.0
    %2446 = vmatpush1.msra.mxu0 0.0
    %2447 = vmatprep.subr.mxu0 0.0
    %2448 = vmatpush1.msra.mxu0 0.0
    %2449 = vmatprep.subr.mxu0 0.0
    %2450 = vmatpush1.msra.mxu0 0.0
    %2451 = vmatprep.subr.mxu0 0.0
    %2452 = vmatpush1.msra.mxu0 0.0
    %2453 = vmatprep.subr.mxu0 0.0
    %2454 = vmatpush1.msra.mxu0 0.0
    %2455 = vmatprep.subr.mxu0 0.0
    %2456 = vmatpush1.msra.mxu0 %v2426
    %2457 = vmatprep.subr.mxu0 0.0
    %2458 = vmatpush1.msra.mxu0 %v2425
    %2459 = vmatprep.subr.mxu0 0.0
    %2460 = vmatpush2.msra.mxu0 0.0
    %2461 = vmatprep.subr.mxu0 0.0
    %2462 = vmatpush2.msra.mxu0 0.0
    %2463 = vmatprep.subr.mxu0 0.0
    %2464 = vmatpush2.msra.mxu0 0.0
    %2465 = vmatprep.subr.mxu0 0.0
    %2466 = vmatpush2.msra.mxu0 0.0
    %2467 = vmatprep.subr.mxu0 0.0
    %2468 = vmatpush2.msra.mxu0 0.0
    %2469 = vmatprep.subr.mxu0 0.0
    %2470 = vmatpush2.msra.mxu0 0.0
    %2471 = vmatprep.subr.mxu0 0.0
    %2472 = vmatpush2.msra.mxu0 0.0
    %2473 = vmatprep.subr.mxu0 0.0
    %2474 = vmatpush2.msra.mxu0 0.0
    %2475 = vmatprep.subr.mxu0 0.0
    %2476 = vmatpush2.msra.mxu0 0.0
    %2477 = vmatprep.subr.mxu0 0.0
    %2478 = vmatpush2.msra.mxu0 0.0
    %2479 = vmatprep.subr.mxu0 0.0
    %2480 = vmatpush2.msra.mxu0 0.0
    %2481 = vmatprep.subr.mxu0 0.0
    %2482 = vmatpush2.msra.mxu0 0.0
    %2483 = vmatprep.subr.mxu0 0.0
    %2484 = vmatpush2.msra.mxu0 0.0
    %2485 = vmatprep.subr.mxu0 0.0
    %2486 = vmatpush2.msra.mxu0 0.0
    %2487 = vmatprep.subr.mxu0 0.0
    %2488 = vmatpush2.msra.mxu0 0.0
    %2489 = vmatprep.subr.mxu0 0.0
    %2490 = vmatpush2.msra.mxu0 0.0
    %2491 = vmatprep.mubr.f32.mxu0 0.0
    %2492 = vmatmul.mubr.f32.gmra.mxu0 %v2343
    %v2493 = vpop.f32.mrf.mxu0
    %v2494 = vadd.f32 0.0, %v2493
    %v2495 = vpop.f32.mrf.mxu0
    %2496 = vmatprep.mubr.f32.mxu0 0.0
    %2497 = vmatmul.mubr.f32.gmra.mxu0 %v2346
    %v2498 = vpop.f32.mrf.mxu0
    %v2499 = vadd.f32 0.0, %v2498
    %v2500 = vpop.f32.mrf.mxu0
    %2501 = vdwg.mxu0
    %v2502 = vadd.f32 %v2331, %v2494
    %v2503 = vadd.f32 %v2332, %v2499
    %s2504 = scalar_lea.vmem %s0, 64
    %v2505 = vld [vmem:[%s2504] sm:$0xff]
    %v2506 = vld [vmem:[%s2504 + $0x8] sm:$0xff]
    %v2507 = vlaneseq
    %v2508 = vshrl.u32 %v2507, 7
    %v2509 = vsub.s32 4, %v2508
    %v2510 = vrot.slane %v1014, %v2509
    %v2511 = vmul.f32 %v1585, %v2510
    %v2512 = vmul.f32 %v1590, %v2510
    %v2514 = vsel %vm72, %v2505, 0
    %v2517 = vsel %vm72, %v2506, 0
    %2519 = vmatprep.subr.mxu0 0.0
    %2520 = vmatpush1.msra.mxu0 0.0
    %2521 = vmatprep.subr.mxu0 0.0
    %2522 = vmatpush1.msra.mxu0 0.0
    %2523 = vmatprep.subr.mxu0 0.0
    %2524 = vmatpush1.msra.mxu0 0.0
    %2525 = vmatprep.subr.mxu0 0.0
    %2526 = vmatpush1.msra.mxu0 0.0
    %2527 = vmatprep.subr.mxu0 0.0
    %2528 = vmatpush1.msra.mxu0 0.0
    %2529 = vmatprep.subr.mxu0 0.0
    %2530 = vmatpush1.msra.mxu0 0.0
    %2531 = vmatprep.subr.mxu0 0.0
    %2532 = vmatpush1.msra.mxu0 0.0
    %2533 = vmatprep.subr.mxu0 0.0
    %2534 = vmatpush1.msra.mxu0 0.0
    %2535 = vmatprep.subr.mxu0 0.0
    %2536 = vmatpush1.msra.mxu0 0.0
    %2537 = vmatprep.subr.mxu0 0.0
    %2538 = vmatpush1.msra.mxu0 0.0
    %2539 = vmatprep.subr.mxu0 0.0
    %2540 = vmatpush1.msra.mxu0 0.0
    %2541 = vmatprep.subr.mxu0 0.0
    %2542 = vmatpush1.msra.mxu0 0.0
    %2543 = vmatprep.subr.mxu0 0.0
    %2544 = vmatpush1.msra.mxu0 0.0
    %2545 = vmatprep.subr.mxu0 0.0
    %2546 = vmatpush1.msra.mxu0 0.0
    %2547 = vmatprep.subr.mxu0 0.0
    %2548 = vmatpush1.msra.mxu0 %v2512
    %2549 = vmatprep.subr.mxu0 0.0
    %2550 = vmatpush1.msra.mxu0 %v2511
    %2551 = vmatprep.subr.mxu0 0.0
    %2552 = vmatpush2.msra.mxu0 0.0
    %2553 = vmatprep.subr.mxu0 0.0
    %2554 = vmatpush2.msra.mxu0 0.0
    %2555 = vmatprep.subr.mxu0 0.0
    %2556 = vmatpush2.msra.mxu0 0.0
    %2557 = vmatprep.subr.mxu0 0.0
    %2558 = vmatpush2.msra.mxu0 0.0
    %2559 = vmatprep.subr.mxu0 0.0
    %2560 = vmatpush2.msra.mxu0 0.0
    %2561 = vmatprep.subr.mxu0 0.0
    %2562 = vmatpush2.msra.mxu0 0.0
    %2563 = vmatprep.subr.mxu0 0.0
    %2564 = vmatpush2.msra.mxu0 0.0
    %2565 = vmatprep.subr.mxu0 0.0
    %2566 = vmatpush2.msra.mxu0 0.0
    %2567 = vmatprep.subr.mxu0 0.0
    %2568 = vmatpush2.msra.mxu0 0.0
    %2569 = vmatprep.subr.mxu0 0.0
    %2570 = vmatpush2.msra.mxu0 0.0
    %2571 = vmatprep.subr.mxu0 0.0
    %2572 = vmatpush2.msra.mxu0 0.0
    %2573 = vmatprep.subr.mxu0 0.0
    %2574 = vmatpush2.msra.mxu0 0.0
    %2575 = vmatprep.subr.mxu0 0.0
    %2576 = vmatpush2.msra.mxu0 0.0
    %2577 = vmatprep.subr.mxu0 0.0
    %2578 = vmatpush2.msra.mxu0 0.0
    %2579 = vmatprep.subr.mxu0 0.0
    %2580 = vmatpush2.msra.mxu0 0.0
    %2581 = vmatprep.subr.mxu0 0.0
    %2582 = vmatpush2.msra.mxu0 0.0
    %2583 = vmatprep.mubr.f32.mxu0 0.0
    %2584 = vmatmul.mubr.f32.gmra.mxu0 %v2514
    %v2585 = vpop.f32.mrf.mxu0
    %v2586 = vadd.f32 0.0, %v2585
    %v2587 = vpop.f32.mrf.mxu0
    %2588 = vmatprep.mubr.f32.mxu0 0.0
    %2589 = vmatmul.mubr.f32.gmra.mxu0 %v2517
    %v2590 = vpop.f32.mrf.mxu0
    %v2591 = vadd.f32 0.0, %v2590
    %v2592 = vpop.f32.mrf.mxu0
    %2593 = vdwg.mxu0
    %v2594 = vadd.f32 %v2423, %v2586
    %v2595 = vadd.f32 %v2424, %v2591
    %v2596 = vmul.f32 %v1667, %v2510
    %v2597 = vmul.f32 %v1672, %v2510
    %2598 = vmatprep.subr.mxu0 0.0
    %2599 = vmatpush1.msra.mxu0 0.0
    %2600 = vmatprep.subr.mxu0 0.0
    %2601 = vmatpush1.msra.mxu0 0.0
    %2602 = vmatprep.subr.mxu0 0.0
    %2603 = vmatpush1.msra.mxu0 0.0
    %2604 = vmatprep.subr.mxu0 0.0
    %2605 = vmatpush1.msra.mxu0 0.0
    %2606 = vmatprep.subr.mxu0 0.0
    %2607 = vmatpush1.msra.mxu0 0.0
    %2608 = vmatprep.subr.mxu0 0.0
    %2609 = vmatpush1.msra.mxu0 0.0
    %2610 = vmatprep.subr.mxu0 0.0
    %2611 = vmatpush1.msra.mxu0 0.0
    %2612 = vmatprep.subr.mxu0 0.0
    %2613 = vmatpush1.msra.mxu0 0.0
    %2614 = vmatprep.subr.mxu0 0.0
    %2615 = vmatpush1.msra.mxu0 0.0
    %2616 = vmatprep.subr.mxu0 0.0
    %2617 = vmatpush1.msra.mxu0 0.0
    %2618 = vmatprep.subr.mxu0 0.0
    %2619 = vmatpush1.msra.mxu0 0.0
    %2620 = vmatprep.subr.mxu0 0.0
    %2621 = vmatpush1.msra.mxu0 0.0
    %2622 = vmatprep.subr.mxu0 0.0
    %2623 = vmatpush1.msra.mxu0 0.0
    %2624 = vmatprep.subr.mxu0 0.0
    %2625 = vmatpush1.msra.mxu0 0.0
    %2626 = vmatprep.subr.mxu0 0.0
    %2627 = vmatpush1.msra.mxu0 %v2597
    %2628 = vmatprep.subr.mxu0 0.0
    %2629 = vmatpush1.msra.mxu0 %v2596
    %2630 = vmatprep.subr.mxu0 0.0
    %2631 = vmatpush2.msra.mxu0 0.0
    %2632 = vmatprep.subr.mxu0 0.0
    %2633 = vmatpush2.msra.mxu0 0.0
    %2634 = vmatprep.subr.mxu0 0.0
    %2635 = vmatpush2.msra.mxu0 0.0
    %2636 = vmatprep.subr.mxu0 0.0
    %2637 = vmatpush2.msra.mxu0 0.0
    %2638 = vmatprep.subr.mxu0 0.0
    %2639 = vmatpush2.msra.mxu0 0.0
    %2640 = vmatprep.subr.mxu0 0.0
    %2641 = vmatpush2.msra.mxu0 0.0
    %2642 = vmatprep.subr.mxu0 0.0
    %2643 = vmatpush2.msra.mxu0 0.0
    %2644 = vmatprep.subr.mxu0 0.0
    %2645 = vmatpush2.msra.mxu0 0.0
    %2646 = vmatprep.subr.mxu0 0.0
    %2647 = vmatpush2.msra.mxu0 0.0
    %2648 = vmatprep.subr.mxu0 0.0
    %2649 = vmatpush2.msra.mxu0 0.0
    %2650 = vmatprep.subr.mxu0 0.0
    %2651 = vmatpush2.msra.mxu0 0.0
    %2652 = vmatprep.subr.mxu0 0.0
    %2653 = vmatpush2.msra.mxu0 0.0
    %2654 = vmatprep.subr.mxu0 0.0
    %2655 = vmatpush2.msra.mxu0 0.0
    %2656 = vmatprep.subr.mxu0 0.0
    %2657 = vmatpush2.msra.mxu0 0.0
    %2658 = vmatprep.subr.mxu0 0.0
    %2659 = vmatpush2.msra.mxu0 0.0
    %2660 = vmatprep.subr.mxu0 0.0
    %2661 = vmatpush2.msra.mxu0 0.0
    %2662 = vmatprep.mubr.f32.mxu0 0.0
    %2663 = vmatmul.mubr.f32.gmra.mxu0 %v2514
    %v2664 = vpop.f32.mrf.mxu0
    %v2665 = vadd.f32 0.0, %v2664
    %v2666 = vpop.f32.mrf.mxu0
    %2667 = vmatprep.mubr.f32.mxu0 0.0
    %2668 = vmatmul.mubr.f32.gmra.mxu0 %v2517
    %v2669 = vpop.f32.mrf.mxu0
    %v2670 = vadd.f32 0.0, %v2669
    %v2671 = vpop.f32.mrf.mxu0
    %2672 = vdwg.mxu0
    %v2673 = vadd.f32 %v2502, %v2665
    %v2674 = vadd.f32 %v2503, %v2670
    %s2675 = scalar_lea.vmem %s0, 80
    %v2676 = vld [vmem:[%s2675] sm:$0xff]
    %v2677 = vld [vmem:[%s2675 + $0x8] sm:$0xff]
    %v2678 = vlaneseq
    %v2679 = vshrl.u32 %v2678, 7
    %v2680 = vsub.s32 5, %v2679
    %v2681 = vrot.slane %v1014, %v2680
    %v2682 = vmul.f32 %v1585, %v2681
    %v2683 = vmul.f32 %v1590, %v2681
    %v2685 = vsel %vm72, %v2676, 0
    %v2688 = vsel %vm72, %v2677, 0
    %2690 = vmatprep.subr.mxu0 0.0
    %2691 = vmatpush1.msra.mxu0 0.0
    %2692 = vmatprep.subr.mxu0 0.0
    %2693 = vmatpush1.msra.mxu0 0.0
    %2694 = vmatprep.subr.mxu0 0.0
    %2695 = vmatpush1.msra.mxu0 0.0
    %2696 = vmatprep.subr.mxu0 0.0
    %2697 = vmatpush1.msra.mxu0 0.0
    %2698 = vmatprep.subr.mxu0 0.0
    %2699 = vmatpush1.msra.mxu0 0.0
    %2700 = vmatprep.subr.mxu0 0.0
    %2701 = vmatpush1.msra.mxu0 0.0
    %2702 = vmatprep.subr.mxu0 0.0
    %2703 = vmatpush1.msra.mxu0 0.0
    %2704 = vmatprep.subr.mxu0 0.0
    %2705 = vmatpush1.msra.mxu0 0.0
    %2706 = vmatprep.subr.mxu0 0.0
    %2707 = vmatpush1.msra.mxu0 0.0
    %2708 = vmatprep.subr.mxu0 0.0
    %2709 = vmatpush1.msra.mxu0 0.0
    %2710 = vmatprep.subr.mxu0 0.0
    %2711 = vmatpush1.msra.mxu0 0.0
    %2712 = vmatprep.subr.mxu0 0.0
    %2713 = vmatpush1.msra.mxu0 0.0
    %2714 = vmatprep.subr.mxu0 0.0
    %2715 = vmatpush1.msra.mxu0 0.0
    %2716 = vmatprep.subr.mxu0 0.0
    %2717 = vmatpush1.msra.mxu0 0.0
    %2718 = vmatprep.subr.mxu0 0.0
    %2719 = vmatpush1.msra.mxu0 %v2683
    %2720 = vmatprep.subr.mxu0 0.0
    %2721 = vmatpush1.msra.mxu0 %v2682
    %2722 = vmatprep.subr.mxu0 0.0
    %2723 = vmatpush2.msra.mxu0 0.0
    %2724 = vmatprep.subr.mxu0 0.0
    %2725 = vmatpush2.msra.mxu0 0.0
    %2726 = vmatprep.subr.mxu0 0.0
    %2727 = vmatpush2.msra.mxu0 0.0
    %2728 = vmatprep.subr.mxu0 0.0
    %2729 = vmatpush2.msra.mxu0 0.0
    %2730 = vmatprep.subr.mxu0 0.0
    %2731 = vmatpush2.msra.mxu0 0.0
    %2732 = vmatprep.subr.mxu0 0.0
    %2733 = vmatpush2.msra.mxu0 0.0
    %2734 = vmatprep.subr.mxu0 0.0
    %2735 = vmatpush2.msra.mxu0 0.0
    %2736 = vmatprep.subr.mxu0 0.0
    %2737 = vmatpush2.msra.mxu0 0.0
    %2738 = vmatprep.subr.mxu0 0.0
    %2739 = vmatpush2.msra.mxu0 0.0
    %2740 = vmatprep.subr.mxu0 0.0
    %2741 = vmatpush2.msra.mxu0 0.0
    %2742 = vmatprep.subr.mxu0 0.0
    %2743 = vmatpush2.msra.mxu0 0.0
    %2744 = vmatprep.subr.mxu0 0.0
    %2745 = vmatpush2.msra.mxu0 0.0
    %2746 = vmatprep.subr.mxu0 0.0
    %2747 = vmatpush2.msra.mxu0 0.0
    %2748 = vmatprep.subr.mxu0 0.0
    %2749 = vmatpush2.msra.mxu0 0.0
    %2750 = vmatprep.subr.mxu0 0.0
    %2751 = vmatpush2.msra.mxu0 0.0
    %2752 = vmatprep.subr.mxu0 0.0
    %2753 = vmatpush2.msra.mxu0 0.0
    %2754 = vmatprep.mubr.f32.mxu0 0.0
    %2755 = vmatmul.mubr.f32.gmra.mxu0 %v2685
    %v2756 = vpop.f32.mrf.mxu0
    %v2757 = vadd.f32 0.0, %v2756
    %v2758 = vpop.f32.mrf.mxu0
    %2759 = vmatprep.mubr.f32.mxu0 0.0
    %2760 = vmatmul.mubr.f32.gmra.mxu0 %v2688
    %v2761 = vpop.f32.mrf.mxu0
    %v2762 = vadd.f32 0.0, %v2761
    %v2763 = vpop.f32.mrf.mxu0
    %2764 = vdwg.mxu0
    %v2765 = vadd.f32 %v2594, %v2757
    %v2766 = vadd.f32 %v2595, %v2762
    %v2767 = vmul.f32 %v1667, %v2681
    %v2768 = vmul.f32 %v1672, %v2681
    %2769 = vmatprep.subr.mxu0 0.0
    %2770 = vmatpush1.msra.mxu0 0.0
    %2771 = vmatprep.subr.mxu0 0.0
    %2772 = vmatpush1.msra.mxu0 0.0
    %2773 = vmatprep.subr.mxu0 0.0
    %2774 = vmatpush1.msra.mxu0 0.0
    %2775 = vmatprep.subr.mxu0 0.0
    %2776 = vmatpush1.msra.mxu0 0.0
    %2777 = vmatprep.subr.mxu0 0.0
    %2778 = vmatpush1.msra.mxu0 0.0
    %2779 = vmatprep.subr.mxu0 0.0
    %2780 = vmatpush1.msra.mxu0 0.0
    %2781 = vmatprep.subr.mxu0 0.0
    %2782 = vmatpush1.msra.mxu0 0.0
    %2783 = vmatprep.subr.mxu0 0.0
    %2784 = vmatpush1.msra.mxu0 0.0
    %2785 = vmatprep.subr.mxu0 0.0
    %2786 = vmatpush1.msra.mxu0 0.0
    %2787 = vmatprep.subr.mxu0 0.0
    %2788 = vmatpush1.msra.mxu0 0.0
    %2789 = vmatprep.subr.mxu0 0.0
    %2790 = vmatpush1.msra.mxu0 0.0
    %2791 = vmatprep.subr.mxu0 0.0
    %2792 = vmatpush1.msra.mxu0 0.0
    %2793 = vmatprep.subr.mxu0 0.0
    %2794 = vmatpush1.msra.mxu0 0.0
    %2795 = vmatprep.subr.mxu0 0.0
    %2796 = vmatpush1.msra.mxu0 0.0
    %2797 = vmatprep.subr.mxu0 0.0
    %2798 = vmatpush1.msra.mxu0 %v2768
    %2799 = vmatprep.subr.mxu0 0.0
    %2800 = vmatpush1.msra.mxu0 %v2767
    %2801 = vmatprep.subr.mxu0 0.0
    %2802 = vmatpush2.msra.mxu0 0.0
    %2803 = vmatprep.subr.mxu0 0.0
    %2804 = vmatpush2.msra.mxu0 0.0
    %2805 = vmatprep.subr.mxu0 0.0
    %2806 = vmatpush2.msra.mxu0 0.0
    %2807 = vmatprep.subr.mxu0 0.0
    %2808 = vmatpush2.msra.mxu0 0.0
    %2809 = vmatprep.subr.mxu0 0.0
    %2810 = vmatpush2.msra.mxu0 0.0
    %2811 = vmatprep.subr.mxu0 0.0
    %2812 = vmatpush2.msra.mxu0 0.0
    %2813 = vmatprep.subr.mxu0 0.0
    %2814 = vmatpush2.msra.mxu0 0.0
    %2815 = vmatprep.subr.mxu0 0.0
    %2816 = vmatpush2.msra.mxu0 0.0
    %2817 = vmatprep.subr.mxu0 0.0
    %2818 = vmatpush2.msra.mxu0 0.0
    %2819 = vmatprep.subr.mxu0 0.0
    %2820 = vmatpush2.msra.mxu0 0.0
    %2821 = vmatprep.subr.mxu0 0.0
    %2822 = vmatpush2.msra.mxu0 0.0
    %2823 = vmatprep.subr.mxu0 0.0
    %2824 = vmatpush2.msra.mxu0 0.0
    %2825 = vmatprep.subr.mxu0 0.0
    %2826 = vmatpush2.msra.mxu0 0.0
    %2827 = vmatprep.subr.mxu0 0.0
    %2828 = vmatpush2.msra.mxu0 0.0
    %2829 = vmatprep.subr.mxu0 0.0
    %2830 = vmatpush2.msra.mxu0 0.0
    %2831 = vmatprep.subr.mxu0 0.0
    %2832 = vmatpush2.msra.mxu0 0.0
    %2833 = vmatprep.mubr.f32.mxu0 0.0
    %2834 = vmatmul.mubr.f32.gmra.mxu0 %v2685
    %v2835 = vpop.f32.mrf.mxu0
    %v2836 = vadd.f32 0.0, %v2835
    %v2837 = vpop.f32.mrf.mxu0
    %2838 = vmatprep.mubr.f32.mxu0 0.0
    %2839 = vmatmul.mubr.f32.gmra.mxu0 %v2688
    %v2840 = vpop.f32.mrf.mxu0
    %v2841 = vadd.f32 0.0, %v2840
    %v2842 = vpop.f32.mrf.mxu0
    %2843 = vdwg.mxu0
    %v2844 = vadd.f32 %v2673, %v2836
    %v2845 = vadd.f32 %v2674, %v2841
    %s2846 = scalar_lea.vmem %s0, 96
    %v2847 = vld [vmem:[%s2846] sm:$0xff]
    %v2848 = vld [vmem:[%s2846 + $0x8] sm:$0xff]
    %v2849 = vlaneseq
    %v2850 = vshrl.u32 %v2849, 7
    %v2851 = vsub.s32 6, %v2850
    %v2852 = vrot.slane %v1014, %v2851
    %v2853 = vmul.f32 %v1585, %v2852
    %v2854 = vmul.f32 %v1590, %v2852
    %v2856 = vsel %vm72, %v2847, 0
    %v2859 = vsel %vm72, %v2848, 0
    %2861 = vmatprep.subr.mxu0 0.0
    %2862 = vmatpush1.msra.mxu0 0.0
    %2863 = vmatprep.subr.mxu0 0.0
    %2864 = vmatpush1.msra.mxu0 0.0
    %2865 = vmatprep.subr.mxu0 0.0
    %2866 = vmatpush1.msra.mxu0 0.0
    %2867 = vmatprep.subr.mxu0 0.0
    %2868 = vmatpush1.msra.mxu0 0.0
    %2869 = vmatprep.subr.mxu0 0.0
    %2870 = vmatpush1.msra.mxu0 0.0
    %2871 = vmatprep.subr.mxu0 0.0
    %2872 = vmatpush1.msra.mxu0 0.0
    %2873 = vmatprep.subr.mxu0 0.0
    %2874 = vmatpush1.msra.mxu0 0.0
    %2875 = vmatprep.subr.mxu0 0.0
    %2876 = vmatpush1.msra.mxu0 0.0
    %2877 = vmatprep.subr.mxu0 0.0
    %2878 = vmatpush1.msra.mxu0 0.0
    %2879 = vmatprep.subr.mxu0 0.0
    %2880 = vmatpush1.msra.mxu0 0.0
    %2881 = vmatprep.subr.mxu0 0.0
    %2882 = vmatpush1.msra.mxu0 0.0
    %2883 = vmatprep.subr.mxu0 0.0
    %2884 = vmatpush1.msra.mxu0 0.0
    %2885 = vmatprep.subr.mxu0 0.0
    %2886 = vmatpush1.msra.mxu0 0.0
    %2887 = vmatprep.subr.mxu0 0.0
    %2888 = vmatpush1.msra.mxu0 0.0
    %2889 = vmatprep.subr.mxu0 0.0
    %2890 = vmatpush1.msra.mxu0 %v2854
    %2891 = vmatprep.subr.mxu0 0.0
    %2892 = vmatpush1.msra.mxu0 %v2853
    %2893 = vmatprep.subr.mxu0 0.0
    %2894 = vmatpush2.msra.mxu0 0.0
    %2895 = vmatprep.subr.mxu0 0.0
    %2896 = vmatpush2.msra.mxu0 0.0
    %2897 = vmatprep.subr.mxu0 0.0
    %2898 = vmatpush2.msra.mxu0 0.0
    %2899 = vmatprep.subr.mxu0 0.0
    %2900 = vmatpush2.msra.mxu0 0.0
    %2901 = vmatprep.subr.mxu0 0.0
    %2902 = vmatpush2.msra.mxu0 0.0
    %2903 = vmatprep.subr.mxu0 0.0
    %2904 = vmatpush2.msra.mxu0 0.0
    %2905 = vmatprep.subr.mxu0 0.0
    %2906 = vmatpush2.msra.mxu0 0.0
    %2907 = vmatprep.subr.mxu0 0.0
    %2908 = vmatpush2.msra.mxu0 0.0
    %2909 = vmatprep.subr.mxu0 0.0
    %2910 = vmatpush2.msra.mxu0 0.0
    %2911 = vmatprep.subr.mxu0 0.0
    %2912 = vmatpush2.msra.mxu0 0.0
    %2913 = vmatprep.subr.mxu0 0.0
    %2914 = vmatpush2.msra.mxu0 0.0
    %2915 = vmatprep.subr.mxu0 0.0
    %2916 = vmatpush2.msra.mxu0 0.0
    %2917 = vmatprep.subr.mxu0 0.0
    %2918 = vmatpush2.msra.mxu0 0.0
    %2919 = vmatprep.subr.mxu0 0.0
    %2920 = vmatpush2.msra.mxu0 0.0
    %2921 = vmatprep.subr.mxu0 0.0
    %2922 = vmatpush2.msra.mxu0 0.0
    %2923 = vmatprep.subr.mxu0 0.0
    %2924 = vmatpush2.msra.mxu0 0.0
    %2925 = vmatprep.mubr.f32.mxu0 0.0
    %2926 = vmatmul.mubr.f32.gmra.mxu0 %v2856
    %v2927 = vpop.f32.mrf.mxu0
    %v2928 = vadd.f32 0.0, %v2927
    %v2929 = vpop.f32.mrf.mxu0
    %2930 = vmatprep.mubr.f32.mxu0 0.0
    %2931 = vmatmul.mubr.f32.gmra.mxu0 %v2859
    %v2932 = vpop.f32.mrf.mxu0
    %v2933 = vadd.f32 0.0, %v2932
    %v2934 = vpop.f32.mrf.mxu0
    %2935 = vdwg.mxu0
    %v2936 = vadd.f32 %v2765, %v2928
    %v2937 = vadd.f32 %v2766, %v2933
    %v2938 = vmul.f32 %v1667, %v2852
    %v2939 = vmul.f32 %v1672, %v2852
    %2940 = vmatprep.subr.mxu0 0.0
    %2941 = vmatpush1.msra.mxu0 0.0
    %2942 = vmatprep.subr.mxu0 0.0
    %2943 = vmatpush1.msra.mxu0 0.0
    %2944 = vmatprep.subr.mxu0 0.0
    %2945 = vmatpush1.msra.mxu0 0.0
    %2946 = vmatprep.subr.mxu0 0.0
    %2947 = vmatpush1.msra.mxu0 0.0
    %2948 = vmatprep.subr.mxu0 0.0
    %2949 = vmatpush1.msra.mxu0 0.0
    %2950 = vmatprep.subr.mxu0 0.0
    %2951 = vmatpush1.msra.mxu0 0.0
    %2952 = vmatprep.subr.mxu0 0.0
    %2953 = vmatpush1.msra.mxu0 0.0
    %2954 = vmatprep.subr.mxu0 0.0
    %2955 = vmatpush1.msra.mxu0 0.0
    %2956 = vmatprep.subr.mxu0 0.0
    %2957 = vmatpush1.msra.mxu0 0.0
    %2958 = vmatprep.subr.mxu0 0.0
    %2959 = vmatpush1.msra.mxu0 0.0
    %2960 = vmatprep.subr.mxu0 0.0
    %2961 = vmatpush1.msra.mxu0 0.0
    %2962 = vmatprep.subr.mxu0 0.0
    %2963 = vmatpush1.msra.mxu0 0.0
    %2964 = vmatprep.subr.mxu0 0.0
    %2965 = vmatpush1.msra.mxu0 0.0
    %2966 = vmatprep.subr.mxu0 0.0
    %2967 = vmatpush1.msra.mxu0 0.0
    %2968 = vmatprep.subr.mxu0 0.0
    %2969 = vmatpush1.msra.mxu0 %v2939
    %2970 = vmatprep.subr.mxu0 0.0
    %2971 = vmatpush1.msra.mxu0 %v2938
    %2972 = vmatprep.subr.mxu0 0.0
    %2973 = vmatpush2.msra.mxu0 0.0
    %2974 = vmatprep.subr.mxu0 0.0
    %2975 = vmatpush2.msra.mxu0 0.0
    %2976 = vmatprep.subr.mxu0 0.0
    %2977 = vmatpush2.msra.mxu0 0.0
    %2978 = vmatprep.subr.mxu0 0.0
    %2979 = vmatpush2.msra.mxu0 0.0
    %2980 = vmatprep.subr.mxu0 0.0
    %2981 = vmatpush2.msra.mxu0 0.0
    %2982 = vmatprep.subr.mxu0 0.0
    %2983 = vmatpush2.msra.mxu0 0.0
    %2984 = vmatprep.subr.mxu0 0.0
    %2985 = vmatpush2.msra.mxu0 0.0
    %2986 = vmatprep.subr.mxu0 0.0
    %2987 = vmatpush2.msra.mxu0 0.0
    %2988 = vmatprep.subr.mxu0 0.0
    %2989 = vmatpush2.msra.mxu0 0.0
    %2990 = vmatprep.subr.mxu0 0.0
    %2991 = vmatpush2.msra.mxu0 0.0
    %2992 = vmatprep.subr.mxu0 0.0
    %2993 = vmatpush2.msra.mxu0 0.0
    %2994 = vmatprep.subr.mxu0 0.0
    %2995 = vmatpush2.msra.mxu0 0.0
    %2996 = vmatprep.subr.mxu0 0.0
    %2997 = vmatpush2.msra.mxu0 0.0
    %2998 = vmatprep.subr.mxu0 0.0
    %2999 = vmatpush2.msra.mxu0 0.0
    %3000 = vmatprep.subr.mxu0 0.0
    %3001 = vmatpush2.msra.mxu0 0.0
    %3002 = vmatprep.subr.mxu0 0.0
    %3003 = vmatpush2.msra.mxu0 0.0
    %3004 = vmatprep.mubr.f32.mxu0 0.0
    %3005 = vmatmul.mubr.f32.gmra.mxu0 %v2856
    %v3006 = vpop.f32.mrf.mxu0
    %v3007 = vadd.f32 0.0, %v3006
    %v3008 = vpop.f32.mrf.mxu0
    %3009 = vmatprep.mubr.f32.mxu0 0.0
    %3010 = vmatmul.mubr.f32.gmra.mxu0 %v2859
    %v3011 = vpop.f32.mrf.mxu0
    %v3012 = vadd.f32 0.0, %v3011
    %v3013 = vpop.f32.mrf.mxu0
    %3014 = vdwg.mxu0
    %v3015 = vadd.f32 %v2844, %v3007
    %v3016 = vadd.f32 %v2845, %v3012
    %s3017 = scalar_lea.vmem %s0, 112
    %v3018 = vld [vmem:[%s3017] sm:$0xff]
    %v3019 = vld [vmem:[%s3017 + $0x8] sm:$0xff]
    %v3020 = vlaneseq
    %v3021 = vshrl.u32 %v3020, 7
    %v3022 = vsub.s32 7, %v3021
    %v3023 = vrot.slane %v1014, %v3022
    %v3024 = vmul.f32 %v1585, %v3023
    %v3025 = vmul.f32 %v1590, %v3023
    %v3027 = vsel %vm72, %v3018, 0
    %v3030 = vsel %vm72, %v3019, 0
    %3032 = vmatprep.subr.mxu0 0.0
    %3033 = vmatpush1.msra.mxu0 0.0
    %3034 = vmatprep.subr.mxu0 0.0
    %3035 = vmatpush1.msra.mxu0 0.0
    %3036 = vmatprep.subr.mxu0 0.0
    %3037 = vmatpush1.msra.mxu0 0.0
    %3038 = vmatprep.subr.mxu0 0.0
    %3039 = vmatpush1.msra.mxu0 0.0
    %3040 = vmatprep.subr.mxu0 0.0
    %3041 = vmatpush1.msra.mxu0 0.0
    %3042 = vmatprep.subr.mxu0 0.0
    %3043 = vmatpush1.msra.mxu0 0.0
    %3044 = vmatprep.subr.mxu0 0.0
    %3045 = vmatpush1.msra.mxu0 0.0
    %3046 = vmatprep.subr.mxu0 0.0
    %3047 = vmatpush1.msra.mxu0 0.0
    %3048 = vmatprep.subr.mxu0 0.0
    %3049 = vmatpush1.msra.mxu0 0.0
    %3050 = vmatprep.subr.mxu0 0.0
    %3051 = vmatpush1.msra.mxu0 0.0
    %3052 = vmatprep.subr.mxu0 0.0
    %3053 = vmatpush1.msra.mxu0 0.0
    %3054 = vmatprep.subr.mxu0 0.0
    %3055 = vmatpush1.msra.mxu0 0.0
    %3056 = vmatprep.subr.mxu0 0.0
    %3057 = vmatpush1.msra.mxu0 0.0
    %3058 = vmatprep.subr.mxu0 0.0
    %3059 = vmatpush1.msra.mxu0 0.0
    %3060 = vmatprep.subr.mxu0 0.0
    %3061 = vmatpush1.msra.mxu0 %v3025
    %3062 = vmatprep.subr.mxu0 0.0
    %3063 = vmatpush1.msra.mxu0 %v3024
    %3064 = vmatprep.subr.mxu0 0.0
    %3065 = vmatpush2.msra.mxu0 0.0
    %3066 = vmatprep.subr.mxu0 0.0
    %3067 = vmatpush2.msra.mxu0 0.0
    %3068 = vmatprep.subr.mxu0 0.0
    %3069 = vmatpush2.msra.mxu0 0.0
    %3070 = vmatprep.subr.mxu0 0.0
    %3071 = vmatpush2.msra.mxu0 0.0
    %3072 = vmatprep.subr.mxu0 0.0
    %3073 = vmatpush2.msra.mxu0 0.0
    %3074 = vmatprep.subr.mxu0 0.0
    %3075 = vmatpush2.msra.mxu0 0.0
    %3076 = vmatprep.subr.mxu0 0.0
    %3077 = vmatpush2.msra.mxu0 0.0
    %3078 = vmatprep.subr.mxu0 0.0
    %3079 = vmatpush2.msra.mxu0 0.0
    %3080 = vmatprep.subr.mxu0 0.0
    %3081 = vmatpush2.msra.mxu0 0.0
    %3082 = vmatprep.subr.mxu0 0.0
    %3083 = vmatpush2.msra.mxu0 0.0
    %3084 = vmatprep.subr.mxu0 0.0
    %3085 = vmatpush2.msra.mxu0 0.0
    %3086 = vmatprep.subr.mxu0 0.0
    %3087 = vmatpush2.msra.mxu0 0.0
    %3088 = vmatprep.subr.mxu0 0.0
    %3089 = vmatpush2.msra.mxu0 0.0
    %3090 = vmatprep.subr.mxu0 0.0
    %3091 = vmatpush2.msra.mxu0 0.0
    %3092 = vmatprep.subr.mxu0 0.0
    %3093 = vmatpush2.msra.mxu0 0.0
    %3094 = vmatprep.subr.mxu0 0.0
    %3095 = vmatpush2.msra.mxu0 0.0
    %3096 = vmatprep.mubr.f32.mxu0 0.0
    %3097 = vmatmul.mubr.f32.gmra.mxu0 %v3027
    %v3098 = vpop.f32.mrf.mxu0
    %v3099 = vadd.f32 0.0, %v3098
    %v3100 = vpop.f32.mrf.mxu0
    %3101 = vmatprep.mubr.f32.mxu0 0.0
    %3102 = vmatmul.mubr.f32.gmra.mxu0 %v3030
    %v3103 = vpop.f32.mrf.mxu0
    %v3104 = vadd.f32 0.0, %v3103
    %v3105 = vpop.f32.mrf.mxu0
    %3106 = vdwg.mxu0
    %v3107 = vadd.f32 %v2936, %v3099
    %v3108 = vadd.f32 %v2937, %v3104
    %v3109 = vmul.f32 %v1667, %v3023
    %v3110 = vmul.f32 %v1672, %v3023
    %3111 = vmatprep.subr.mxu0 0.0
    %3112 = vmatpush1.msra.mxu0 0.0
    %3113 = vmatprep.subr.mxu0 0.0
    %3114 = vmatpush1.msra.mxu0 0.0
    %3115 = vmatprep.subr.mxu0 0.0
    %3116 = vmatpush1.msra.mxu0 0.0
    %3117 = vmatprep.subr.mxu0 0.0
    %3118 = vmatpush1.msra.mxu0 0.0
    %3119 = vmatprep.subr.mxu0 0.0
    %3120 = vmatpush1.msra.mxu0 0.0
    %3121 = vmatprep.subr.mxu0 0.0
    %3122 = vmatpush1.msra.mxu0 0.0
    %3123 = vmatprep.subr.mxu0 0.0
    %3124 = vmatpush1.msra.mxu0 0.0
    %3125 = vmatprep.subr.mxu0 0.0
    %3126 = vmatpush1.msra.mxu0 0.0
    %3127 = vmatprep.subr.mxu0 0.0
    %3128 = vmatpush1.msra.mxu0 0.0
    %3129 = vmatprep.subr.mxu0 0.0
    %3130 = vmatpush1.msra.mxu0 0.0
    %3131 = vmatprep.subr.mxu0 0.0
    %3132 = vmatpush1.msra.mxu0 0.0
    %3133 = vmatprep.subr.mxu0 0.0
    %3134 = vmatpush1.msra.mxu0 0.0
    %3135 = vmatprep.subr.mxu0 0.0
    %3136 = vmatpush1.msra.mxu0 0.0
    %3137 = vmatprep.subr.mxu0 0.0
    %3138 = vmatpush1.msra.mxu0 0.0
    %3139 = vmatprep.subr.mxu0 0.0
    %3140 = vmatpush1.msra.mxu0 %v3110
    %3141 = vmatprep.subr.mxu0 0.0
    %3142 = vmatpush1.msra.mxu0 %v3109
    %3143 = vmatprep.subr.mxu0 0.0
    %3144 = vmatpush2.msra.mxu0 0.0
    %3145 = vmatprep.subr.mxu0 0.0
    %3146 = vmatpush2.msra.mxu0 0.0
    %3147 = vmatprep.subr.mxu0 0.0
    %3148 = vmatpush2.msra.mxu0 0.0
    %3149 = vmatprep.subr.mxu0 0.0
    %3150 = vmatpush2.msra.mxu0 0.0
    %3151 = vmatprep.subr.mxu0 0.0
    %3152 = vmatpush2.msra.mxu0 0.0
    %3153 = vmatprep.subr.mxu0 0.0
    %3154 = vmatpush2.msra.mxu0 0.0
    %3155 = vmatprep.subr.mxu0 0.0
    %3156 = vmatpush2.msra.mxu0 0.0
    %3157 = vmatprep.subr.mxu0 0.0
    %3158 = vmatpush2.msra.mxu0 0.0
    %3159 = vmatprep.subr.mxu0 0.0
    %3160 = vmatpush2.msra.mxu0 0.0
    %3161 = vmatprep.subr.mxu0 0.0
    %3162 = vmatpush2.msra.mxu0 0.0
    %3163 = vmatprep.subr.mxu0 0.0
    %3164 = vmatpush2.msra.mxu0 0.0
    %3165 = vmatprep.subr.mxu0 0.0
    %3166 = vmatpush2.msra.mxu0 0.0
    %3167 = vmatprep.subr.mxu0 0.0
    %3168 = vmatpush2.msra.mxu0 0.0
    %3169 = vmatprep.subr.mxu0 0.0
    %3170 = vmatpush2.msra.mxu0 0.0
    %3171 = vmatprep.subr.mxu0 0.0
    %3172 = vmatpush2.msra.mxu0 0.0
    %3173 = vmatprep.subr.mxu0 0.0
    %3174 = vmatpush2.msra.mxu0 0.0
    %3175 = vmatprep.mubr.f32.mxu0 0.0
    %3176 = vmatmul.mubr.f32.gmra.mxu0 %v3027
    %v3177 = vpop.f32.mrf.mxu0
    %v3178 = vadd.f32 0.0, %v3177
    %v3179 = vpop.f32.mrf.mxu0
    %3180 = vmatprep.mubr.f32.mxu0 0.0
    %3181 = vmatmul.mubr.f32.gmra.mxu0 %v3030
    %v3182 = vpop.f32.mrf.mxu0
    %v3183 = vadd.f32 0.0, %v3182
    %v3184 = vpop.f32.mrf.mxu0
    %3185 = vdwg.mxu0
    %v3186 = vadd.f32 %v3015, %v3178
    %v3187 = vadd.f32 %v3016, %v3183
    %s3188 = scalar_lea.vmem %s0, 128
    %v3189 = vld [vmem:[%s3188] sm:$0xff]
    %v3190 = vld [vmem:[%s3188 + $0x8] sm:$0xff]
    %v3191 = vlaneseq
    %v3192 = vshrl.u32 %v3191, 7
    %v3193 = vsub.s32 0, %v3192
    %v3194 = vrot.slane %v1015, %v3193
    %v3195 = vmul.f32 %v1585, %v3194
    %v3196 = vmul.f32 %v1590, %v3194
    %v3198 = vsel %vm72, %v3189, 0
    %v3201 = vsel %vm72, %v3190, 0
    %3203 = vmatprep.subr.mxu0 0.0
    %3204 = vmatpush1.msra.mxu0 0.0
    %3205 = vmatprep.subr.mxu0 0.0
    %3206 = vmatpush1.msra.mxu0 0.0
    %3207 = vmatprep.subr.mxu0 0.0
    %3208 = vmatpush1.msra.mxu0 0.0
    %3209 = vmatprep.subr.mxu0 0.0
    %3210 = vmatpush1.msra.mxu0 0.0
    %3211 = vmatprep.subr.mxu0 0.0
    %3212 = vmatpush1.msra.mxu0 0.0
    %3213 = vmatprep.subr.mxu0 0.0
    %3214 = vmatpush1.msra.mxu0 0.0
    %3215 = vmatprep.subr.mxu0 0.0
    %3216 = vmatpush1.msra.mxu0 0.0
    %3217 = vmatprep.subr.mxu0 0.0
    %3218 = vmatpush1.msra.mxu0 0.0
    %3219 = vmatprep.subr.mxu0 0.0
    %3220 = vmatpush1.msra.mxu0 0.0
    %3221 = vmatprep.subr.mxu0 0.0
    %3222 = vmatpush1.msra.mxu0 0.0
    %3223 = vmatprep.subr.mxu0 0.0
    %3224 = vmatpush1.msra.mxu0 0.0
    %3225 = vmatprep.subr.mxu0 0.0
    %3226 = vmatpush1.msra.mxu0 0.0
    %3227 = vmatprep.subr.mxu0 0.0
    %3228 = vmatpush1.msra.mxu0 0.0
    %3229 = vmatprep.subr.mxu0 0.0
    %3230 = vmatpush1.msra.mxu0 0.0
    %3231 = vmatprep.subr.mxu0 0.0
    %3232 = vmatpush1.msra.mxu0 %v3196
    %3233 = vmatprep.subr.mxu0 0.0
    %3234 = vmatpush1.msra.mxu0 %v3195
    %3235 = vmatprep.subr.mxu0 0.0
    %3236 = vmatpush2.msra.mxu0 0.0
    %3237 = vmatprep.subr.mxu0 0.0
    %3238 = vmatpush2.msra.mxu0 0.0
    %3239 = vmatprep.subr.mxu0 0.0
    %3240 = vmatpush2.msra.mxu0 0.0
    %3241 = vmatprep.subr.mxu0 0.0
    %3242 = vmatpush2.msra.mxu0 0.0
    %3243 = vmatprep.subr.mxu0 0.0
    %3244 = vmatpush2.msra.mxu0 0.0
    %3245 = vmatprep.subr.mxu0 0.0
    %3246 = vmatpush2.msra.mxu0 0.0
    %3247 = vmatprep.subr.mxu0 0.0
    %3248 = vmatpush2.msra.mxu0 0.0
    %3249 = vmatprep.subr.mxu0 0.0
    %3250 = vmatpush2.msra.mxu0 0.0
    %3251 = vmatprep.subr.mxu0 0.0
    %3252 = vmatpush2.msra.mxu0 0.0
    %3253 = vmatprep.subr.mxu0 0.0
    %3254 = vmatpush2.msra.mxu0 0.0
    %3255 = vmatprep.subr.mxu0 0.0
    %3256 = vmatpush2.msra.mxu0 0.0
    %3257 = vmatprep.subr.mxu0 0.0
    %3258 = vmatpush2.msra.mxu0 0.0
    %3259 = vmatprep.subr.mxu0 0.0
    %3260 = vmatpush2.msra.mxu0 0.0
    %3261 = vmatprep.subr.mxu0 0.0
    %3262 = vmatpush2.msra.mxu0 0.0
    %3263 = vmatprep.subr.mxu0 0.0
    %3264 = vmatpush2.msra.mxu0 0.0
    %3265 = vmatprep.subr.mxu0 0.0
    %3266 = vmatpush2.msra.mxu0 0.0
    %3267 = vmatprep.mubr.f32.mxu0 0.0
    %3268 = vmatmul.mubr.f32.gmra.mxu0 %v3198
    %v3269 = vpop.f32.mrf.mxu0
    %v3270 = vadd.f32 0.0, %v3269
    %v3271 = vpop.f32.mrf.mxu0
    %3272 = vmatprep.mubr.f32.mxu0 0.0
    %3273 = vmatmul.mubr.f32.gmra.mxu0 %v3201
    %v3274 = vpop.f32.mrf.mxu0
    %v3275 = vadd.f32 0.0, %v3274
    %v3276 = vpop.f32.mrf.mxu0
    %3277 = vdwg.mxu0
    %v3278 = vadd.f32 %v3107, %v3270
    %v3279 = vadd.f32 %v3108, %v3275
    %v3280 = vmul.f32 %v1667, %v3194
    %v3281 = vmul.f32 %v1672, %v3194
    %3282 = vmatprep.subr.mxu0 0.0
    %3283 = vmatpush1.msra.mxu0 0.0
    %3284 = vmatprep.subr.mxu0 0.0
    %3285 = vmatpush1.msra.mxu0 0.0
    %3286 = vmatprep.subr.mxu0 0.0
    %3287 = vmatpush1.msra.mxu0 0.0
    %3288 = vmatprep.subr.mxu0 0.0
    %3289 = vmatpush1.msra.mxu0 0.0
    %3290 = vmatprep.subr.mxu0 0.0
    %3291 = vmatpush1.msra.mxu0 0.0
    %3292 = vmatprep.subr.mxu0 0.0
    %3293 = vmatpush1.msra.mxu0 0.0
    %3294 = vmatprep.subr.mxu0 0.0
    %3295 = vmatpush1.msra.mxu0 0.0
    %3296 = vmatprep.subr.mxu0 0.0
    %3297 = vmatpush1.msra.mxu0 0.0
    %3298 = vmatprep.subr.mxu0 0.0
    %3299 = vmatpush1.msra.mxu0 0.0
    %3300 = vmatprep.subr.mxu0 0.0
    %3301 = vmatpush1.msra.mxu0 0.0
    %3302 = vmatprep.subr.mxu0 0.0
    %3303 = vmatpush1.msra.mxu0 0.0
    %3304 = vmatprep.subr.mxu0 0.0
    %3305 = vmatpush1.msra.mxu0 0.0
    %3306 = vmatprep.subr.mxu0 0.0
    %3307 = vmatpush1.msra.mxu0 0.0
    %3308 = vmatprep.subr.mxu0 0.0
    %3309 = vmatpush1.msra.mxu0 0.0
    %3310 = vmatprep.subr.mxu0 0.0
    %3311 = vmatpush1.msra.mxu0 %v3281
    %3312 = vmatprep.subr.mxu0 0.0
    %3313 = vmatpush1.msra.mxu0 %v3280
    %3314 = vmatprep.subr.mxu0 0.0
    %3315 = vmatpush2.msra.mxu0 0.0
    %3316 = vmatprep.subr.mxu0 0.0
    %3317 = vmatpush2.msra.mxu0 0.0
    %3318 = vmatprep.subr.mxu0 0.0
    %3319 = vmatpush2.msra.mxu0 0.0
    %3320 = vmatprep.subr.mxu0 0.0
    %3321 = vmatpush2.msra.mxu0 0.0
    %3322 = vmatprep.subr.mxu0 0.0
    %3323 = vmatpush2.msra.mxu0 0.0
    %3324 = vmatprep.subr.mxu0 0.0
    %3325 = vmatpush2.msra.mxu0 0.0
    %3326 = vmatprep.subr.mxu0 0.0
    %3327 = vmatpush2.msra.mxu0 0.0
    %3328 = vmatprep.subr.mxu0 0.0
    %3329 = vmatpush2.msra.mxu0 0.0
    %3330 = vmatprep.subr.mxu0 0.0
    %3331 = vmatpush2.msra.mxu0 0.0
    %3332 = vmatprep.subr.mxu0 0.0
    %3333 = vmatpush2.msra.mxu0 0.0
    %3334 = vmatprep.subr.mxu0 0.0
    %3335 = vmatpush2.msra.mxu0 0.0
    %3336 = vmatprep.subr.mxu0 0.0
    %3337 = vmatpush2.msra.mxu0 0.0
    %3338 = vmatprep.subr.mxu0 0.0
    %3339 = vmatpush2.msra.mxu0 0.0
    %3340 = vmatprep.subr.mxu0 0.0
    %3341 = vmatpush2.msra.mxu0 0.0
    %3342 = vmatprep.subr.mxu0 0.0
    %3343 = vmatpush2.msra.mxu0 0.0
    %3344 = vmatprep.subr.mxu0 0.0
    %3345 = vmatpush2.msra.mxu0 0.0
    %3346 = vmatprep.mubr.f32.mxu0 0.0
    %3347 = vmatmul.mubr.f32.gmra.mxu0 %v3198
    %v3348 = vpop.f32.mrf.mxu0
    %v3349 = vadd.f32 0.0, %v3348
    %v3350 = vpop.f32.mrf.mxu0
    %3351 = vmatprep.mubr.f32.mxu0 0.0
    %3352 = vmatmul.mubr.f32.gmra.mxu0 %v3201
    %v3353 = vpop.f32.mrf.mxu0
    %v3354 = vadd.f32 0.0, %v3353
    %v3355 = vpop.f32.mrf.mxu0
    %3356 = vdwg.mxu0
    %v3357 = vadd.f32 %v3186, %v3349
    %v3358 = vadd.f32 %v3187, %v3354
    %v3359 = vld [vmem:[#allocation2 + $0x258] sm:$0xff]
    %v3360 = vld [vmem:[#allocation2 + $0x260] sm:$0xff]
    %v3361 = vld [vmem:[#allocation2 + $0x268] sm:$0xff]
    %v3362 = vld [vmem:[#allocation2 + $0x270] sm:$0xff]
    %v3363 = vld [vmem:[#allocation2 + $0x278] sm:$0xff]
    %v3364 = vld [vmem:[#allocation2 + $0x280] sm:$0xff]
    %v3365 = vld [vmem:[#allocation2 + $0x288] sm:$0xff]
    %v3366 = vld [vmem:[#allocation2 + $0x290] sm:$0xff]
    %v3367 = vld [vmem:[#allocation2 + $0x298] sm:$0xff]
    %v3368 = vld [vmem:[#allocation2 + $0x2a0] sm:$0xff]
    %v3369 = vld [vmem:[#allocation2 + $0x2a8] sm:$0xff]
    %v3370 = vld [vmem:[#allocation2 + $0x2b0] sm:$0xff]
    %v3371 = vld [vmem:[#allocation2 + $0x2b8] sm:$0xff]
    %v3372 = vld [vmem:[#allocation2 + $0x2c0] sm:$0xff]
    %v3373 = vld [vmem:[#allocation2 + $0x2c8] sm:$0xff]
    %v3374 = vld [vmem:[#allocation2 + $0x2d0] sm:$0xff]
    %v3375 = vld [vmem:[#allocation2 + $0x2d8] sm:$0x1]
    %v3376 = vlaneseq
    %v3377 = vshrl.u32 %v3376, 7
    %v3378 = vsub.s32 0, %v3377
    %v3379 = vrot.slane %v3375, %v3378
    %3380 = vmatprep.subr.mxu0 0.0
    %3381 = vmatpush1.msra.mxu0 %v3374
    %3382 = vmatprep.subr.mxu0 0.0
    %3383 = vmatpush1.msra.mxu0 %v3373
    %3384 = vmatprep.subr.mxu0 0.0
    %3385 = vmatpush1.msra.mxu0 %v3372
    %3386 = vmatprep.subr.mxu0 0.0
    %3387 = vmatpush1.msra.mxu0 %v3371
    %3388 = vmatprep.subr.mxu0 0.0
    %3389 = vmatpush1.msra.mxu0 %v3370
    %3390 = vmatprep.subr.mxu0 0.0
    %3391 = vmatpush1.msra.mxu0 %v3369
    %3392 = vmatprep.subr.mxu0 0.0
    %3393 = vmatpush1.msra.mxu0 %v3368
    %3394 = vmatprep.subr.mxu0 0.0
    %3395 = vmatpush1.msra.mxu0 %v3367
    %3396 = vmatprep.subr.mxu0 0.0
    %3397 = vmatpush1.msra.mxu0 %v3366
    %3398 = vmatprep.subr.mxu0 0.0
    %3399 = vmatpush1.msra.mxu0 %v3365
    %3400 = vmatprep.subr.mxu0 0.0
    %3401 = vmatpush1.msra.mxu0 %v3364
    %3402 = vmatprep.subr.mxu0 0.0
    %3403 = vmatpush1.msra.mxu0 %v3363
    %3404 = vmatprep.subr.mxu0 0.0
    %3405 = vmatpush1.msra.mxu0 %v3362
    %3406 = vmatprep.subr.mxu0 0.0
    %3407 = vmatpush1.msra.mxu0 %v3361
    %3408 = vmatprep.subr.mxu0 0.0
    %3409 = vmatpush1.msra.mxu0 %v3360
    %3410 = vmatprep.subr.mxu0 0.0
    %3411 = vmatpush1.msra.mxu0 %v3359
    %3412 = vmatprep.subr.mxu0 0.0
    %3413 = vmatpush2.msra.mxu0 0.0
    %3414 = vmatprep.subr.mxu0 0.0
    %3415 = vmatpush2.msra.mxu0 0.0
    %3416 = vmatprep.subr.mxu0 0.0
    %3417 = vmatpush2.msra.mxu0 0.0
    %3418 = vmatprep.subr.mxu0 0.0
    %3419 = vmatpush2.msra.mxu0 0.0
    %3420 = vmatprep.subr.mxu0 0.0
    %3421 = vmatpush2.msra.mxu0 0.0
    %3422 = vmatprep.subr.mxu0 0.0
    %3423 = vmatpush2.msra.mxu0 0.0
    %3424 = vmatprep.subr.mxu0 0.0
    %3425 = vmatpush2.msra.mxu0 0.0
    %3426 = vmatprep.subr.mxu0 0.0
    %3427 = vmatpush2.msra.mxu0 0.0
    %3428 = vmatprep.subr.mxu0 0.0
    %3429 = vmatpush2.msra.mxu0 0.0
    %3430 = vmatprep.subr.mxu0 0.0
    %3431 = vmatpush2.msra.mxu0 0.0
    %3432 = vmatprep.subr.mxu0 0.0
    %3433 = vmatpush2.msra.mxu0 0.0
    %3434 = vmatprep.subr.mxu0 0.0
    %3435 = vmatpush2.msra.mxu0 0.0
    %3436 = vmatprep.subr.mxu0 0.0
    %3437 = vmatpush2.msra.mxu0 0.0
    %3438 = vmatprep.subr.mxu0 0.0
    %3439 = vmatpush2.msra.mxu0 0.0
    %3440 = vmatprep.subr.mxu0 0.0
    %3441 = vmatpush2.msra.mxu0 0.0
    %3442 = vmatprep.subr.mxu0 0.0
    %3443 = vmatpush2.msra.mxu0 0.0
    %3444 = vmatprep.mubr.f32.mxu0 0.0
    %3445 = vmatmul.mubr.f32.gmra.mxu0 %v3278
    %v3446 = vpop.f32.mrf.mxu0
    %v3447 = vadd.f32 %v3379, %v3446
    %v3448 = vpop.f32.mrf.mxu0
    %3449 = vmatprep.mubr.f32.mxu0 0.0
    %3450 = vmatmul.mubr.f32.gmra.mxu0 %v3279
    %v3451 = vpop.f32.mrf.mxu0
    %v3452 = vadd.f32 %v3379, %v3451
    %v3453 = vpop.f32.mrf.mxu0
    %3454 = vdwg.mxu0
    %v3455 = vmax.f32 %v3447, 0.0
    %v3456 = vmax.f32 %v3452, 0.0
    %3457 = vmatprep.subr.mxu0 0.0
    %3458 = vmatpush1.msra.mxu0 %v3374
    %3459 = vmatprep.subr.mxu0 0.0
    %3460 = vmatpush1.msra.mxu0 %v3373
    %3461 = vmatprep.subr.mxu0 0.0
    %3462 = vmatpush1.msra.mxu0 %v3372
    %3463 = vmatprep.subr.mxu0 0.0
    %3464 = vmatpush1.msra.mxu0 %v3371
    %3465 = vmatprep.subr.mxu0 0.0
    %3466 = vmatpush1.msra.mxu0 %v3370
    %3467 = vmatprep.subr.mxu0 0.0
    %3468 = vmatpush1.msra.mxu0 %v3369
    %3469 = vmatprep.subr.mxu0 0.0
    %3470 = vmatpush1.msra.mxu0 %v3368
    %3471 = vmatprep.subr.mxu0 0.0
    %3472 = vmatpush1.msra.mxu0 %v3367
    %3473 = vmatprep.subr.mxu0 0.0
    %3474 = vmatpush1.msra.mxu0 %v3366
    %3475 = vmatprep.subr.mxu0 0.0
    %3476 = vmatpush1.msra.mxu0 %v3365
    %3477 = vmatprep.subr.mxu0 0.0
    %3478 = vmatpush1.msra.mxu0 %v3364
    %3479 = vmatprep.subr.mxu0 0.0
    %3480 = vmatpush1.msra.mxu0 %v3363
    %3481 = vmatprep.subr.mxu0 0.0
    %3482 = vmatpush1.msra.mxu0 %v3362
    %3483 = vmatprep.subr.mxu0 0.0
    %3484 = vmatpush1.msra.mxu0 %v3361
    %3485 = vmatprep.subr.mxu0 0.0
    %3486 = vmatpush1.msra.mxu0 %v3360
    %3487 = vmatprep.subr.mxu0 0.0
    %3488 = vmatpush1.msra.mxu0 %v3359
    %3489 = vmatprep.subr.mxu0 0.0
    %3490 = vmatpush2.msra.mxu0 0.0
    %3491 = vmatprep.subr.mxu0 0.0
    %3492 = vmatpush2.msra.mxu0 0.0
    %3493 = vmatprep.subr.mxu0 0.0
    %3494 = vmatpush2.msra.mxu0 0.0
    %3495 = vmatprep.subr.mxu0 0.0
    %3496 = vmatpush2.msra.mxu0 0.0
    %3497 = vmatprep.subr.mxu0 0.0
    %3498 = vmatpush2.msra.mxu0 0.0
    %3499 = vmatprep.subr.mxu0 0.0
    %3500 = vmatpush2.msra.mxu0 0.0
    %3501 = vmatprep.subr.mxu0 0.0
    %3502 = vmatpush2.msra.mxu0 0.0
    %3503 = vmatprep.subr.mxu0 0.0
    %3504 = vmatpush2.msra.mxu0 0.0
    %3505 = vmatprep.subr.mxu0 0.0
    %3506 = vmatpush2.msra.mxu0 0.0
    %3507 = vmatprep.subr.mxu0 0.0
    %3508 = vmatpush2.msra.mxu0 0.0
    %3509 = vmatprep.subr.mxu0 0.0
    %3510 = vmatpush2.msra.mxu0 0.0
    %3511 = vmatprep.subr.mxu0 0.0
    %3512 = vmatpush2.msra.mxu0 0.0
    %3513 = vmatprep.subr.mxu0 0.0
    %3514 = vmatpush2.msra.mxu0 0.0
    %3515 = vmatprep.subr.mxu0 0.0
    %3516 = vmatpush2.msra.mxu0 0.0
    %3517 = vmatprep.subr.mxu0 0.0
    %3518 = vmatpush2.msra.mxu0 0.0
    %3519 = vmatprep.subr.mxu0 0.0
    %3520 = vmatpush2.msra.mxu0 0.0
    %3521 = vmatprep.mubr.f32.mxu0 0.0
    %3522 = vmatmul.mubr.f32.gmra.mxu0 %v3357
    %v3523 = vpop.f32.mrf.mxu0
    %v3524 = vadd.f32 %v3379, %v3523
    %v3525 = vpop.f32.mrf.mxu0
    %3526 = vmatprep.mubr.f32.mxu0 0.0
    %3527 = vmatmul.mubr.f32.gmra.mxu0 %v3358
    %v3528 = vpop.f32.mrf.mxu0
    %v3529 = vadd.f32 %v3379, %v3528
    %v3530 = vpop.f32.mrf.mxu0
    %3531 = vdwg.mxu0
    %v3532 = vmax.f32 %v3524, 0.0
    %v3533 = vmax.f32 %v3529, 0.0
    %v3534 = vlaneseq
    %v3535 = vshrl.u32 %v3534, 7
    %v3536 = vsub.s32 0, %v3535
    %v3537 = vrot.slane %v1365, %v3536
    %v3538 = vmul.f32 %v3455, %v3537
    %v3539 = vmul.f32 %v3456, %v3537
    %v3540 = vmul.f32 %v3532, %v3537
    %v3541 = vmul.f32 %v3533, %v3537
    %v3542 = vlaneseq
    %v3543 = vshrl.u32 %v3542, 7
    %v3544 = vsub.s32 1, %v3543
    %v3545 = vrot.slane %v1365, %v3544
    %v3546 = vmul.f32 %v3455, %v3545
    %v3547 = vmul.f32 %v3456, %v3545
    %3548 = vmatprep.subr.mxu0 0.0
    %3549 = vmatpush1.msra.mxu0 0.0
    %3550 = vmatprep.subr.mxu0 0.0
    %3551 = vmatpush1.msra.mxu0 0.0
    %3552 = vmatprep.subr.mxu0 0.0
    %3553 = vmatpush1.msra.mxu0 0.0
    %3554 = vmatprep.subr.mxu0 0.0
    %3555 = vmatpush1.msra.mxu0 0.0
    %3556 = vmatprep.subr.mxu0 0.0
    %3557 = vmatpush1.msra.mxu0 0.0
    %3558 = vmatprep.subr.mxu0 0.0
    %3559 = vmatpush1.msra.mxu0 0.0
    %3560 = vmatprep.subr.mxu0 0.0
    %3561 = vmatpush1.msra.mxu0 0.0
    %3562 = vmatprep.subr.mxu0 0.0
    %3563 = vmatpush1.msra.mxu0 0.0
    %3564 = vmatprep.subr.mxu0 0.0
    %3565 = vmatpush1.msra.mxu0 0.0
    %3566 = vmatprep.subr.mxu0 0.0
    %3567 = vmatpush1.msra.mxu0 0.0
    %3568 = vmatprep.subr.mxu0 0.0
    %3569 = vmatpush1.msra.mxu0 0.0
    %3570 = vmatprep.subr.mxu0 0.0
    %3571 = vmatpush1.msra.mxu0 0.0
    %3572 = vmatprep.subr.mxu0 0.0
    %3573 = vmatpush1.msra.mxu0 0.0
    %3574 = vmatprep.subr.mxu0 0.0
    %3575 = vmatpush1.msra.mxu0 0.0
    %3576 = vmatprep.subr.mxu0 0.0
    %3577 = vmatpush1.msra.mxu0 %v3547
    %3578 = vmatprep.subr.mxu0 0.0
    %3579 = vmatpush1.msra.mxu0 %v3546
    %3580 = vmatprep.subr.mxu0 0.0
    %3581 = vmatpush2.msra.mxu0 0.0
    %3582 = vmatprep.subr.mxu0 0.0
    %3583 = vmatpush2.msra.mxu0 0.0
    %3584 = vmatprep.subr.mxu0 0.0
    %3585 = vmatpush2.msra.mxu0 0.0
    %3586 = vmatprep.subr.mxu0 0.0
    %3587 = vmatpush2.msra.mxu0 0.0
    %3588 = vmatprep.subr.mxu0 0.0
    %3589 = vmatpush2.msra.mxu0 0.0
    %3590 = vmatprep.subr.mxu0 0.0
    %3591 = vmatpush2.msra.mxu0 0.0
    %3592 = vmatprep.subr.mxu0 0.0
    %3593 = vmatpush2.msra.mxu0 0.0
    %3594 = vmatprep.subr.mxu0 0.0
    %3595 = vmatpush2.msra.mxu0 0.0
    %3596 = vmatprep.subr.mxu0 0.0
    %3597 = vmatpush2.msra.mxu0 0.0
    %3598 = vmatprep.subr.mxu0 0.0
    %3599 = vmatpush2.msra.mxu0 0.0
    %3600 = vmatprep.subr.mxu0 0.0
    %3601 = vmatpush2.msra.mxu0 0.0
    %3602 = vmatprep.subr.mxu0 0.0
    %3603 = vmatpush2.msra.mxu0 0.0
    %3604 = vmatprep.subr.mxu0 0.0
    %3605 = vmatpush2.msra.mxu0 0.0
    %3606 = vmatprep.subr.mxu0 0.0
    %3607 = vmatpush2.msra.mxu0 0.0
    %3608 = vmatprep.subr.mxu0 0.0
    %3609 = vmatpush2.msra.mxu0 0.0
    %3610 = vmatprep.subr.mxu0 0.0
    %3611 = vmatpush2.msra.mxu0 0.0
    %3612 = vmatprep.mubr.f32.mxu0 0.0
    %3613 = vmatmul.mubr.f32.gmra.mxu0 %v1849
    %v3614 = vpop.f32.mrf.mxu0
    %v3615 = vadd.f32 0.0, %v3614
    %v3616 = vpop.f32.mrf.mxu0
    %3617 = vmatprep.mubr.f32.mxu0 0.0
    %3618 = vmatmul.mubr.f32.gmra.mxu0 %v1852
    %v3619 = vpop.f32.mrf.mxu0
    %v3620 = vadd.f32 0.0, %v3619
    %v3621 = vpop.f32.mrf.mxu0
    %3622 = vdwg.mxu0
    %3623 = vmatprep.subr.mxu0 0.0
    %3624 = vmatpush1.msra.mxu0 0.0
    %3625 = vmatprep.subr.mxu0 0.0
    %3626 = vmatpush1.msra.mxu0 0.0
    %3627 = vmatprep.subr.mxu0 0.0
    %3628 = vmatpush1.msra.mxu0 0.0
    %3629 = vmatprep.subr.mxu0 0.0
    %3630 = vmatpush1.msra.mxu0 0.0
    %3631 = vmatprep.subr.mxu0 0.0
    %3632 = vmatpush1.msra.mxu0 0.0
    %3633 = vmatprep.subr.mxu0 0.0
    %3634 = vmatpush1.msra.mxu0 0.0
    %3635 = vmatprep.subr.mxu0 0.0
    %3636 = vmatpush1.msra.mxu0 0.0
    %3637 = vmatprep.subr.mxu0 0.0
    %3638 = vmatpush1.msra.mxu0 0.0
    %3639 = vmatprep.subr.mxu0 0.0
    %3640 = vmatpush1.msra.mxu0 0.0
    %3641 = vmatprep.subr.mxu0 0.0
    %3642 = vmatpush1.msra.mxu0 0.0
    %3643 = vmatprep.subr.mxu0 0.0
    %3644 = vmatpush1.msra.mxu0 0.0
    %3645 = vmatprep.subr.mxu0 0.0
    %3646 = vmatpush1.msra.mxu0 0.0
    %3647 = vmatprep.subr.mxu0 0.0
    %3648 = vmatpush1.msra.mxu0 0.0
    %3649 = vmatprep.subr.mxu0 0.0
    %3650 = vmatpush1.msra.mxu0 0.0
    %3651 = vmatprep.subr.mxu0 0.0
    %3652 = vmatpush1.msra.mxu0 %v3539
    %3653 = vmatprep.subr.mxu0 0.0
    %3654 = vmatpush1.msra.mxu0 %v3538
    %3655 = vmatprep.subr.mxu0 0.0
    %3656 = vmatpush2.msra.mxu0 0.0
    %3657 = vmatprep.subr.mxu0 0.0
    %3658 = vmatpush2.msra.mxu0 0.0
    %3659 = vmatprep.subr.mxu0 0.0
    %3660 = vmatpush2.msra.mxu0 0.0
    %3661 = vmatprep.subr.mxu0 0.0
    %3662 = vmatpush2.msra.mxu0 0.0
    %3663 = vmatprep.subr.mxu0 0.0
    %3664 = vmatpush2.msra.mxu0 0.0
    %3665 = vmatprep.subr.mxu0 0.0
    %3666 = vmatpush2.msra.mxu0 0.0
    %3667 = vmatprep.subr.mxu0 0.0
    %3668 = vmatpush2.msra.mxu0 0.0
    %3669 = vmatprep.subr.mxu0 0.0
    %3670 = vmatpush2.msra.mxu0 0.0
    %3671 = vmatprep.subr.mxu0 0.0
    %3672 = vmatpush2.msra.mxu0 0.0
    %3673 = vmatprep.subr.mxu0 0.0
    %3674 = vmatpush2.msra.mxu0 0.0
    %3675 = vmatprep.subr.mxu0 0.0
    %3676 = vmatpush2.msra.mxu0 0.0
    %3677 = vmatprep.subr.mxu0 0.0
    %3678 = vmatpush2.msra.mxu0 0.0
    %3679 = vmatprep.subr.mxu0 0.0
    %3680 = vmatpush2.msra.mxu0 0.0
    %3681 = vmatprep.subr.mxu0 0.0
    %3682 = vmatpush2.msra.mxu0 0.0
    %3683 = vmatprep.subr.mxu0 0.0
    %3684 = vmatpush2.msra.mxu0 0.0
    %3685 = vmatprep.subr.mxu0 0.0
    %3686 = vmatpush2.msra.mxu0 0.0
    %3687 = vmatprep.mubr.f32.mxu0 0.0
    %3688 = vmatmul.mubr.f32.gmra.mxu0 %v1930
    %v3689 = vpop.f32.mrf.mxu0
    %v3690 = vadd.f32 %v3615, %v3689
    %v3691 = vpop.f32.mrf.mxu0
    %3692 = vmatprep.mubr.f32.mxu0 0.0
    %3693 = vmatmul.mubr.f32.gmra.mxu0 %v1933
    %v3694 = vpop.f32.mrf.mxu0
    %v3695 = vadd.f32 %v3620, %v3694
    %v3696 = vpop.f32.mrf.mxu0
    %3697 = vdwg.mxu0
    %v3698 = vmul.f32 %v3532, %v3545
    %v3699 = vmul.f32 %v3533, %v3545
    %3700 = vmatprep.subr.mxu0 0.0
    %3701 = vmatpush1.msra.mxu0 0.0
    %3702 = vmatprep.subr.mxu0 0.0
    %3703 = vmatpush1.msra.mxu0 0.0
    %3704 = vmatprep.subr.mxu0 0.0
    %3705 = vmatpush1.msra.mxu0 0.0
    %3706 = vmatprep.subr.mxu0 0.0
    %3707 = vmatpush1.msra.mxu0 0.0
    %3708 = vmatprep.subr.mxu0 0.0
    %3709 = vmatpush1.msra.mxu0 0.0
    %3710 = vmatprep.subr.mxu0 0.0
    %3711 = vmatpush1.msra.mxu0 0.0
    %3712 = vmatprep.subr.mxu0 0.0
    %3713 = vmatpush1.msra.mxu0 0.0
    %3714 = vmatprep.subr.mxu0 0.0
    %3715 = vmatpush1.msra.mxu0 0.0
    %3716 = vmatprep.subr.mxu0 0.0
    %3717 = vmatpush1.msra.mxu0 0.0
    %3718 = vmatprep.subr.mxu0 0.0
    %3719 = vmatpush1.msra.mxu0 0.0
    %3720 = vmatprep.subr.mxu0 0.0
    %3721 = vmatpush1.msra.mxu0 0.0
    %3722 = vmatprep.subr.mxu0 0.0
    %3723 = vmatpush1.msra.mxu0 0.0
    %3724 = vmatprep.subr.mxu0 0.0
    %3725 = vmatpush1.msra.mxu0 0.0
    %3726 = vmatprep.subr.mxu0 0.0
    %3727 = vmatpush1.msra.mxu0 0.0
    %3728 = vmatprep.subr.mxu0 0.0
    %3729 = vmatpush1.msra.mxu0 %v3699
    %3730 = vmatprep.subr.mxu0 0.0
    %3731 = vmatpush1.msra.mxu0 %v3698
    %3732 = vmatprep.subr.mxu0 0.0
    %3733 = vmatpush2.msra.mxu0 0.0
    %3734 = vmatprep.subr.mxu0 0.0
    %3735 = vmatpush2.msra.mxu0 0.0
    %3736 = vmatprep.subr.mxu0 0.0
    %3737 = vmatpush2.msra.mxu0 0.0
    %3738 = vmatprep.subr.mxu0 0.0
    %3739 = vmatpush2.msra.mxu0 0.0
    %3740 = vmatprep.subr.mxu0 0.0
    %3741 = vmatpush2.msra.mxu0 0.0
    %3742 = vmatprep.subr.mxu0 0.0
    %3743 = vmatpush2.msra.mxu0 0.0
    %3744 = vmatprep.subr.mxu0 0.0
    %3745 = vmatpush2.msra.mxu0 0.0
    %3746 = vmatprep.subr.mxu0 0.0
    %3747 = vmatpush2.msra.mxu0 0.0
    %3748 = vmatprep.subr.mxu0 0.0
    %3749 = vmatpush2.msra.mxu0 0.0
    %3750 = vmatprep.subr.mxu0 0.0
    %3751 = vmatpush2.msra.mxu0 0.0
    %3752 = vmatprep.subr.mxu0 0.0
    %3753 = vmatpush2.msra.mxu0 0.0
    %3754 = vmatprep.subr.mxu0 0.0
    %3755 = vmatpush2.msra.mxu0 0.0
    %3756 = vmatprep.subr.mxu0 0.0
    %3757 = vmatpush2.msra.mxu0 0.0
    %3758 = vmatprep.subr.mxu0 0.0
    %3759 = vmatpush2.msra.mxu0 0.0
    %3760 = vmatprep.subr.mxu0 0.0
    %3761 = vmatpush2.msra.mxu0 0.0
    %3762 = vmatprep.subr.mxu0 0.0
    %3763 = vmatpush2.msra.mxu0 0.0
    %3764 = vmatprep.mubr.f32.mxu0 0.0
    %3765 = vmatmul.mubr.f32.gmra.mxu0 %v1849
    %v3766 = vpop.f32.mrf.mxu0
    %v3767 = vadd.f32 0.0, %v3766
    %v3768 = vpop.f32.mrf.mxu0
    %3769 = vmatprep.mubr.f32.mxu0 0.0
    %3770 = vmatmul.mubr.f32.gmra.mxu0 %v1852
    %v3771 = vpop.f32.mrf.mxu0
    %v3772 = vadd.f32 0.0, %v3771
    %v3773 = vpop.f32.mrf.mxu0
    %3774 = vdwg.mxu0
    %3775 = vmatprep.subr.mxu0 0.0
    %3776 = vmatpush1.msra.mxu0 0.0
    %3777 = vmatprep.subr.mxu0 0.0
    %3778 = vmatpush1.msra.mxu0 0.0
    %3779 = vmatprep.subr.mxu0 0.0
    %3780 = vmatpush1.msra.mxu0 0.0
    %3781 = vmatprep.subr.mxu0 0.0
    %3782 = vmatpush1.msra.mxu0 0.0
    %3783 = vmatprep.subr.mxu0 0.0
    %3784 = vmatpush1.msra.mxu0 0.0
    %3785 = vmatprep.subr.mxu0 0.0
    %3786 = vmatpush1.msra.mxu0 0.0
    %3787 = vmatprep.subr.mxu0 0.0
    %3788 = vmatpush1.msra.mxu0 0.0
    %3789 = vmatprep.subr.mxu0 0.0
    %3790 = vmatpush1.msra.mxu0 0.0
    %3791 = vmatprep.subr.mxu0 0.0
    %3792 = vmatpush1.msra.mxu0 0.0
    %3793 = vmatprep.subr.mxu0 0.0
    %3794 = vmatpush1.msra.mxu0 0.0
    %3795 = vmatprep.subr.mxu0 0.0
    %3796 = vmatpush1.msra.mxu0 0.0
    %3797 = vmatprep.subr.mxu0 0.0
    %3798 = vmatpush1.msra.mxu0 0.0
    %3799 = vmatprep.subr.mxu0 0.0
    %3800 = vmatpush1.msra.mxu0 0.0
    %3801 = vmatprep.subr.mxu0 0.0
    %3802 = vmatpush1.msra.mxu0 0.0
    %3803 = vmatprep.subr.mxu0 0.0
    %3804 = vmatpush1.msra.mxu0 %v3541
    %3805 = vmatprep.subr.mxu0 0.0
    %3806 = vmatpush1.msra.mxu0 %v3540
    %3807 = vmatprep.subr.mxu0 0.0
    %3808 = vmatpush2.msra.mxu0 0.0
    %3809 = vmatprep.subr.mxu0 0.0
    %3810 = vmatpush2.msra.mxu0 0.0
    %3811 = vmatprep.subr.mxu0 0.0
    %3812 = vmatpush2.msra.mxu0 0.0
    %3813 = vmatprep.subr.mxu0 0.0
    %3814 = vmatpush2.msra.mxu0 0.0
    %3815 = vmatprep.subr.mxu0 0.0
    %3816 = vmatpush2.msra.mxu0 0.0
    %3817 = vmatprep.subr.mxu0 0.0
    %3818 = vmatpush2.msra.mxu0 0.0
    %3819 = vmatprep.subr.mxu0 0.0
    %3820 = vmatpush2.msra.mxu0 0.0
    %3821 = vmatprep.subr.mxu0 0.0
    %3822 = vmatpush2.msra.mxu0 0.0
    %3823 = vmatprep.subr.mxu0 0.0
    %3824 = vmatpush2.msra.mxu0 0.0
    %3825 = vmatprep.subr.mxu0 0.0
    %3826 = vmatpush2.msra.mxu0 0.0
    %3827 = vmatprep.subr.mxu0 0.0
    %3828 = vmatpush2.msra.mxu0 0.0
    %3829 = vmatprep.subr.mxu0 0.0
    %3830 = vmatpush2.msra.mxu0 0.0
    %3831 = vmatprep.subr.mxu0 0.0
    %3832 = vmatpush2.msra.mxu0 0.0
    %3833 = vmatprep.subr.mxu0 0.0
    %3834 = vmatpush2.msra.mxu0 0.0
    %3835 = vmatprep.subr.mxu0 0.0
    %3836 = vmatpush2.msra.mxu0 0.0
    %3837 = vmatprep.subr.mxu0 0.0
    %3838 = vmatpush2.msra.mxu0 0.0
    %3839 = vmatprep.mubr.f32.mxu0 0.0
    %3840 = vmatmul.mubr.f32.gmra.mxu0 %v1930
    %v3841 = vpop.f32.mrf.mxu0
    %v3842 = vadd.f32 %v3767, %v3841
    %v3843 = vpop.f32.mrf.mxu0
    %3844 = vmatprep.mubr.f32.mxu0 0.0
    %3845 = vmatmul.mubr.f32.gmra.mxu0 %v1933
    %v3846 = vpop.f32.mrf.mxu0
    %v3847 = vadd.f32 %v3772, %v3846
    %v3848 = vpop.f32.mrf.mxu0
    %3849 = vdwg.mxu0
    %v3850 = vlaneseq
    %v3851 = vshrl.u32 %v3850, 7
    %v3852 = vsub.s32 2, %v3851
    %v3853 = vrot.slane %v1365, %v3852
    %v3854 = vmul.f32 %v3455, %v3853
    %v3855 = vmul.f32 %v3456, %v3853
    %3856 = vmatprep.subr.mxu0 0.0
    %3857 = vmatpush1.msra.mxu0 0.0
    %3858 = vmatprep.subr.mxu0 0.0
    %3859 = vmatpush1.msra.mxu0 0.0
    %3860 = vmatprep.subr.mxu0 0.0
    %3861 = vmatpush1.msra.mxu0 0.0
    %3862 = vmatprep.subr.mxu0 0.0
    %3863 = vmatpush1.msra.mxu0 0.0
    %3864 = vmatprep.subr.mxu0 0.0
    %3865 = vmatpush1.msra.mxu0 0.0
    %3866 = vmatprep.subr.mxu0 0.0
    %3867 = vmatpush1.msra.mxu0 0.0
    %3868 = vmatprep.subr.mxu0 0.0
    %3869 = vmatpush1.msra.mxu0 0.0
    %3870 = vmatprep.subr.mxu0 0.0
    %3871 = vmatpush1.msra.mxu0 0.0
    %3872 = vmatprep.subr.mxu0 0.0
    %3873 = vmatpush1.msra.mxu0 0.0
    %3874 = vmatprep.subr.mxu0 0.0
    %3875 = vmatpush1.msra.mxu0 0.0
    %3876 = vmatprep.subr.mxu0 0.0
    %3877 = vmatpush1.msra.mxu0 0.0
    %3878 = vmatprep.subr.mxu0 0.0
    %3879 = vmatpush1.msra.mxu0 0.0
    %3880 = vmatprep.subr.mxu0 0.0
    %3881 = vmatpush1.msra.mxu0 0.0
    %3882 = vmatprep.subr.mxu0 0.0
    %3883 = vmatpush1.msra.mxu0 0.0
    %3884 = vmatprep.subr.mxu0 0.0
    %3885 = vmatpush1.msra.mxu0 %v3855
    %3886 = vmatprep.subr.mxu0 0.0
    %3887 = vmatpush1.msra.mxu0 %v3854
    %3888 = vmatprep.subr.mxu0 0.0
    %3889 = vmatpush2.msra.mxu0 0.0
    %3890 = vmatprep.subr.mxu0 0.0
    %3891 = vmatpush2.msra.mxu0 0.0
    %3892 = vmatprep.subr.mxu0 0.0
    %3893 = vmatpush2.msra.mxu0 0.0
    %3894 = vmatprep.subr.mxu0 0.0
    %3895 = vmatpush2.msra.mxu0 0.0
    %3896 = vmatprep.subr.mxu0 0.0
    %3897 = vmatpush2.msra.mxu0 0.0
    %3898 = vmatprep.subr.mxu0 0.0
    %3899 = vmatpush2.msra.mxu0 0.0
    %3900 = vmatprep.subr.mxu0 0.0
    %3901 = vmatpush2.msra.mxu0 0.0
    %3902 = vmatprep.subr.mxu0 0.0
    %3903 = vmatpush2.msra.mxu0 0.0
    %3904 = vmatprep.subr.mxu0 0.0
    %3905 = vmatpush2.msra.mxu0 0.0
    %3906 = vmatprep.subr.mxu0 0.0
    %3907 = vmatpush2.msra.mxu0 0.0
    %3908 = vmatprep.subr.mxu0 0.0
    %3909 = vmatpush2.msra.mxu0 0.0
    %3910 = vmatprep.subr.mxu0 0.0
    %3911 = vmatpush2.msra.mxu0 0.0
    %3912 = vmatprep.subr.mxu0 0.0
    %3913 = vmatpush2.msra.mxu0 0.0
    %3914 = vmatprep.subr.mxu0 0.0
    %3915 = vmatpush2.msra.mxu0 0.0
    %3916 = vmatprep.subr.mxu0 0.0
    %3917 = vmatpush2.msra.mxu0 0.0
    %3918 = vmatprep.subr.mxu0 0.0
    %3919 = vmatpush2.msra.mxu0 0.0
    %3920 = vmatprep.mubr.f32.mxu0 0.0
    %3921 = vmatmul.mubr.f32.gmra.mxu0 %v2172
    %v3922 = vpop.f32.mrf.mxu0
    %v3923 = vadd.f32 0.0, %v3922
    %v3924 = vpop.f32.mrf.mxu0
    %3925 = vmatprep.mubr.f32.mxu0 0.0
    %3926 = vmatmul.mubr.f32.gmra.mxu0 %v2175
    %v3927 = vpop.f32.mrf.mxu0
    %v3928 = vadd.f32 0.0, %v3927
    %v3929 = vpop.f32.mrf.mxu0
    %3930 = vdwg.mxu0
    %v3931 = vadd.f32 %v3690, %v3923
    %v3932 = vadd.f32 %v3695, %v3928
    %v3933 = vmul.f32 %v3532, %v3853
    %v3934 = vmul.f32 %v3533, %v3853
    %3935 = vmatprep.subr.mxu0 0.0
    %3936 = vmatpush1.msra.mxu0 0.0
    %3937 = vmatprep.subr.mxu0 0.0
    %3938 = vmatpush1.msra.mxu0 0.0
    %3939 = vmatprep.subr.mxu0 0.0
    %3940 = vmatpush1.msra.mxu0 0.0
    %3941 = vmatprep.subr.mxu0 0.0
    %3942 = vmatpush1.msra.mxu0 0.0
    %3943 = vmatprep.subr.mxu0 0.0
    %3944 = vmatpush1.msra.mxu0 0.0
    %3945 = vmatprep.subr.mxu0 0.0
    %3946 = vmatpush1.msra.mxu0 0.0
    %3947 = vmatprep.subr.mxu0 0.0
    %3948 = vmatpush1.msra.mxu0 0.0
    %3949 = vmatprep.subr.mxu0 0.0
    %3950 = vmatpush1.msra.mxu0 0.0
    %3951 = vmatprep.subr.mxu0 0.0
    %3952 = vmatpush1.msra.mxu0 0.0
    %3953 = vmatprep.subr.mxu0 0.0
    %3954 = vmatpush1.msra.mxu0 0.0
    %3955 = vmatprep.subr.mxu0 0.0
    %3956 = vmatpush1.msra.mxu0 0.0
    %3957 = vmatprep.subr.mxu0 0.0
    %3958 = vmatpush1.msra.mxu0 0.0
    %3959 = vmatprep.subr.mxu0 0.0
    %3960 = vmatpush1.msra.mxu0 0.0
    %3961 = vmatprep.subr.mxu0 0.0
    %3962 = vmatpush1.msra.mxu0 0.0
    %3963 = vmatprep.subr.mxu0 0.0
    %3964 = vmatpush1.msra.mxu0 %v3934
    %3965 = vmatprep.subr.mxu0 0.0
    %3966 = vmatpush1.msra.mxu0 %v3933
    %3967 = vmatprep.subr.mxu0 0.0
    %3968 = vmatpush2.msra.mxu0 0.0
    %3969 = vmatprep.subr.mxu0 0.0
    %3970 = vmatpush2.msra.mxu0 0.0
    %3971 = vmatprep.subr.mxu0 0.0
    %3972 = vmatpush2.msra.mxu0 0.0
    %3973 = vmatprep.subr.mxu0 0.0
    %3974 = vmatpush2.msra.mxu0 0.0
    %3975 = vmatprep.subr.mxu0 0.0
    %3976 = vmatpush2.msra.mxu0 0.0
    %3977 = vmatprep.subr.mxu0 0.0
    %3978 = vmatpush2.msra.mxu0 0.0
    %3979 = vmatprep.subr.mxu0 0.0
    %3980 = vmatpush2.msra.mxu0 0.0
    %3981 = vmatprep.subr.mxu0 0.0
    %3982 = vmatpush2.msra.mxu0 0.0
    %3983 = vmatprep.subr.mxu0 0.0
    %3984 = vmatpush2.msra.mxu0 0.0
    %3985 = vmatprep.subr.mxu0 0.0
    %3986 = vmatpush2.msra.mxu0 0.0
    %3987 = vmatprep.subr.mxu0 0.0
    %3988 = vmatpush2.msra.mxu0 0.0
    %3989 = vmatprep.subr.mxu0 0.0
    %3990 = vmatpush2.msra.mxu0 0.0
    %3991 = vmatprep.subr.mxu0 0.0
    %3992 = vmatpush2.msra.mxu0 0.0
    %3993 = vmatprep.subr.mxu0 0.0
    %3994 = vmatpush2.msra.mxu0 0.0
    %3995 = vmatprep.subr.mxu0 0.0
    %3996 = vmatpush2.msra.mxu0 0.0
    %3997 = vmatprep.subr.mxu0 0.0
    %3998 = vmatpush2.msra.mxu0 0.0
    %3999 = vmatprep.mubr.f32.mxu0 0.0
    %4000 = vmatmul.mubr.f32.gmra.mxu0 %v2172
    %v4001 = vpop.f32.mrf.mxu0
    %v4002 = vadd.f32 0.0, %v4001
    %v4003 = vpop.f32.mrf.mxu0
    %4004 = vmatprep.mubr.f32.mxu0 0.0
    %4005 = vmatmul.mubr.f32.gmra.mxu0 %v2175
    %v4006 = vpop.f32.mrf.mxu0
    %v4007 = vadd.f32 0.0, %v4006
    %v4008 = vpop.f32.mrf.mxu0
    %4009 = vdwg.mxu0
    %v4010 = vadd.f32 %v3842, %v4002
    %v4011 = vadd.f32 %v3847, %v4007
    %v4012 = vlaneseq
    %v4013 = vshrl.u32 %v4012, 7
    %v4014 = vsub.s32 3, %v4013
    %v4015 = vrot.slane %v1365, %v4014
    %v4016 = vmul.f32 %v3455, %v4015
    %v4017 = vmul.f32 %v3456, %v4015
    %4018 = vmatprep.subr.mxu0 0.0
    %4019 = vmatpush1.msra.mxu0 0.0
    %4020 = vmatprep.subr.mxu0 0.0
    %4021 = vmatpush1.msra.mxu0 0.0
    %4022 = vmatprep.subr.mxu0 0.0
    %4023 = vmatpush1.msra.mxu0 0.0
    %4024 = vmatprep.subr.mxu0 0.0
    %4025 = vmatpush1.msra.mxu0 0.0
    %4026 = vmatprep.subr.mxu0 0.0
    %4027 = vmatpush1.msra.mxu0 0.0
    %4028 = vmatprep.subr.mxu0 0.0
    %4029 = vmatpush1.msra.mxu0 0.0
    %4030 = vmatprep.subr.mxu0 0.0
    %4031 = vmatpush1.msra.mxu0 0.0
    %4032 = vmatprep.subr.mxu0 0.0
    %4033 = vmatpush1.msra.mxu0 0.0
    %4034 = vmatprep.subr.mxu0 0.0
    %4035 = vmatpush1.msra.mxu0 0.0
    %4036 = vmatprep.subr.mxu0 0.0
    %4037 = vmatpush1.msra.mxu0 0.0
    %4038 = vmatprep.subr.mxu0 0.0
    %4039 = vmatpush1.msra.mxu0 0.0
    %4040 = vmatprep.subr.mxu0 0.0
    %4041 = vmatpush1.msra.mxu0 0.0
    %4042 = vmatprep.subr.mxu0 0.0
    %4043 = vmatpush1.msra.mxu0 0.0
    %4044 = vmatprep.subr.mxu0 0.0
    %4045 = vmatpush1.msra.mxu0 0.0
    %4046 = vmatprep.subr.mxu0 0.0
    %4047 = vmatpush1.msra.mxu0 %v4017
    %4048 = vmatprep.subr.mxu0 0.0
    %4049 = vmatpush1.msra.mxu0 %v4016
    %4050 = vmatprep.subr.mxu0 0.0
    %4051 = vmatpush2.msra.mxu0 0.0
    %4052 = vmatprep.subr.mxu0 0.0
    %4053 = vmatpush2.msra.mxu0 0.0
    %4054 = vmatprep.subr.mxu0 0.0
    %4055 = vmatpush2.msra.mxu0 0.0
    %4056 = vmatprep.subr.mxu0 0.0
    %4057 = vmatpush2.msra.mxu0 0.0
    %4058 = vmatprep.subr.mxu0 0.0
    %4059 = vmatpush2.msra.mxu0 0.0
    %4060 = vmatprep.subr.mxu0 0.0
    %4061 = vmatpush2.msra.mxu0 0.0
    %4062 = vmatprep.subr.mxu0 0.0
    %4063 = vmatpush2.msra.mxu0 0.0
    %4064 = vmatprep.subr.mxu0 0.0
    %4065 = vmatpush2.msra.mxu0 0.0
    %4066 = vmatprep.subr.mxu0 0.0
    %4067 = vmatpush2.msra.mxu0 0.0
    %4068 = vmatprep.subr.mxu0 0.0
    %4069 = vmatpush2.msra.mxu0 0.0
    %4070 = vmatprep.subr.mxu0 0.0
    %4071 = vmatpush2.msra.mxu0 0.0
    %4072 = vmatprep.subr.mxu0 0.0
    %4073 = vmatpush2.msra.mxu0 0.0
    %4074 = vmatprep.subr.mxu0 0.0
    %4075 = vmatpush2.msra.mxu0 0.0
    %4076 = vmatprep.subr.mxu0 0.0
    %4077 = vmatpush2.msra.mxu0 0.0
    %4078 = vmatprep.subr.mxu0 0.0
    %4079 = vmatpush2.msra.mxu0 0.0
    %4080 = vmatprep.subr.mxu0 0.0
    %4081 = vmatpush2.msra.mxu0 0.0
    %4082 = vmatprep.mubr.f32.mxu0 0.0
    %4083 = vmatmul.mubr.f32.gmra.mxu0 %v2343
    %v4084 = vpop.f32.mrf.mxu0
    %v4085 = vadd.f32 0.0, %v4084
    %v4086 = vpop.f32.mrf.mxu0
    %4087 = vmatprep.mubr.f32.mxu0 0.0
    %4088 = vmatmul.mubr.f32.gmra.mxu0 %v2346
    %v4089 = vpop.f32.mrf.mxu0
    %v4090 = vadd.f32 0.0, %v4089
    %v4091 = vpop.f32.mrf.mxu0
    %4092 = vdwg.mxu0
    %v4093 = vadd.f32 %v3931, %v4085
    %v4094 = vadd.f32 %v3932, %v4090
    %v4095 = vmul.f32 %v3532, %v4015
    %v4096 = vmul.f32 %v3533, %v4015
    %4097 = vmatprep.subr.mxu0 0.0
    %4098 = vmatpush1.msra.mxu0 0.0
    %4099 = vmatprep.subr.mxu0 0.0
    %4100 = vmatpush1.msra.mxu0 0.0
    %4101 = vmatprep.subr.mxu0 0.0
    %4102 = vmatpush1.msra.mxu0 0.0
    %4103 = vmatprep.subr.mxu0 0.0
    %4104 = vmatpush1.msra.mxu0 0.0
    %4105 = vmatprep.subr.mxu0 0.0
    %4106 = vmatpush1.msra.mxu0 0.0
    %4107 = vmatprep.subr.mxu0 0.0
    %4108 = vmatpush1.msra.mxu0 0.0
    %4109 = vmatprep.subr.mxu0 0.0
    %4110 = vmatpush1.msra.mxu0 0.0
    %4111 = vmatprep.subr.mxu0 0.0
    %4112 = vmatpush1.msra.mxu0 0.0
    %4113 = vmatprep.subr.mxu0 0.0
    %4114 = vmatpush1.msra.mxu0 0.0
    %4115 = vmatprep.subr.mxu0 0.0
    %4116 = vmatpush1.msra.mxu0 0.0
    %4117 = vmatprep.subr.mxu0 0.0
    %4118 = vmatpush1.msra.mxu0 0.0
    %4119 = vmatprep.subr.mxu0 0.0
    %4120 = vmatpush1.msra.mxu0 0.0
    %4121 = vmatprep.subr.mxu0 0.0
    %4122 = vmatpush1.msra.mxu0 0.0
    %4123 = vmatprep.subr.mxu0 0.0
    %4124 = vmatpush1.msra.mxu0 0.0
    %4125 = vmatprep.subr.mxu0 0.0
    %4126 = vmatpush1.msra.mxu0 %v4096
    %4127 = vmatprep.subr.mxu0 0.0
    %4128 = vmatpush1.msra.mxu0 %v4095
    %4129 = vmatprep.subr.mxu0 0.0
    %4130 = vmatpush2.msra.mxu0 0.0
    %4131 = vmatprep.subr.mxu0 0.0
    %4132 = vmatpush2.msra.mxu0 0.0
    %4133 = vmatprep.subr.mxu0 0.0
    %4134 = vmatpush2.msra.mxu0 0.0
    %4135 = vmatprep.subr.mxu0 0.0
    %4136 = vmatpush2.msra.mxu0 0.0
    %4137 = vmatprep.subr.mxu0 0.0
    %4138 = vmatpush2.msra.mxu0 0.0
    %4139 = vmatprep.subr.mxu0 0.0
    %4140 = vmatpush2.msra.mxu0 0.0
    %4141 = vmatprep.subr.mxu0 0.0
    %4142 = vmatpush2.msra.mxu0 0.0
    %4143 = vmatprep.subr.mxu0 0.0
    %4144 = vmatpush2.msra.mxu0 0.0
    %4145 = vmatprep.subr.mxu0 0.0
    %4146 = vmatpush2.msra.mxu0 0.0
    %4147 = vmatprep.subr.mxu0 0.0
    %4148 = vmatpush2.msra.mxu0 0.0
    %4149 = vmatprep.subr.mxu0 0.0
    %4150 = vmatpush2.msra.mxu0 0.0
    %4151 = vmatprep.subr.mxu0 0.0
    %4152 = vmatpush2.msra.mxu0 0.0
    %4153 = vmatprep.subr.mxu0 0.0
    %4154 = vmatpush2.msra.mxu0 0.0
    %4155 = vmatprep.subr.mxu0 0.0
    %4156 = vmatpush2.msra.mxu0 0.0
    %4157 = vmatprep.subr.mxu0 0.0
    %4158 = vmatpush2.msra.mxu0 0.0
    %4159 = vmatprep.subr.mxu0 0.0
    %4160 = vmatpush2.msra.mxu0 0.0
    %4161 = vmatprep.mubr.f32.mxu0 0.0
    %4162 = vmatmul.mubr.f32.gmra.mxu0 %v2343
    %v4163 = vpop.f32.mrf.mxu0
    %v4164 = vadd.f32 0.0, %v4163
    %v4165 = vpop.f32.mrf.mxu0
    %4166 = vmatprep.mubr.f32.mxu0 0.0
    %4167 = vmatmul.mubr.f32.gmra.mxu0 %v2346
    %v4168 = vpop.f32.mrf.mxu0
    %v4169 = vadd.f32 0.0, %v4168
    %v4170 = vpop.f32.mrf.mxu0
    %4171 = vdwg.mxu0
    %v4172 = vadd.f32 %v4010, %v4164
    %v4173 = vadd.f32 %v4011, %v4169
    %v4174 = vlaneseq
    %v4175 = vshrl.u32 %v4174, 7
    %v4176 = vsub.s32 4, %v4175
    %v4177 = vrot.slane %v1365, %v4176
    %v4178 = vmul.f32 %v3455, %v4177
    %v4179 = vmul.f32 %v3456, %v4177
    %4180 = vmatprep.subr.mxu0 0.0
    %4181 = vmatpush1.msra.mxu0 0.0
    %4182 = vmatprep.subr.mxu0 0.0
    %4183 = vmatpush1.msra.mxu0 0.0
    %4184 = vmatprep.subr.mxu0 0.0
    %4185 = vmatpush1.msra.mxu0 0.0
    %4186 = vmatprep.subr.mxu0 0.0
    %4187 = vmatpush1.msra.mxu0 0.0
    %4188 = vmatprep.subr.mxu0 0.0
    %4189 = vmatpush1.msra.mxu0 0.0
    %4190 = vmatprep.subr.mxu0 0.0
    %4191 = vmatpush1.msra.mxu0 0.0
    %4192 = vmatprep.subr.mxu0 0.0
    %4193 = vmatpush1.msra.mxu0 0.0
    %4194 = vmatprep.subr.mxu0 0.0
    %4195 = vmatpush1.msra.mxu0 0.0
    %4196 = vmatprep.subr.mxu0 0.0
    %4197 = vmatpush1.msra.mxu0 0.0
    %4198 = vmatprep.subr.mxu0 0.0
    %4199 = vmatpush1.msra.mxu0 0.0
    %4200 = vmatprep.subr.mxu0 0.0
    %4201 = vmatpush1.msra.mxu0 0.0
    %4202 = vmatprep.subr.mxu0 0.0
    %4203 = vmatpush1.msra.mxu0 0.0
    %4204 = vmatprep.subr.mxu0 0.0
    %4205 = vmatpush1.msra.mxu0 0.0
    %4206 = vmatprep.subr.mxu0 0.0
    %4207 = vmatpush1.msra.mxu0 0.0
    %4208 = vmatprep.subr.mxu0 0.0
    %4209 = vmatpush1.msra.mxu0 %v4179
    %4210 = vmatprep.subr.mxu0 0.0
    %4211 = vmatpush1.msra.mxu0 %v4178
    %4212 = vmatprep.subr.mxu0 0.0
    %4213 = vmatpush2.msra.mxu0 0.0
    %4214 = vmatprep.subr.mxu0 0.0
    %4215 = vmatpush2.msra.mxu0 0.0
    %4216 = vmatprep.subr.mxu0 0.0
    %4217 = vmatpush2.msra.mxu0 0.0
    %4218 = vmatprep.subr.mxu0 0.0
    %4219 = vmatpush2.msra.mxu0 0.0
    %4220 = vmatprep.subr.mxu0 0.0
    %4221 = vmatpush2.msra.mxu0 0.0
    %4222 = vmatprep.subr.mxu0 0.0
    %4223 = vmatpush2.msra.mxu0 0.0
    %4224 = vmatprep.subr.mxu0 0.0
    %4225 = vmatpush2.msra.mxu0 0.0
    %4226 = vmatprep.subr.mxu0 0.0
    %4227 = vmatpush2.msra.mxu0 0.0
    %4228 = vmatprep.subr.mxu0 0.0
    %4229 = vmatpush2.msra.mxu0 0.0
    %4230 = vmatprep.subr.mxu0 0.0
    %4231 = vmatpush2.msra.mxu0 0.0
    %4232 = vmatprep.subr.mxu0 0.0
    %4233 = vmatpush2.msra.mxu0 0.0
    %4234 = vmatprep.subr.mxu0 0.0
    %4235 = vmatpush2.msra.mxu0 0.0
    %4236 = vmatprep.subr.mxu0 0.0
    %4237 = vmatpush2.msra.mxu0 0.0
    %4238 = vmatprep.subr.mxu0 0.0
    %4239 = vmatpush2.msra.mxu0 0.0
    %4240 = vmatprep.subr.mxu0 0.0
    %4241 = vmatpush2.msra.mxu0 0.0
    %4242 = vmatprep.subr.mxu0 0.0
    %4243 = vmatpush2.msra.mxu0 0.0
    %4244 = vmatprep.mubr.f32.mxu0 0.0
    %4245 = vmatmul.mubr.f32.gmra.mxu0 %v2514
    %v4246 = vpop.f32.mrf.mxu0
    %v4247 = vadd.f32 0.0, %v4246
    %v4248 = vpop.f32.mrf.mxu0
    %4249 = vmatprep.mubr.f32.mxu0 0.0
    %4250 = vmatmul.mubr.f32.gmra.mxu0 %v2517
    %v4251 = vpop.f32.mrf.mxu0
    %v4252 = vadd.f32 0.0, %v4251
    %v4253 = vpop.f32.mrf.mxu0
    %4254 = vdwg.mxu0
    %v4255 = vadd.f32 %v4093, %v4247
    %v4256 = vadd.f32 %v4094, %v4252
    %v4257 = vmul.f32 %v3532, %v4177
    %v4258 = vmul.f32 %v3533, %v4177
    %4259 = vmatprep.subr.mxu0 0.0
    %4260 = vmatpush1.msra.mxu0 0.0
    %4261 = vmatprep.subr.mxu0 0.0
    %4262 = vmatpush1.msra.mxu0 0.0
    %4263 = vmatprep.subr.mxu0 0.0
    %4264 = vmatpush1.msra.mxu0 0.0
    %4265 = vmatprep.subr.mxu0 0.0
    %4266 = vmatpush1.msra.mxu0 0.0
    %4267 = vmatprep.subr.mxu0 0.0
    %4268 = vmatpush1.msra.mxu0 0.0
    %4269 = vmatprep.subr.mxu0 0.0
    %4270 = vmatpush1.msra.mxu0 0.0
    %4271 = vmatprep.subr.mxu0 0.0
    %4272 = vmatpush1.msra.mxu0 0.0
    %4273 = vmatprep.subr.mxu0 0.0
    %4274 = vmatpush1.msra.mxu0 0.0
    %4275 = vmatprep.subr.mxu0 0.0
    %4276 = vmatpush1.msra.mxu0 0.0
    %4277 = vmatprep.subr.mxu0 0.0
    %4278 = vmatpush1.msra.mxu0 0.0
    %4279 = vmatprep.subr.mxu0 0.0
    %4280 = vmatpush1.msra.mxu0 0.0
    %4281 = vmatprep.subr.mxu0 0.0
    %4282 = vmatpush1.msra.mxu0 0.0
    %4283 = vmatprep.subr.mxu0 0.0
    %4284 = vmatpush1.msra.mxu0 0.0
    %4285 = vmatprep.subr.mxu0 0.0
    %4286 = vmatpush1.msra.mxu0 0.0
    %4287 = vmatprep.subr.mxu0 0.0
    %4288 = vmatpush1.msra.mxu0 %v4258
    %4289 = vmatprep.subr.mxu0 0.0
    %4290 = vmatpush1.msra.mxu0 %v4257
    %4291 = vmatprep.subr.mxu0 0.0
    %4292 = vmatpush2.msra.mxu0 0.0
    %4293 = vmatprep.subr.mxu0 0.0
    %4294 = vmatpush2.msra.mxu0 0.0
    %4295 = vmatprep.subr.mxu0 0.0
    %4296 = vmatpush2.msra.mxu0 0.0
    %4297 = vmatprep.subr.mxu0 0.0
    %4298 = vmatpush2.msra.mxu0 0.0
    %4299 = vmatprep.subr.mxu0 0.0
    %4300 = vmatpush2.msra.mxu0 0.0
    %4301 = vmatprep.subr.mxu0 0.0
    %4302 = vmatpush2.msra.mxu0 0.0
    %4303 = vmatprep.subr.mxu0 0.0
    %4304 = vmatpush2.msra.mxu0 0.0
    %4305 = vmatprep.subr.mxu0 0.0
    %4306 = vmatpush2.msra.mxu0 0.0
    %4307 = vmatprep.subr.mxu0 0.0
    %4308 = vmatpush2.msra.mxu0 0.0
    %4309 = vmatprep.subr.mxu0 0.0
    %4310 = vmatpush2.msra.mxu0 0.0
    %4311 = vmatprep.subr.mxu0 0.0
    %4312 = vmatpush2.msra.mxu0 0.0
    %4313 = vmatprep.subr.mxu0 0.0
    %4314 = vmatpush2.msra.mxu0 0.0
    %4315 = vmatprep.subr.mxu0 0.0
    %4316 = vmatpush2.msra.mxu0 0.0
    %4317 = vmatprep.subr.mxu0 0.0
    %4318 = vmatpush2.msra.mxu0 0.0
    %4319 = vmatprep.subr.mxu0 0.0
    %4320 = vmatpush2.msra.mxu0 0.0
    %4321 = vmatprep.subr.mxu0 0.0
    %4322 = vmatpush2.msra.mxu0 0.0
    %4323 = vmatprep.mubr.f32.mxu0 0.0
    %4324 = vmatmul.mubr.f32.gmra.mxu0 %v2514
    %v4325 = vpop.f32.mrf.mxu0
    %v4326 = vadd.f32 0.0, %v4325
    %v4327 = vpop.f32.mrf.mxu0
    %4328 = vmatprep.mubr.f32.mxu0 0.0
    %4329 = vmatmul.mubr.f32.gmra.mxu0 %v2517
    %v4330 = vpop.f32.mrf.mxu0
    %v4331 = vadd.f32 0.0, %v4330
    %v4332 = vpop.f32.mrf.mxu0
    %4333 = vdwg.mxu0
    %v4334 = vadd.f32 %v4172, %v4326
    %v4335 = vadd.f32 %v4173, %v4331
    %v4336 = vlaneseq
    %v4337 = vshrl.u32 %v4336, 7
    %v4338 = vsub.s32 5, %v4337
    %v4339 = vrot.slane %v1365, %v4338
    %v4340 = vmul.f32 %v3455, %v4339
    %v4341 = vmul.f32 %v3456, %v4339
    %4342 = vmatprep.subr.mxu0 0.0
    %4343 = vmatpush1.msra.mxu0 0.0
    %4344 = vmatprep.subr.mxu0 0.0
    %4345 = vmatpush1.msra.mxu0 0.0
    %4346 = vmatprep.subr.mxu0 0.0
    %4347 = vmatpush1.msra.mxu0 0.0
    %4348 = vmatprep.subr.mxu0 0.0
    %4349 = vmatpush1.msra.mxu0 0.0
    %4350 = vmatprep.subr.mxu0 0.0
    %4351 = vmatpush1.msra.mxu0 0.0
    %4352 = vmatprep.subr.mxu0 0.0
    %4353 = vmatpush1.msra.mxu0 0.0
    %4354 = vmatprep.subr.mxu0 0.0
    %4355 = vmatpush1.msra.mxu0 0.0
    %4356 = vmatprep.subr.mxu0 0.0
    %4357 = vmatpush1.msra.mxu0 0.0
    %4358 = vmatprep.subr.mxu0 0.0
    %4359 = vmatpush1.msra.mxu0 0.0
    %4360 = vmatprep.subr.mxu0 0.0
    %4361 = vmatpush1.msra.mxu0 0.0
    %4362 = vmatprep.subr.mxu0 0.0
    %4363 = vmatpush1.msra.mxu0 0.0
    %4364 = vmatprep.subr.mxu0 0.0
    %4365 = vmatpush1.msra.mxu0 0.0
    %4366 = vmatprep.subr.mxu0 0.0
    %4367 = vmatpush1.msra.mxu0 0.0
    %4368 = vmatprep.subr.mxu0 0.0
    %4369 = vmatpush1.msra.mxu0 0.0
    %4370 = vmatprep.subr.mxu0 0.0
    %4371 = vmatpush1.msra.mxu0 %v4341
    %4372 = vmatprep.subr.mxu0 0.0
    %4373 = vmatpush1.msra.mxu0 %v4340
    %4374 = vmatprep.subr.mxu0 0.0
    %4375 = vmatpush2.msra.mxu0 0.0
    %4376 = vmatprep.subr.mxu0 0.0
    %4377 = vmatpush2.msra.mxu0 0.0
    %4378 = vmatprep.subr.mxu0 0.0
    %4379 = vmatpush2.msra.mxu0 0.0
    %4380 = vmatprep.subr.mxu0 0.0
    %4381 = vmatpush2.msra.mxu0 0.0
    %4382 = vmatprep.subr.mxu0 0.0
    %4383 = vmatpush2.msra.mxu0 0.0
    %4384 = vmatprep.subr.mxu0 0.0
    %4385 = vmatpush2.msra.mxu0 0.0
    %4386 = vmatprep.subr.mxu0 0.0
    %4387 = vmatpush2.msra.mxu0 0.0
    %4388 = vmatprep.subr.mxu0 0.0
    %4389 = vmatpush2.msra.mxu0 0.0
    %4390 = vmatprep.subr.mxu0 0.0
    %4391 = vmatpush2.msra.mxu0 0.0
    %4392 = vmatprep.subr.mxu0 0.0
    %4393 = vmatpush2.msra.mxu0 0.0
    %4394 = vmatprep.subr.mxu0 0.0
    %4395 = vmatpush2.msra.mxu0 0.0
    %4396 = vmatprep.subr.mxu0 0.0
    %4397 = vmatpush2.msra.mxu0 0.0
    %4398 = vmatprep.subr.mxu0 0.0
    %4399 = vmatpush2.msra.mxu0 0.0
    %4400 = vmatprep.subr.mxu0 0.0
    %4401 = vmatpush2.msra.mxu0 0.0
    %4402 = vmatprep.subr.mxu0 0.0
    %4403 = vmatpush2.msra.mxu0 0.0
    %4404 = vmatprep.subr.mxu0 0.0
    %4405 = vmatpush2.msra.mxu0 0.0
    %4406 = vmatprep.mubr.f32.mxu0 0.0
    %4407 = vmatmul.mubr.f32.gmra.mxu0 %v2685
    %v4408 = vpop.f32.mrf.mxu0
    %v4409 = vadd.f32 0.0, %v4408
    %v4410 = vpop.f32.mrf.mxu0
    %4411 = vmatprep.mubr.f32.mxu0 0.0
    %4412 = vmatmul.mubr.f32.gmra.mxu0 %v2688
    %v4413 = vpop.f32.mrf.mxu0
    %v4414 = vadd.f32 0.0, %v4413
    %v4415 = vpop.f32.mrf.mxu0
    %4416 = vdwg.mxu0
    %v4417 = vadd.f32 %v4255, %v4409
    %v4418 = vadd.f32 %v4256, %v4414
    %v4419 = vmul.f32 %v3532, %v4339
    %v4420 = vmul.f32 %v3533, %v4339
    %4421 = vmatprep.subr.mxu0 0.0
    %4422 = vmatpush1.msra.mxu0 0.0
    %4423 = vmatprep.subr.mxu0 0.0
    %4424 = vmatpush1.msra.mxu0 0.0
    %4425 = vmatprep.subr.mxu0 0.0
    %4426 = vmatpush1.msra.mxu0 0.0
    %4427 = vmatprep.subr.mxu0 0.0
    %4428 = vmatpush1.msra.mxu0 0.0
    %4429 = vmatprep.subr.mxu0 0.0
    %4430 = vmatpush1.msra.mxu0 0.0
    %4431 = vmatprep.subr.mxu0 0.0
    %4432 = vmatpush1.msra.mxu0 0.0
    %4433 = vmatprep.subr.mxu0 0.0
    %4434 = vmatpush1.msra.mxu0 0.0
    %4435 = vmatprep.subr.mxu0 0.0
    %4436 = vmatpush1.msra.mxu0 0.0
    %4437 = vmatprep.subr.mxu0 0.0
    %4438 = vmatpush1.msra.mxu0 0.0
    %4439 = vmatprep.subr.mxu0 0.0
    %4440 = vmatpush1.msra.mxu0 0.0
    %4441 = vmatprep.subr.mxu0 0.0
    %4442 = vmatpush1.msra.mxu0 0.0
    %4443 = vmatprep.subr.mxu0 0.0
    %4444 = vmatpush1.msra.mxu0 0.0
    %4445 = vmatprep.subr.mxu0 0.0
    %4446 = vmatpush1.msra.mxu0 0.0
    %4447 = vmatprep.subr.mxu0 0.0
    %4448 = vmatpush1.msra.mxu0 0.0
    %4449 = vmatprep.subr.mxu0 0.0
    %4450 = vmatpush1.msra.mxu0 %v4420
    %4451 = vmatprep.subr.mxu0 0.0
    %4452 = vmatpush1.msra.mxu0 %v4419
    %4453 = vmatprep.subr.mxu0 0.0
    %4454 = vmatpush2.msra.mxu0 0.0
    %4455 = vmatprep.subr.mxu0 0.0
    %4456 = vmatpush2.msra.mxu0 0.0
    %4457 = vmatprep.subr.mxu0 0.0
    %4458 = vmatpush2.msra.mxu0 0.0
    %4459 = vmatprep.subr.mxu0 0.0
    %4460 = vmatpush2.msra.mxu0 0.0
    %4461 = vmatprep.subr.mxu0 0.0
    %4462 = vmatpush2.msra.mxu0 0.0
    %4463 = vmatprep.subr.mxu0 0.0
    %4464 = vmatpush2.msra.mxu0 0.0
    %4465 = vmatprep.subr.mxu0 0.0
    %4466 = vmatpush2.msra.mxu0 0.0
    %4467 = vmatprep.subr.mxu0 0.0
    %4468 = vmatpush2.msra.mxu0 0.0
    %4469 = vmatprep.subr.mxu0 0.0
    %4470 = vmatpush2.msra.mxu0 0.0
    %4471 = vmatprep.subr.mxu0 0.0
    %4472 = vmatpush2.msra.mxu0 0.0
    %4473 = vmatprep.subr.mxu0 0.0
    %4474 = vmatpush2.msra.mxu0 0.0
    %4475 = vmatprep.subr.mxu0 0.0
    %4476 = vmatpush2.msra.mxu0 0.0
    %4477 = vmatprep.subr.mxu0 0.0
    %4478 = vmatpush2.msra.mxu0 0.0
    %4479 = vmatprep.subr.mxu0 0.0
    %4480 = vmatpush2.msra.mxu0 0.0
    %4481 = vmatprep.subr.mxu0 0.0
    %4482 = vmatpush2.msra.mxu0 0.0
    %4483 = vmatprep.subr.mxu0 0.0
    %4484 = vmatpush2.msra.mxu0 0.0
    %4485 = vmatprep.mubr.f32.mxu0 0.0
    %4486 = vmatmul.mubr.f32.gmra.mxu0 %v2685
    %v4487 = vpop.f32.mrf.mxu0
    %v4488 = vadd.f32 0.0, %v4487
    %v4489 = vpop.f32.mrf.mxu0
    %4490 = vmatprep.mubr.f32.mxu0 0.0
    %4491 = vmatmul.mubr.f32.gmra.mxu0 %v2688
    %v4492 = vpop.f32.mrf.mxu0
    %v4493 = vadd.f32 0.0, %v4492
    %v4494 = vpop.f32.mrf.mxu0
    %4495 = vdwg.mxu0
    %v4496 = vadd.f32 %v4334, %v4488
    %v4497 = vadd.f32 %v4335, %v4493
    %v4498 = vlaneseq
    %v4499 = vshrl.u32 %v4498, 7
    %v4500 = vsub.s32 6, %v4499
    %v4501 = vrot.slane %v1365, %v4500
    %v4502 = vmul.f32 %v3455, %v4501
    %v4503 = vmul.f32 %v3456, %v4501
    %4504 = vmatprep.subr.mxu0 0.0
    %4505 = vmatpush1.msra.mxu0 0.0
    %4506 = vmatprep.subr.mxu0 0.0
    %4507 = vmatpush1.msra.mxu0 0.0
    %4508 = vmatprep.subr.mxu0 0.0
    %4509 = vmatpush1.msra.mxu0 0.0
    %4510 = vmatprep.subr.mxu0 0.0
    %4511 = vmatpush1.msra.mxu0 0.0
    %4512 = vmatprep.subr.mxu0 0.0
    %4513 = vmatpush1.msra.mxu0 0.0
    %4514 = vmatprep.subr.mxu0 0.0
    %4515 = vmatpush1.msra.mxu0 0.0
    %4516 = vmatprep.subr.mxu0 0.0
    %4517 = vmatpush1.msra.mxu0 0.0
    %4518 = vmatprep.subr.mxu0 0.0
    %4519 = vmatpush1.msra.mxu0 0.0
    %4520 = vmatprep.subr.mxu0 0.0
    %4521 = vmatpush1.msra.mxu0 0.0
    %4522 = vmatprep.subr.mxu0 0.0
    %4523 = vmatpush1.msra.mxu0 0.0
    %4524 = vmatprep.subr.mxu0 0.0
    %4525 = vmatpush1.msra.mxu0 0.0
    %4526 = vmatprep.subr.mxu0 0.0
    %4527 = vmatpush1.msra.mxu0 0.0
    %4528 = vmatprep.subr.mxu0 0.0
    %4529 = vmatpush1.msra.mxu0 0.0
    %4530 = vmatprep.subr.mxu0 0.0
    %4531 = vmatpush1.msra.mxu0 0.0
    %4532 = vmatprep.subr.mxu0 0.0
    %4533 = vmatpush1.msra.mxu0 %v4503
    %4534 = vmatprep.subr.mxu0 0.0
    %4535 = vmatpush1.msra.mxu0 %v4502
    %4536 = vmatprep.subr.mxu0 0.0
    %4537 = vmatpush2.msra.mxu0 0.0
    %4538 = vmatprep.subr.mxu0 0.0
    %4539 = vmatpush2.msra.mxu0 0.0
    %4540 = vmatprep.subr.mxu0 0.0
    %4541 = vmatpush2.msra.mxu0 0.0
    %4542 = vmatprep.subr.mxu0 0.0
    %4543 = vmatpush2.msra.mxu0 0.0
    %4544 = vmatprep.subr.mxu0 0.0
    %4545 = vmatpush2.msra.mxu0 0.0
    %4546 = vmatprep.subr.mxu0 0.0
    %4547 = vmatpush2.msra.mxu0 0.0
    %4548 = vmatprep.subr.mxu0 0.0
    %4549 = vmatpush2.msra.mxu0 0.0
    %4550 = vmatprep.subr.mxu0 0.0
    %4551 = vmatpush2.msra.mxu0 0.0
    %4552 = vmatprep.subr.mxu0 0.0
    %4553 = vmatpush2.msra.mxu0 0.0
    %4554 = vmatprep.subr.mxu0 0.0
    %4555 = vmatpush2.msra.mxu0 0.0
    %4556 = vmatprep.subr.mxu0 0.0
    %4557 = vmatpush2.msra.mxu0 0.0
    %4558 = vmatprep.subr.mxu0 0.0
    %4559 = vmatpush2.msra.mxu0 0.0
    %4560 = vmatprep.subr.mxu0 0.0
    %4561 = vmatpush2.msra.mxu0 0.0
    %4562 = vmatprep.subr.mxu0 0.0
    %4563 = vmatpush2.msra.mxu0 0.0
    %4564 = vmatprep.subr.mxu0 0.0
    %4565 = vmatpush2.msra.mxu0 0.0
    %4566 = vmatprep.subr.mxu0 0.0
    %4567 = vmatpush2.msra.mxu0 0.0
    %4568 = vmatprep.mubr.f32.mxu0 0.0
    %4569 = vmatmul.mubr.f32.gmra.mxu0 %v2856
    %v4570 = vpop.f32.mrf.mxu0
    %v4571 = vadd.f32 0.0, %v4570
    %v4572 = vpop.f32.mrf.mxu0
    %4573 = vmatprep.mubr.f32.mxu0 0.0
    %4574 = vmatmul.mubr.f32.gmra.mxu0 %v2859
    %v4575 = vpop.f32.mrf.mxu0
    %v4576 = vadd.f32 0.0, %v4575
    %v4577 = vpop.f32.mrf.mxu0
    %4578 = vdwg.mxu0
    %v4579 = vadd.f32 %v4417, %v4571
    %v4580 = vadd.f32 %v4418, %v4576
    %v4581 = vmul.f32 %v3532, %v4501
    %v4582 = vmul.f32 %v3533, %v4501
    %4583 = vmatprep.subr.mxu0 0.0
    %4584 = vmatpush1.msra.mxu0 0.0
    %4585 = vmatprep.subr.mxu0 0.0
    %4586 = vmatpush1.msra.mxu0 0.0
    %4587 = vmatprep.subr.mxu0 0.0
    %4588 = vmatpush1.msra.mxu0 0.0
    %4589 = vmatprep.subr.mxu0 0.0
    %4590 = vmatpush1.msra.mxu0 0.0
    %4591 = vmatprep.subr.mxu0 0.0
    %4592 = vmatpush1.msra.mxu0 0.0
    %4593 = vmatprep.subr.mxu0 0.0
    %4594 = vmatpush1.msra.mxu0 0.0
    %4595 = vmatprep.subr.mxu0 0.0
    %4596 = vmatpush1.msra.mxu0 0.0
    %4597 = vmatprep.subr.mxu0 0.0
    %4598 = vmatpush1.msra.mxu0 0.0
    %4599 = vmatprep.subr.mxu0 0.0
    %4600 = vmatpush1.msra.mxu0 0.0
    %4601 = vmatprep.subr.mxu0 0.0
    %4602 = vmatpush1.msra.mxu0 0.0
    %4603 = vmatprep.subr.mxu0 0.0
    %4604 = vmatpush1.msra.mxu0 0.0
    %4605 = vmatprep.subr.mxu0 0.0
    %4606 = vmatpush1.msra.mxu0 0.0
    %4607 = vmatprep.subr.mxu0 0.0
    %4608 = vmatpush1.msra.mxu0 0.0
    %4609 = vmatprep.subr.mxu0 0.0
    %4610 = vmatpush1.msra.mxu0 0.0
    %4611 = vmatprep.subr.mxu0 0.0
    %4612 = vmatpush1.msra.mxu0 %v4582
    %4613 = vmatprep.subr.mxu0 0.0
    %4614 = vmatpush1.msra.mxu0 %v4581
    %4615 = vmatprep.subr.mxu0 0.0
    %4616 = vmatpush2.msra.mxu0 0.0
    %4617 = vmatprep.subr.mxu0 0.0
    %4618 = vmatpush2.msra.mxu0 0.0
    %4619 = vmatprep.subr.mxu0 0.0
    %4620 = vmatpush2.msra.mxu0 0.0
    %4621 = vmatprep.subr.mxu0 0.0
    %4622 = vmatpush2.msra.mxu0 0.0
    %4623 = vmatprep.subr.mxu0 0.0
    %4624 = vmatpush2.msra.mxu0 0.0
    %4625 = vmatprep.subr.mxu0 0.0
    %4626 = vmatpush2.msra.mxu0 0.0
    %4627 = vmatprep.subr.mxu0 0.0
    %4628 = vmatpush2.msra.mxu0 0.0
    %4629 = vmatprep.subr.mxu0 0.0
    %4630 = vmatpush2.msra.mxu0 0.0
    %4631 = vmatprep.subr.mxu0 0.0
    %4632 = vmatpush2.msra.mxu0 0.0
    %4633 = vmatprep.subr.mxu0 0.0
    %4634 = vmatpush2.msra.mxu0 0.0
    %4635 = vmatprep.subr.mxu0 0.0
    %4636 = vmatpush2.msra.mxu0 0.0
    %4637 = vmatprep.subr.mxu0 0.0
    %4638 = vmatpush2.msra.mxu0 0.0
    %4639 = vmatprep.subr.mxu0 0.0
    %4640 = vmatpush2.msra.mxu0 0.0
    %4641 = vmatprep.subr.mxu0 0.0
    %4642 = vmatpush2.msra.mxu0 0.0
    %4643 = vmatprep.subr.mxu0 0.0
    %4644 = vmatpush2.msra.mxu0 0.0
    %4645 = vmatprep.subr.mxu0 0.0
    %4646 = vmatpush2.msra.mxu0 0.0
    %4647 = vmatprep.mubr.f32.mxu0 0.0
    %4648 = vmatmul.mubr.f32.gmra.mxu0 %v2856
    %v4649 = vpop.f32.mrf.mxu0
    %v4650 = vadd.f32 0.0, %v4649
    %v4651 = vpop.f32.mrf.mxu0
    %4652 = vmatprep.mubr.f32.mxu0 0.0
    %4653 = vmatmul.mubr.f32.gmra.mxu0 %v2859
    %v4654 = vpop.f32.mrf.mxu0
    %v4655 = vadd.f32 0.0, %v4654
    %v4656 = vpop.f32.mrf.mxu0
    %4657 = vdwg.mxu0
    %v4658 = vadd.f32 %v4496, %v4650
    %v4659 = vadd.f32 %v4497, %v4655
    %v4660 = vlaneseq
    %v4661 = vshrl.u32 %v4660, 7
    %v4662 = vsub.s32 7, %v4661
    %v4663 = vrot.slane %v1365, %v4662
    %v4664 = vmul.f32 %v3455, %v4663
    %v4665 = vmul.f32 %v3456, %v4663
    %4666 = vmatprep.subr.mxu0 0.0
    %4667 = vmatpush1.msra.mxu0 0.0
    %4668 = vmatprep.subr.mxu0 0.0
    %4669 = vmatpush1.msra.mxu0 0.0
    %4670 = vmatprep.subr.mxu0 0.0
    %4671 = vmatpush1.msra.mxu0 0.0
    %4672 = vmatprep.subr.mxu0 0.0
    %4673 = vmatpush1.msra.mxu0 0.0
    %4674 = vmatprep.subr.mxu0 0.0
    %4675 = vmatpush1.msra.mxu0 0.0
    %4676 = vmatprep.subr.mxu0 0.0
    %4677 = vmatpush1.msra.mxu0 0.0
    %4678 = vmatprep.subr.mxu0 0.0
    %4679 = vmatpush1.msra.mxu0 0.0
    %4680 = vmatprep.subr.mxu0 0.0
    %4681 = vmatpush1.msra.mxu0 0.0
    %4682 = vmatprep.subr.mxu0 0.0
    %4683 = vmatpush1.msra.mxu0 0.0
    %4684 = vmatprep.subr.mxu0 0.0
    %4685 = vmatpush1.msra.mxu0 0.0
    %4686 = vmatprep.subr.mxu0 0.0
    %4687 = vmatpush1.msra.mxu0 0.0
    %4688 = vmatprep.subr.mxu0 0.0
    %4689 = vmatpush1.msra.mxu0 0.0
    %4690 = vmatprep.subr.mxu0 0.0
    %4691 = vmatpush1.msra.mxu0 0.0
    %4692 = vmatprep.subr.mxu0 0.0
    %4693 = vmatpush1.msra.mxu0 0.0
    %4694 = vmatprep.subr.mxu0 0.0
    %4695 = vmatpush1.msra.mxu0 %v4665
    %4696 = vmatprep.subr.mxu0 0.0
    %4697 = vmatpush1.msra.mxu0 %v4664
    %4698 = vmatprep.subr.mxu0 0.0
    %4699 = vmatpush2.msra.mxu0 0.0
    %4700 = vmatprep.subr.mxu0 0.0
    %4701 = vmatpush2.msra.mxu0 0.0
    %4702 = vmatprep.subr.mxu0 0.0
    %4703 = vmatpush2.msra.mxu0 0.0
    %4704 = vmatprep.subr.mxu0 0.0
    %4705 = vmatpush2.msra.mxu0 0.0
    %4706 = vmatprep.subr.mxu0 0.0
    %4707 = vmatpush2.msra.mxu0 0.0
    %4708 = vmatprep.subr.mxu0 0.0
    %4709 = vmatpush2.msra.mxu0 0.0
    %4710 = vmatprep.subr.mxu0 0.0
    %4711 = vmatpush2.msra.mxu0 0.0
    %4712 = vmatprep.subr.mxu0 0.0
    %4713 = vmatpush2.msra.mxu0 0.0
    %4714 = vmatprep.subr.mxu0 0.0
    %4715 = vmatpush2.msra.mxu0 0.0
    %4716 = vmatprep.subr.mxu0 0.0
    %4717 = vmatpush2.msra.mxu0 0.0
    %4718 = vmatprep.subr.mxu0 0.0
    %4719 = vmatpush2.msra.mxu0 0.0
    %4720 = vmatprep.subr.mxu0 0.0
    %4721 = vmatpush2.msra.mxu0 0.0
    %4722 = vmatprep.subr.mxu0 0.0
    %4723 = vmatpush2.msra.mxu0 0.0
    %4724 = vmatprep.subr.mxu0 0.0
    %4725 = vmatpush2.msra.mxu0 0.0
    %4726 = vmatprep.subr.mxu0 0.0
    %4727 = vmatpush2.msra.mxu0 0.0
    %4728 = vmatprep.subr.mxu0 0.0
    %4729 = vmatpush2.msra.mxu0 0.0
    %4730 = vmatprep.mubr.f32.mxu0 0.0
    %4731 = vmatmul.mubr.f32.gmra.mxu0 %v3027
    %v4732 = vpop.f32.mrf.mxu0
    %v4733 = vadd.f32 0.0, %v4732
    %v4734 = vpop.f32.mrf.mxu0
    %4735 = vmatprep.mubr.f32.mxu0 0.0
    %4736 = vmatmul.mubr.f32.gmra.mxu0 %v3030
    %v4737 = vpop.f32.mrf.mxu0
    %v4738 = vadd.f32 0.0, %v4737
    %v4739 = vpop.f32.mrf.mxu0
    %4740 = vdwg.mxu0
    %v4741 = vadd.f32 %v4579, %v4733
    %v4742 = vadd.f32 %v4580, %v4738
    %v4743 = vmul.f32 %v3532, %v4663
    %v4744 = vmul.f32 %v3533, %v4663
    %4745 = vmatprep.subr.mxu0 0.0
    %4746 = vmatpush1.msra.mxu0 0.0
    %4747 = vmatprep.subr.mxu0 0.0
    %4748 = vmatpush1.msra.mxu0 0.0
    %4749 = vmatprep.subr.mxu0 0.0
    %4750 = vmatpush1.msra.mxu0 0.0
    %4751 = vmatprep.subr.mxu0 0.0
    %4752 = vmatpush1.msra.mxu0 0.0
    %4753 = vmatprep.subr.mxu0 0.0
    %4754 = vmatpush1.msra.mxu0 0.0
    %4755 = vmatprep.subr.mxu0 0.0
    %4756 = vmatpush1.msra.mxu0 0.0
    %4757 = vmatprep.subr.mxu0 0.0
    %4758 = vmatpush1.msra.mxu0 0.0
    %4759 = vmatprep.subr.mxu0 0.0
    %4760 = vmatpush1.msra.mxu0 0.0
    %4761 = vmatprep.subr.mxu0 0.0
    %4762 = vmatpush1.msra.mxu0 0.0
    %4763 = vmatprep.subr.mxu0 0.0
    %4764 = vmatpush1.msra.mxu0 0.0
    %4765 = vmatprep.subr.mxu0 0.0
    %4766 = vmatpush1.msra.mxu0 0.0
    %4767 = vmatprep.subr.mxu0 0.0
    %4768 = vmatpush1.msra.mxu0 0.0
    %4769 = vmatprep.subr.mxu0 0.0
    %4770 = vmatpush1.msra.mxu0 0.0
    %4771 = vmatprep.subr.mxu0 0.0
    %4772 = vmatpush1.msra.mxu0 0.0
    %4773 = vmatprep.subr.mxu0 0.0
    %4774 = vmatpush1.msra.mxu0 %v4744
    %4775 = vmatprep.subr.mxu0 0.0
    %4776 = vmatpush1.msra.mxu0 %v4743
    %4777 = vmatprep.subr.mxu0 0.0
    %4778 = vmatpush2.msra.mxu0 0.0
    %4779 = vmatprep.subr.mxu0 0.0
    %4780 = vmatpush2.msra.mxu0 0.0
    %4781 = vmatprep.subr.mxu0 0.0
    %4782 = vmatpush2.msra.mxu0 0.0
    %4783 = vmatprep.subr.mxu0 0.0
    %4784 = vmatpush2.msra.mxu0 0.0
    %4785 = vmatprep.subr.mxu0 0.0
    %4786 = vmatpush2.msra.mxu0 0.0
    %4787 = vmatprep.subr.mxu0 0.0
    %4788 = vmatpush2.msra.mxu0 0.0
    %4789 = vmatprep.subr.mxu0 0.0
    %4790 = vmatpush2.msra.mxu0 0.0
    %4791 = vmatprep.subr.mxu0 0.0
    %4792 = vmatpush2.msra.mxu0 0.0
    %4793 = vmatprep.subr.mxu0 0.0
    %4794 = vmatpush2.msra.mxu0 0.0
    %4795 = vmatprep.subr.mxu0 0.0
    %4796 = vmatpush2.msra.mxu0 0.0
    %4797 = vmatprep.subr.mxu0 0.0
    %4798 = vmatpush2.msra.mxu0 0.0
    %4799 = vmatprep.subr.mxu0 0.0
    %4800 = vmatpush2.msra.mxu0 0.0
    %4801 = vmatprep.subr.mxu0 0.0
    %4802 = vmatpush2.msra.mxu0 0.0
    %4803 = vmatprep.subr.mxu0 0.0
    %4804 = vmatpush2.msra.mxu0 0.0
    %4805 = vmatprep.subr.mxu0 0.0
    %4806 = vmatpush2.msra.mxu0 0.0
    %4807 = vmatprep.subr.mxu0 0.0
    %4808 = vmatpush2.msra.mxu0 0.0
    %4809 = vmatprep.mubr.f32.mxu0 0.0
    %4810 = vmatmul.mubr.f32.gmra.mxu0 %v3027
    %v4811 = vpop.f32.mrf.mxu0
    %v4812 = vadd.f32 0.0, %v4811
    %v4813 = vpop.f32.mrf.mxu0
    %4814 = vmatprep.mubr.f32.mxu0 0.0
    %4815 = vmatmul.mubr.f32.gmra.mxu0 %v3030
    %v4816 = vpop.f32.mrf.mxu0
    %v4817 = vadd.f32 0.0, %v4816
    %v4818 = vpop.f32.mrf.mxu0
    %4819 = vdwg.mxu0
    %v4820 = vadd.f32 %v4658, %v4812
    %v4821 = vadd.f32 %v4659, %v4817
    %v4822 = vlaneseq
    %v4823 = vshrl.u32 %v4822, 7
    %v4824 = vsub.s32 0, %v4823
    %v4825 = vrot.slane %v1366, %v4824
    %v4826 = vmul.f32 %v3455, %v4825
    %v4827 = vmul.f32 %v3456, %v4825
    %4828 = vmatprep.subr.mxu0 0.0
    %4829 = vmatpush1.msra.mxu0 0.0
    %4830 = vmatprep.subr.mxu0 0.0
    %4831 = vmatpush1.msra.mxu0 0.0
    %4832 = vmatprep.subr.mxu0 0.0
    %4833 = vmatpush1.msra.mxu0 0.0
    %4834 = vmatprep.subr.mxu0 0.0
    %4835 = vmatpush1.msra.mxu0 0.0
    %4836 = vmatprep.subr.mxu0 0.0
    %4837 = vmatpush1.msra.mxu0 0.0
    %4838 = vmatprep.subr.mxu0 0.0
    %4839 = vmatpush1.msra.mxu0 0.0
    %4840 = vmatprep.subr.mxu0 0.0
    %4841 = vmatpush1.msra.mxu0 0.0
    %4842 = vmatprep.subr.mxu0 0.0
    %4843 = vmatpush1.msra.mxu0 0.0
    %4844 = vmatprep.subr.mxu0 0.0
    %4845 = vmatpush1.msra.mxu0 0.0
    %4846 = vmatprep.subr.mxu0 0.0
    %4847 = vmatpush1.msra.mxu0 0.0
    %4848 = vmatprep.subr.mxu0 0.0
    %4849 = vmatpush1.msra.mxu0 0.0
    %4850 = vmatprep.subr.mxu0 0.0
    %4851 = vmatpush1.msra.mxu0 0.0
    %4852 = vmatprep.subr.mxu0 0.0
    %4853 = vmatpush1.msra.mxu0 0.0
    %4854 = vmatprep.subr.mxu0 0.0
    %4855 = vmatpush1.msra.mxu0 0.0
    %4856 = vmatprep.subr.mxu0 0.0
    %4857 = vmatpush1.msra.mxu0 %v4827
    %4858 = vmatprep.subr.mxu0 0.0
    %4859 = vmatpush1.msra.mxu0 %v4826
    %4860 = vmatprep.subr.mxu0 0.0
    %4861 = vmatpush2.msra.mxu0 0.0
    %4862 = vmatprep.subr.mxu0 0.0
    %4863 = vmatpush2.msra.mxu0 0.0
    %4864 = vmatprep.subr.mxu0 0.0
    %4865 = vmatpush2.msra.mxu0 0.0
    %4866 = vmatprep.subr.mxu0 0.0
    %4867 = vmatpush2.msra.mxu0 0.0
    %4868 = vmatprep.subr.mxu0 0.0
    %4869 = vmatpush2.msra.mxu0 0.0
    %4870 = vmatprep.subr.mxu0 0.0
    %4871 = vmatpush2.msra.mxu0 0.0
    %4872 = vmatprep.subr.mxu0 0.0
    %4873 = vmatpush2.msra.mxu0 0.0
    %4874 = vmatprep.subr.mxu0 0.0
    %4875 = vmatpush2.msra.mxu0 0.0
    %4876 = vmatprep.subr.mxu0 0.0
    %4877 = vmatpush2.msra.mxu0 0.0
    %4878 = vmatprep.subr.mxu0 0.0
    %4879 = vmatpush2.msra.mxu0 0.0
    %4880 = vmatprep.subr.mxu0 0.0
    %4881 = vmatpush2.msra.mxu0 0.0
    %4882 = vmatprep.subr.mxu0 0.0
    %4883 = vmatpush2.msra.mxu0 0.0
    %4884 = vmatprep.subr.mxu0 0.0
    %4885 = vmatpush2.msra.mxu0 0.0
    %4886 = vmatprep.subr.mxu0 0.0
    %4887 = vmatpush2.msra.mxu0 0.0
    %4888 = vmatprep.subr.mxu0 0.0
    %4889 = vmatpush2.msra.mxu0 0.0
    %4890 = vmatprep.subr.mxu0 0.0
    %4891 = vmatpush2.msra.mxu0 0.0
    %4892 = vmatprep.mubr.f32.mxu0 0.0
    %4893 = vmatmul.mubr.f32.gmra.mxu0 %v3198
    %v4894 = vpop.f32.mrf.mxu0
    %v4895 = vadd.f32 0.0, %v4894
    %v4896 = vpop.f32.mrf.mxu0
    %4897 = vmatprep.mubr.f32.mxu0 0.0
    %4898 = vmatmul.mubr.f32.gmra.mxu0 %v3201
    %v4899 = vpop.f32.mrf.mxu0
    %v4900 = vadd.f32 0.0, %v4899
    %v4901 = vpop.f32.mrf.mxu0
    %4902 = vdwg.mxu0
    %v4903 = vadd.f32 %v4741, %v4895
    %v4904 = vadd.f32 %v4742, %v4900
    %v4905 = vmul.f32 %v3532, %v4825
    %v4906 = vmul.f32 %v3533, %v4825
    %4907 = vmatprep.subr.mxu0 0.0
    %4908 = vmatpush1.msra.mxu0 0.0
    %4909 = vmatprep.subr.mxu0 0.0
    %4910 = vmatpush1.msra.mxu0 0.0
    %4911 = vmatprep.subr.mxu0 0.0
    %4912 = vmatpush1.msra.mxu0 0.0
    %4913 = vmatprep.subr.mxu0 0.0
    %4914 = vmatpush1.msra.mxu0 0.0
    %4915 = vmatprep.subr.mxu0 0.0
    %4916 = vmatpush1.msra.mxu0 0.0
    %4917 = vmatprep.subr.mxu0 0.0
    %4918 = vmatpush1.msra.mxu0 0.0
    %4919 = vmatprep.subr.mxu0 0.0
    %4920 = vmatpush1.msra.mxu0 0.0
    %4921 = vmatprep.subr.mxu0 0.0
    %4922 = vmatpush1.msra.mxu0 0.0
    %4923 = vmatprep.subr.mxu0 0.0
    %4924 = vmatpush1.msra.mxu0 0.0
    %4925 = vmatprep.subr.mxu0 0.0
    %4926 = vmatpush1.msra.mxu0 0.0
    %4927 = vmatprep.subr.mxu0 0.0
    %4928 = vmatpush1.msra.mxu0 0.0
    %4929 = vmatprep.subr.mxu0 0.0
    %4930 = vmatpush1.msra.mxu0 0.0
    %4931 = vmatprep.subr.mxu0 0.0
    %4932 = vmatpush1.msra.mxu0 0.0
    %4933 = vmatprep.subr.mxu0 0.0
    %4934 = vmatpush1.msra.mxu0 0.0
    %4935 = vmatprep.subr.mxu0 0.0
    %4936 = vmatpush1.msra.mxu0 %v4906
    %4937 = vmatprep.subr.mxu0 0.0
    %4938 = vmatpush1.msra.mxu0 %v4905
    %4939 = vmatprep.subr.mxu0 0.0
    %4940 = vmatpush2.msra.mxu0 0.0
    %4941 = vmatprep.subr.mxu0 0.0
    %4942 = vmatpush2.msra.mxu0 0.0
    %4943 = vmatprep.subr.mxu0 0.0
    %4944 = vmatpush2.msra.mxu0 0.0
    %4945 = vmatprep.subr.mxu0 0.0
    %4946 = vmatpush2.msra.mxu0 0.0
    %4947 = vmatprep.subr.mxu0 0.0
    %4948 = vmatpush2.msra.mxu0 0.0
    %4949 = vmatprep.subr.mxu0 0.0
    %4950 = vmatpush2.msra.mxu0 0.0
    %4951 = vmatprep.subr.mxu0 0.0
    %4952 = vmatpush2.msra.mxu0 0.0
    %4953 = vmatprep.subr.mxu0 0.0
    %4954 = vmatpush2.msra.mxu0 0.0
    %4955 = vmatprep.subr.mxu0 0.0
    %4956 = vmatpush2.msra.mxu0 0.0
    %4957 = vmatprep.subr.mxu0 0.0
    %4958 = vmatpush2.msra.mxu0 0.0
    %4959 = vmatprep.subr.mxu0 0.0
    %4960 = vmatpush2.msra.mxu0 0.0
    %4961 = vmatprep.subr.mxu0 0.0
    %4962 = vmatpush2.msra.mxu0 0.0
    %4963 = vmatprep.subr.mxu0 0.0
    %4964 = vmatpush2.msra.mxu0 0.0
    %4965 = vmatprep.subr.mxu0 0.0
    %4966 = vmatpush2.msra.mxu0 0.0
    %4967 = vmatprep.subr.mxu0 0.0
    %4968 = vmatpush2.msra.mxu0 0.0
    %4969 = vmatprep.subr.mxu0 0.0
    %4970 = vmatpush2.msra.mxu0 0.0
    %4971 = vmatprep.mubr.f32.mxu0 0.0
    %4972 = vmatmul.mubr.f32.gmra.mxu0 %v3198
    %v4973 = vpop.f32.mrf.mxu0
    %v4974 = vadd.f32 0.0, %v4973
    %v4975 = vpop.f32.mrf.mxu0
    %4976 = vmatprep.mubr.f32.mxu0 0.0
    %4977 = vmatmul.mubr.f32.gmra.mxu0 %v3201
    %v4978 = vpop.f32.mrf.mxu0
    %v4979 = vadd.f32 0.0, %v4978
    %v4980 = vpop.f32.mrf.mxu0
    %4981 = vdwg.mxu0
    %v4982 = vadd.f32 %v4820, %v4974
    %v4983 = vadd.f32 %v4821, %v4979
    %v4984 = vld [vmem:[#allocation2 + $0x328] sm:$0xff]
    %v4985 = vld [vmem:[#allocation2 + $0x330] sm:$0xff]
    %v4986 = vld [vmem:[#allocation2 + $0x338] sm:$0xff]
    %v4987 = vld [vmem:[#allocation2 + $0x340] sm:$0xff]
    %v4988 = vld [vmem:[#allocation2 + $0x348] sm:$0xff]
    %v4989 = vld [vmem:[#allocation2 + $0x350] sm:$0xff]
    %v4990 = vld [vmem:[#allocation2 + $0x358] sm:$0xff]
    %v4991 = vld [vmem:[#allocation2 + $0x360] sm:$0xff]
    %v4992 = vld [vmem:[#allocation2 + $0x368] sm:$0xff]
    %v4993 = vld [vmem:[#allocation2 + $0x370] sm:$0xff]
    %v4994 = vld [vmem:[#allocation2 + $0x378] sm:$0xff]
    %v4995 = vld [vmem:[#allocation2 + $0x380] sm:$0xff]
    %v4996 = vld [vmem:[#allocation2 + $0x388] sm:$0xff]
    %v4997 = vld [vmem:[#allocation2 + $0x390] sm:$0xff]
    %v4998 = vld [vmem:[#allocation2 + $0x398] sm:$0xff]
    %v4999 = vld [vmem:[#allocation2 + $0x3a0] sm:$0xff]
    %v5000 = vld [vmem:[#allocation2 + $0x3a8] sm:$0x1]
    %v5001 = vlaneseq
    %v5002 = vshrl.u32 %v5001, 7
    %v5003 = vsub.s32 0, %v5002
    %v5004 = vrot.slane %v5000, %v5003
    %5005 = vmatprep.subr.mxu0 0.0
    %5006 = vmatpush1.msra.mxu0 %v4999
    %5007 = vmatprep.subr.mxu0 0.0
    %5008 = vmatpush1.msra.mxu0 %v4998
    %5009 = vmatprep.subr.mxu0 0.0
    %5010 = vmatpush1.msra.mxu0 %v4997
    %5011 = vmatprep.subr.mxu0 0.0
    %5012 = vmatpush1.msra.mxu0 %v4996
    %5013 = vmatprep.subr.mxu0 0.0
    %5014 = vmatpush1.msra.mxu0 %v4995
    %5015 = vmatprep.subr.mxu0 0.0
    %5016 = vmatpush1.msra.mxu0 %v4994
    %5017 = vmatprep.subr.mxu0 0.0
    %5018 = vmatpush1.msra.mxu0 %v4993
    %5019 = vmatprep.subr.mxu0 0.0
    %5020 = vmatpush1.msra.mxu0 %v4992
    %5021 = vmatprep.subr.mxu0 0.0
    %5022 = vmatpush1.msra.mxu0 %v4991
    %5023 = vmatprep.subr.mxu0 0.0
    %5024 = vmatpush1.msra.mxu0 %v4990
    %5025 = vmatprep.subr.mxu0 0.0
    %5026 = vmatpush1.msra.mxu0 %v4989
    %5027 = vmatprep.subr.mxu0 0.0
    %5028 = vmatpush1.msra.mxu0 %v4988
    %5029 = vmatprep.subr.mxu0 0.0
    %5030 = vmatpush1.msra.mxu0 %v4987
    %5031 = vmatprep.subr.mxu0 0.0
    %5032 = vmatpush1.msra.mxu0 %v4986
    %5033 = vmatprep.subr.mxu0 0.0
    %5034 = vmatpush1.msra.mxu0 %v4985
    %5035 = vmatprep.subr.mxu0 0.0
    %5036 = vmatpush1.msra.mxu0 %v4984
    %5037 = vmatprep.subr.mxu0 0.0
    %5038 = vmatpush2.msra.mxu0 0.0
    %5039 = vmatprep.subr.mxu0 0.0
    %5040 = vmatpush2.msra.mxu0 0.0
    %5041 = vmatprep.subr.mxu0 0.0
    %5042 = vmatpush2.msra.mxu0 0.0
    %5043 = vmatprep.subr.mxu0 0.0
    %5044 = vmatpush2.msra.mxu0 0.0
    %5045 = vmatprep.subr.mxu0 0.0
    %5046 = vmatpush2.msra.mxu0 0.0
    %5047 = vmatprep.subr.mxu0 0.0
    %5048 = vmatpush2.msra.mxu0 0.0
    %5049 = vmatprep.subr.mxu0 0.0
    %5050 = vmatpush2.msra.mxu0 0.0
    %5051 = vmatprep.subr.mxu0 0.0
    %5052 = vmatpush2.msra.mxu0 0.0
    %5053 = vmatprep.subr.mxu0 0.0
    %5054 = vmatpush2.msra.mxu0 0.0
    %5055 = vmatprep.subr.mxu0 0.0
    %5056 = vmatpush2.msra.mxu0 0.0
    %5057 = vmatprep.subr.mxu0 0.0
    %5058 = vmatpush2.msra.mxu0 0.0
    %5059 = vmatprep.subr.mxu0 0.0
    %5060 = vmatpush2.msra.mxu0 0.0
    %5061 = vmatprep.subr.mxu0 0.0
    %5062 = vmatpush2.msra.mxu0 0.0
    %5063 = vmatprep.subr.mxu0 0.0
    %5064 = vmatpush2.msra.mxu0 0.0
    %5065 = vmatprep.subr.mxu0 0.0
    %5066 = vmatpush2.msra.mxu0 0.0
    %5067 = vmatprep.subr.mxu0 0.0
    %5068 = vmatpush2.msra.mxu0 0.0
    %5069 = vmatprep.mubr.f32.mxu0 0.0
    %5070 = vmatmul.mubr.f32.gmra.mxu0 %v4903
    %v5071 = vpop.f32.mrf.mxu0
    %v5072 = vadd.f32 %v5004, %v5071
    %v5073 = vpop.f32.mrf.mxu0
    %5074 = vmatprep.mubr.f32.mxu0 0.0
    %5075 = vmatmul.mubr.f32.gmra.mxu0 %v4904
    %v5076 = vpop.f32.mrf.mxu0
    %v5077 = vadd.f32 %v5004, %v5076
    %v5078 = vpop.f32.mrf.mxu0
    %5079 = vdwg.mxu0
    %v5080 = vmax.f32 %v5072, 0.0
    %v5081 = vmax.f32 %v5077, 0.0
    %5082 = vmatprep.subr.mxu0 0.0
    %5083 = vmatpush1.msra.mxu0 %v4999
    %5084 = vmatprep.subr.mxu0 0.0
    %5085 = vmatpush1.msra.mxu0 %v4998
    %5086 = vmatprep.subr.mxu0 0.0
    %5087 = vmatpush1.msra.mxu0 %v4997
    %5088 = vmatprep.subr.mxu0 0.0
    %5089 = vmatpush1.msra.mxu0 %v4996
    %5090 = vmatprep.subr.mxu0 0.0
    %5091 = vmatpush1.msra.mxu0 %v4995
    %5092 = vmatprep.subr.mxu0 0.0
    %5093 = vmatpush1.msra.mxu0 %v4994
    %5094 = vmatprep.subr.mxu0 0.0
    %5095 = vmatpush1.msra.mxu0 %v4993
    %5096 = vmatprep.subr.mxu0 0.0
    %5097 = vmatpush1.msra.mxu0 %v4992
    %5098 = vmatprep.subr.mxu0 0.0
    %5099 = vmatpush1.msra.mxu0 %v4991
    %5100 = vmatprep.subr.mxu0 0.0
    %5101 = vmatpush1.msra.mxu0 %v4990
    %5102 = vmatprep.subr.mxu0 0.0
    %5103 = vmatpush1.msra.mxu0 %v4989
    %5104 = vmatprep.subr.mxu0 0.0
    %5105 = vmatpush1.msra.mxu0 %v4988
    %5106 = vmatprep.subr.mxu0 0.0
    %5107 = vmatpush1.msra.mxu0 %v4987
    %5108 = vmatprep.subr.mxu0 0.0
    %5109 = vmatpush1.msra.mxu0 %v4986
    %5110 = vmatprep.subr.mxu0 0.0
    %5111 = vmatpush1.msra.mxu0 %v4985
    %5112 = vmatprep.subr.mxu0 0.0
    %5113 = vmatpush1.msra.mxu0 %v4984
    %5114 = vmatprep.subr.mxu0 0.0
    %5115 = vmatpush2.msra.mxu0 0.0
    %5116 = vmatprep.subr.mxu0 0.0
    %5117 = vmatpush2.msra.mxu0 0.0
    %5118 = vmatprep.subr.mxu0 0.0
    %5119 = vmatpush2.msra.mxu0 0.0
    %5120 = vmatprep.subr.mxu0 0.0
    %5121 = vmatpush2.msra.mxu0 0.0
    %5122 = vmatprep.subr.mxu0 0.0
    %5123 = vmatpush2.msra.mxu0 0.0
    %5124 = vmatprep.subr.mxu0 0.0
    %5125 = vmatpush2.msra.mxu0 0.0
    %5126 = vmatprep.subr.mxu0 0.0
    %5127 = vmatpush2.msra.mxu0 0.0
    %5128 = vmatprep.subr.mxu0 0.0
    %5129 = vmatpush2.msra.mxu0 0.0
    %5130 = vmatprep.subr.mxu0 0.0
    %5131 = vmatpush2.msra.mxu0 0.0
    %5132 = vmatprep.subr.mxu0 0.0
    %5133 = vmatpush2.msra.mxu0 0.0
    %5134 = vmatprep.subr.mxu0 0.0
    %5135 = vmatpush2.msra.mxu0 0.0
    %5136 = vmatprep.subr.mxu0 0.0
    %5137 = vmatpush2.msra.mxu0 0.0
    %5138 = vmatprep.subr.mxu0 0.0
    %5139 = vmatpush2.msra.mxu0 0.0
    %5140 = vmatprep.subr.mxu0 0.0
    %5141 = vmatpush2.msra.mxu0 0.0
    %5142 = vmatprep.subr.mxu0 0.0
    %5143 = vmatpush2.msra.mxu0 0.0
    %5144 = vmatprep.subr.mxu0 0.0
    %5145 = vmatpush2.msra.mxu0 0.0
    %5146 = vmatprep.mubr.f32.mxu0 0.0
    %5147 = vmatmul.mubr.f32.gmra.mxu0 %v4982
    %v5148 = vpop.f32.mrf.mxu0
    %v5149 = vadd.f32 %v5004, %v5148
    %v5150 = vpop.f32.mrf.mxu0
    %5151 = vmatprep.mubr.f32.mxu0 0.0
    %5152 = vmatmul.mubr.f32.gmra.mxu0 %v4983
    %v5153 = vpop.f32.mrf.mxu0
    %v5154 = vadd.f32 %v5004, %v5153
    %v5155 = vpop.f32.mrf.mxu0
    %5156 = vdwg.mxu0
    %v5157 = vmax.f32 %v5149, 0.0
    %v5158 = vmax.f32 %v5154, 0.0
    %5159 = vmatprep.subr.mxu0 0.0
    %5160 = vmatpush1.msra.mxu0 0.0
    %5161 = vmatprep.subr.mxu0 0.0
    %5162 = vmatpush1.msra.mxu0 0.0
    %5163 = vmatprep.subr.mxu0 0.0
    %5164 = vmatpush1.msra.mxu0 0.0
    %5165 = vmatprep.subr.mxu0 0.0
    %5166 = vmatpush1.msra.mxu0 0.0
    %5167 = vmatprep.subr.mxu0 0.0
    %5168 = vmatpush1.msra.mxu0 0.0
    %5169 = vmatprep.subr.mxu0 0.0
    %5170 = vmatpush1.msra.mxu0 0.0
    %5171 = vmatprep.subr.mxu0 0.0
    %5172 = vmatpush1.msra.mxu0 0.0
    %5173 = vmatprep.subr.mxu0 0.0
    %5174 = vmatpush1.msra.mxu0 0.0
    %5175 = vmatprep.subr.mxu0 0.0
    %5176 = vmatpush1.msra.mxu0 0.0
    %5177 = vmatprep.subr.mxu0 0.0
    %5178 = vmatpush1.msra.mxu0 0.0
    %5179 = vmatprep.subr.mxu0 0.0
    %5180 = vmatpush1.msra.mxu0 0.0
    %5181 = vmatprep.subr.mxu0 0.0
    %5182 = vmatpush1.msra.mxu0 0.0
    %5183 = vmatprep.subr.mxu0 0.0
    %5184 = vmatpush1.msra.mxu0 0.0
    %5185 = vmatprep.subr.mxu0 0.0
    %5186 = vmatpush1.msra.mxu0 0.0
    %5187 = vmatprep.subr.mxu0 0.0
    %5188 = vmatpush1.msra.mxu0 %v5081
    %5189 = vmatprep.subr.mxu0 0.0
    %5190 = vmatpush1.msra.mxu0 %v5080
    %5191 = vmatprep.subr.mxu0 0.0
    %5192 = vmatpush2.msra.mxu0 0.0
    %5193 = vmatprep.subr.mxu0 0.0
    %5194 = vmatpush2.msra.mxu0 0.0
    %5195 = vmatprep.subr.mxu0 0.0
    %5196 = vmatpush2.msra.mxu0 0.0
    %5197 = vmatprep.subr.mxu0 0.0
    %5198 = vmatpush2.msra.mxu0 0.0
    %5199 = vmatprep.subr.mxu0 0.0
    %5200 = vmatpush2.msra.mxu0 0.0
    %5201 = vmatprep.subr.mxu0 0.0
    %5202 = vmatpush2.msra.mxu0 0.0
    %5203 = vmatprep.subr.mxu0 0.0
    %5204 = vmatpush2.msra.mxu0 0.0
    %5205 = vmatprep.subr.mxu0 0.0
    %5206 = vmatpush2.msra.mxu0 0.0
    %5207 = vmatprep.subr.mxu0 0.0
    %5208 = vmatpush2.msra.mxu0 0.0
    %5209 = vmatprep.subr.mxu0 0.0
    %5210 = vmatpush2.msra.mxu0 0.0
    %5211 = vmatprep.subr.mxu0 0.0
    %5212 = vmatpush2.msra.mxu0 0.0
    %5213 = vmatprep.subr.mxu0 0.0
    %5214 = vmatpush2.msra.mxu0 0.0
    %5215 = vmatprep.subr.mxu0 0.0
    %5216 = vmatpush2.msra.mxu0 0.0
    %5217 = vmatprep.subr.mxu0 0.0
    %5218 = vmatpush2.msra.mxu0 0.0
    %5219 = vmatprep.subr.mxu0 0.0
    %5220 = vmatpush2.msra.mxu0 0.0
    %5221 = vmatprep.subr.mxu0 0.0
    %5222 = vmatpush2.msra.mxu0 0.0
    %5223 = vmatprep.mubr.f32.mxu0 0.0
    %5224 = vmatmul.mubr.f32.gmra.mxu0 %v147
    %v5225 = vpop.f32.mrf.mxu0
    %v5226 = vadd.f32 0.0, %v5225
    %v5227 = vpop.f32.mrf.mxu0
    %5228 = vdwg.mxu0
    %v5229 = vmul.f32 %v5226, %v661
    %5230 = vmatprep.subr.mxu0 0.0
    %5231 = vmatpush1.msra.mxu0 0.0
    %5232 = vmatprep.subr.mxu0 0.0
    %5233 = vmatpush1.msra.mxu0 0.0
    %5234 = vmatprep.subr.mxu0 0.0
    %5235 = vmatpush1.msra.mxu0 0.0
    %5236 = vmatprep.subr.mxu0 0.0
    %5237 = vmatpush1.msra.mxu0 0.0
    %5238 = vmatprep.subr.mxu0 0.0
    %5239 = vmatpush1.msra.mxu0 0.0
    %5240 = vmatprep.subr.mxu0 0.0
    %5241 = vmatpush1.msra.mxu0 0.0
    %5242 = vmatprep.subr.mxu0 0.0
    %5243 = vmatpush1.msra.mxu0 0.0
    %5244 = vmatprep.subr.mxu0 0.0
    %5245 = vmatpush1.msra.mxu0 0.0
    %5246 = vmatprep.subr.mxu0 0.0
    %5247 = vmatpush1.msra.mxu0 0.0
    %5248 = vmatprep.subr.mxu0 0.0
    %5249 = vmatpush1.msra.mxu0 0.0
    %5250 = vmatprep.subr.mxu0 0.0
    %5251 = vmatpush1.msra.mxu0 0.0
    %5252 = vmatprep.subr.mxu0 0.0
    %5253 = vmatpush1.msra.mxu0 0.0
    %5254 = vmatprep.subr.mxu0 0.0
    %5255 = vmatpush1.msra.mxu0 0.0
    %5256 = vmatprep.subr.mxu0 0.0
    %5257 = vmatpush1.msra.mxu0 0.0
    %5258 = vmatprep.subr.mxu0 0.0
    %5259 = vmatpush1.msra.mxu0 %v5158
    %5260 = vmatprep.subr.mxu0 0.0
    %5261 = vmatpush1.msra.mxu0 %v5157
    %5262 = vmatprep.subr.mxu0 0.0
    %5263 = vmatpush2.msra.mxu0 0.0
    %5264 = vmatprep.subr.mxu0 0.0
    %5265 = vmatpush2.msra.mxu0 0.0
    %5266 = vmatprep.subr.mxu0 0.0
    %5267 = vmatpush2.msra.mxu0 0.0
    %5268 = vmatprep.subr.mxu0 0.0
    %5269 = vmatpush2.msra.mxu0 0.0
    %5270 = vmatprep.subr.mxu0 0.0
    %5271 = vmatpush2.msra.mxu0 0.0
    %5272 = vmatprep.subr.mxu0 0.0
    %5273 = vmatpush2.msra.mxu0 0.0
    %5274 = vmatprep.subr.mxu0 0.0
    %5275 = vmatpush2.msra.mxu0 0.0
    %5276 = vmatprep.subr.mxu0 0.0
    %5277 = vmatpush2.msra.mxu0 0.0
    %5278 = vmatprep.subr.mxu0 0.0
    %5279 = vmatpush2.msra.mxu0 0.0
    %5280 = vmatprep.subr.mxu0 0.0
    %5281 = vmatpush2.msra.mxu0 0.0
    %5282 = vmatprep.subr.mxu0 0.0
    %5283 = vmatpush2.msra.mxu0 0.0
    %5284 = vmatprep.subr.mxu0 0.0
    %5285 = vmatpush2.msra.mxu0 0.0
    %5286 = vmatprep.subr.mxu0 0.0
    %5287 = vmatpush2.msra.mxu0 0.0
    %5288 = vmatprep.subr.mxu0 0.0
    %5289 = vmatpush2.msra.mxu0 0.0
    %5290 = vmatprep.subr.mxu0 0.0
    %5291 = vmatpush2.msra.mxu0 0.0
    %5292 = vmatprep.subr.mxu0 0.0
    %5293 = vmatpush2.msra.mxu0 0.0
    %5294 = vmatprep.mubr.f32.mxu0 0.0
    %5295 = vmatmul.mubr.f32.gmra.mxu0 %v74
    %v5296 = vpop.f32.mrf.mxu0
    %v5297 = vadd.f32 0.0, %v5296
    %v5298 = vpop.f32.mrf.mxu0
    %5299 = vdwg.mxu0
    %v5300 = vmul.f32 %v5297, %v661
    %v5301 = vld [vmem:[#allocation2 + $0x188] sm:$0xff]
    %v5302 = vld [vmem:[#allocation2 + $0x190] sm:$0xff]
    %v5303 = vld [vmem:[#allocation2 + $0x198] sm:$0xff]
    %v5304 = vld [vmem:[#allocation2 + $0x1a0] sm:$0xff]
    %v5305 = vld [vmem:[#allocation2 + $0x1a8] sm:$0xff]
    %v5306 = vld [vmem:[#allocation2 + $0x1b0] sm:$0xff]
    %v5307 = vld [vmem:[#allocation2 + $0x1b8] sm:$0xff]
    %v5308 = vld [vmem:[#allocation2 + $0x1c0] sm:$0xff]
    %v5309 = vld [vmem:[#allocation2 + $0x1c8] sm:$0xff]
    %v5310 = vld [vmem:[#allocation2 + $0x1d0] sm:$0xff]
    %v5311 = vld [vmem:[#allocation2 + $0x1d8] sm:$0xff]
    %v5312 = vld [vmem:[#allocation2 + $0x1e0] sm:$0xff]
    %v5313 = vld [vmem:[#allocation2 + $0x1e8] sm:$0xff]
    %v5314 = vld [vmem:[#allocation2 + $0x1f0] sm:$0xff]
    %v5315 = vld [vmem:[#allocation2 + $0x1f8] sm:$0xff]
    %v5316 = vld [vmem:[#allocation2 + $0x200] sm:$0xff]
    %5317 = vmatprep.subr.mxu0 0.0
    %5318 = vmatpush1.msra.mxu0 %v5316
    %5319 = vmatprep.subr.mxu0 0.0
    %5320 = vmatpush1.msra.mxu0 %v5315
    %5321 = vmatprep.subr.mxu0 0.0
    %5322 = vmatpush1.msra.mxu0 %v5314
    %5323 = vmatprep.subr.mxu0 0.0
    %5324 = vmatpush1.msra.mxu0 %v5313
    %5325 = vmatprep.subr.mxu0 0.0
    %5326 = vmatpush1.msra.mxu0 %v5312
    %5327 = vmatprep.subr.mxu0 0.0
    %5328 = vmatpush1.msra.mxu0 %v5311
    %5329 = vmatprep.subr.mxu0 0.0
    %5330 = vmatpush1.msra.mxu0 %v5310
    %5331 = vmatprep.subr.mxu0 0.0
    %5332 = vmatpush1.msra.mxu0 %v5309
    %5333 = vmatprep.subr.mxu0 0.0
    %5334 = vmatpush1.msra.mxu0 %v5308
    %5335 = vmatprep.subr.mxu0 0.0
    %5336 = vmatpush1.msra.mxu0 %v5307
    %5337 = vmatprep.subr.mxu0 0.0
    %5338 = vmatpush1.msra.mxu0 %v5306
    %5339 = vmatprep.subr.mxu0 0.0
    %5340 = vmatpush1.msra.mxu0 %v5305
    %5341 = vmatprep.subr.mxu0 0.0
    %5342 = vmatpush1.msra.mxu0 %v5304
    %5343 = vmatprep.subr.mxu0 0.0
    %5344 = vmatpush1.msra.mxu0 %v5303
    %5345 = vmatprep.subr.mxu0 0.0
    %5346 = vmatpush1.msra.mxu0 %v5302
    %5347 = vmatprep.subr.mxu0 0.0
    %5348 = vmatpush1.msra.mxu0 %v5301
    %5349 = vmatprep.subr.mxu0 0.0
    %5350 = vmatpush2.msra.mxu0 0.0
    %5351 = vmatprep.subr.mxu0 0.0
    %5352 = vmatpush2.msra.mxu0 0.0
    %5353 = vmatprep.subr.mxu0 0.0
    %5354 = vmatpush2.msra.mxu0 0.0
    %5355 = vmatprep.subr.mxu0 0.0
    %5356 = vmatpush2.msra.mxu0 0.0
    %5357 = vmatprep.subr.mxu0 0.0
    %5358 = vmatpush2.msra.mxu0 0.0
    %5359 = vmatprep.subr.mxu0 0.0
    %5360 = vmatpush2.msra.mxu0 0.0
    %5361 = vmatprep.subr.mxu0 0.0
    %5362 = vmatpush2.msra.mxu0 0.0
    %5363 = vmatprep.subr.mxu0 0.0
    %5364 = vmatpush2.msra.mxu0 0.0
    %5365 = vmatprep.subr.mxu0 0.0
    %5366 = vmatpush2.msra.mxu0 0.0
    %5367 = vmatprep.subr.mxu0 0.0
    %5368 = vmatpush2.msra.mxu0 0.0
    %5369 = vmatprep.subr.mxu0 0.0
    %5370 = vmatpush2.msra.mxu0 0.0
    %5371 = vmatprep.subr.mxu0 0.0
    %5372 = vmatpush2.msra.mxu0 0.0
    %5373 = vmatprep.subr.mxu0 0.0
    %5374 = vmatpush2.msra.mxu0 0.0
    %5375 = vmatprep.subr.mxu0 0.0
    %5376 = vmatpush2.msra.mxu0 0.0
    %5377 = vmatprep.subr.mxu0 0.0
    %5378 = vmatpush2.msra.mxu0 0.0
    %5379 = vmatprep.subr.mxu0 0.0
    %5380 = vmatpush2.msra.mxu0 0.0
    %5381 = vmatprep.mubr.f32.mxu0 0.0
    %5382 = vmatmul.mubr.f32.gmra.mxu0 %v5229
    %v5383 = vpop.f32.mrf.mxu0
    %v5384 = vadd.f32 0.0, %v5383
    %v5385 = vpop.f32.mrf.mxu0
    %5386 = vdwg.mxu0
    %v5387 = vadd.f32 %v1828, %v5384
    %v5388 = vld [vmem:[#allocation2 + $0x108] sm:$0xff]
    %v5389 = vld [vmem:[#allocation2 + $0x110] sm:$0xff]
    %v5390 = vld [vmem:[#allocation2 + $0x118] sm:$0xff]
    %v5391 = vld [vmem:[#allocation2 + $0x120] sm:$0xff]
    %v5392 = vld [vmem:[#allocation2 + $0x128] sm:$0xff]
    %v5393 = vld [vmem:[#allocation2 + $0x130] sm:$0xff]
    %v5394 = vld [vmem:[#allocation2 + $0x138] sm:$0xff]
    %v5395 = vld [vmem:[#allocation2 + $0x140] sm:$0xff]
    %v5396 = vld [vmem:[#allocation2 + $0x148] sm:$0xff]
    %v5397 = vld [vmem:[#allocation2 + $0x150] sm:$0xff]
    %v5398 = vld [vmem:[#allocation2 + $0x158] sm:$0xff]
    %v5399 = vld [vmem:[#allocation2 + $0x160] sm:$0xff]
    %v5400 = vld [vmem:[#allocation2 + $0x168] sm:$0xff]
    %v5401 = vld [vmem:[#allocation2 + $0x170] sm:$0xff]
    %v5402 = vld [vmem:[#allocation2 + $0x178] sm:$0xff]
    %v5403 = vld [vmem:[#allocation2 + $0x180] sm:$0xff]
    %5404 = vmatprep.subr.mxu0 0.0
    %5405 = vmatpush1.msra.mxu0 %v5403
    %5406 = vmatprep.subr.mxu0 0.0
    %5407 = vmatpush1.msra.mxu0 %v5402
    %5408 = vmatprep.subr.mxu0 0.0
    %5409 = vmatpush1.msra.mxu0 %v5401
    %5410 = vmatprep.subr.mxu0 0.0
    %5411 = vmatpush1.msra.mxu0 %v5400
    %5412 = vmatprep.subr.mxu0 0.0
    %5413 = vmatpush1.msra.mxu0 %v5399
    %5414 = vmatprep.subr.mxu0 0.0
    %5415 = vmatpush1.msra.mxu0 %v5398
    %5416 = vmatprep.subr.mxu0 0.0
    %5417 = vmatpush1.msra.mxu0 %v5397
    %5418 = vmatprep.subr.mxu0 0.0
    %5419 = vmatpush1.msra.mxu0 %v5396
    %5420 = vmatprep.subr.mxu0 0.0
    %5421 = vmatpush1.msra.mxu0 %v5395
    %5422 = vmatprep.subr.mxu0 0.0
    %5423 = vmatpush1.msra.mxu0 %v5394
    %5424 = vmatprep.subr.mxu0 0.0
    %5425 = vmatpush1.msra.mxu0 %v5393
    %5426 = vmatprep.subr.mxu0 0.0
    %5427 = vmatpush1.msra.mxu0 %v5392
    %5428 = vmatprep.subr.mxu0 0.0
    %5429 = vmatpush1.msra.mxu0 %v5391
    %5430 = vmatprep.subr.mxu0 0.0
    %5431 = vmatpush1.msra.mxu0 %v5390
    %5432 = vmatprep.subr.mxu0 0.0
    %5433 = vmatpush1.msra.mxu0 %v5389
    %5434 = vmatprep.subr.mxu0 0.0
    %5435 = vmatpush1.msra.mxu0 %v5388
    %5436 = vmatprep.subr.mxu0 0.0
    %5437 = vmatpush2.msra.mxu0 0.0
    %5438 = vmatprep.subr.mxu0 0.0
    %5439 = vmatpush2.msra.mxu0 0.0
    %5440 = vmatprep.subr.mxu0 0.0
    %5441 = vmatpush2.msra.mxu0 0.0
    %5442 = vmatprep.subr.mxu0 0.0
    %5443 = vmatpush2.msra.mxu0 0.0
    %5444 = vmatprep.subr.mxu0 0.0
    %5445 = vmatpush2.msra.mxu0 0.0
    %5446 = vmatprep.subr.mxu0 0.0
    %5447 = vmatpush2.msra.mxu0 0.0
    %5448 = vmatprep.subr.mxu0 0.0
    %5449 = vmatpush2.msra.mxu0 0.0
    %5450 = vmatprep.subr.mxu0 0.0
    %5451 = vmatpush2.msra.mxu0 0.0
    %5452 = vmatprep.subr.mxu0 0.0
    %5453 = vmatpush2.msra.mxu0 0.0
    %5454 = vmatprep.subr.mxu0 0.0
    %5455 = vmatpush2.msra.mxu0 0.0
    %5456 = vmatprep.subr.mxu0 0.0
    %5457 = vmatpush2.msra.mxu0 0.0
    %5458 = vmatprep.subr.mxu0 0.0
    %5459 = vmatpush2.msra.mxu0 0.0
    %5460 = vmatprep.subr.mxu0 0.0
    %5461 = vmatpush2.msra.mxu0 0.0
    %5462 = vmatprep.subr.mxu0 0.0
    %5463 = vmatpush2.msra.mxu0 0.0
    %5464 = vmatprep.subr.mxu0 0.0
    %5465 = vmatpush2.msra.mxu0 0.0
    %5466 = vmatprep.subr.mxu0 0.0
    %5467 = vmatpush2.msra.mxu0 0.0
    %5468 = vmatprep.mubr.f32.mxu0 0.0
    %5469 = vmatmul.mubr.f32.gmra.mxu0 %v5300
    %v5470 = vpop.f32.mrf.mxu0
    %v5471 = vadd.f32 0.0, %v5470
    %v5472 = vpop.f32.mrf.mxu0
    %5473 = vdwg.mxu0
    %v5474 = vadd.f32 %v5387, %v5471
    %5476 = vset.pattern.permute.xlu0 0
    %5477 = vperm.xlu0 %5476, %v660
    %v5478 = vpop.permute.xlu0 %5477
    %v5480 = vmul.f32 %v5478, %v5474
    %v5481 = vadd.f32 %v5480, 0.0
    %s5482 = scalar_lea.vmem %s0, 144
    %v5483 = vld [vmem:[%s5482] sm:$0xff]
    %v5484 = vld [vmem:[%s5482 + $0x8] sm:$0xff]
    %s5485 = scalar_lea.vmem %s0, 160
    %v5486 = vld [vmem:[%s5485] sm:$0xff]
    %v5487 = vld [vmem:[%s5485 + $0x8] sm:$0xff]
    %v5489 = vsel %vm72, %v5486, 0
    %v5492 = vsel %vm72, %v5487, 0
    %5494 = vmatprep.subr.mxu0 0.0
    %5495 = vmatpush1.msra.mxu0 0.0
    %5496 = vmatprep.subr.mxu0 0.0
    %5497 = vmatpush1.msra.mxu0 0.0
    %5498 = vmatprep.subr.mxu0 0.0
    %5499 = vmatpush1.msra.mxu0 0.0
    %5500 = vmatprep.subr.mxu0 0.0
    %5501 = vmatpush1.msra.mxu0 0.0
    %5502 = vmatprep.subr.mxu0 0.0
    %5503 = vmatpush1.msra.mxu0 0.0
    %5504 = vmatprep.subr.mxu0 0.0
    %5505 = vmatpush1.msra.mxu0 0.0
    %5506 = vmatprep.subr.mxu0 0.0
    %5507 = vmatpush1.msra.mxu0 0.0
    %5508 = vmatprep.subr.mxu0 0.0
    %5509 = vmatpush1.msra.mxu0 0.0
    %5510 = vmatprep.subr.mxu0 0.0
    %5511 = vmatpush1.msra.mxu0 0.0
    %5512 = vmatprep.subr.mxu0 0.0
    %5513 = vmatpush1.msra.mxu0 0.0
    %5514 = vmatprep.subr.mxu0 0.0
    %5515 = vmatpush1.msra.mxu0 0.0
    %5516 = vmatprep.subr.mxu0 0.0
    %5517 = vmatpush1.msra.mxu0 0.0
    %5518 = vmatprep.subr.mxu0 0.0
    %5519 = vmatpush1.msra.mxu0 0.0
    %5520 = vmatprep.subr.mxu0 0.0
    %5521 = vmatpush1.msra.mxu0 0.0
    %5522 = vmatprep.subr.mxu0 0.0
    %5523 = vmatpush1.msra.mxu0 %v1847
    %5524 = vmatprep.subr.mxu0 0.0
    %5525 = vmatpush1.msra.mxu0 %v1846
    %5526 = vmatprep.subr.mxu0 0.0
    %5527 = vmatpush2.msra.mxu0 0.0
    %5528 = vmatprep.subr.mxu0 0.0
    %5529 = vmatpush2.msra.mxu0 0.0
    %5530 = vmatprep.subr.mxu0 0.0
    %5531 = vmatpush2.msra.mxu0 0.0
    %5532 = vmatprep.subr.mxu0 0.0
    %5533 = vmatpush2.msra.mxu0 0.0
    %5534 = vmatprep.subr.mxu0 0.0
    %5535 = vmatpush2.msra.mxu0 0.0
    %5536 = vmatprep.subr.mxu0 0.0
    %5537 = vmatpush2.msra.mxu0 0.0
    %5538 = vmatprep.subr.mxu0 0.0
    %5539 = vmatpush2.msra.mxu0 0.0
    %5540 = vmatprep.subr.mxu0 0.0
    %5541 = vmatpush2.msra.mxu0 0.0
    %5542 = vmatprep.subr.mxu0 0.0
    %5543 = vmatpush2.msra.mxu0 0.0
    %5544 = vmatprep.subr.mxu0 0.0
    %5545 = vmatpush2.msra.mxu0 0.0
    %5546 = vmatprep.subr.mxu0 0.0
    %5547 = vmatpush2.msra.mxu0 0.0
    %5548 = vmatprep.subr.mxu0 0.0
    %5549 = vmatpush2.msra.mxu0 0.0
    %5550 = vmatprep.subr.mxu0 0.0
    %5551 = vmatpush2.msra.mxu0 0.0
    %5552 = vmatprep.subr.mxu0 0.0
    %5553 = vmatpush2.msra.mxu0 0.0
    %5554 = vmatprep.subr.mxu0 0.0
    %5555 = vmatpush2.msra.mxu0 0.0
    %5556 = vmatprep.subr.mxu0 0.0
    %5557 = vmatpush2.msra.mxu0 0.0
    %5558 = vmatprep.mubr.f32.mxu0 0.0
    %5559 = vmatmul.mubr.f32.gmra.mxu0 %v5489
    %v5560 = vpop.f32.mrf.mxu0
    %v5561 = vadd.f32 0.0, %v5560
    %v5562 = vpop.f32.mrf.mxu0
    %5563 = vmatprep.mubr.f32.mxu0 0.0
    %5564 = vmatmul.mubr.f32.gmra.mxu0 %v5492
    %v5565 = vpop.f32.mrf.mxu0
    %v5566 = vadd.f32 0.0, %v5565
    %v5567 = vpop.f32.mrf.mxu0
    %5568 = vdwg.mxu0
    %v5570 = vsel %vm72, %v5483, 0
    %v5573 = vsel %vm72, %v5484, 0
    %5575 = vmatprep.subr.mxu0 0.0
    %5576 = vmatpush1.msra.mxu0 0.0
    %5577 = vmatprep.subr.mxu0 0.0
    %5578 = vmatpush1.msra.mxu0 0.0
    %5579 = vmatprep.subr.mxu0 0.0
    %5580 = vmatpush1.msra.mxu0 0.0
    %5581 = vmatprep.subr.mxu0 0.0
    %5582 = vmatpush1.msra.mxu0 0.0
    %5583 = vmatprep.subr.mxu0 0.0
    %5584 = vmatpush1.msra.mxu0 0.0
    %5585 = vmatprep.subr.mxu0 0.0
    %5586 = vmatpush1.msra.mxu0 0.0
    %5587 = vmatprep.subr.mxu0 0.0
    %5588 = vmatpush1.msra.mxu0 0.0
    %5589 = vmatprep.subr.mxu0 0.0
    %5590 = vmatpush1.msra.mxu0 0.0
    %5591 = vmatprep.subr.mxu0 0.0
    %5592 = vmatpush1.msra.mxu0 0.0
    %5593 = vmatprep.subr.mxu0 0.0
    %5594 = vmatpush1.msra.mxu0 0.0
    %5595 = vmatprep.subr.mxu0 0.0
    %5596 = vmatpush1.msra.mxu0 0.0
    %5597 = vmatprep.subr.mxu0 0.0
    %5598 = vmatpush1.msra.mxu0 0.0
    %5599 = vmatprep.subr.mxu0 0.0
    %5600 = vmatpush1.msra.mxu0 0.0
    %5601 = vmatprep.subr.mxu0 0.0
    %5602 = vmatpush1.msra.mxu0 0.0
    %5603 = vmatprep.subr.mxu0 0.0
    %5604 = vmatpush1.msra.mxu0 %v1836
    %5605 = vmatprep.subr.mxu0 0.0
    %5606 = vmatpush1.msra.mxu0 %v1835
    %5607 = vmatprep.subr.mxu0 0.0
    %5608 = vmatpush2.msra.mxu0 0.0
    %5609 = vmatprep.subr.mxu0 0.0
    %5610 = vmatpush2.msra.mxu0 0.0
    %5611 = vmatprep.subr.mxu0 0.0
    %5612 = vmatpush2.msra.mxu0 0.0
    %5613 = vmatprep.subr.mxu0 0.0
    %5614 = vmatpush2.msra.mxu0 0.0
    %5615 = vmatprep.subr.mxu0 0.0
    %5616 = vmatpush2.msra.mxu0 0.0
    %5617 = vmatprep.subr.mxu0 0.0
    %5618 = vmatpush2.msra.mxu0 0.0
    %5619 = vmatprep.subr.mxu0 0.0
    %5620 = vmatpush2.msra.mxu0 0.0
    %5621 = vmatprep.subr.mxu0 0.0
    %5622 = vmatpush2.msra.mxu0 0.0
    %5623 = vmatprep.subr.mxu0 0.0
    %5624 = vmatpush2.msra.mxu0 0.0
    %5625 = vmatprep.subr.mxu0 0.0
    %5626 = vmatpush2.msra.mxu0 0.0
    %5627 = vmatprep.subr.mxu0 0.0
    %5628 = vmatpush2.msra.mxu0 0.0
    %5629 = vmatprep.subr.mxu0 0.0
    %5630 = vmatpush2.msra.mxu0 0.0
    %5631 = vmatprep.subr.mxu0 0.0
    %5632 = vmatpush2.msra.mxu0 0.0
    %5633 = vmatprep.subr.mxu0 0.0
    %5634 = vmatpush2.msra.mxu0 0.0
    %5635 = vmatprep.subr.mxu0 0.0
    %5636 = vmatpush2.msra.mxu0 0.0
    %5637 = vmatprep.subr.mxu0 0.0
    %5638 = vmatpush2.msra.mxu0 0.0
    %5639 = vmatprep.mubr.f32.mxu0 0.0
    %5640 = vmatmul.mubr.f32.gmra.mxu0 %v5570
    %v5641 = vpop.f32.mrf.mxu0
    %v5642 = vadd.f32 %v5561, %v5641
    %v5643 = vpop.f32.mrf.mxu0
    %5644 = vmatprep.mubr.f32.mxu0 0.0
    %5645 = vmatmul.mubr.f32.gmra.mxu0 %v5573
    %v5646 = vpop.f32.mrf.mxu0
    %v5647 = vadd.f32 %v5566, %v5646
    %v5648 = vpop.f32.mrf.mxu0
    %5649 = vdwg.mxu0
    %5650 = vmatprep.subr.mxu0 0.0
    %5651 = vmatpush1.msra.mxu0 0.0
    %5652 = vmatprep.subr.mxu0 0.0
    %5653 = vmatpush1.msra.mxu0 0.0
    %5654 = vmatprep.subr.mxu0 0.0
    %5655 = vmatpush1.msra.mxu0 0.0
    %5656 = vmatprep.subr.mxu0 0.0
    %5657 = vmatpush1.msra.mxu0 0.0
    %5658 = vmatprep.subr.mxu0 0.0
    %5659 = vmatpush1.msra.mxu0 0.0
    %5660 = vmatprep.subr.mxu0 0.0
    %5661 = vmatpush1.msra.mxu0 0.0
    %5662 = vmatprep.subr.mxu0 0.0
    %5663 = vmatpush1.msra.mxu0 0.0
    %5664 = vmatprep.subr.mxu0 0.0
    %5665 = vmatpush1.msra.mxu0 0.0
    %5666 = vmatprep.subr.mxu0 0.0
    %5667 = vmatpush1.msra.mxu0 0.0
    %5668 = vmatprep.subr.mxu0 0.0
    %5669 = vmatpush1.msra.mxu0 0.0
    %5670 = vmatprep.subr.mxu0 0.0
    %5671 = vmatpush1.msra.mxu0 0.0
    %5672 = vmatprep.subr.mxu0 0.0
    %5673 = vmatpush1.msra.mxu0 0.0
    %5674 = vmatprep.subr.mxu0 0.0
    %5675 = vmatpush1.msra.mxu0 0.0
    %5676 = vmatprep.subr.mxu0 0.0
    %5677 = vmatpush1.msra.mxu0 0.0
    %5678 = vmatprep.subr.mxu0 0.0
    %5679 = vmatpush1.msra.mxu0 %v2011
    %5680 = vmatprep.subr.mxu0 0.0
    %5681 = vmatpush1.msra.mxu0 %v2010
    %5682 = vmatprep.subr.mxu0 0.0
    %5683 = vmatpush2.msra.mxu0 0.0
    %5684 = vmatprep.subr.mxu0 0.0
    %5685 = vmatpush2.msra.mxu0 0.0
    %5686 = vmatprep.subr.mxu0 0.0
    %5687 = vmatpush2.msra.mxu0 0.0
    %5688 = vmatprep.subr.mxu0 0.0
    %5689 = vmatpush2.msra.mxu0 0.0
    %5690 = vmatprep.subr.mxu0 0.0
    %5691 = vmatpush2.msra.mxu0 0.0
    %5692 = vmatprep.subr.mxu0 0.0
    %5693 = vmatpush2.msra.mxu0 0.0
    %5694 = vmatprep.subr.mxu0 0.0
    %5695 = vmatpush2.msra.mxu0 0.0
    %5696 = vmatprep.subr.mxu0 0.0
    %5697 = vmatpush2.msra.mxu0 0.0
    %5698 = vmatprep.subr.mxu0 0.0
    %5699 = vmatpush2.msra.mxu0 0.0
    %5700 = vmatprep.subr.mxu0 0.0
    %5701 = vmatpush2.msra.mxu0 0.0
    %5702 = vmatprep.subr.mxu0 0.0
    %5703 = vmatpush2.msra.mxu0 0.0
    %5704 = vmatprep.subr.mxu0 0.0
    %5705 = vmatpush2.msra.mxu0 0.0
    %5706 = vmatprep.subr.mxu0 0.0
    %5707 = vmatpush2.msra.mxu0 0.0
    %5708 = vmatprep.subr.mxu0 0.0
    %5709 = vmatpush2.msra.mxu0 0.0
    %5710 = vmatprep.subr.mxu0 0.0
    %5711 = vmatpush2.msra.mxu0 0.0
    %5712 = vmatprep.subr.mxu0 0.0
    %5713 = vmatpush2.msra.mxu0 0.0
    %5714 = vmatprep.mubr.f32.mxu0 0.0
    %5715 = vmatmul.mubr.f32.gmra.mxu0 %v5489
    %v5716 = vpop.f32.mrf.mxu0
    %v5717 = vadd.f32 0.0, %v5716
    %v5718 = vpop.f32.mrf.mxu0
    %5719 = vmatprep.mubr.f32.mxu0 0.0
    %5720 = vmatmul.mubr.f32.gmra.mxu0 %v5492
    %v5721 = vpop.f32.mrf.mxu0
    %v5722 = vadd.f32 0.0, %v5721
    %v5723 = vpop.f32.mrf.mxu0
    %5724 = vdwg.mxu0
    %5725 = vmatprep.subr.mxu0 0.0
    %5726 = vmatpush1.msra.mxu0 0.0
    %5727 = vmatprep.subr.mxu0 0.0
    %5728 = vmatpush1.msra.mxu0 0.0
    %5729 = vmatprep.subr.mxu0 0.0
    %5730 = vmatpush1.msra.mxu0 0.0
    %5731 = vmatprep.subr.mxu0 0.0
    %5732 = vmatpush1.msra.mxu0 0.0
    %5733 = vmatprep.subr.mxu0 0.0
    %5734 = vmatpush1.msra.mxu0 0.0
    %5735 = vmatprep.subr.mxu0 0.0
    %5736 = vmatpush1.msra.mxu0 0.0
    %5737 = vmatprep.subr.mxu0 0.0
    %5738 = vmatpush1.msra.mxu0 0.0
    %5739 = vmatprep.subr.mxu0 0.0
    %5740 = vmatpush1.msra.mxu0 0.0
    %5741 = vmatprep.subr.mxu0 0.0
    %5742 = vmatpush1.msra.mxu0 0.0
    %5743 = vmatprep.subr.mxu0 0.0
    %5744 = vmatpush1.msra.mxu0 0.0
    %5745 = vmatprep.subr.mxu0 0.0
    %5746 = vmatpush1.msra.mxu0 0.0
    %5747 = vmatprep.subr.mxu0 0.0
    %5748 = vmatpush1.msra.mxu0 0.0
    %5749 = vmatprep.subr.mxu0 0.0
    %5750 = vmatpush1.msra.mxu0 0.0
    %5751 = vmatprep.subr.mxu0 0.0
    %5752 = vmatpush1.msra.mxu0 0.0
    %5753 = vmatprep.subr.mxu0 0.0
    %5754 = vmatpush1.msra.mxu0 %v1838
    %5755 = vmatprep.subr.mxu0 0.0
    %5756 = vmatpush1.msra.mxu0 %v1837
    %5757 = vmatprep.subr.mxu0 0.0
    %5758 = vmatpush2.msra.mxu0 0.0
    %5759 = vmatprep.subr.mxu0 0.0
    %5760 = vmatpush2.msra.mxu0 0.0
    %5761 = vmatprep.subr.mxu0 0.0
    %5762 = vmatpush2.msra.mxu0 0.0
    %5763 = vmatprep.subr.mxu0 0.0
    %5764 = vmatpush2.msra.mxu0 0.0
    %5765 = vmatprep.subr.mxu0 0.0
    %5766 = vmatpush2.msra.mxu0 0.0
    %5767 = vmatprep.subr.mxu0 0.0
    %5768 = vmatpush2.msra.mxu0 0.0
    %5769 = vmatprep.subr.mxu0 0.0
    %5770 = vmatpush2.msra.mxu0 0.0
    %5771 = vmatprep.subr.mxu0 0.0
    %5772 = vmatpush2.msra.mxu0 0.0
    %5773 = vmatprep.subr.mxu0 0.0
    %5774 = vmatpush2.msra.mxu0 0.0
    %5775 = vmatprep.subr.mxu0 0.0
    %5776 = vmatpush2.msra.mxu0 0.0
    %5777 = vmatprep.subr.mxu0 0.0
    %5778 = vmatpush2.msra.mxu0 0.0
    %5779 = vmatprep.subr.mxu0 0.0
    %5780 = vmatpush2.msra.mxu0 0.0
    %5781 = vmatprep.subr.mxu0 0.0
    %5782 = vmatpush2.msra.mxu0 0.0
    %5783 = vmatprep.subr.mxu0 0.0
    %5784 = vmatpush2.msra.mxu0 0.0
    %5785 = vmatprep.subr.mxu0 0.0
    %5786 = vmatpush2.msra.mxu0 0.0
    %5787 = vmatprep.subr.mxu0 0.0
    %5788 = vmatpush2.msra.mxu0 0.0
    %5789 = vmatprep.mubr.f32.mxu0 0.0
    %5790 = vmatmul.mubr.f32.gmra.mxu0 %v5570
    %v5791 = vpop.f32.mrf.mxu0
    %v5792 = vadd.f32 %v5717, %v5791
    %v5793 = vpop.f32.mrf.mxu0
    %5794 = vmatprep.mubr.f32.mxu0 0.0
    %5795 = vmatmul.mubr.f32.gmra.mxu0 %v5573
    %v5796 = vpop.f32.mrf.mxu0
    %v5797 = vadd.f32 %v5722, %v5796
    %v5798 = vpop.f32.mrf.mxu0
    %5799 = vdwg.mxu0
    %s5800 = scalar_lea.vmem %s0, 176
    %v5801 = vld [vmem:[%s5800] sm:$0xff]
    %v5802 = vld [vmem:[%s5800 + $0x8] sm:$0xff]
    %v5804 = vsel %vm72, %v5801, 0
    %v5807 = vsel %vm72, %v5802, 0
    %5809 = vmatprep.subr.mxu0 0.0
    %5810 = vmatpush1.msra.mxu0 0.0
    %5811 = vmatprep.subr.mxu0 0.0
    %5812 = vmatpush1.msra.mxu0 0.0
    %5813 = vmatprep.subr.mxu0 0.0
    %5814 = vmatpush1.msra.mxu0 0.0
    %5815 = vmatprep.subr.mxu0 0.0
    %5816 = vmatpush1.msra.mxu0 0.0
    %5817 = vmatprep.subr.mxu0 0.0
    %5818 = vmatpush1.msra.mxu0 0.0
    %5819 = vmatprep.subr.mxu0 0.0
    %5820 = vmatpush1.msra.mxu0 0.0
    %5821 = vmatprep.subr.mxu0 0.0
    %5822 = vmatpush1.msra.mxu0 0.0
    %5823 = vmatprep.subr.mxu0 0.0
    %5824 = vmatpush1.msra.mxu0 0.0
    %5825 = vmatprep.subr.mxu0 0.0
    %5826 = vmatpush1.msra.mxu0 0.0
    %5827 = vmatprep.subr.mxu0 0.0
    %5828 = vmatpush1.msra.mxu0 0.0
    %5829 = vmatprep.subr.mxu0 0.0
    %5830 = vmatpush1.msra.mxu0 0.0
    %5831 = vmatprep.subr.mxu0 0.0
    %5832 = vmatpush1.msra.mxu0 0.0
    %5833 = vmatprep.subr.mxu0 0.0
    %5834 = vmatpush1.msra.mxu0 0.0
    %5835 = vmatprep.subr.mxu0 0.0
    %5836 = vmatpush1.msra.mxu0 0.0
    %5837 = vmatprep.subr.mxu0 0.0
    %5838 = vmatpush1.msra.mxu0 %v2170
    %5839 = vmatprep.subr.mxu0 0.0
    %5840 = vmatpush1.msra.mxu0 %v2169
    %5841 = vmatprep.subr.mxu0 0.0
    %5842 = vmatpush2.msra.mxu0 0.0
    %5843 = vmatprep.subr.mxu0 0.0
    %5844 = vmatpush2.msra.mxu0 0.0
    %5845 = vmatprep.subr.mxu0 0.0
    %5846 = vmatpush2.msra.mxu0 0.0
    %5847 = vmatprep.subr.mxu0 0.0
    %5848 = vmatpush2.msra.mxu0 0.0
    %5849 = vmatprep.subr.mxu0 0.0
    %5850 = vmatpush2.msra.mxu0 0.0
    %5851 = vmatprep.subr.mxu0 0.0
    %5852 = vmatpush2.msra.mxu0 0.0
    %5853 = vmatprep.subr.mxu0 0.0
    %5854 = vmatpush2.msra.mxu0 0.0
    %5855 = vmatprep.subr.mxu0 0.0
    %5856 = vmatpush2.msra.mxu0 0.0
    %5857 = vmatprep.subr.mxu0 0.0
    %5858 = vmatpush2.msra.mxu0 0.0
    %5859 = vmatprep.subr.mxu0 0.0
    %5860 = vmatpush2.msra.mxu0 0.0
    %5861 = vmatprep.subr.mxu0 0.0
    %5862 = vmatpush2.msra.mxu0 0.0
    %5863 = vmatprep.subr.mxu0 0.0
    %5864 = vmatpush2.msra.mxu0 0.0
    %5865 = vmatprep.subr.mxu0 0.0
    %5866 = vmatpush2.msra.mxu0 0.0
    %5867 = vmatprep.subr.mxu0 0.0
    %5868 = vmatpush2.msra.mxu0 0.0
    %5869 = vmatprep.subr.mxu0 0.0
    %5870 = vmatpush2.msra.mxu0 0.0
    %5871 = vmatprep.subr.mxu0 0.0
    %5872 = vmatpush2.msra.mxu0 0.0
    %5873 = vmatprep.mubr.f32.mxu0 0.0
    %5874 = vmatmul.mubr.f32.gmra.mxu0 %v5804
    %v5875 = vpop.f32.mrf.mxu0
    %v5876 = vadd.f32 0.0, %v5875
    %v5877 = vpop.f32.mrf.mxu0
    %5878 = vmatprep.mubr.f32.mxu0 0.0
    %5879 = vmatmul.mubr.f32.gmra.mxu0 %v5807
    %v5880 = vpop.f32.mrf.mxu0
    %v5881 = vadd.f32 0.0, %v5880
    %v5882 = vpop.f32.mrf.mxu0
    %5883 = vdwg.mxu0
    %v5884 = vadd.f32 %v5642, %v5876
    %v5885 = vadd.f32 %v5647, %v5881
    %5886 = vmatprep.subr.mxu0 0.0
    %5887 = vmatpush1.msra.mxu0 0.0
    %5888 = vmatprep.subr.mxu0 0.0
    %5889 = vmatpush1.msra.mxu0 0.0
    %5890 = vmatprep.subr.mxu0 0.0
    %5891 = vmatpush1.msra.mxu0 0.0
    %5892 = vmatprep.subr.mxu0 0.0
    %5893 = vmatpush1.msra.mxu0 0.0
    %5894 = vmatprep.subr.mxu0 0.0
    %5895 = vmatpush1.msra.mxu0 0.0
    %5896 = vmatprep.subr.mxu0 0.0
    %5897 = vmatpush1.msra.mxu0 0.0
    %5898 = vmatprep.subr.mxu0 0.0
    %5899 = vmatpush1.msra.mxu0 0.0
    %5900 = vmatprep.subr.mxu0 0.0
    %5901 = vmatpush1.msra.mxu0 0.0
    %5902 = vmatprep.subr.mxu0 0.0
    %5903 = vmatpush1.msra.mxu0 0.0
    %5904 = vmatprep.subr.mxu0 0.0
    %5905 = vmatpush1.msra.mxu0 0.0
    %5906 = vmatprep.subr.mxu0 0.0
    %5907 = vmatpush1.msra.mxu0 0.0
    %5908 = vmatprep.subr.mxu0 0.0
    %5909 = vmatpush1.msra.mxu0 0.0
    %5910 = vmatprep.subr.mxu0 0.0
    %5911 = vmatpush1.msra.mxu0 0.0
    %5912 = vmatprep.subr.mxu0 0.0
    %5913 = vmatpush1.msra.mxu0 0.0
    %5914 = vmatprep.subr.mxu0 0.0
    %5915 = vmatpush1.msra.mxu0 %v2255
    %5916 = vmatprep.subr.mxu0 0.0
    %5917 = vmatpush1.msra.mxu0 %v2254
    %5918 = vmatprep.subr.mxu0 0.0
    %5919 = vmatpush2.msra.mxu0 0.0
    %5920 = vmatprep.subr.mxu0 0.0
    %5921 = vmatpush2.msra.mxu0 0.0
    %5922 = vmatprep.subr.mxu0 0.0
    %5923 = vmatpush2.msra.mxu0 0.0
    %5924 = vmatprep.subr.mxu0 0.0
    %5925 = vmatpush2.msra.mxu0 0.0
    %5926 = vmatprep.subr.mxu0 0.0
    %5927 = vmatpush2.msra.mxu0 0.0
    %5928 = vmatprep.subr.mxu0 0.0
    %5929 = vmatpush2.msra.mxu0 0.0
    %5930 = vmatprep.subr.mxu0 0.0
    %5931 = vmatpush2.msra.mxu0 0.0
    %5932 = vmatprep.subr.mxu0 0.0
    %5933 = vmatpush2.msra.mxu0 0.0
    %5934 = vmatprep.subr.mxu0 0.0
    %5935 = vmatpush2.msra.mxu0 0.0
    %5936 = vmatprep.subr.mxu0 0.0
    %5937 = vmatpush2.msra.mxu0 0.0
    %5938 = vmatprep.subr.mxu0 0.0
    %5939 = vmatpush2.msra.mxu0 0.0
    %5940 = vmatprep.subr.mxu0 0.0
    %5941 = vmatpush2.msra.mxu0 0.0
    %5942 = vmatprep.subr.mxu0 0.0
    %5943 = vmatpush2.msra.mxu0 0.0
    %5944 = vmatprep.subr.mxu0 0.0
    %5945 = vmatpush2.msra.mxu0 0.0
    %5946 = vmatprep.subr.mxu0 0.0
    %5947 = vmatpush2.msra.mxu0 0.0
    %5948 = vmatprep.subr.mxu0 0.0
    %5949 = vmatpush2.msra.mxu0 0.0
    %5950 = vmatprep.mubr.f32.mxu0 0.0
    %5951 = vmatmul.mubr.f32.gmra.mxu0 %v5804
    %v5952 = vpop.f32.mrf.mxu0
    %v5953 = vadd.f32 0.0, %v5952
    %v5954 = vpop.f32.mrf.mxu0
    %5955 = vmatprep.mubr.f32.mxu0 0.0
    %5956 = vmatmul.mubr.f32.gmra.mxu0 %v5807
    %v5957 = vpop.f32.mrf.mxu0
    %v5958 = vadd.f32 0.0, %v5957
    %v5959 = vpop.f32.mrf.mxu0
    %5960 = vdwg.mxu0
    %v5961 = vadd.f32 %v5792, %v5953
    %v5962 = vadd.f32 %v5797, %v5958
    %s5963 = scalar_lea.vmem %s0, 192
    %v5964 = vld [vmem:[%s5963] sm:$0xff]
    %v5965 = vld [vmem:[%s5963 + $0x8] sm:$0xff]
    %v5967 = vsel %vm72, %v5964, 0
    %v5970 = vsel %vm72, %v5965, 0
    %5972 = vmatprep.subr.mxu0 0.0
    %5973 = vmatpush1.msra.mxu0 0.0
    %5974 = vmatprep.subr.mxu0 0.0
    %5975 = vmatpush1.msra.mxu0 0.0
    %5976 = vmatprep.subr.mxu0 0.0
    %5977 = vmatpush1.msra.mxu0 0.0
    %5978 = vmatprep.subr.mxu0 0.0
    %5979 = vmatpush1.msra.mxu0 0.0
    %5980 = vmatprep.subr.mxu0 0.0
    %5981 = vmatpush1.msra.mxu0 0.0
    %5982 = vmatprep.subr.mxu0 0.0
    %5983 = vmatpush1.msra.mxu0 0.0
    %5984 = vmatprep.subr.mxu0 0.0
    %5985 = vmatpush1.msra.mxu0 0.0
    %5986 = vmatprep.subr.mxu0 0.0
    %5987 = vmatpush1.msra.mxu0 0.0
    %5988 = vmatprep.subr.mxu0 0.0
    %5989 = vmatpush1.msra.mxu0 0.0
    %5990 = vmatprep.subr.mxu0 0.0
    %5991 = vmatpush1.msra.mxu0 0.0
    %5992 = vmatprep.subr.mxu0 0.0
    %5993 = vmatpush1.msra.mxu0 0.0
    %5994 = vmatprep.subr.mxu0 0.0
    %5995 = vmatpush1.msra.mxu0 0.0
    %5996 = vmatprep.subr.mxu0 0.0
    %5997 = vmatpush1.msra.mxu0 0.0
    %5998 = vmatprep.subr.mxu0 0.0
    %5999 = vmatpush1.msra.mxu0 0.0
    %6000 = vmatprep.subr.mxu0 0.0
    %6001 = vmatpush1.msra.mxu0 %v2341
    %6002 = vmatprep.subr.mxu0 0.0
    %6003 = vmatpush1.msra.mxu0 %v2340
    %6004 = vmatprep.subr.mxu0 0.0
    %6005 = vmatpush2.msra.mxu0 0.0
    %6006 = vmatprep.subr.mxu0 0.0
    %6007 = vmatpush2.msra.mxu0 0.0
    %6008 = vmatprep.subr.mxu0 0.0
    %6009 = vmatpush2.msra.mxu0 0.0
    %6010 = vmatprep.subr.mxu0 0.0
    %6011 = vmatpush2.msra.mxu0 0.0
    %6012 = vmatprep.subr.mxu0 0.0
    %6013 = vmatpush2.msra.mxu0 0.0
    %6014 = vmatprep.subr.mxu0 0.0
    %6015 = vmatpush2.msra.mxu0 0.0
    %6016 = vmatprep.subr.mxu0 0.0
    %6017 = vmatpush2.msra.mxu0 0.0
    %6018 = vmatprep.subr.mxu0 0.0
    %6019 = vmatpush2.msra.mxu0 0.0
    %6020 = vmatprep.subr.mxu0 0.0
    %6021 = vmatpush2.msra.mxu0 0.0
    %6022 = vmatprep.subr.mxu0 0.0
    %6023 = vmatpush2.msra.mxu0 0.0
    %6024 = vmatprep.subr.mxu0 0.0
    %6025 = vmatpush2.msra.mxu0 0.0
    %6026 = vmatprep.subr.mxu0 0.0
    %6027 = vmatpush2.msra.mxu0 0.0
    %6028 = vmatprep.subr.mxu0 0.0
    %6029 = vmatpush2.msra.mxu0 0.0
    %6030 = vmatprep.subr.mxu0 0.0
    %6031 = vmatpush2.msra.mxu0 0.0
    %6032 = vmatprep.subr.mxu0 0.0
    %6033 = vmatpush2.msra.mxu0 0.0
    %6034 = vmatprep.subr.mxu0 0.0
    %6035 = vmatpush2.msra.mxu0 0.0
    %6036 = vmatprep.mubr.f32.mxu0 0.0
    %6037 = vmatmul.mubr.f32.gmra.mxu0 %v5967
    %v6038 = vpop.f32.mrf.mxu0
    %v6039 = vadd.f32 0.0, %v6038
    %v6040 = vpop.f32.mrf.mxu0
    %6041 = vmatprep.mubr.f32.mxu0 0.0
    %6042 = vmatmul.mubr.f32.gmra.mxu0 %v5970
    %v6043 = vpop.f32.mrf.mxu0
    %v6044 = vadd.f32 0.0, %v6043
    %v6045 = vpop.f32.mrf.mxu0
    %6046 = vdwg.mxu0
    %v6047 = vadd.f32 %v5884, %v6039
    %v6048 = vadd.f32 %v5885, %v6044
    %6049 = vmatprep.subr.mxu0 0.0
    %6050 = vmatpush1.msra.mxu0 0.0
    %6051 = vmatprep.subr.mxu0 0.0
    %6052 = vmatpush1.msra.mxu0 0.0
    %6053 = vmatprep.subr.mxu0 0.0
    %6054 = vmatpush1.msra.mxu0 0.0
    %6055 = vmatprep.subr.mxu0 0.0
    %6056 = vmatpush1.msra.mxu0 0.0
    %6057 = vmatprep.subr.mxu0 0.0
    %6058 = vmatpush1.msra.mxu0 0.0
    %6059 = vmatprep.subr.mxu0 0.0
    %6060 = vmatpush1.msra.mxu0 0.0
    %6061 = vmatprep.subr.mxu0 0.0
    %6062 = vmatpush1.msra.mxu0 0.0
    %6063 = vmatprep.subr.mxu0 0.0
    %6064 = vmatpush1.msra.mxu0 0.0
    %6065 = vmatprep.subr.mxu0 0.0
    %6066 = vmatpush1.msra.mxu0 0.0
    %6067 = vmatprep.subr.mxu0 0.0
    %6068 = vmatpush1.msra.mxu0 0.0
    %6069 = vmatprep.subr.mxu0 0.0
    %6070 = vmatpush1.msra.mxu0 0.0
    %6071 = vmatprep.subr.mxu0 0.0
    %6072 = vmatpush1.msra.mxu0 0.0
    %6073 = vmatprep.subr.mxu0 0.0
    %6074 = vmatpush1.msra.mxu0 0.0
    %6075 = vmatprep.subr.mxu0 0.0
    %6076 = vmatpush1.msra.mxu0 0.0
    %6077 = vmatprep.subr.mxu0 0.0
    %6078 = vmatpush1.msra.mxu0 %v2426
    %6079 = vmatprep.subr.mxu0 0.0
    %6080 = vmatpush1.msra.mxu0 %v2425
    %6081 = vmatprep.subr.mxu0 0.0
    %6082 = vmatpush2.msra.mxu0 0.0
    %6083 = vmatprep.subr.mxu0 0.0
    %6084 = vmatpush2.msra.mxu0 0.0
    %6085 = vmatprep.subr.mxu0 0.0
    %6086 = vmatpush2.msra.mxu0 0.0
    %6087 = vmatprep.subr.mxu0 0.0
    %6088 = vmatpush2.msra.mxu0 0.0
    %6089 = vmatprep.subr.mxu0 0.0
    %6090 = vmatpush2.msra.mxu0 0.0
    %6091 = vmatprep.subr.mxu0 0.0
    %6092 = vmatpush2.msra.mxu0 0.0
    %6093 = vmatprep.subr.mxu0 0.0
    %6094 = vmatpush2.msra.mxu0 0.0
    %6095 = vmatprep.subr.mxu0 0.0
    %6096 = vmatpush2.msra.mxu0 0.0
    %6097 = vmatprep.subr.mxu0 0.0
    %6098 = vmatpush2.msra.mxu0 0.0
    %6099 = vmatprep.subr.mxu0 0.0
    %6100 = vmatpush2.msra.mxu0 0.0
    %6101 = vmatprep.subr.mxu0 0.0
    %6102 = vmatpush2.msra.mxu0 0.0
    %6103 = vmatprep.subr.mxu0 0.0
    %6104 = vmatpush2.msra.mxu0 0.0
    %6105 = vmatprep.subr.mxu0 0.0
    %6106 = vmatpush2.msra.mxu0 0.0
    %6107 = vmatprep.subr.mxu0 0.0
    %6108 = vmatpush2.msra.mxu0 0.0
    %6109 = vmatprep.subr.mxu0 0.0
    %6110 = vmatpush2.msra.mxu0 0.0
    %6111 = vmatprep.subr.mxu0 0.0
    %6112 = vmatpush2.msra.mxu0 0.0
    %6113 = vmatprep.mubr.f32.mxu0 0.0
    %6114 = vmatmul.mubr.f32.gmra.mxu0 %v5967
    %v6115 = vpop.f32.mrf.mxu0
    %v6116 = vadd.f32 0.0, %v6115
    %v6117 = vpop.f32.mrf.mxu0
    %6118 = vmatprep.mubr.f32.mxu0 0.0
    %6119 = vmatmul.mubr.f32.gmra.mxu0 %v5970
    %v6120 = vpop.f32.mrf.mxu0
    %v6121 = vadd.f32 0.0, %v6120
    %v6122 = vpop.f32.mrf.mxu0
    %6123 = vdwg.mxu0
    %v6124 = vadd.f32 %v5961, %v6116
    %v6125 = vadd.f32 %v5962, %v6121
    %s6126 = scalar_lea.vmem %s0, 208
    %v6127 = vld [vmem:[%s6126] sm:$0xff]
    %v6128 = vld [vmem:[%s6126 + $0x8] sm:$0xff]
    %v6130 = vsel %vm72, %v6127, 0
    %v6133 = vsel %vm72, %v6128, 0
    %6135 = vmatprep.subr.mxu0 0.0
    %6136 = vmatpush1.msra.mxu0 0.0
    %6137 = vmatprep.subr.mxu0 0.0
    %6138 = vmatpush1.msra.mxu0 0.0
    %6139 = vmatprep.subr.mxu0 0.0
    %6140 = vmatpush1.msra.mxu0 0.0
    %6141 = vmatprep.subr.mxu0 0.0
    %6142 = vmatpush1.msra.mxu0 0.0
    %6143 = vmatprep.subr.mxu0 0.0
    %6144 = vmatpush1.msra.mxu0 0.0
    %6145 = vmatprep.subr.mxu0 0.0
    %6146 = vmatpush1.msra.mxu0 0.0
    %6147 = vmatprep.subr.mxu0 0.0
    %6148 = vmatpush1.msra.mxu0 0.0
    %6149 = vmatprep.subr.mxu0 0.0
    %6150 = vmatpush1.msra.mxu0 0.0
    %6151 = vmatprep.subr.mxu0 0.0
    %6152 = vmatpush1.msra.mxu0 0.0
    %6153 = vmatprep.subr.mxu0 0.0
    %6154 = vmatpush1.msra.mxu0 0.0
    %6155 = vmatprep.subr.mxu0 0.0
    %6156 = vmatpush1.msra.mxu0 0.0
    %6157 = vmatprep.subr.mxu0 0.0
    %6158 = vmatpush1.msra.mxu0 0.0
    %6159 = vmatprep.subr.mxu0 0.0
    %6160 = vmatpush1.msra.mxu0 0.0
    %6161 = vmatprep.subr.mxu0 0.0
    %6162 = vmatpush1.msra.mxu0 0.0
    %6163 = vmatprep.subr.mxu0 0.0
    %6164 = vmatpush1.msra.mxu0 %v2512
    %6165 = vmatprep.subr.mxu0 0.0
    %6166 = vmatpush1.msra.mxu0 %v2511
    %6167 = vmatprep.subr.mxu0 0.0
    %6168 = vmatpush2.msra.mxu0 0.0
    %6169 = vmatprep.subr.mxu0 0.0
    %6170 = vmatpush2.msra.mxu0 0.0
    %6171 = vmatprep.subr.mxu0 0.0
    %6172 = vmatpush2.msra.mxu0 0.0
    %6173 = vmatprep.subr.mxu0 0.0
    %6174 = vmatpush2.msra.mxu0 0.0
    %6175 = vmatprep.subr.mxu0 0.0
    %6176 = vmatpush2.msra.mxu0 0.0
    %6177 = vmatprep.subr.mxu0 0.0
    %6178 = vmatpush2.msra.mxu0 0.0
    %6179 = vmatprep.subr.mxu0 0.0
    %6180 = vmatpush2.msra.mxu0 0.0
    %6181 = vmatprep.subr.mxu0 0.0
    %6182 = vmatpush2.msra.mxu0 0.0
    %6183 = vmatprep.subr.mxu0 0.0
    %6184 = vmatpush2.msra.mxu0 0.0
    %6185 = vmatprep.subr.mxu0 0.0
    %6186 = vmatpush2.msra.mxu0 0.0
    %6187 = vmatprep.subr.mxu0 0.0
    %6188 = vmatpush2.msra.mxu0 0.0
    %6189 = vmatprep.subr.mxu0 0.0
    %6190 = vmatpush2.msra.mxu0 0.0
    %6191 = vmatprep.subr.mxu0 0.0
    %6192 = vmatpush2.msra.mxu0 0.0
    %6193 = vmatprep.subr.mxu0 0.0
    %6194 = vmatpush2.msra.mxu0 0.0
    %6195 = vmatprep.subr.mxu0 0.0
    %6196 = vmatpush2.msra.mxu0 0.0
    %6197 = vmatprep.subr.mxu0 0.0
    %6198 = vmatpush2.msra.mxu0 0.0
    %6199 = vmatprep.mubr.f32.mxu0 0.0
    %6200 = vmatmul.mubr.f32.gmra.mxu0 %v6130
    %v6201 = vpop.f32.mrf.mxu0
    %v6202 = vadd.f32 0.0, %v6201
    %v6203 = vpop.f32.mrf.mxu0
    %6204 = vmatprep.mubr.f32.mxu0 0.0
    %6205 = vmatmul.mubr.f32.gmra.mxu0 %v6133
    %v6206 = vpop.f32.mrf.mxu0
    %v6207 = vadd.f32 0.0, %v6206
    %v6208 = vpop.f32.mrf.mxu0
    %6209 = vdwg.mxu0
    %v6210 = vadd.f32 %v6047, %v6202
    %v6211 = vadd.f32 %v6048, %v6207
    %6212 = vmatprep.subr.mxu0 0.0
    %6213 = vmatpush1.msra.mxu0 0.0
    %6214 = vmatprep.subr.mxu0 0.0
    %6215 = vmatpush1.msra.mxu0 0.0
    %6216 = vmatprep.subr.mxu0 0.0
    %6217 = vmatpush1.msra.mxu0 0.0
    %6218 = vmatprep.subr.mxu0 0.0
    %6219 = vmatpush1.msra.mxu0 0.0
    %6220 = vmatprep.subr.mxu0 0.0
    %6221 = vmatpush1.msra.mxu0 0.0
    %6222 = vmatprep.subr.mxu0 0.0
    %6223 = vmatpush1.msra.mxu0 0.0
    %6224 = vmatprep.subr.mxu0 0.0
    %6225 = vmatpush1.msra.mxu0 0.0
    %6226 = vmatprep.subr.mxu0 0.0
    %6227 = vmatpush1.msra.mxu0 0.0
    %6228 = vmatprep.subr.mxu0 0.0
    %6229 = vmatpush1.msra.mxu0 0.0
    %6230 = vmatprep.subr.mxu0 0.0
    %6231 = vmatpush1.msra.mxu0 0.0
    %6232 = vmatprep.subr.mxu0 0.0
    %6233 = vmatpush1.msra.mxu0 0.0
    %6234 = vmatprep.subr.mxu0 0.0
    %6235 = vmatpush1.msra.mxu0 0.0
    %6236 = vmatprep.subr.mxu0 0.0
    %6237 = vmatpush1.msra.mxu0 0.0
    %6238 = vmatprep.subr.mxu0 0.0
    %6239 = vmatpush1.msra.mxu0 0.0
    %6240 = vmatprep.subr.mxu0 0.0
    %6241 = vmatpush1.msra.mxu0 %v2597
    %6242 = vmatprep.subr.mxu0 0.0
    %6243 = vmatpush1.msra.mxu0 %v2596
    %6244 = vmatprep.subr.mxu0 0.0
    %6245 = vmatpush2.msra.mxu0 0.0
    %6246 = vmatprep.subr.mxu0 0.0
    %6247 = vmatpush2.msra.mxu0 0.0
    %6248 = vmatprep.subr.mxu0 0.0
    %6249 = vmatpush2.msra.mxu0 0.0
    %6250 = vmatprep.subr.mxu0 0.0
    %6251 = vmatpush2.msra.mxu0 0.0
    %6252 = vmatprep.subr.mxu0 0.0
    %6253 = vmatpush2.msra.mxu0 0.0
    %6254 = vmatprep.subr.mxu0 0.0
    %6255 = vmatpush2.msra.mxu0 0.0
    %6256 = vmatprep.subr.mxu0 0.0
    %6257 = vmatpush2.msra.mxu0 0.0
    %6258 = vmatprep.subr.mxu0 0.0
    %6259 = vmatpush2.msra.mxu0 0.0
    %6260 = vmatprep.subr.mxu0 0.0
    %6261 = vmatpush2.msra.mxu0 0.0
    %6262 = vmatprep.subr.mxu0 0.0
    %6263 = vmatpush2.msra.mxu0 0.0
    %6264 = vmatprep.subr.mxu0 0.0
    %6265 = vmatpush2.msra.mxu0 0.0
    %6266 = vmatprep.subr.mxu0 0.0
    %6267 = vmatpush2.msra.mxu0 0.0
    %6268 = vmatprep.subr.mxu0 0.0
    %6269 = vmatpush2.msra.mxu0 0.0
    %6270 = vmatprep.subr.mxu0 0.0
    %6271 = vmatpush2.msra.mxu0 0.0
    %6272 = vmatprep.subr.mxu0 0.0
    %6273 = vmatpush2.msra.mxu0 0.0
    %6274 = vmatprep.subr.mxu0 0.0
    %6275 = vmatpush2.msra.mxu0 0.0
    %6276 = vmatprep.mubr.f32.mxu0 0.0
    %6277 = vmatmul.mubr.f32.gmra.mxu0 %v6130
    %v6278 = vpop.f32.mrf.mxu0
    %v6279 = vadd.f32 0.0, %v6278
    %v6280 = vpop.f32.mrf.mxu0
    %6281 = vmatprep.mubr.f32.mxu0 0.0
    %6282 = vmatmul.mubr.f32.gmra.mxu0 %v6133
    %v6283 = vpop.f32.mrf.mxu0
    %v6284 = vadd.f32 0.0, %v6283
    %v6285 = vpop.f32.mrf.mxu0
    %6286 = vdwg.mxu0
    %v6287 = vadd.f32 %v6124, %v6279
    %v6288 = vadd.f32 %v6125, %v6284
    %s6289 = scalar_lea.vmem %s0, 224
    %v6290 = vld [vmem:[%s6289] sm:$0xff]
    %v6291 = vld [vmem:[%s6289 + $0x8] sm:$0xff]
    %v6293 = vsel %vm72, %v6290, 0
    %v6296 = vsel %vm72, %v6291, 0
    %6298 = vmatprep.subr.mxu0 0.0
    %6299 = vmatpush1.msra.mxu0 0.0
    %6300 = vmatprep.subr.mxu0 0.0
    %6301 = vmatpush1.msra.mxu0 0.0
    %6302 = vmatprep.subr.mxu0 0.0
    %6303 = vmatpush1.msra.mxu0 0.0
    %6304 = vmatprep.subr.mxu0 0.0
    %6305 = vmatpush1.msra.mxu0 0.0
    %6306 = vmatprep.subr.mxu0 0.0
    %6307 = vmatpush1.msra.mxu0 0.0
    %6308 = vmatprep.subr.mxu0 0.0
    %6309 = vmatpush1.msra.mxu0 0.0
    %6310 = vmatprep.subr.mxu0 0.0
    %6311 = vmatpush1.msra.mxu0 0.0
    %6312 = vmatprep.subr.mxu0 0.0
    %6313 = vmatpush1.msra.mxu0 0.0
    %6314 = vmatprep.subr.mxu0 0.0
    %6315 = vmatpush1.msra.mxu0 0.0
    %6316 = vmatprep.subr.mxu0 0.0
    %6317 = vmatpush1.msra.mxu0 0.0
    %6318 = vmatprep.subr.mxu0 0.0
    %6319 = vmatpush1.msra.mxu0 0.0
    %6320 = vmatprep.subr.mxu0 0.0
    %6321 = vmatpush1.msra.mxu0 0.0
    %6322 = vmatprep.subr.mxu0 0.0
    %6323 = vmatpush1.msra.mxu0 0.0
    %6324 = vmatprep.subr.mxu0 0.0
    %6325 = vmatpush1.msra.mxu0 0.0
    %6326 = vmatprep.subr.mxu0 0.0
    %6327 = vmatpush1.msra.mxu0 %v2683
    %6328 = vmatprep.subr.mxu0 0.0
    %6329 = vmatpush1.msra.mxu0 %v2682
    %6330 = vmatprep.subr.mxu0 0.0
    %6331 = vmatpush2.msra.mxu0 0.0
    %6332 = vmatprep.subr.mxu0 0.0
    %6333 = vmatpush2.msra.mxu0 0.0
    %6334 = vmatprep.subr.mxu0 0.0
    %6335 = vmatpush2.msra.mxu0 0.0
    %6336 = vmatprep.subr.mxu0 0.0
    %6337 = vmatpush2.msra.mxu0 0.0
    %6338 = vmatprep.subr.mxu0 0.0
    %6339 = vmatpush2.msra.mxu0 0.0
    %6340 = vmatprep.subr.mxu0 0.0
    %6341 = vmatpush2.msra.mxu0 0.0
    %6342 = vmatprep.subr.mxu0 0.0
    %6343 = vmatpush2.msra.mxu0 0.0
    %6344 = vmatprep.subr.mxu0 0.0
    %6345 = vmatpush2.msra.mxu0 0.0
    %6346 = vmatprep.subr.mxu0 0.0
    %6347 = vmatpush2.msra.mxu0 0.0
    %6348 = vmatprep.subr.mxu0 0.0
    %6349 = vmatpush2.msra.mxu0 0.0
    %6350 = vmatprep.subr.mxu0 0.0
    %6351 = vmatpush2.msra.mxu0 0.0
    %6352 = vmatprep.subr.mxu0 0.0
    %6353 = vmatpush2.msra.mxu0 0.0
    %6354 = vmatprep.subr.mxu0 0.0
    %6355 = vmatpush2.msra.mxu0 0.0
    %6356 = vmatprep.subr.mxu0 0.0
    %6357 = vmatpush2.msra.mxu0 0.0
    %6358 = vmatprep.subr.mxu0 0.0
    %6359 = vmatpush2.msra.mxu0 0.0
    %6360 = vmatprep.subr.mxu0 0.0
    %6361 = vmatpush2.msra.mxu0 0.0
    %6362 = vmatprep.mubr.f32.mxu0 0.0
    %6363 = vmatmul.mubr.f32.gmra.mxu0 %v6293
    %v6364 = vpop.f32.mrf.mxu0
    %v6365 = vadd.f32 0.0, %v6364
    %v6366 = vpop.f32.mrf.mxu0
    %6367 = vmatprep.mubr.f32.mxu0 0.0
    %6368 = vmatmul.mubr.f32.gmra.mxu0 %v6296
    %v6369 = vpop.f32.mrf.mxu0
    %v6370 = vadd.f32 0.0, %v6369
    %v6371 = vpop.f32.mrf.mxu0
    %6372 = vdwg.mxu0
    %v6373 = vadd.f32 %v6210, %v6365
    %v6374 = vadd.f32 %v6211, %v6370
    %6375 = vmatprep.subr.mxu0 0.0
    %6376 = vmatpush1.msra.mxu0 0.0
    %6377 = vmatprep.subr.mxu0 0.0
    %6378 = vmatpush1.msra.mxu0 0.0
    %6379 = vmatprep.subr.mxu0 0.0
    %6380 = vmatpush1.msra.mxu0 0.0
    %6381 = vmatprep.subr.mxu0 0.0
    %6382 = vmatpush1.msra.mxu0 0.0
    %6383 = vmatprep.subr.mxu0 0.0
    %6384 = vmatpush1.msra.mxu0 0.0
    %6385 = vmatprep.subr.mxu0 0.0
    %6386 = vmatpush1.msra.mxu0 0.0
    %6387 = vmatprep.subr.mxu0 0.0
    %6388 = vmatpush1.msra.mxu0 0.0
    %6389 = vmatprep.subr.mxu0 0.0
    %6390 = vmatpush1.msra.mxu0 0.0
    %6391 = vmatprep.subr.mxu0 0.0
    %6392 = vmatpush1.msra.mxu0 0.0
    %6393 = vmatprep.subr.mxu0 0.0
    %6394 = vmatpush1.msra.mxu0 0.0
    %6395 = vmatprep.subr.mxu0 0.0
    %6396 = vmatpush1.msra.mxu0 0.0
    %6397 = vmatprep.subr.mxu0 0.0
    %6398 = vmatpush1.msra.mxu0 0.0
    %6399 = vmatprep.subr.mxu0 0.0
    %6400 = vmatpush1.msra.mxu0 0.0
    %6401 = vmatprep.subr.mxu0 0.0
    %6402 = vmatpush1.msra.mxu0 0.0
    %6403 = vmatprep.subr.mxu0 0.0
    %6404 = vmatpush1.msra.mxu0 %v2768
    %6405 = vmatprep.subr.mxu0 0.0
    %6406 = vmatpush1.msra.mxu0 %v2767
    %6407 = vmatprep.subr.mxu0 0.0
    %6408 = vmatpush2.msra.mxu0 0.0
    %6409 = vmatprep.subr.mxu0 0.0
    %6410 = vmatpush2.msra.mxu0 0.0
    %6411 = vmatprep.subr.mxu0 0.0
    %6412 = vmatpush2.msra.mxu0 0.0
    %6413 = vmatprep.subr.mxu0 0.0
    %6414 = vmatpush2.msra.mxu0 0.0
    %6415 = vmatprep.subr.mxu0 0.0
    %6416 = vmatpush2.msra.mxu0 0.0
    %6417 = vmatprep.subr.mxu0 0.0
    %6418 = vmatpush2.msra.mxu0 0.0
    %6419 = vmatprep.subr.mxu0 0.0
    %6420 = vmatpush2.msra.mxu0 0.0
    %6421 = vmatprep.subr.mxu0 0.0
    %6422 = vmatpush2.msra.mxu0 0.0
    %6423 = vmatprep.subr.mxu0 0.0
    %6424 = vmatpush2.msra.mxu0 0.0
    %6425 = vmatprep.subr.mxu0 0.0
    %6426 = vmatpush2.msra.mxu0 0.0
    %6427 = vmatprep.subr.mxu0 0.0
    %6428 = vmatpush2.msra.mxu0 0.0
    %6429 = vmatprep.subr.mxu0 0.0
    %6430 = vmatpush2.msra.mxu0 0.0
    %6431 = vmatprep.subr.mxu0 0.0
    %6432 = vmatpush2.msra.mxu0 0.0
    %6433 = vmatprep.subr.mxu0 0.0
    %6434 = vmatpush2.msra.mxu0 0.0
    %6435 = vmatprep.subr.mxu0 0.0
    %6436 = vmatpush2.msra.mxu0 0.0
    %6437 = vmatprep.subr.mxu0 0.0
    %6438 = vmatpush2.msra.mxu0 0.0
    %6439 = vmatprep.mubr.f32.mxu0 0.0
    %6440 = vmatmul.mubr.f32.gmra.mxu0 %v6293
    %v6441 = vpop.f32.mrf.mxu0
    %v6442 = vadd.f32 0.0, %v6441
    %v6443 = vpop.f32.mrf.mxu0
    %6444 = vmatprep.mubr.f32.mxu0 0.0
    %6445 = vmatmul.mubr.f32.gmra.mxu0 %v6296
    %v6446 = vpop.f32.mrf.mxu0
    %v6447 = vadd.f32 0.0, %v6446
    %v6448 = vpop.f32.mrf.mxu0
    %6449 = vdwg.mxu0
    %v6450 = vadd.f32 %v6287, %v6442
    %v6451 = vadd.f32 %v6288, %v6447
    %s6452 = scalar_lea.vmem %s0, 240
    %v6453 = vld [vmem:[%s6452] sm:$0xff]
    %v6454 = vld [vmem:[%s6452 + $0x8] sm:$0xff]
    %v6456 = vsel %vm72, %v6453, 0
    %v6459 = vsel %vm72, %v6454, 0
    %6461 = vmatprep.subr.mxu0 0.0
    %6462 = vmatpush1.msra.mxu0 0.0
    %6463 = vmatprep.subr.mxu0 0.0
    %6464 = vmatpush1.msra.mxu0 0.0
    %6465 = vmatprep.subr.mxu0 0.0
    %6466 = vmatpush1.msra.mxu0 0.0
    %6467 = vmatprep.subr.mxu0 0.0
    %6468 = vmatpush1.msra.mxu0 0.0
    %6469 = vmatprep.subr.mxu0 0.0
    %6470 = vmatpush1.msra.mxu0 0.0
    %6471 = vmatprep.subr.mxu0 0.0
    %6472 = vmatpush1.msra.mxu0 0.0
    %6473 = vmatprep.subr.mxu0 0.0
    %6474 = vmatpush1.msra.mxu0 0.0
    %6475 = vmatprep.subr.mxu0 0.0
    %6476 = vmatpush1.msra.mxu0 0.0
    %6477 = vmatprep.subr.mxu0 0.0
    %6478 = vmatpush1.msra.mxu0 0.0
    %6479 = vmatprep.subr.mxu0 0.0
    %6480 = vmatpush1.msra.mxu0 0.0
    %6481 = vmatprep.subr.mxu0 0.0
    %6482 = vmatpush1.msra.mxu0 0.0
    %6483 = vmatprep.subr.mxu0 0.0
    %6484 = vmatpush1.msra.mxu0 0.0
    %6485 = vmatprep.subr.mxu0 0.0
    %6486 = vmatpush1.msra.mxu0 0.0
    %6487 = vmatprep.subr.mxu0 0.0
    %6488 = vmatpush1.msra.mxu0 0.0
    %6489 = vmatprep.subr.mxu0 0.0
    %6490 = vmatpush1.msra.mxu0 %v2854
    %6491 = vmatprep.subr.mxu0 0.0
    %6492 = vmatpush1.msra.mxu0 %v2853
    %6493 = vmatprep.subr.mxu0 0.0
    %6494 = vmatpush2.msra.mxu0 0.0
    %6495 = vmatprep.subr.mxu0 0.0
    %6496 = vmatpush2.msra.mxu0 0.0
    %6497 = vmatprep.subr.mxu0 0.0
    %6498 = vmatpush2.msra.mxu0 0.0
    %6499 = vmatprep.subr.mxu0 0.0
    %6500 = vmatpush2.msra.mxu0 0.0
    %6501 = vmatprep.subr.mxu0 0.0
    %6502 = vmatpush2.msra.mxu0 0.0
    %6503 = vmatprep.subr.mxu0 0.0
    %6504 = vmatpush2.msra.mxu0 0.0
    %6505 = vmatprep.subr.mxu0 0.0
    %6506 = vmatpush2.msra.mxu0 0.0
    %6507 = vmatprep.subr.mxu0 0.0
    %6508 = vmatpush2.msra.mxu0 0.0
    %6509 = vmatprep.subr.mxu0 0.0
    %6510 = vmatpush2.msra.mxu0 0.0
    %6511 = vmatprep.subr.mxu0 0.0
    %6512 = vmatpush2.msra.mxu0 0.0
    %6513 = vmatprep.subr.mxu0 0.0
    %6514 = vmatpush2.msra.mxu0 0.0
    %6515 = vmatprep.subr.mxu0 0.0
    %6516 = vmatpush2.msra.mxu0 0.0
    %6517 = vmatprep.subr.mxu0 0.0
    %6518 = vmatpush2.msra.mxu0 0.0
    %6519 = vmatprep.subr.mxu0 0.0
    %6520 = vmatpush2.msra.mxu0 0.0
    %6521 = vmatprep.subr.mxu0 0.0
    %6522 = vmatpush2.msra.mxu0 0.0
    %6523 = vmatprep.subr.mxu0 0.0
    %6524 = vmatpush2.msra.mxu0 0.0
    %6525 = vmatprep.mubr.f32.mxu0 0.0
    %6526 = vmatmul.mubr.f32.gmra.mxu0 %v6456
    %v6527 = vpop.f32.mrf.mxu0
    %v6528 = vadd.f32 0.0, %v6527
    %v6529 = vpop.f32.mrf.mxu0
    %6530 = vmatprep.mubr.f32.mxu0 0.0
    %6531 = vmatmul.mubr.f32.gmra.mxu0 %v6459
    %v6532 = vpop.f32.mrf.mxu0
    %v6533 = vadd.f32 0.0, %v6532
    %v6534 = vpop.f32.mrf.mxu0
    %6535 = vdwg.mxu0
    %v6536 = vadd.f32 %v6373, %v6528
    %v6537 = vadd.f32 %v6374, %v6533
    %6538 = vmatprep.subr.mxu0 0.0
    %6539 = vmatpush1.msra.mxu0 0.0
    %6540 = vmatprep.subr.mxu0 0.0
    %6541 = vmatpush1.msra.mxu0 0.0
    %6542 = vmatprep.subr.mxu0 0.0
    %6543 = vmatpush1.msra.mxu0 0.0
    %6544 = vmatprep.subr.mxu0 0.0
    %6545 = vmatpush1.msra.mxu0 0.0
    %6546 = vmatprep.subr.mxu0 0.0
    %6547 = vmatpush1.msra.mxu0 0.0
    %6548 = vmatprep.subr.mxu0 0.0
    %6549 = vmatpush1.msra.mxu0 0.0
    %6550 = vmatprep.subr.mxu0 0.0
    %6551 = vmatpush1.msra.mxu0 0.0
    %6552 = vmatprep.subr.mxu0 0.0
    %6553 = vmatpush1.msra.mxu0 0.0
    %6554 = vmatprep.subr.mxu0 0.0
    %6555 = vmatpush1.msra.mxu0 0.0
    %6556 = vmatprep.subr.mxu0 0.0
    %6557 = vmatpush1.msra.mxu0 0.0
    %6558 = vmatprep.subr.mxu0 0.0
    %6559 = vmatpush1.msra.mxu0 0.0
    %6560 = vmatprep.subr.mxu0 0.0
    %6561 = vmatpush1.msra.mxu0 0.0
    %6562 = vmatprep.subr.mxu0 0.0
    %6563 = vmatpush1.msra.mxu0 0.0
    %6564 = vmatprep.subr.mxu0 0.0
    %6565 = vmatpush1.msra.mxu0 0.0
    %6566 = vmatprep.subr.mxu0 0.0
    %6567 = vmatpush1.msra.mxu0 %v2939
    %6568 = vmatprep.subr.mxu0 0.0
    %6569 = vmatpush1.msra.mxu0 %v2938
    %6570 = vmatprep.subr.mxu0 0.0
    %6571 = vmatpush2.msra.mxu0 0.0
    %6572 = vmatprep.subr.mxu0 0.0
    %6573 = vmatpush2.msra.mxu0 0.0
    %6574 = vmatprep.subr.mxu0 0.0
    %6575 = vmatpush2.msra.mxu0 0.0
    %6576 = vmatprep.subr.mxu0 0.0
    %6577 = vmatpush2.msra.mxu0 0.0
    %6578 = vmatprep.subr.mxu0 0.0
    %6579 = vmatpush2.msra.mxu0 0.0
    %6580 = vmatprep.subr.mxu0 0.0
    %6581 = vmatpush2.msra.mxu0 0.0
    %6582 = vmatprep.subr.mxu0 0.0
    %6583 = vmatpush2.msra.mxu0 0.0
    %6584 = vmatprep.subr.mxu0 0.0
    %6585 = vmatpush2.msra.mxu0 0.0
    %6586 = vmatprep.subr.mxu0 0.0
    %6587 = vmatpush2.msra.mxu0 0.0
    %6588 = vmatprep.subr.mxu0 0.0
    %6589 = vmatpush2.msra.mxu0 0.0
    %6590 = vmatprep.subr.mxu0 0.0
    %6591 = vmatpush2.msra.mxu0 0.0
    %6592 = vmatprep.subr.mxu0 0.0
    %6593 = vmatpush2.msra.mxu0 0.0
    %6594 = vmatprep.subr.mxu0 0.0
    %6595 = vmatpush2.msra.mxu0 0.0
    %6596 = vmatprep.subr.mxu0 0.0
    %6597 = vmatpush2.msra.mxu0 0.0
    %6598 = vmatprep.subr.mxu0 0.0
    %6599 = vmatpush2.msra.mxu0 0.0
    %6600 = vmatprep.subr.mxu0 0.0
    %6601 = vmatpush2.msra.mxu0 0.0
    %6602 = vmatprep.mubr.f32.mxu0 0.0
    %6603 = vmatmul.mubr.f32.gmra.mxu0 %v6456
    %v6604 = vpop.f32.mrf.mxu0
    %v6605 = vadd.f32 0.0, %v6604
    %v6606 = vpop.f32.mrf.mxu0
    %6607 = vmatprep.mubr.f32.mxu0 0.0
    %6608 = vmatmul.mubr.f32.gmra.mxu0 %v6459
    %v6609 = vpop.f32.mrf.mxu0
    %v6610 = vadd.f32 0.0, %v6609
    %v6611 = vpop.f32.mrf.mxu0
    %6612 = vdwg.mxu0
    %v6613 = vadd.f32 %v6450, %v6605
    %v6614 = vadd.f32 %v6451, %v6610
    %s6615 = scalar_lea.vmem %s0, 256
    %v6616 = vld [vmem:[%s6615] sm:$0xff]
    %v6617 = vld [vmem:[%s6615 + $0x8] sm:$0xff]
    %v6619 = vsel %vm72, %v6616, 0
    %v6622 = vsel %vm72, %v6617, 0
    %6624 = vmatprep.subr.mxu0 0.0
    %6625 = vmatpush1.msra.mxu0 0.0
    %6626 = vmatprep.subr.mxu0 0.0
    %6627 = vmatpush1.msra.mxu0 0.0
    %6628 = vmatprep.subr.mxu0 0.0
    %6629 = vmatpush1.msra.mxu0 0.0
    %6630 = vmatprep.subr.mxu0 0.0
    %6631 = vmatpush1.msra.mxu0 0.0
    %6632 = vmatprep.subr.mxu0 0.0
    %6633 = vmatpush1.msra.mxu0 0.0
    %6634 = vmatprep.subr.mxu0 0.0
    %6635 = vmatpush1.msra.mxu0 0.0
    %6636 = vmatprep.subr.mxu0 0.0
    %6637 = vmatpush1.msra.mxu0 0.0
    %6638 = vmatprep.subr.mxu0 0.0
    %6639 = vmatpush1.msra.mxu0 0.0
    %6640 = vmatprep.subr.mxu0 0.0
    %6641 = vmatpush1.msra.mxu0 0.0
    %6642 = vmatprep.subr.mxu0 0.0
    %6643 = vmatpush1.msra.mxu0 0.0
    %6644 = vmatprep.subr.mxu0 0.0
    %6645 = vmatpush1.msra.mxu0 0.0
    %6646 = vmatprep.subr.mxu0 0.0
    %6647 = vmatpush1.msra.mxu0 0.0
    %6648 = vmatprep.subr.mxu0 0.0
    %6649 = vmatpush1.msra.mxu0 0.0
    %6650 = vmatprep.subr.mxu0 0.0
    %6651 = vmatpush1.msra.mxu0 0.0
    %6652 = vmatprep.subr.mxu0 0.0
    %6653 = vmatpush1.msra.mxu0 %v3025
    %6654 = vmatprep.subr.mxu0 0.0
    %6655 = vmatpush1.msra.mxu0 %v3024
    %6656 = vmatprep.subr.mxu0 0.0
    %6657 = vmatpush2.msra.mxu0 0.0
    %6658 = vmatprep.subr.mxu0 0.0
    %6659 = vmatpush2.msra.mxu0 0.0
    %6660 = vmatprep.subr.mxu0 0.0
    %6661 = vmatpush2.msra.mxu0 0.0
    %6662 = vmatprep.subr.mxu0 0.0
    %6663 = vmatpush2.msra.mxu0 0.0
    %6664 = vmatprep.subr.mxu0 0.0
    %6665 = vmatpush2.msra.mxu0 0.0
    %6666 = vmatprep.subr.mxu0 0.0
    %6667 = vmatpush2.msra.mxu0 0.0
    %6668 = vmatprep.subr.mxu0 0.0
    %6669 = vmatpush2.msra.mxu0 0.0
    %6670 = vmatprep.subr.mxu0 0.0
    %6671 = vmatpush2.msra.mxu0 0.0
    %6672 = vmatprep.subr.mxu0 0.0
    %6673 = vmatpush2.msra.mxu0 0.0
    %6674 = vmatprep.subr.mxu0 0.0
    %6675 = vmatpush2.msra.mxu0 0.0
    %6676 = vmatprep.subr.mxu0 0.0
    %6677 = vmatpush2.msra.mxu0 0.0
    %6678 = vmatprep.subr.mxu0 0.0
    %6679 = vmatpush2.msra.mxu0 0.0
    %6680 = vmatprep.subr.mxu0 0.0
    %6681 = vmatpush2.msra.mxu0 0.0
    %6682 = vmatprep.subr.mxu0 0.0
    %6683 = vmatpush2.msra.mxu0 0.0
    %6684 = vmatprep.subr.mxu0 0.0
    %6685 = vmatpush2.msra.mxu0 0.0
    %6686 = vmatprep.subr.mxu0 0.0
    %6687 = vmatpush2.msra.mxu0 0.0
    %6688 = vmatprep.mubr.f32.mxu0 0.0
    %6689 = vmatmul.mubr.f32.gmra.mxu0 %v6619
    %v6690 = vpop.f32.mrf.mxu0
    %v6691 = vadd.f32 0.0, %v6690
    %v6692 = vpop.f32.mrf.mxu0
    %6693 = vmatprep.mubr.f32.mxu0 0.0
    %6694 = vmatmul.mubr.f32.gmra.mxu0 %v6622
    %v6695 = vpop.f32.mrf.mxu0
    %v6696 = vadd.f32 0.0, %v6695
    %v6697 = vpop.f32.mrf.mxu0
    %6698 = vdwg.mxu0
    %v6699 = vadd.f32 %v6536, %v6691
    %v6700 = vadd.f32 %v6537, %v6696
    %6701 = vmatprep.subr.mxu0 0.0
    %6702 = vmatpush1.msra.mxu0 0.0
    %6703 = vmatprep.subr.mxu0 0.0
    %6704 = vmatpush1.msra.mxu0 0.0
    %6705 = vmatprep.subr.mxu0 0.0
    %6706 = vmatpush1.msra.mxu0 0.0
    %6707 = vmatprep.subr.mxu0 0.0
    %6708 = vmatpush1.msra.mxu0 0.0
    %6709 = vmatprep.subr.mxu0 0.0
    %6710 = vmatpush1.msra.mxu0 0.0
    %6711 = vmatprep.subr.mxu0 0.0
    %6712 = vmatpush1.msra.mxu0 0.0
    %6713 = vmatprep.subr.mxu0 0.0
    %6714 = vmatpush1.msra.mxu0 0.0
    %6715 = vmatprep.subr.mxu0 0.0
    %6716 = vmatpush1.msra.mxu0 0.0
    %6717 = vmatprep.subr.mxu0 0.0
    %6718 = vmatpush1.msra.mxu0 0.0
    %6719 = vmatprep.subr.mxu0 0.0
    %6720 = vmatpush1.msra.mxu0 0.0
    %6721 = vmatprep.subr.mxu0 0.0
    %6722 = vmatpush1.msra.mxu0 0.0
    %6723 = vmatprep.subr.mxu0 0.0
    %6724 = vmatpush1.msra.mxu0 0.0
    %6725 = vmatprep.subr.mxu0 0.0
    %6726 = vmatpush1.msra.mxu0 0.0
    %6727 = vmatprep.subr.mxu0 0.0
    %6728 = vmatpush1.msra.mxu0 0.0
    %6729 = vmatprep.subr.mxu0 0.0
    %6730 = vmatpush1.msra.mxu0 %v3110
    %6731 = vmatprep.subr.mxu0 0.0
    %6732 = vmatpush1.msra.mxu0 %v3109
    %6733 = vmatprep.subr.mxu0 0.0
    %6734 = vmatpush2.msra.mxu0 0.0
    %6735 = vmatprep.subr.mxu0 0.0
    %6736 = vmatpush2.msra.mxu0 0.0
    %6737 = vmatprep.subr.mxu0 0.0
    %6738 = vmatpush2.msra.mxu0 0.0
    %6739 = vmatprep.subr.mxu0 0.0
    %6740 = vmatpush2.msra.mxu0 0.0
    %6741 = vmatprep.subr.mxu0 0.0
    %6742 = vmatpush2.msra.mxu0 0.0
    %6743 = vmatprep.subr.mxu0 0.0
    %6744 = vmatpush2.msra.mxu0 0.0
    %6745 = vmatprep.subr.mxu0 0.0
    %6746 = vmatpush2.msra.mxu0 0.0
    %6747 = vmatprep.subr.mxu0 0.0
    %6748 = vmatpush2.msra.mxu0 0.0
    %6749 = vmatprep.subr.mxu0 0.0
    %6750 = vmatpush2.msra.mxu0 0.0
    %6751 = vmatprep.subr.mxu0 0.0
    %6752 = vmatpush2.msra.mxu0 0.0
    %6753 = vmatprep.subr.mxu0 0.0
    %6754 = vmatpush2.msra.mxu0 0.0
    %6755 = vmatprep.subr.mxu0 0.0
    %6756 = vmatpush2.msra.mxu0 0.0
    %6757 = vmatprep.subr.mxu0 0.0
    %6758 = vmatpush2.msra.mxu0 0.0
    %6759 = vmatprep.subr.mxu0 0.0
    %6760 = vmatpush2.msra.mxu0 0.0
    %6761 = vmatprep.subr.mxu0 0.0
    %6762 = vmatpush2.msra.mxu0 0.0
    %6763 = vmatprep.subr.mxu0 0.0
    %6764 = vmatpush2.msra.mxu0 0.0
    %6765 = vmatprep.mubr.f32.mxu0 0.0
    %6766 = vmatmul.mubr.f32.gmra.mxu0 %v6619
    %v6767 = vpop.f32.mrf.mxu0
    %v6768 = vadd.f32 0.0, %v6767
    %v6769 = vpop.f32.mrf.mxu0
    %6770 = vmatprep.mubr.f32.mxu0 0.0
    %6771 = vmatmul.mubr.f32.gmra.mxu0 %v6622
    %v6772 = vpop.f32.mrf.mxu0
    %v6773 = vadd.f32 0.0, %v6772
    %v6774 = vpop.f32.mrf.mxu0
    %6775 = vdwg.mxu0
    %v6776 = vadd.f32 %v6613, %v6768
    %v6777 = vadd.f32 %v6614, %v6773
    %s6778 = scalar_lea.vmem %s0, 272
    %v6779 = vld [vmem:[%s6778] sm:$0xff]
    %v6780 = vld [vmem:[%s6778 + $0x8] sm:$0xff]
    %v6782 = vsel %vm72, %v6779, 0
    %v6785 = vsel %vm72, %v6780, 0
    %6787 = vmatprep.subr.mxu0 0.0
    %6788 = vmatpush1.msra.mxu0 0.0
    %6789 = vmatprep.subr.mxu0 0.0
    %6790 = vmatpush1.msra.mxu0 0.0
    %6791 = vmatprep.subr.mxu0 0.0
    %6792 = vmatpush1.msra.mxu0 0.0
    %6793 = vmatprep.subr.mxu0 0.0
    %6794 = vmatpush1.msra.mxu0 0.0
    %6795 = vmatprep.subr.mxu0 0.0
    %6796 = vmatpush1.msra.mxu0 0.0
    %6797 = vmatprep.subr.mxu0 0.0
    %6798 = vmatpush1.msra.mxu0 0.0
    %6799 = vmatprep.subr.mxu0 0.0
    %6800 = vmatpush1.msra.mxu0 0.0
    %6801 = vmatprep.subr.mxu0 0.0
    %6802 = vmatpush1.msra.mxu0 0.0
    %6803 = vmatprep.subr.mxu0 0.0
    %6804 = vmatpush1.msra.mxu0 0.0
    %6805 = vmatprep.subr.mxu0 0.0
    %6806 = vmatpush1.msra.mxu0 0.0
    %6807 = vmatprep.subr.mxu0 0.0
    %6808 = vmatpush1.msra.mxu0 0.0
    %6809 = vmatprep.subr.mxu0 0.0
    %6810 = vmatpush1.msra.mxu0 0.0
    %6811 = vmatprep.subr.mxu0 0.0
    %6812 = vmatpush1.msra.mxu0 0.0
    %6813 = vmatprep.subr.mxu0 0.0
    %6814 = vmatpush1.msra.mxu0 0.0
    %6815 = vmatprep.subr.mxu0 0.0
    %6816 = vmatpush1.msra.mxu0 %v3196
    %6817 = vmatprep.subr.mxu0 0.0
    %6818 = vmatpush1.msra.mxu0 %v3195
    %6819 = vmatprep.subr.mxu0 0.0
    %6820 = vmatpush2.msra.mxu0 0.0
    %6821 = vmatprep.subr.mxu0 0.0
    %6822 = vmatpush2.msra.mxu0 0.0
    %6823 = vmatprep.subr.mxu0 0.0
    %6824 = vmatpush2.msra.mxu0 0.0
    %6825 = vmatprep.subr.mxu0 0.0
    %6826 = vmatpush2.msra.mxu0 0.0
    %6827 = vmatprep.subr.mxu0 0.0
    %6828 = vmatpush2.msra.mxu0 0.0
    %6829 = vmatprep.subr.mxu0 0.0
    %6830 = vmatpush2.msra.mxu0 0.0
    %6831 = vmatprep.subr.mxu0 0.0
    %6832 = vmatpush2.msra.mxu0 0.0
    %6833 = vmatprep.subr.mxu0 0.0
    %6834 = vmatpush2.msra.mxu0 0.0
    %6835 = vmatprep.subr.mxu0 0.0
    %6836 = vmatpush2.msra.mxu0 0.0
    %6837 = vmatprep.subr.mxu0 0.0
    %6838 = vmatpush2.msra.mxu0 0.0
    %6839 = vmatprep.subr.mxu0 0.0
    %6840 = vmatpush2.msra.mxu0 0.0
    %6841 = vmatprep.subr.mxu0 0.0
    %6842 = vmatpush2.msra.mxu0 0.0
    %6843 = vmatprep.subr.mxu0 0.0
    %6844 = vmatpush2.msra.mxu0 0.0
    %6845 = vmatprep.subr.mxu0 0.0
    %6846 = vmatpush2.msra.mxu0 0.0
    %6847 = vmatprep.subr.mxu0 0.0
    %6848 = vmatpush2.msra.mxu0 0.0
    %6849 = vmatprep.subr.mxu0 0.0
    %6850 = vmatpush2.msra.mxu0 0.0
    %6851 = vmatprep.mubr.f32.mxu0 0.0
    %6852 = vmatmul.mubr.f32.gmra.mxu0 %v6782
    %v6853 = vpop.f32.mrf.mxu0
    %v6854 = vadd.f32 0.0, %v6853
    %v6855 = vpop.f32.mrf.mxu0
    %6856 = vmatprep.mubr.f32.mxu0 0.0
    %6857 = vmatmul.mubr.f32.gmra.mxu0 %v6785
    %v6858 = vpop.f32.mrf.mxu0
    %v6859 = vadd.f32 0.0, %v6858
    %v6860 = vpop.f32.mrf.mxu0
    %6861 = vdwg.mxu0
    %v6862 = vadd.f32 %v6699, %v6854
    %v6863 = vadd.f32 %v6700, %v6859
    %6864 = vmatprep.subr.mxu0 0.0
    %6865 = vmatpush1.msra.mxu0 0.0
    %6866 = vmatprep.subr.mxu0 0.0
    %6867 = vmatpush1.msra.mxu0 0.0
    %6868 = vmatprep.subr.mxu0 0.0
    %6869 = vmatpush1.msra.mxu0 0.0
    %6870 = vmatprep.subr.mxu0 0.0
    %6871 = vmatpush1.msra.mxu0 0.0
    %6872 = vmatprep.subr.mxu0 0.0
    %6873 = vmatpush1.msra.mxu0 0.0
    %6874 = vmatprep.subr.mxu0 0.0
    %6875 = vmatpush1.msra.mxu0 0.0
    %6876 = vmatprep.subr.mxu0 0.0
    %6877 = vmatpush1.msra.mxu0 0.0
    %6878 = vmatprep.subr.mxu0 0.0
    %6879 = vmatpush1.msra.mxu0 0.0
    %6880 = vmatprep.subr.mxu0 0.0
    %6881 = vmatpush1.msra.mxu0 0.0
    %6882 = vmatprep.subr.mxu0 0.0
    %6883 = vmatpush1.msra.mxu0 0.0
    %6884 = vmatprep.subr.mxu0 0.0
    %6885 = vmatpush1.msra.mxu0 0.0
    %6886 = vmatprep.subr.mxu0 0.0
    %6887 = vmatpush1.msra.mxu0 0.0
    %6888 = vmatprep.subr.mxu0 0.0
    %6889 = vmatpush1.msra.mxu0 0.0
    %6890 = vmatprep.subr.mxu0 0.0
    %6891 = vmatpush1.msra.mxu0 0.0
    %6892 = vmatprep.subr.mxu0 0.0
    %6893 = vmatpush1.msra.mxu0 %v3281
    %6894 = vmatprep.subr.mxu0 0.0
    %6895 = vmatpush1.msra.mxu0 %v3280
    %6896 = vmatprep.subr.mxu0 0.0
    %6897 = vmatpush2.msra.mxu0 0.0
    %6898 = vmatprep.subr.mxu0 0.0
    %6899 = vmatpush2.msra.mxu0 0.0
    %6900 = vmatprep.subr.mxu0 0.0
    %6901 = vmatpush2.msra.mxu0 0.0
    %6902 = vmatprep.subr.mxu0 0.0
    %6903 = vmatpush2.msra.mxu0 0.0
    %6904 = vmatprep.subr.mxu0 0.0
    %6905 = vmatpush2.msra.mxu0 0.0
    %6906 = vmatprep.subr.mxu0 0.0
    %6907 = vmatpush2.msra.mxu0 0.0
    %6908 = vmatprep.subr.mxu0 0.0
    %6909 = vmatpush2.msra.mxu0 0.0
    %6910 = vmatprep.subr.mxu0 0.0
    %6911 = vmatpush2.msra.mxu0 0.0
    %6912 = vmatprep.subr.mxu0 0.0
    %6913 = vmatpush2.msra.mxu0 0.0
    %6914 = vmatprep.subr.mxu0 0.0
    %6915 = vmatpush2.msra.mxu0 0.0
    %6916 = vmatprep.subr.mxu0 0.0
    %6917 = vmatpush2.msra.mxu0 0.0
    %6918 = vmatprep.subr.mxu0 0.0
    %6919 = vmatpush2.msra.mxu0 0.0
    %6920 = vmatprep.subr.mxu0 0.0
    %6921 = vmatpush2.msra.mxu0 0.0
    %6922 = vmatprep.subr.mxu0 0.0
    %6923 = vmatpush2.msra.mxu0 0.0
    %6924 = vmatprep.subr.mxu0 0.0
    %6925 = vmatpush2.msra.mxu0 0.0
    %6926 = vmatprep.subr.mxu0 0.0
    %6927 = vmatpush2.msra.mxu0 0.0
    %6928 = vmatprep.mubr.f32.mxu0 0.0
    %6929 = vmatmul.mubr.f32.gmra.mxu0 %v6782
    %v6930 = vpop.f32.mrf.mxu0
    %v6931 = vadd.f32 0.0, %v6930
    %v6932 = vpop.f32.mrf.mxu0
    %6933 = vmatprep.mubr.f32.mxu0 0.0
    %6934 = vmatmul.mubr.f32.gmra.mxu0 %v6785
    %v6935 = vpop.f32.mrf.mxu0
    %v6936 = vadd.f32 0.0, %v6935
    %v6937 = vpop.f32.mrf.mxu0
    %6938 = vdwg.mxu0
    %v6939 = vadd.f32 %v6776, %v6931
    %v6940 = vadd.f32 %v6777, %v6936
    %6941 = vmatprep.subr.mxu0 0.0
    %6942 = vmatpush1.msra.mxu0 %v3374
    %6943 = vmatprep.subr.mxu0 0.0
    %6944 = vmatpush1.msra.mxu0 %v3373
    %6945 = vmatprep.subr.mxu0 0.0
    %6946 = vmatpush1.msra.mxu0 %v3372
    %6947 = vmatprep.subr.mxu0 0.0
    %6948 = vmatpush1.msra.mxu0 %v3371
    %6949 = vmatprep.subr.mxu0 0.0
    %6950 = vmatpush1.msra.mxu0 %v3370
    %6951 = vmatprep.subr.mxu0 0.0
    %6952 = vmatpush1.msra.mxu0 %v3369
    %6953 = vmatprep.subr.mxu0 0.0
    %6954 = vmatpush1.msra.mxu0 %v3368
    %6955 = vmatprep.subr.mxu0 0.0
    %6956 = vmatpush1.msra.mxu0 %v3367
    %6957 = vmatprep.subr.mxu0 0.0
    %6958 = vmatpush1.msra.mxu0 %v3366
    %6959 = vmatprep.subr.mxu0 0.0
    %6960 = vmatpush1.msra.mxu0 %v3365
    %6961 = vmatprep.subr.mxu0 0.0
    %6962 = vmatpush1.msra.mxu0 %v3364
    %6963 = vmatprep.subr.mxu0 0.0
    %6964 = vmatpush1.msra.mxu0 %v3363
    %6965 = vmatprep.subr.mxu0 0.0
    %6966 = vmatpush1.msra.mxu0 %v3362
    %6967 = vmatprep.subr.mxu0 0.0
    %6968 = vmatpush1.msra.mxu0 %v3361
    %6969 = vmatprep.subr.mxu0 0.0
    %6970 = vmatpush1.msra.mxu0 %v3360
    %6971 = vmatprep.subr.mxu0 0.0
    %6972 = vmatpush1.msra.mxu0 %v3359
    %6973 = vmatprep.subr.mxu0 0.0
    %6974 = vmatpush2.msra.mxu0 0.0
    %6975 = vmatprep.subr.mxu0 0.0
    %6976 = vmatpush2.msra.mxu0 0.0
    %6977 = vmatprep.subr.mxu0 0.0
    %6978 = vmatpush2.msra.mxu0 0.0
    %6979 = vmatprep.subr.mxu0 0.0
    %6980 = vmatpush2.msra.mxu0 0.0
    %6981 = vmatprep.subr.mxu0 0.0
    %6982 = vmatpush2.msra.mxu0 0.0
    %6983 = vmatprep.subr.mxu0 0.0
    %6984 = vmatpush2.msra.mxu0 0.0
    %6985 = vmatprep.subr.mxu0 0.0
    %6986 = vmatpush2.msra.mxu0 0.0
    %6987 = vmatprep.subr.mxu0 0.0
    %6988 = vmatpush2.msra.mxu0 0.0
    %6989 = vmatprep.subr.mxu0 0.0
    %6990 = vmatpush2.msra.mxu0 0.0
    %6991 = vmatprep.subr.mxu0 0.0
    %6992 = vmatpush2.msra.mxu0 0.0
    %6993 = vmatprep.subr.mxu0 0.0
    %6994 = vmatpush2.msra.mxu0 0.0
    %6995 = vmatprep.subr.mxu0 0.0
    %6996 = vmatpush2.msra.mxu0 0.0
    %6997 = vmatprep.subr.mxu0 0.0
    %6998 = vmatpush2.msra.mxu0 0.0
    %6999 = vmatprep.subr.mxu0 0.0
    %7000 = vmatpush2.msra.mxu0 0.0
    %7001 = vmatprep.subr.mxu0 0.0
    %7002 = vmatpush2.msra.mxu0 0.0
    %7003 = vmatprep.subr.mxu0 0.0
    %7004 = vmatpush2.msra.mxu0 0.0
    %7005 = vmatprep.mubr.f32.mxu0 0.0
    %7006 = vmatmul.mubr.f32.gmra.mxu0 %v6862
    %v7007 = vpop.f32.mrf.mxu0
    %v7008 = vadd.f32 %v3379, %v7007
    %v7009 = vpop.f32.mrf.mxu0
    %7010 = vmatprep.mubr.f32.mxu0 0.0
    %7011 = vmatmul.mubr.f32.gmra.mxu0 %v6863
    %v7012 = vpop.f32.mrf.mxu0
    %v7013 = vadd.f32 %v3379, %v7012
    %v7014 = vpop.f32.mrf.mxu0
    %7015 = vdwg.mxu0
    %v7016 = vmax.f32 %v7008, 0.0
    %v7017 = vmax.f32 %v7013, 0.0
    %7018 = vmatprep.subr.mxu0 0.0
    %7019 = vmatpush1.msra.mxu0 %v3374
    %7020 = vmatprep.subr.mxu0 0.0
    %7021 = vmatpush1.msra.mxu0 %v3373
    %7022 = vmatprep.subr.mxu0 0.0
    %7023 = vmatpush1.msra.mxu0 %v3372
    %7024 = vmatprep.subr.mxu0 0.0
    %7025 = vmatpush1.msra.mxu0 %v3371
    %7026 = vmatprep.subr.mxu0 0.0
    %7027 = vmatpush1.msra.mxu0 %v3370
    %7028 = vmatprep.subr.mxu0 0.0
    %7029 = vmatpush1.msra.mxu0 %v3369
    %7030 = vmatprep.subr.mxu0 0.0
    %7031 = vmatpush1.msra.mxu0 %v3368
    %7032 = vmatprep.subr.mxu0 0.0
    %7033 = vmatpush1.msra.mxu0 %v3367
    %7034 = vmatprep.subr.mxu0 0.0
    %7035 = vmatpush1.msra.mxu0 %v3366
    %7036 = vmatprep.subr.mxu0 0.0
    %7037 = vmatpush1.msra.mxu0 %v3365
    %7038 = vmatprep.subr.mxu0 0.0
    %7039 = vmatpush1.msra.mxu0 %v3364
    %7040 = vmatprep.subr.mxu0 0.0
    %7041 = vmatpush1.msra.mxu0 %v3363
    %7042 = vmatprep.subr.mxu0 0.0
    %7043 = vmatpush1.msra.mxu0 %v3362
    %7044 = vmatprep.subr.mxu0 0.0
    %7045 = vmatpush1.msra.mxu0 %v3361
    %7046 = vmatprep.subr.mxu0 0.0
    %7047 = vmatpush1.msra.mxu0 %v3360
    %7048 = vmatprep.subr.mxu0 0.0
    %7049 = vmatpush1.msra.mxu0 %v3359
    %7050 = vmatprep.subr.mxu0 0.0
    %7051 = vmatpush2.msra.mxu0 0.0
    %7052 = vmatprep.subr.mxu0 0.0
    %7053 = vmatpush2.msra.mxu0 0.0
    %7054 = vmatprep.subr.mxu0 0.0
    %7055 = vmatpush2.msra.mxu0 0.0
    %7056 = vmatprep.subr.mxu0 0.0
    %7057 = vmatpush2.msra.mxu0 0.0
    %7058 = vmatprep.subr.mxu0 0.0
    %7059 = vmatpush2.msra.mxu0 0.0
    %7060 = vmatprep.subr.mxu0 0.0
    %7061 = vmatpush2.msra.mxu0 0.0
    %7062 = vmatprep.subr.mxu0 0.0
    %7063 = vmatpush2.msra.mxu0 0.0
    %7064 = vmatprep.subr.mxu0 0.0
    %7065 = vmatpush2.msra.mxu0 0.0
    %7066 = vmatprep.subr.mxu0 0.0
    %7067 = vmatpush2.msra.mxu0 0.0
    %7068 = vmatprep.subr.mxu0 0.0
    %7069 = vmatpush2.msra.mxu0 0.0
    %7070 = vmatprep.subr.mxu0 0.0
    %7071 = vmatpush2.msra.mxu0 0.0
    %7072 = vmatprep.subr.mxu0 0.0
    %7073 = vmatpush2.msra.mxu0 0.0
    %7074 = vmatprep.subr.mxu0 0.0
    %7075 = vmatpush2.msra.mxu0 0.0
    %7076 = vmatprep.subr.mxu0 0.0
    %7077 = vmatpush2.msra.mxu0 0.0
    %7078 = vmatprep.subr.mxu0 0.0
    %7079 = vmatpush2.msra.mxu0 0.0
    %7080 = vmatprep.subr.mxu0 0.0
    %7081 = vmatpush2.msra.mxu0 0.0
    %7082 = vmatprep.mubr.f32.mxu0 0.0
    %7083 = vmatmul.mubr.f32.gmra.mxu0 %v6939
    %v7084 = vpop.f32.mrf.mxu0
    %v7085 = vadd.f32 %v3379, %v7084
    %v7086 = vpop.f32.mrf.mxu0
    %7087 = vmatprep.mubr.f32.mxu0 0.0
    %7088 = vmatmul.mubr.f32.gmra.mxu0 %v6940
    %v7089 = vpop.f32.mrf.mxu0
    %v7090 = vadd.f32 %v3379, %v7089
    %v7091 = vpop.f32.mrf.mxu0
    %7092 = vdwg.mxu0
    %v7093 = vmax.f32 %v7085, 0.0
    %v7094 = vmax.f32 %v7090, 0.0
    %v7095 = vmul.f32 %v7016, %v3537
    %v7096 = vmul.f32 %v7017, %v3537
    %v7097 = vmul.f32 %v7093, %v3537
    %v7098 = vmul.f32 %v7094, %v3537
    %v7099 = vmul.f32 %v7016, %v3545
    %v7100 = vmul.f32 %v7017, %v3545
    %7101 = vmatprep.subr.mxu0 0.0
    %7102 = vmatpush1.msra.mxu0 0.0
    %7103 = vmatprep.subr.mxu0 0.0
    %7104 = vmatpush1.msra.mxu0 0.0
    %7105 = vmatprep.subr.mxu0 0.0
    %7106 = vmatpush1.msra.mxu0 0.0
    %7107 = vmatprep.subr.mxu0 0.0
    %7108 = vmatpush1.msra.mxu0 0.0
    %7109 = vmatprep.subr.mxu0 0.0
    %7110 = vmatpush1.msra.mxu0 0.0
    %7111 = vmatprep.subr.mxu0 0.0
    %7112 = vmatpush1.msra.mxu0 0.0
    %7113 = vmatprep.subr.mxu0 0.0
    %7114 = vmatpush1.msra.mxu0 0.0
    %7115 = vmatprep.subr.mxu0 0.0
    %7116 = vmatpush1.msra.mxu0 0.0
    %7117 = vmatprep.subr.mxu0 0.0
    %7118 = vmatpush1.msra.mxu0 0.0
    %7119 = vmatprep.subr.mxu0 0.0
    %7120 = vmatpush1.msra.mxu0 0.0
    %7121 = vmatprep.subr.mxu0 0.0
    %7122 = vmatpush1.msra.mxu0 0.0
    %7123 = vmatprep.subr.mxu0 0.0
    %7124 = vmatpush1.msra.mxu0 0.0
    %7125 = vmatprep.subr.mxu0 0.0
    %7126 = vmatpush1.msra.mxu0 0.0
    %7127 = vmatprep.subr.mxu0 0.0
    %7128 = vmatpush1.msra.mxu0 0.0
    %7129 = vmatprep.subr.mxu0 0.0
    %7130 = vmatpush1.msra.mxu0 %v7100
    %7131 = vmatprep.subr.mxu0 0.0
    %7132 = vmatpush1.msra.mxu0 %v7099
    %7133 = vmatprep.subr.mxu0 0.0
    %7134 = vmatpush2.msra.mxu0 0.0
    %7135 = vmatprep.subr.mxu0 0.0
    %7136 = vmatpush2.msra.mxu0 0.0
    %7137 = vmatprep.subr.mxu0 0.0
    %7138 = vmatpush2.msra.mxu0 0.0
    %7139 = vmatprep.subr.mxu0 0.0
    %7140 = vmatpush2.msra.mxu0 0.0
    %7141 = vmatprep.subr.mxu0 0.0
    %7142 = vmatpush2.msra.mxu0 0.0
    %7143 = vmatprep.subr.mxu0 0.0
    %7144 = vmatpush2.msra.mxu0 0.0
    %7145 = vmatprep.subr.mxu0 0.0
    %7146 = vmatpush2.msra.mxu0 0.0
    %7147 = vmatprep.subr.mxu0 0.0
    %7148 = vmatpush2.msra.mxu0 0.0
    %7149 = vmatprep.subr.mxu0 0.0
    %7150 = vmatpush2.msra.mxu0 0.0
    %7151 = vmatprep.subr.mxu0 0.0
    %7152 = vmatpush2.msra.mxu0 0.0
    %7153 = vmatprep.subr.mxu0 0.0
    %7154 = vmatpush2.msra.mxu0 0.0
    %7155 = vmatprep.subr.mxu0 0.0
    %7156 = vmatpush2.msra.mxu0 0.0
    %7157 = vmatprep.subr.mxu0 0.0
    %7158 = vmatpush2.msra.mxu0 0.0
    %7159 = vmatprep.subr.mxu0 0.0
    %7160 = vmatpush2.msra.mxu0 0.0
    %7161 = vmatprep.subr.mxu0 0.0
    %7162 = vmatpush2.msra.mxu0 0.0
    %7163 = vmatprep.subr.mxu0 0.0
    %7164 = vmatpush2.msra.mxu0 0.0
    %7165 = vmatprep.mubr.f32.mxu0 0.0
    %7166 = vmatmul.mubr.f32.gmra.mxu0 %v5489
    %v7167 = vpop.f32.mrf.mxu0
    %v7168 = vadd.f32 0.0, %v7167
    %v7169 = vpop.f32.mrf.mxu0
    %7170 = vmatprep.mubr.f32.mxu0 0.0
    %7171 = vmatmul.mubr.f32.gmra.mxu0 %v5492
    %v7172 = vpop.f32.mrf.mxu0
    %v7173 = vadd.f32 0.0, %v7172
    %v7174 = vpop.f32.mrf.mxu0
    %7175 = vdwg.mxu0
    %7176 = vmatprep.subr.mxu0 0.0
    %7177 = vmatpush1.msra.mxu0 0.0
    %7178 = vmatprep.subr.mxu0 0.0
    %7179 = vmatpush1.msra.mxu0 0.0
    %7180 = vmatprep.subr.mxu0 0.0
    %7181 = vmatpush1.msra.mxu0 0.0
    %7182 = vmatprep.subr.mxu0 0.0
    %7183 = vmatpush1.msra.mxu0 0.0
    %7184 = vmatprep.subr.mxu0 0.0
    %7185 = vmatpush1.msra.mxu0 0.0
    %7186 = vmatprep.subr.mxu0 0.0
    %7187 = vmatpush1.msra.mxu0 0.0
    %7188 = vmatprep.subr.mxu0 0.0
    %7189 = vmatpush1.msra.mxu0 0.0
    %7190 = vmatprep.subr.mxu0 0.0
    %7191 = vmatpush1.msra.mxu0 0.0
    %7192 = vmatprep.subr.mxu0 0.0
    %7193 = vmatpush1.msra.mxu0 0.0
    %7194 = vmatprep.subr.mxu0 0.0
    %7195 = vmatpush1.msra.mxu0 0.0
    %7196 = vmatprep.subr.mxu0 0.0
    %7197 = vmatpush1.msra.mxu0 0.0
    %7198 = vmatprep.subr.mxu0 0.0
    %7199 = vmatpush1.msra.mxu0 0.0
    %7200 = vmatprep.subr.mxu0 0.0
    %7201 = vmatpush1.msra.mxu0 0.0
    %7202 = vmatprep.subr.mxu0 0.0
    %7203 = vmatpush1.msra.mxu0 0.0
    %7204 = vmatprep.subr.mxu0 0.0
    %7205 = vmatpush1.msra.mxu0 %v7096
    %7206 = vmatprep.subr.mxu0 0.0
    %7207 = vmatpush1.msra.mxu0 %v7095
    %7208 = vmatprep.subr.mxu0 0.0
    %7209 = vmatpush2.msra.mxu0 0.0
    %7210 = vmatprep.subr.mxu0 0.0
    %7211 = vmatpush2.msra.mxu0 0.0
    %7212 = vmatprep.subr.mxu0 0.0
    %7213 = vmatpush2.msra.mxu0 0.0
    %7214 = vmatprep.subr.mxu0 0.0
    %7215 = vmatpush2.msra.mxu0 0.0
    %7216 = vmatprep.subr.mxu0 0.0
    %7217 = vmatpush2.msra.mxu0 0.0
    %7218 = vmatprep.subr.mxu0 0.0
    %7219 = vmatpush2.msra.mxu0 0.0
    %7220 = vmatprep.subr.mxu0 0.0
    %7221 = vmatpush2.msra.mxu0 0.0
    %7222 = vmatprep.subr.mxu0 0.0
    %7223 = vmatpush2.msra.mxu0 0.0
    %7224 = vmatprep.subr.mxu0 0.0
    %7225 = vmatpush2.msra.mxu0 0.0
    %7226 = vmatprep.subr.mxu0 0.0
    %7227 = vmatpush2.msra.mxu0 0.0
    %7228 = vmatprep.subr.mxu0 0.0
    %7229 = vmatpush2.msra.mxu0 0.0
    %7230 = vmatprep.subr.mxu0 0.0
    %7231 = vmatpush2.msra.mxu0 0.0
    %7232 = vmatprep.subr.mxu0 0.0
    %7233 = vmatpush2.msra.mxu0 0.0
    %7234 = vmatprep.subr.mxu0 0.0
    %7235 = vmatpush2.msra.mxu0 0.0
    %7236 = vmatprep.subr.mxu0 0.0
    %7237 = vmatpush2.msra.mxu0 0.0
    %7238 = vmatprep.subr.mxu0 0.0
    %7239 = vmatpush2.msra.mxu0 0.0
    %7240 = vmatprep.mubr.f32.mxu0 0.0
    %7241 = vmatmul.mubr.f32.gmra.mxu0 %v5570
    %v7242 = vpop.f32.mrf.mxu0
    %v7243 = vadd.f32 %v7168, %v7242
    %v7244 = vpop.f32.mrf.mxu0
    %7245 = vmatprep.mubr.f32.mxu0 0.0
    %7246 = vmatmul.mubr.f32.gmra.mxu0 %v5573
    %v7247 = vpop.f32.mrf.mxu0
    %v7248 = vadd.f32 %v7173, %v7247
    %v7249 = vpop.f32.mrf.mxu0
    %7250 = vdwg.mxu0
    %v7251 = vmul.f32 %v7093, %v3545
    %v7252 = vmul.f32 %v7094, %v3545
    %7253 = vmatprep.subr.mxu0 0.0
    %7254 = vmatpush1.msra.mxu0 0.0
    %7255 = vmatprep.subr.mxu0 0.0
    %7256 = vmatpush1.msra.mxu0 0.0
    %7257 = vmatprep.subr.mxu0 0.0
    %7258 = vmatpush1.msra.mxu0 0.0
    %7259 = vmatprep.subr.mxu0 0.0
    %7260 = vmatpush1.msra.mxu0 0.0
    %7261 = vmatprep.subr.mxu0 0.0
    %7262 = vmatpush1.msra.mxu0 0.0
    %7263 = vmatprep.subr.mxu0 0.0
    %7264 = vmatpush1.msra.mxu0 0.0
    %7265 = vmatprep.subr.mxu0 0.0
    %7266 = vmatpush1.msra.mxu0 0.0
    %7267 = vmatprep.subr.mxu0 0.0
    %7268 = vmatpush1.msra.mxu0 0.0
    %7269 = vmatprep.subr.mxu0 0.0
    %7270 = vmatpush1.msra.mxu0 0.0
    %7271 = vmatprep.subr.mxu0 0.0
    %7272 = vmatpush1.msra.mxu0 0.0
    %7273 = vmatprep.subr.mxu0 0.0
    %7274 = vmatpush1.msra.mxu0 0.0
    %7275 = vmatprep.subr.mxu0 0.0
    %7276 = vmatpush1.msra.mxu0 0.0
    %7277 = vmatprep.subr.mxu0 0.0
    %7278 = vmatpush1.msra.mxu0 0.0
    %7279 = vmatprep.subr.mxu0 0.0
    %7280 = vmatpush1.msra.mxu0 0.0
    %7281 = vmatprep.subr.mxu0 0.0
    %7282 = vmatpush1.msra.mxu0 %v7252
    %7283 = vmatprep.subr.mxu0 0.0
    %7284 = vmatpush1.msra.mxu0 %v7251
    %7285 = vmatprep.subr.mxu0 0.0
    %7286 = vmatpush2.msra.mxu0 0.0
    %7287 = vmatprep.subr.mxu0 0.0
    %7288 = vmatpush2.msra.mxu0 0.0
    %7289 = vmatprep.subr.mxu0 0.0
    %7290 = vmatpush2.msra.mxu0 0.0
    %7291 = vmatprep.subr.mxu0 0.0
    %7292 = vmatpush2.msra.mxu0 0.0
    %7293 = vmatprep.subr.mxu0 0.0
    %7294 = vmatpush2.msra.mxu0 0.0
    %7295 = vmatprep.subr.mxu0 0.0
    %7296 = vmatpush2.msra.mxu0 0.0
    %7297 = vmatprep.subr.mxu0 0.0
    %7298 = vmatpush2.msra.mxu0 0.0
    %7299 = vmatprep.subr.mxu0 0.0
    %7300 = vmatpush2.msra.mxu0 0.0
    %7301 = vmatprep.subr.mxu0 0.0
    %7302 = vmatpush2.msra.mxu0 0.0
    %7303 = vmatprep.subr.mxu0 0.0
    %7304 = vmatpush2.msra.mxu0 0.0
    %7305 = vmatprep.subr.mxu0 0.0
    %7306 = vmatpush2.msra.mxu0 0.0
    %7307 = vmatprep.subr.mxu0 0.0
    %7308 = vmatpush2.msra.mxu0 0.0
    %7309 = vmatprep.subr.mxu0 0.0
    %7310 = vmatpush2.msra.mxu0 0.0
    %7311 = vmatprep.subr.mxu0 0.0
    %7312 = vmatpush2.msra.mxu0 0.0
    %7313 = vmatprep.subr.mxu0 0.0
    %7314 = vmatpush2.msra.mxu0 0.0
    %7315 = vmatprep.subr.mxu0 0.0
    %7316 = vmatpush2.msra.mxu0 0.0
    %7317 = vmatprep.mubr.f32.mxu0 0.0
    %7318 = vmatmul.mubr.f32.gmra.mxu0 %v5489
    %v7319 = vpop.f32.mrf.mxu0
    %v7320 = vadd.f32 0.0, %v7319
    %v7321 = vpop.f32.mrf.mxu0
    %7322 = vmatprep.mubr.f32.mxu0 0.0
    %7323 = vmatmul.mubr.f32.gmra.mxu0 %v5492
    %v7324 = vpop.f32.mrf.mxu0
    %v7325 = vadd.f32 0.0, %v7324
    %v7326 = vpop.f32.mrf.mxu0
    %7327 = vdwg.mxu0
    %7328 = vmatprep.subr.mxu0 0.0
    %7329 = vmatpush1.msra.mxu0 0.0
    %7330 = vmatprep.subr.mxu0 0.0
    %7331 = vmatpush1.msra.mxu0 0.0
    %7332 = vmatprep.subr.mxu0 0.0
    %7333 = vmatpush1.msra.mxu0 0.0
    %7334 = vmatprep.subr.mxu0 0.0
    %7335 = vmatpush1.msra.mxu0 0.0
    %7336 = vmatprep.subr.mxu0 0.0
    %7337 = vmatpush1.msra.mxu0 0.0
    %7338 = vmatprep.subr.mxu0 0.0
    %7339 = vmatpush1.msra.mxu0 0.0
    %7340 = vmatprep.subr.mxu0 0.0
    %7341 = vmatpush1.msra.mxu0 0.0
    %7342 = vmatprep.subr.mxu0 0.0
    %7343 = vmatpush1.msra.mxu0 0.0
    %7344 = vmatprep.subr.mxu0 0.0
    %7345 = vmatpush1.msra.mxu0 0.0
    %7346 = vmatprep.subr.mxu0 0.0
    %7347 = vmatpush1.msra.mxu0 0.0
    %7348 = vmatprep.subr.mxu0 0.0
    %7349 = vmatpush1.msra.mxu0 0.0
    %7350 = vmatprep.subr.mxu0 0.0
    %7351 = vmatpush1.msra.mxu0 0.0
    %7352 = vmatprep.subr.mxu0 0.0
    %7353 = vmatpush1.msra.mxu0 0.0
    %7354 = vmatprep.subr.mxu0 0.0
    %7355 = vmatpush1.msra.mxu0 0.0
    %7356 = vmatprep.subr.mxu0 0.0
    %7357 = vmatpush1.msra.mxu0 %v7098
    %7358 = vmatprep.subr.mxu0 0.0
    %7359 = vmatpush1.msra.mxu0 %v7097
    %7360 = vmatprep.subr.mxu0 0.0
    %7361 = vmatpush2.msra.mxu0 0.0
    %7362 = vmatprep.subr.mxu0 0.0
    %7363 = vmatpush2.msra.mxu0 0.0
    %7364 = vmatprep.subr.mxu0 0.0
    %7365 = vmatpush2.msra.mxu0 0.0
    %7366 = vmatprep.subr.mxu0 0.0
    %7367 = vmatpush2.msra.mxu0 0.0
    %7368 = vmatprep.subr.mxu0 0.0
    %7369 = vmatpush2.msra.mxu0 0.0
    %7370 = vmatprep.subr.mxu0 0.0
    %7371 = vmatpush2.msra.mxu0 0.0
    %7372 = vmatprep.subr.mxu0 0.0
    %7373 = vmatpush2.msra.mxu0 0.0
    %7374 = vmatprep.subr.mxu0 0.0
    %7375 = vmatpush2.msra.mxu0 0.0
    %7376 = vmatprep.subr.mxu0 0.0
    %7377 = vmatpush2.msra.mxu0 0.0
    %7378 = vmatprep.subr.mxu0 0.0
    %7379 = vmatpush2.msra.mxu0 0.0
    %7380 = vmatprep.subr.mxu0 0.0
    %7381 = vmatpush2.msra.mxu0 0.0
    %7382 = vmatprep.subr.mxu0 0.0
    %7383 = vmatpush2.msra.mxu0 0.0
    %7384 = vmatprep.subr.mxu0 0.0
    %7385 = vmatpush2.msra.mxu0 0.0
    %7386 = vmatprep.subr.mxu0 0.0
    %7387 = vmatpush2.msra.mxu0 0.0
    %7388 = vmatprep.subr.mxu0 0.0
    %7389 = vmatpush2.msra.mxu0 0.0
    %7390 = vmatprep.subr.mxu0 0.0
    %7391 = vmatpush2.msra.mxu0 0.0
    %7392 = vmatprep.mubr.f32.mxu0 0.0
    %7393 = vmatmul.mubr.f32.gmra.mxu0 %v5570
    %v7394 = vpop.f32.mrf.mxu0
    %v7395 = vadd.f32 %v7320, %v7394
    %v7396 = vpop.f32.mrf.mxu0
    %7397 = vmatprep.mubr.f32.mxu0 0.0
    %7398 = vmatmul.mubr.f32.gmra.mxu0 %v5573
    %v7399 = vpop.f32.mrf.mxu0
    %v7400 = vadd.f32 %v7325, %v7399
    %v7401 = vpop.f32.mrf.mxu0
    %7402 = vdwg.mxu0
    %v7403 = vmul.f32 %v7016, %v3853
    %v7404 = vmul.f32 %v7017, %v3853
    %7405 = vmatprep.subr.mxu0 0.0
    %7406 = vmatpush1.msra.mxu0 0.0
    %7407 = vmatprep.subr.mxu0 0.0
    %7408 = vmatpush1.msra.mxu0 0.0
    %7409 = vmatprep.subr.mxu0 0.0
    %7410 = vmatpush1.msra.mxu0 0.0
    %7411 = vmatprep.subr.mxu0 0.0
    %7412 = vmatpush1.msra.mxu0 0.0
    %7413 = vmatprep.subr.mxu0 0.0
    %7414 = vmatpush1.msra.mxu0 0.0
    %7415 = vmatprep.subr.mxu0 0.0
    %7416 = vmatpush1.msra.mxu0 0.0
    %7417 = vmatprep.subr.mxu0 0.0
    %7418 = vmatpush1.msra.mxu0 0.0
    %7419 = vmatprep.subr.mxu0 0.0
    %7420 = vmatpush1.msra.mxu0 0.0
    %7421 = vmatprep.subr.mxu0 0.0
    %7422 = vmatpush1.msra.mxu0 0.0
    %7423 = vmatprep.subr.mxu0 0.0
    %7424 = vmatpush1.msra.mxu0 0.0
    %7425 = vmatprep.subr.mxu0 0.0
    %7426 = vmatpush1.msra.mxu0 0.0
    %7427 = vmatprep.subr.mxu0 0.0
    %7428 = vmatpush1.msra.mxu0 0.0
    %7429 = vmatprep.subr.mxu0 0.0
    %7430 = vmatpush1.msra.mxu0 0.0
    %7431 = vmatprep.subr.mxu0 0.0
    %7432 = vmatpush1.msra.mxu0 0.0
    %7433 = vmatprep.subr.mxu0 0.0
    %7434 = vmatpush1.msra.mxu0 %v7404
    %7435 = vmatprep.subr.mxu0 0.0
    %7436 = vmatpush1.msra.mxu0 %v7403
    %7437 = vmatprep.subr.mxu0 0.0
    %7438 = vmatpush2.msra.mxu0 0.0
    %7439 = vmatprep.subr.mxu0 0.0
    %7440 = vmatpush2.msra.mxu0 0.0
    %7441 = vmatprep.subr.mxu0 0.0
    %7442 = vmatpush2.msra.mxu0 0.0
    %7443 = vmatprep.subr.mxu0 0.0
    %7444 = vmatpush2.msra.mxu0 0.0
    %7445 = vmatprep.subr.mxu0 0.0
    %7446 = vmatpush2.msra.mxu0 0.0
    %7447 = vmatprep.subr.mxu0 0.0
    %7448 = vmatpush2.msra.mxu0 0.0
    %7449 = vmatprep.subr.mxu0 0.0
    %7450 = vmatpush2.msra.mxu0 0.0
    %7451 = vmatprep.subr.mxu0 0.0
    %7452 = vmatpush2.msra.mxu0 0.0
    %7453 = vmatprep.subr.mxu0 0.0
    %7454 = vmatpush2.msra.mxu0 0.0
    %7455 = vmatprep.subr.mxu0 0.0
    %7456 = vmatpush2.msra.mxu0 0.0
    %7457 = vmatprep.subr.mxu0 0.0
    %7458 = vmatpush2.msra.mxu0 0.0
    %7459 = vmatprep.subr.mxu0 0.0
    %7460 = vmatpush2.msra.mxu0 0.0
    %7461 = vmatprep.subr.mxu0 0.0
    %7462 = vmatpush2.msra.mxu0 0.0
    %7463 = vmatprep.subr.mxu0 0.0
    %7464 = vmatpush2.msra.mxu0 0.0
    %7465 = vmatprep.subr.mxu0 0.0
    %7466 = vmatpush2.msra.mxu0 0.0
    %7467 = vmatprep.subr.mxu0 0.0
    %7468 = vmatpush2.msra.mxu0 0.0
    %7469 = vmatprep.mubr.f32.mxu0 0.0
    %7470 = vmatmul.mubr.f32.gmra.mxu0 %v5804
    %v7471 = vpop.f32.mrf.mxu0
    %v7472 = vadd.f32 0.0, %v7471
    %v7473 = vpop.f32.mrf.mxu0
    %7474 = vmatprep.mubr.f32.mxu0 0.0
    %7475 = vmatmul.mubr.f32.gmra.mxu0 %v5807
    %v7476 = vpop.f32.mrf.mxu0
    %v7477 = vadd.f32 0.0, %v7476
    %v7478 = vpop.f32.mrf.mxu0
    %7479 = vdwg.mxu0
    %v7480 = vadd.f32 %v7243, %v7472
    %v7481 = vadd.f32 %v7248, %v7477
    %v7482 = vmul.f32 %v7093, %v3853
    %v7483 = vmul.f32 %v7094, %v3853
    %7484 = vmatprep.subr.mxu0 0.0
    %7485 = vmatpush1.msra.mxu0 0.0
    %7486 = vmatprep.subr.mxu0 0.0
    %7487 = vmatpush1.msra.mxu0 0.0
    %7488 = vmatprep.subr.mxu0 0.0
    %7489 = vmatpush1.msra.mxu0 0.0
    %7490 = vmatprep.subr.mxu0 0.0
    %7491 = vmatpush1.msra.mxu0 0.0
    %7492 = vmatprep.subr.mxu0 0.0
    %7493 = vmatpush1.msra.mxu0 0.0
    %7494 = vmatprep.subr.mxu0 0.0
    %7495 = vmatpush1.msra.mxu0 0.0
    %7496 = vmatprep.subr.mxu0 0.0
    %7497 = vmatpush1.msra.mxu0 0.0
    %7498 = vmatprep.subr.mxu0 0.0
    %7499 = vmatpush1.msra.mxu0 0.0
    %7500 = vmatprep.subr.mxu0 0.0
    %7501 = vmatpush1.msra.mxu0 0.0
    %7502 = vmatprep.subr.mxu0 0.0
    %7503 = vmatpush1.msra.mxu0 0.0
    %7504 = vmatprep.subr.mxu0 0.0
    %7505 = vmatpush1.msra.mxu0 0.0
    %7506 = vmatprep.subr.mxu0 0.0
    %7507 = vmatpush1.msra.mxu0 0.0
    %7508 = vmatprep.subr.mxu0 0.0
    %7509 = vmatpush1.msra.mxu0 0.0
    %7510 = vmatprep.subr.mxu0 0.0
    %7511 = vmatpush1.msra.mxu0 0.0
    %7512 = vmatprep.subr.mxu0 0.0
    %7513 = vmatpush1.msra.mxu0 %v7483
    %7514 = vmatprep.subr.mxu0 0.0
    %7515 = vmatpush1.msra.mxu0 %v7482
    %7516 = vmatprep.subr.mxu0 0.0
    %7517 = vmatpush2.msra.mxu0 0.0
    %7518 = vmatprep.subr.mxu0 0.0
    %7519 = vmatpush2.msra.mxu0 0.0
    %7520 = vmatprep.subr.mxu0 0.0
    %7521 = vmatpush2.msra.mxu0 0.0
    %7522 = vmatprep.subr.mxu0 0.0
    %7523 = vmatpush2.msra.mxu0 0.0
    %7524 = vmatprep.subr.mxu0 0.0
    %7525 = vmatpush2.msra.mxu0 0.0
    %7526 = vmatprep.subr.mxu0 0.0
    %7527 = vmatpush2.msra.mxu0 0.0
    %7528 = vmatprep.subr.mxu0 0.0
    %7529 = vmatpush2.msra.mxu0 0.0
    %7530 = vmatprep.subr.mxu0 0.0
    %7531 = vmatpush2.msra.mxu0 0.0
    %7532 = vmatprep.subr.mxu0 0.0
    %7533 = vmatpush2.msra.mxu0 0.0
    %7534 = vmatprep.subr.mxu0 0.0
    %7535 = vmatpush2.msra.mxu0 0.0
    %7536 = vmatprep.subr.mxu0 0.0
    %7537 = vmatpush2.msra.mxu0 0.0
    %7538 = vmatprep.subr.mxu0 0.0
    %7539 = vmatpush2.msra.mxu0 0.0
    %7540 = vmatprep.subr.mxu0 0.0
    %7541 = vmatpush2.msra.mxu0 0.0
    %7542 = vmatprep.subr.mxu0 0.0
    %7543 = vmatpush2.msra.mxu0 0.0
    %7544 = vmatprep.subr.mxu0 0.0
    %7545 = vmatpush2.msra.mxu0 0.0
    %7546 = vmatprep.subr.mxu0 0.0
    %7547 = vmatpush2.msra.mxu0 0.0
    %7548 = vmatprep.mubr.f32.mxu0 0.0
    %7549 = vmatmul.mubr.f32.gmra.mxu0 %v5804
    %v7550 = vpop.f32.mrf.mxu0
    %v7551 = vadd.f32 0.0, %v7550
    %v7552 = vpop.f32.mrf.mxu0
    %7553 = vmatprep.mubr.f32.mxu0 0.0
    %7554 = vmatmul.mubr.f32.gmra.mxu0 %v5807
    %v7555 = vpop.f32.mrf.mxu0
    %v7556 = vadd.f32 0.0, %v7555
    %v7557 = vpop.f32.mrf.mxu0
    %7558 = vdwg.mxu0
    %v7559 = vadd.f32 %v7395, %v7551
    %v7560 = vadd.f32 %v7400, %v7556
    %v7561 = vmul.f32 %v7016, %v4015
    %v7562 = vmul.f32 %v7017, %v4015
    %7563 = vmatprep.subr.mxu0 0.0
    %7564 = vmatpush1.msra.mxu0 0.0
    %7565 = vmatprep.subr.mxu0 0.0
    %7566 = vmatpush1.msra.mxu0 0.0
    %7567 = vmatprep.subr.mxu0 0.0
    %7568 = vmatpush1.msra.mxu0 0.0
    %7569 = vmatprep.subr.mxu0 0.0
    %7570 = vmatpush1.msra.mxu0 0.0
    %7571 = vmatprep.subr.mxu0 0.0
    %7572 = vmatpush1.msra.mxu0 0.0
    %7573 = vmatprep.subr.mxu0 0.0
    %7574 = vmatpush1.msra.mxu0 0.0
    %7575 = vmatprep.subr.mxu0 0.0
    %7576 = vmatpush1.msra.mxu0 0.0
    %7577 = vmatprep.subr.mxu0 0.0
    %7578 = vmatpush1.msra.mxu0 0.0
    %7579 = vmatprep.subr.mxu0 0.0
    %7580 = vmatpush1.msra.mxu0 0.0
    %7581 = vmatprep.subr.mxu0 0.0
    %7582 = vmatpush1.msra.mxu0 0.0
    %7583 = vmatprep.subr.mxu0 0.0
    %7584 = vmatpush1.msra.mxu0 0.0
    %7585 = vmatprep.subr.mxu0 0.0
    %7586 = vmatpush1.msra.mxu0 0.0
    %7587 = vmatprep.subr.mxu0 0.0
    %7588 = vmatpush1.msra.mxu0 0.0
    %7589 = vmatprep.subr.mxu0 0.0
    %7590 = vmatpush1.msra.mxu0 0.0
    %7591 = vmatprep.subr.mxu0 0.0
    %7592 = vmatpush1.msra.mxu0 %v7562
    %7593 = vmatprep.subr.mxu0 0.0
    %7594 = vmatpush1.msra.mxu0 %v7561
    %7595 = vmatprep.subr.mxu0 0.0
    %7596 = vmatpush2.msra.mxu0 0.0
    %7597 = vmatprep.subr.mxu0 0.0
    %7598 = vmatpush2.msra.mxu0 0.0
    %7599 = vmatprep.subr.mxu0 0.0
    %7600 = vmatpush2.msra.mxu0 0.0
    %7601 = vmatprep.subr.mxu0 0.0
    %7602 = vmatpush2.msra.mxu0 0.0
    %7603 = vmatprep.subr.mxu0 0.0
    %7604 = vmatpush2.msra.mxu0 0.0
    %7605 = vmatprep.subr.mxu0 0.0
    %7606 = vmatpush2.msra.mxu0 0.0
    %7607 = vmatprep.subr.mxu0 0.0
    %7608 = vmatpush2.msra.mxu0 0.0
    %7609 = vmatprep.subr.mxu0 0.0
    %7610 = vmatpush2.msra.mxu0 0.0
    %7611 = vmatprep.subr.mxu0 0.0
    %7612 = vmatpush2.msra.mxu0 0.0
    %7613 = vmatprep.subr.mxu0 0.0
    %7614 = vmatpush2.msra.mxu0 0.0
    %7615 = vmatprep.subr.mxu0 0.0
    %7616 = vmatpush2.msra.mxu0 0.0
    %7617 = vmatprep.subr.mxu0 0.0
    %7618 = vmatpush2.msra.mxu0 0.0
    %7619 = vmatprep.subr.mxu0 0.0
    %7620 = vmatpush2.msra.mxu0 0.0
    %7621 = vmatprep.subr.mxu0 0.0
    %7622 = vmatpush2.msra.mxu0 0.0
    %7623 = vmatprep.subr.mxu0 0.0
    %7624 = vmatpush2.msra.mxu0 0.0
    %7625 = vmatprep.subr.mxu0 0.0
    %7626 = vmatpush2.msra.mxu0 0.0
    %7627 = vmatprep.mubr.f32.mxu0 0.0
    %7628 = vmatmul.mubr.f32.gmra.mxu0 %v5967
    %v7629 = vpop.f32.mrf.mxu0
    %v7630 = vadd.f32 0.0, %v7629
    %v7631 = vpop.f32.mrf.mxu0
    %7632 = vmatprep.mubr.f32.mxu0 0.0
    %7633 = vmatmul.mubr.f32.gmra.mxu0 %v5970
    %v7634 = vpop.f32.mrf.mxu0
    %v7635 = vadd.f32 0.0, %v7634
    %v7636 = vpop.f32.mrf.mxu0
    %7637 = vdwg.mxu0
    %v7638 = vadd.f32 %v7480, %v7630
    %v7639 = vadd.f32 %v7481, %v7635
    %v7640 = vmul.f32 %v7093, %v4015
    %v7641 = vmul.f32 %v7094, %v4015
    %7642 = vmatprep.subr.mxu0 0.0
    %7643 = vmatpush1.msra.mxu0 0.0
    %7644 = vmatprep.subr.mxu0 0.0
    %7645 = vmatpush1.msra.mxu0 0.0
    %7646 = vmatprep.subr.mxu0 0.0
    %7647 = vmatpush1.msra.mxu0 0.0
    %7648 = vmatprep.subr.mxu0 0.0
    %7649 = vmatpush1.msra.mxu0 0.0
    %7650 = vmatprep.subr.mxu0 0.0
    %7651 = vmatpush1.msra.mxu0 0.0
    %7652 = vmatprep.subr.mxu0 0.0
    %7653 = vmatpush1.msra.mxu0 0.0
    %7654 = vmatprep.subr.mxu0 0.0
    %7655 = vmatpush1.msra.mxu0 0.0
    %7656 = vmatprep.subr.mxu0 0.0
    %7657 = vmatpush1.msra.mxu0 0.0
    %7658 = vmatprep.subr.mxu0 0.0
    %7659 = vmatpush1.msra.mxu0 0.0
    %7660 = vmatprep.subr.mxu0 0.0
    %7661 = vmatpush1.msra.mxu0 0.0
    %7662 = vmatprep.subr.mxu0 0.0
    %7663 = vmatpush1.msra.mxu0 0.0
    %7664 = vmatprep.subr.mxu0 0.0
    %7665 = vmatpush1.msra.mxu0 0.0
    %7666 = vmatprep.subr.mxu0 0.0
    %7667 = vmatpush1.msra.mxu0 0.0
    %7668 = vmatprep.subr.mxu0 0.0
    %7669 = vmatpush1.msra.mxu0 0.0
    %7670 = vmatprep.subr.mxu0 0.0
    %7671 = vmatpush1.msra.mxu0 %v7641
    %7672 = vmatprep.subr.mxu0 0.0
    %7673 = vmatpush1.msra.mxu0 %v7640
    %7674 = vmatprep.subr.mxu0 0.0
    %7675 = vmatpush2.msra.mxu0 0.0
    %7676 = vmatprep.subr.mxu0 0.0
    %7677 = vmatpush2.msra.mxu0 0.0
    %7678 = vmatprep.subr.mxu0 0.0
    %7679 = vmatpush2.msra.mxu0 0.0
    %7680 = vmatprep.subr.mxu0 0.0
    %7681 = vmatpush2.msra.mxu0 0.0
    %7682 = vmatprep.subr.mxu0 0.0
    %7683 = vmatpush2.msra.mxu0 0.0
    %7684 = vmatprep.subr.mxu0 0.0
    %7685 = vmatpush2.msra.mxu0 0.0
    %7686 = vmatprep.subr.mxu0 0.0
    %7687 = vmatpush2.msra.mxu0 0.0
    %7688 = vmatprep.subr.mxu0 0.0
    %7689 = vmatpush2.msra.mxu0 0.0
    %7690 = vmatprep.subr.mxu0 0.0
    %7691 = vmatpush2.msra.mxu0 0.0
    %7692 = vmatprep.subr.mxu0 0.0
    %7693 = vmatpush2.msra.mxu0 0.0
    %7694 = vmatprep.subr.mxu0 0.0
    %7695 = vmatpush2.msra.mxu0 0.0
    %7696 = vmatprep.subr.mxu0 0.0
    %7697 = vmatpush2.msra.mxu0 0.0
    %7698 = vmatprep.subr.mxu0 0.0
    %7699 = vmatpush2.msra.mxu0 0.0
    %7700 = vmatprep.subr.mxu0 0.0
    %7701 = vmatpush2.msra.mxu0 0.0
    %7702 = vmatprep.subr.mxu0 0.0
    %7703 = vmatpush2.msra.mxu0 0.0
    %7704 = vmatprep.subr.mxu0 0.0
    %7705 = vmatpush2.msra.mxu0 0.0
    %7706 = vmatprep.mubr.f32.mxu0 0.0
    %7707 = vmatmul.mubr.f32.gmra.mxu0 %v5967
    %v7708 = vpop.f32.mrf.mxu0
    %v7709 = vadd.f32 0.0, %v7708
    %v7710 = vpop.f32.mrf.mxu0
    %7711 = vmatprep.mubr.f32.mxu0 0.0
    %7712 = vmatmul.mubr.f32.gmra.mxu0 %v5970
    %v7713 = vpop.f32.mrf.mxu0
    %v7714 = vadd.f32 0.0, %v7713
    %v7715 = vpop.f32.mrf.mxu0
    %7716 = vdwg.mxu0
    %v7717 = vadd.f32 %v7559, %v7709
    %v7718 = vadd.f32 %v7560, %v7714
    %v7719 = vmul.f32 %v7016, %v4177
    %v7720 = vmul.f32 %v7017, %v4177
    %7721 = vmatprep.subr.mxu0 0.0
    %7722 = vmatpush1.msra.mxu0 0.0
    %7723 = vmatprep.subr.mxu0 0.0
    %7724 = vmatpush1.msra.mxu0 0.0
    %7725 = vmatprep.subr.mxu0 0.0
    %7726 = vmatpush1.msra.mxu0 0.0
    %7727 = vmatprep.subr.mxu0 0.0
    %7728 = vmatpush1.msra.mxu0 0.0
    %7729 = vmatprep.subr.mxu0 0.0
    %7730 = vmatpush1.msra.mxu0 0.0
    %7731 = vmatprep.subr.mxu0 0.0
    %7732 = vmatpush1.msra.mxu0 0.0
    %7733 = vmatprep.subr.mxu0 0.0
    %7734 = vmatpush1.msra.mxu0 0.0
    %7735 = vmatprep.subr.mxu0 0.0
    %7736 = vmatpush1.msra.mxu0 0.0
    %7737 = vmatprep.subr.mxu0 0.0
    %7738 = vmatpush1.msra.mxu0 0.0
    %7739 = vmatprep.subr.mxu0 0.0
    %7740 = vmatpush1.msra.mxu0 0.0
    %7741 = vmatprep.subr.mxu0 0.0
    %7742 = vmatpush1.msra.mxu0 0.0
    %7743 = vmatprep.subr.mxu0 0.0
    %7744 = vmatpush1.msra.mxu0 0.0
    %7745 = vmatprep.subr.mxu0 0.0
    %7746 = vmatpush1.msra.mxu0 0.0
    %7747 = vmatprep.subr.mxu0 0.0
    %7748 = vmatpush1.msra.mxu0 0.0
    %7749 = vmatprep.subr.mxu0 0.0
    %7750 = vmatpush1.msra.mxu0 %v7720
    %7751 = vmatprep.subr.mxu0 0.0
    %7752 = vmatpush1.msra.mxu0 %v7719
    %7753 = vmatprep.subr.mxu0 0.0
    %7754 = vmatpush2.msra.mxu0 0.0
    %7755 = vmatprep.subr.mxu0 0.0
    %7756 = vmatpush2.msra.mxu0 0.0
    %7757 = vmatprep.subr.mxu0 0.0
    %7758 = vmatpush2.msra.mxu0 0.0
    %7759 = vmatprep.subr.mxu0 0.0
    %7760 = vmatpush2.msra.mxu0 0.0
    %7761 = vmatprep.subr.mxu0 0.0
    %7762 = vmatpush2.msra.mxu0 0.0
    %7763 = vmatprep.subr.mxu0 0.0
    %7764 = vmatpush2.msra.mxu0 0.0
    %7765 = vmatprep.subr.mxu0 0.0
    %7766 = vmatpush2.msra.mxu0 0.0
    %7767 = vmatprep.subr.mxu0 0.0
    %7768 = vmatpush2.msra.mxu0 0.0
    %7769 = vmatprep.subr.mxu0 0.0
    %7770 = vmatpush2.msra.mxu0 0.0
    %7771 = vmatprep.subr.mxu0 0.0
    %7772 = vmatpush2.msra.mxu0 0.0
    %7773 = vmatprep.subr.mxu0 0.0
    %7774 = vmatpush2.msra.mxu0 0.0
    %7775 = vmatprep.subr.mxu0 0.0
    %7776 = vmatpush2.msra.mxu0 0.0
    %7777 = vmatprep.subr.mxu0 0.0
    %7778 = vmatpush2.msra.mxu0 0.0
    %7779 = vmatprep.subr.mxu0 0.0
    %7780 = vmatpush2.msra.mxu0 0.0
    %7781 = vmatprep.subr.mxu0 0.0
    %7782 = vmatpush2.msra.mxu0 0.0
    %7783 = vmatprep.subr.mxu0 0.0
    %7784 = vmatpush2.msra.mxu0 0.0
    %7785 = vmatprep.mubr.f32.mxu0 0.0
    %7786 = vmatmul.mubr.f32.gmra.mxu0 %v6130
    %v7787 = vpop.f32.mrf.mxu0
    %v7788 = vadd.f32 0.0, %v7787
    %v7789 = vpop.f32.mrf.mxu0
    %7790 = vmatprep.mubr.f32.mxu0 0.0
    %7791 = vmatmul.mubr.f32.gmra.mxu0 %v6133
    %v7792 = vpop.f32.mrf.mxu0
    %v7793 = vadd.f32 0.0, %v7792
    %v7794 = vpop.f32.mrf.mxu0
    %7795 = vdwg.mxu0
    %v7796 = vadd.f32 %v7638, %v7788
    %v7797 = vadd.f32 %v7639, %v7793
    %v7798 = vmul.f32 %v7093, %v4177
    %v7799 = vmul.f32 %v7094, %v4177
    %7800 = vmatprep.subr.mxu0 0.0
    %7801 = vmatpush1.msra.mxu0 0.0
    %7802 = vmatprep.subr.mxu0 0.0
    %7803 = vmatpush1.msra.mxu0 0.0
    %7804 = vmatprep.subr.mxu0 0.0
    %7805 = vmatpush1.msra.mxu0 0.0
    %7806 = vmatprep.subr.mxu0 0.0
    %7807 = vmatpush1.msra.mxu0 0.0
    %7808 = vmatprep.subr.mxu0 0.0
    %7809 = vmatpush1.msra.mxu0 0.0
    %7810 = vmatprep.subr.mxu0 0.0
    %7811 = vmatpush1.msra.mxu0 0.0
    %7812 = vmatprep.subr.mxu0 0.0
    %7813 = vmatpush1.msra.mxu0 0.0
    %7814 = vmatprep.subr.mxu0 0.0
    %7815 = vmatpush1.msra.mxu0 0.0
    %7816 = vmatprep.subr.mxu0 0.0
    %7817 = vmatpush1.msra.mxu0 0.0
    %7818 = vmatprep.subr.mxu0 0.0
    %7819 = vmatpush1.msra.mxu0 0.0
    %7820 = vmatprep.subr.mxu0 0.0
    %7821 = vmatpush1.msra.mxu0 0.0
    %7822 = vmatprep.subr.mxu0 0.0
    %7823 = vmatpush1.msra.mxu0 0.0
    %7824 = vmatprep.subr.mxu0 0.0
    %7825 = vmatpush1.msra.mxu0 0.0
    %7826 = vmatprep.subr.mxu0 0.0
    %7827 = vmatpush1.msra.mxu0 0.0
    %7828 = vmatprep.subr.mxu0 0.0
    %7829 = vmatpush1.msra.mxu0 %v7799
    %7830 = vmatprep.subr.mxu0 0.0
    %7831 = vmatpush1.msra.mxu0 %v7798
    %7832 = vmatprep.subr.mxu0 0.0
    %7833 = vmatpush2.msra.mxu0 0.0
    %7834 = vmatprep.subr.mxu0 0.0
    %7835 = vmatpush2.msra.mxu0 0.0
    %7836 = vmatprep.subr.mxu0 0.0
    %7837 = vmatpush2.msra.mxu0 0.0
    %7838 = vmatprep.subr.mxu0 0.0
    %7839 = vmatpush2.msra.mxu0 0.0
    %7840 = vmatprep.subr.mxu0 0.0
    %7841 = vmatpush2.msra.mxu0 0.0
    %7842 = vmatprep.subr.mxu0 0.0
    %7843 = vmatpush2.msra.mxu0 0.0
    %7844 = vmatprep.subr.mxu0 0.0
    %7845 = vmatpush2.msra.mxu0 0.0
    %7846 = vmatprep.subr.mxu0 0.0
    %7847 = vmatpush2.msra.mxu0 0.0
    %7848 = vmatprep.subr.mxu0 0.0
    %7849 = vmatpush2.msra.mxu0 0.0
    %7850 = vmatprep.subr.mxu0 0.0
    %7851 = vmatpush2.msra.mxu0 0.0
    %7852 = vmatprep.subr.mxu0 0.0
    %7853 = vmatpush2.msra.mxu0 0.0
    %7854 = vmatprep.subr.mxu0 0.0
    %7855 = vmatpush2.msra.mxu0 0.0
    %7856 = vmatprep.subr.mxu0 0.0
    %7857 = vmatpush2.msra.mxu0 0.0
    %7858 = vmatprep.subr.mxu0 0.0
    %7859 = vmatpush2.msra.mxu0 0.0
    %7860 = vmatprep.subr.mxu0 0.0
    %7861 = vmatpush2.msra.mxu0 0.0
    %7862 = vmatprep.subr.mxu0 0.0
    %7863 = vmatpush2.msra.mxu0 0.0
    %7864 = vmatprep.mubr.f32.mxu0 0.0
    %7865 = vmatmul.mubr.f32.gmra.mxu0 %v6130
    %v7866 = vpop.f32.mrf.mxu0
    %v7867 = vadd.f32 0.0, %v7866
    %v7868 = vpop.f32.mrf.mxu0
    %7869 = vmatprep.mubr.f32.mxu0 0.0
    %7870 = vmatmul.mubr.f32.gmra.mxu0 %v6133
    %v7871 = vpop.f32.mrf.mxu0
    %v7872 = vadd.f32 0.0, %v7871
    %v7873 = vpop.f32.mrf.mxu0
    %7874 = vdwg.mxu0
    %v7875 = vadd.f32 %v7717, %v7867
    %v7876 = vadd.f32 %v7718, %v7872
    %v7877 = vmul.f32 %v7016, %v4339
    %v7878 = vmul.f32 %v7017, %v4339
    %7879 = vmatprep.subr.mxu0 0.0
    %7880 = vmatpush1.msra.mxu0 0.0
    %7881 = vmatprep.subr.mxu0 0.0
    %7882 = vmatpush1.msra.mxu0 0.0
    %7883 = vmatprep.subr.mxu0 0.0
    %7884 = vmatpush1.msra.mxu0 0.0
    %7885 = vmatprep.subr.mxu0 0.0
    %7886 = vmatpush1.msra.mxu0 0.0
    %7887 = vmatprep.subr.mxu0 0.0
    %7888 = vmatpush1.msra.mxu0 0.0
    %7889 = vmatprep.subr.mxu0 0.0
    %7890 = vmatpush1.msra.mxu0 0.0
    %7891 = vmatprep.subr.mxu0 0.0
    %7892 = vmatpush1.msra.mxu0 0.0
    %7893 = vmatprep.subr.mxu0 0.0
    %7894 = vmatpush1.msra.mxu0 0.0
    %7895 = vmatprep.subr.mxu0 0.0
    %7896 = vmatpush1.msra.mxu0 0.0
    %7897 = vmatprep.subr.mxu0 0.0
    %7898 = vmatpush1.msra.mxu0 0.0
    %7899 = vmatprep.subr.mxu0 0.0
    %7900 = vmatpush1.msra.mxu0 0.0
    %7901 = vmatprep.subr.mxu0 0.0
    %7902 = vmatpush1.msra.mxu0 0.0
    %7903 = vmatprep.subr.mxu0 0.0
    %7904 = vmatpush1.msra.mxu0 0.0
    %7905 = vmatprep.subr.mxu0 0.0
    %7906 = vmatpush1.msra.mxu0 0.0
    %7907 = vmatprep.subr.mxu0 0.0
    %7908 = vmatpush1.msra.mxu0 %v7878
    %7909 = vmatprep.subr.mxu0 0.0
    %7910 = vmatpush1.msra.mxu0 %v7877
    %7911 = vmatprep.subr.mxu0 0.0
    %7912 = vmatpush2.msra.mxu0 0.0
    %7913 = vmatprep.subr.mxu0 0.0
    %7914 = vmatpush2.msra.mxu0 0.0
    %7915 = vmatprep.subr.mxu0 0.0
    %7916 = vmatpush2.msra.mxu0 0.0
    %7917 = vmatprep.subr.mxu0 0.0
    %7918 = vmatpush2.msra.mxu0 0.0
    %7919 = vmatprep.subr.mxu0 0.0
    %7920 = vmatpush2.msra.mxu0 0.0
    %7921 = vmatprep.subr.mxu0 0.0
    %7922 = vmatpush2.msra.mxu0 0.0
    %7923 = vmatprep.subr.mxu0 0.0
    %7924 = vmatpush2.msra.mxu0 0.0
    %7925 = vmatprep.subr.mxu0 0.0
    %7926 = vmatpush2.msra.mxu0 0.0
    %7927 = vmatprep.subr.mxu0 0.0
    %7928 = vmatpush2.msra.mxu0 0.0
    %7929 = vmatprep.subr.mxu0 0.0
    %7930 = vmatpush2.msra.mxu0 0.0
    %7931 = vmatprep.subr.mxu0 0.0
    %7932 = vmatpush2.msra.mxu0 0.0
    %7933 = vmatprep.subr.mxu0 0.0
    %7934 = vmatpush2.msra.mxu0 0.0
    %7935 = vmatprep.subr.mxu0 0.0
    %7936 = vmatpush2.msra.mxu0 0.0
    %7937 = vmatprep.subr.mxu0 0.0
    %7938 = vmatpush2.msra.mxu0 0.0
    %7939 = vmatprep.subr.mxu0 0.0
    %7940 = vmatpush2.msra.mxu0 0.0
    %7941 = vmatprep.subr.mxu0 0.0
    %7942 = vmatpush2.msra.mxu0 0.0
    %7943 = vmatprep.mubr.f32.mxu0 0.0
    %7944 = vmatmul.mubr.f32.gmra.mxu0 %v6293
    %v7945 = vpop.f32.mrf.mxu0
    %v7946 = vadd.f32 0.0, %v7945
    %v7947 = vpop.f32.mrf.mxu0
    %7948 = vmatprep.mubr.f32.mxu0 0.0
    %7949 = vmatmul.mubr.f32.gmra.mxu0 %v6296
    %v7950 = vpop.f32.mrf.mxu0
    %v7951 = vadd.f32 0.0, %v7950
    %v7952 = vpop.f32.mrf.mxu0
    %7953 = vdwg.mxu0
    %v7954 = vadd.f32 %v7796, %v7946
    %v7955 = vadd.f32 %v7797, %v7951
    %v7956 = vmul.f32 %v7093, %v4339
    %v7957 = vmul.f32 %v7094, %v4339
    %7958 = vmatprep.subr.mxu0 0.0
    %7959 = vmatpush1.msra.mxu0 0.0
    %7960 = vmatprep.subr.mxu0 0.0
    %7961 = vmatpush1.msra.mxu0 0.0
    %7962 = vmatprep.subr.mxu0 0.0
    %7963 = vmatpush1.msra.mxu0 0.0
    %7964 = vmatprep.subr.mxu0 0.0
    %7965 = vmatpush1.msra.mxu0 0.0
    %7966 = vmatprep.subr.mxu0 0.0
    %7967 = vmatpush1.msra.mxu0 0.0
    %7968 = vmatprep.subr.mxu0 0.0
    %7969 = vmatpush1.msra.mxu0 0.0
    %7970 = vmatprep.subr.mxu0 0.0
    %7971 = vmatpush1.msra.mxu0 0.0
    %7972 = vmatprep.subr.mxu0 0.0
    %7973 = vmatpush1.msra.mxu0 0.0
    %7974 = vmatprep.subr.mxu0 0.0
    %7975 = vmatpush1.msra.mxu0 0.0
    %7976 = vmatprep.subr.mxu0 0.0
    %7977 = vmatpush1.msra.mxu0 0.0
    %7978 = vmatprep.subr.mxu0 0.0
    %7979 = vmatpush1.msra.mxu0 0.0
    %7980 = vmatprep.subr.mxu0 0.0
    %7981 = vmatpush1.msra.mxu0 0.0
    %7982 = vmatprep.subr.mxu0 0.0
    %7983 = vmatpush1.msra.mxu0 0.0
    %7984 = vmatprep.subr.mxu0 0.0
    %7985 = vmatpush1.msra.mxu0 0.0
    %7986 = vmatprep.subr.mxu0 0.0
    %7987 = vmatpush1.msra.mxu0 %v7957
    %7988 = vmatprep.subr.mxu0 0.0
    %7989 = vmatpush1.msra.mxu0 %v7956
    %7990 = vmatprep.subr.mxu0 0.0
    %7991 = vmatpush2.msra.mxu0 0.0
    %7992 = vmatprep.subr.mxu0 0.0
    %7993 = vmatpush2.msra.mxu0 0.0
    %7994 = vmatprep.subr.mxu0 0.0
    %7995 = vmatpush2.msra.mxu0 0.0
    %7996 = vmatprep.subr.mxu0 0.0
    %7997 = vmatpush2.msra.mxu0 0.0
    %7998 = vmatprep.subr.mxu0 0.0
    %7999 = vmatpush2.msra.mxu0 0.0
    %8000 = vmatprep.subr.mxu0 0.0
    %8001 = vmatpush2.msra.mxu0 0.0
    %8002 = vmatprep.subr.mxu0 0.0
    %8003 = vmatpush2.msra.mxu0 0.0
    %8004 = vmatprep.subr.mxu0 0.0
    %8005 = vmatpush2.msra.mxu0 0.0
    %8006 = vmatprep.subr.mxu0 0.0
    %8007 = vmatpush2.msra.mxu0 0.0
    %8008 = vmatprep.subr.mxu0 0.0
    %8009 = vmatpush2.msra.mxu0 0.0
    %8010 = vmatprep.subr.mxu0 0.0
    %8011 = vmatpush2.msra.mxu0 0.0
    %8012 = vmatprep.subr.mxu0 0.0
    %8013 = vmatpush2.msra.mxu0 0.0
    %8014 = vmatprep.subr.mxu0 0.0
    %8015 = vmatpush2.msra.mxu0 0.0
    %8016 = vmatprep.subr.mxu0 0.0
    %8017 = vmatpush2.msra.mxu0 0.0
    %8018 = vmatprep.subr.mxu0 0.0
    %8019 = vmatpush2.msra.mxu0 0.0
    %8020 = vmatprep.subr.mxu0 0.0
    %8021 = vmatpush2.msra.mxu0 0.0
    %8022 = vmatprep.mubr.f32.mxu0 0.0
    %8023 = vmatmul.mubr.f32.gmra.mxu0 %v6293
    %v8024 = vpop.f32.mrf.mxu0
    %v8025 = vadd.f32 0.0, %v8024
    %v8026 = vpop.f32.mrf.mxu0
    %8027 = vmatprep.mubr.f32.mxu0 0.0
    %8028 = vmatmul.mubr.f32.gmra.mxu0 %v6296
    %v8029 = vpop.f32.mrf.mxu0
    %v8030 = vadd.f32 0.0, %v8029
    %v8031 = vpop.f32.mrf.mxu0
    %8032 = vdwg.mxu0
    %v8033 = vadd.f32 %v7875, %v8025
    %v8034 = vadd.f32 %v7876, %v8030
    %v8035 = vmul.f32 %v7016, %v4501
    %v8036 = vmul.f32 %v7017, %v4501
    %8037 = vmatprep.subr.mxu0 0.0
    %8038 = vmatpush1.msra.mxu0 0.0
    %8039 = vmatprep.subr.mxu0 0.0
    %8040 = vmatpush1.msra.mxu0 0.0
    %8041 = vmatprep.subr.mxu0 0.0
    %8042 = vmatpush1.msra.mxu0 0.0
    %8043 = vmatprep.subr.mxu0 0.0
    %8044 = vmatpush1.msra.mxu0 0.0
    %8045 = vmatprep.subr.mxu0 0.0
    %8046 = vmatpush1.msra.mxu0 0.0
    %8047 = vmatprep.subr.mxu0 0.0
    %8048 = vmatpush1.msra.mxu0 0.0
    %8049 = vmatprep.subr.mxu0 0.0
    %8050 = vmatpush1.msra.mxu0 0.0
    %8051 = vmatprep.subr.mxu0 0.0
    %8052 = vmatpush1.msra.mxu0 0.0
    %8053 = vmatprep.subr.mxu0 0.0
    %8054 = vmatpush1.msra.mxu0 0.0
    %8055 = vmatprep.subr.mxu0 0.0
    %8056 = vmatpush1.msra.mxu0 0.0
    %8057 = vmatprep.subr.mxu0 0.0
    %8058 = vmatpush1.msra.mxu0 0.0
    %8059 = vmatprep.subr.mxu0 0.0
    %8060 = vmatpush1.msra.mxu0 0.0
    %8061 = vmatprep.subr.mxu0 0.0
    %8062 = vmatpush1.msra.mxu0 0.0
    %8063 = vmatprep.subr.mxu0 0.0
    %8064 = vmatpush1.msra.mxu0 0.0
    %8065 = vmatprep.subr.mxu0 0.0
    %8066 = vmatpush1.msra.mxu0 %v8036
    %8067 = vmatprep.subr.mxu0 0.0
    %8068 = vmatpush1.msra.mxu0 %v8035
    %8069 = vmatprep.subr.mxu0 0.0
    %8070 = vmatpush2.msra.mxu0 0.0
    %8071 = vmatprep.subr.mxu0 0.0
    %8072 = vmatpush2.msra.mxu0 0.0
    %8073 = vmatprep.subr.mxu0 0.0
    %8074 = vmatpush2.msra.mxu0 0.0
    %8075 = vmatprep.subr.mxu0 0.0
    %8076 = vmatpush2.msra.mxu0 0.0
    %8077 = vmatprep.subr.mxu0 0.0
    %8078 = vmatpush2.msra.mxu0 0.0
    %8079 = vmatprep.subr.mxu0 0.0
    %8080 = vmatpush2.msra.mxu0 0.0
    %8081 = vmatprep.subr.mxu0 0.0
    %8082 = vmatpush2.msra.mxu0 0.0
    %8083 = vmatprep.subr.mxu0 0.0
    %8084 = vmatpush2.msra.mxu0 0.0
    %8085 = vmatprep.subr.mxu0 0.0
    %8086 = vmatpush2.msra.mxu0 0.0
    %8087 = vmatprep.subr.mxu0 0.0
    %8088 = vmatpush2.msra.mxu0 0.0
    %8089 = vmatprep.subr.mxu0 0.0
    %8090 = vmatpush2.msra.mxu0 0.0
    %8091 = vmatprep.subr.mxu0 0.0
    %8092 = vmatpush2.msra.mxu0 0.0
    %8093 = vmatprep.subr.mxu0 0.0
    %8094 = vmatpush2.msra.mxu0 0.0
    %8095 = vmatprep.subr.mxu0 0.0
    %8096 = vmatpush2.msra.mxu0 0.0
    %8097 = vmatprep.subr.mxu0 0.0
    %8098 = vmatpush2.msra.mxu0 0.0
    %8099 = vmatprep.subr.mxu0 0.0
    %8100 = vmatpush2.msra.mxu0 0.0
    %8101 = vmatprep.mubr.f32.mxu0 0.0
    %8102 = vmatmul.mubr.f32.gmra.mxu0 %v6456
    %v8103 = vpop.f32.mrf.mxu0
    %v8104 = vadd.f32 0.0, %v8103
    %v8105 = vpop.f32.mrf.mxu0
    %8106 = vmatprep.mubr.f32.mxu0 0.0
    %8107 = vmatmul.mubr.f32.gmra.mxu0 %v6459
    %v8108 = vpop.f32.mrf.mxu0
    %v8109 = vadd.f32 0.0, %v8108
    %v8110 = vpop.f32.mrf.mxu0
    %8111 = vdwg.mxu0
    %v8112 = vadd.f32 %v7954, %v8104
    %v8113 = vadd.f32 %v7955, %v8109
    %v8114 = vmul.f32 %v7093, %v4501
    %v8115 = vmul.f32 %v7094, %v4501
    %8116 = vmatprep.subr.mxu0 0.0
    %8117 = vmatpush1.msra.mxu0 0.0
    %8118 = vmatprep.subr.mxu0 0.0
    %8119 = vmatpush1.msra.mxu0 0.0
    %8120 = vmatprep.subr.mxu0 0.0
    %8121 = vmatpush1.msra.mxu0 0.0
    %8122 = vmatprep.subr.mxu0 0.0
    %8123 = vmatpush1.msra.mxu0 0.0
    %8124 = vmatprep.subr.mxu0 0.0
    %8125 = vmatpush1.msra.mxu0 0.0
    %8126 = vmatprep.subr.mxu0 0.0
    %8127 = vmatpush1.msra.mxu0 0.0
    %8128 = vmatprep.subr.mxu0 0.0
    %8129 = vmatpush1.msra.mxu0 0.0
    %8130 = vmatprep.subr.mxu0 0.0
    %8131 = vmatpush1.msra.mxu0 0.0
    %8132 = vmatprep.subr.mxu0 0.0
    %8133 = vmatpush1.msra.mxu0 0.0
    %8134 = vmatprep.subr.mxu0 0.0
    %8135 = vmatpush1.msra.mxu0 0.0
    %8136 = vmatprep.subr.mxu0 0.0
    %8137 = vmatpush1.msra.mxu0 0.0
    %8138 = vmatprep.subr.mxu0 0.0
    %8139 = vmatpush1.msra.mxu0 0.0
    %8140 = vmatprep.subr.mxu0 0.0
    %8141 = vmatpush1.msra.mxu0 0.0
    %8142 = vmatprep.subr.mxu0 0.0
    %8143 = vmatpush1.msra.mxu0 0.0
    %8144 = vmatprep.subr.mxu0 0.0
    %8145 = vmatpush1.msra.mxu0 %v8115
    %8146 = vmatprep.subr.mxu0 0.0
    %8147 = vmatpush1.msra.mxu0 %v8114
    %8148 = vmatprep.subr.mxu0 0.0
    %8149 = vmatpush2.msra.mxu0 0.0
    %8150 = vmatprep.subr.mxu0 0.0
    %8151 = vmatpush2.msra.mxu0 0.0
    %8152 = vmatprep.subr.mxu0 0.0
    %8153 = vmatpush2.msra.mxu0 0.0
    %8154 = vmatprep.subr.mxu0 0.0
    %8155 = vmatpush2.msra.mxu0 0.0
    %8156 = vmatprep.subr.mxu0 0.0
    %8157 = vmatpush2.msra.mxu0 0.0
    %8158 = vmatprep.subr.mxu0 0.0
    %8159 = vmatpush2.msra.mxu0 0.0
    %8160 = vmatprep.subr.mxu0 0.0
    %8161 = vmatpush2.msra.mxu0 0.0
    %8162 = vmatprep.subr.mxu0 0.0
    %8163 = vmatpush2.msra.mxu0 0.0
    %8164 = vmatprep.subr.mxu0 0.0
    %8165 = vmatpush2.msra.mxu0 0.0
    %8166 = vmatprep.subr.mxu0 0.0
    %8167 = vmatpush2.msra.mxu0 0.0
    %8168 = vmatprep.subr.mxu0 0.0
    %8169 = vmatpush2.msra.mxu0 0.0
    %8170 = vmatprep.subr.mxu0 0.0
    %8171 = vmatpush2.msra.mxu0 0.0
    %8172 = vmatprep.subr.mxu0 0.0
    %8173 = vmatpush2.msra.mxu0 0.0
    %8174 = vmatprep.subr.mxu0 0.0
    %8175 = vmatpush2.msra.mxu0 0.0
    %8176 = vmatprep.subr.mxu0 0.0
    %8177 = vmatpush2.msra.mxu0 0.0
    %8178 = vmatprep.subr.mxu0 0.0
    %8179 = vmatpush2.msra.mxu0 0.0
    %8180 = vmatprep.mubr.f32.mxu0 0.0
    %8181 = vmatmul.mubr.f32.gmra.mxu0 %v6456
    %v8182 = vpop.f32.mrf.mxu0
    %v8183 = vadd.f32 0.0, %v8182
    %v8184 = vpop.f32.mrf.mxu0
    %8185 = vmatprep.mubr.f32.mxu0 0.0
    %8186 = vmatmul.mubr.f32.gmra.mxu0 %v6459
    %v8187 = vpop.f32.mrf.mxu0
    %v8188 = vadd.f32 0.0, %v8187
    %v8189 = vpop.f32.mrf.mxu0
    %8190 = vdwg.mxu0
    %v8191 = vadd.f32 %v8033, %v8183
    %v8192 = vadd.f32 %v8034, %v8188
    %v8193 = vmul.f32 %v7016, %v4663
    %v8194 = vmul.f32 %v7017, %v4663
    %8195 = vmatprep.subr.mxu0 0.0
    %8196 = vmatpush1.msra.mxu0 0.0
    %8197 = vmatprep.subr.mxu0 0.0
    %8198 = vmatpush1.msra.mxu0 0.0
    %8199 = vmatprep.subr.mxu0 0.0
    %8200 = vmatpush1.msra.mxu0 0.0
    %8201 = vmatprep.subr.mxu0 0.0
    %8202 = vmatpush1.msra.mxu0 0.0
    %8203 = vmatprep.subr.mxu0 0.0
    %8204 = vmatpush1.msra.mxu0 0.0
    %8205 = vmatprep.subr.mxu0 0.0
    %8206 = vmatpush1.msra.mxu0 0.0
    %8207 = vmatprep.subr.mxu0 0.0
    %8208 = vmatpush1.msra.mxu0 0.0
    %8209 = vmatprep.subr.mxu0 0.0
    %8210 = vmatpush1.msra.mxu0 0.0
    %8211 = vmatprep.subr.mxu0 0.0
    %8212 = vmatpush1.msra.mxu0 0.0
    %8213 = vmatprep.subr.mxu0 0.0
    %8214 = vmatpush1.msra.mxu0 0.0
    %8215 = vmatprep.subr.mxu0 0.0
    %8216 = vmatpush1.msra.mxu0 0.0
    %8217 = vmatprep.subr.mxu0 0.0
    %8218 = vmatpush1.msra.mxu0 0.0
    %8219 = vmatprep.subr.mxu0 0.0
    %8220 = vmatpush1.msra.mxu0 0.0
    %8221 = vmatprep.subr.mxu0 0.0
    %8222 = vmatpush1.msra.mxu0 0.0
    %8223 = vmatprep.subr.mxu0 0.0
    %8224 = vmatpush1.msra.mxu0 %v8194
    %8225 = vmatprep.subr.mxu0 0.0
    %8226 = vmatpush1.msra.mxu0 %v8193
    %8227 = vmatprep.subr.mxu0 0.0
    %8228 = vmatpush2.msra.mxu0 0.0
    %8229 = vmatprep.subr.mxu0 0.0
    %8230 = vmatpush2.msra.mxu0 0.0
    %8231 = vmatprep.subr.mxu0 0.0
    %8232 = vmatpush2.msra.mxu0 0.0
    %8233 = vmatprep.subr.mxu0 0.0
    %8234 = vmatpush2.msra.mxu0 0.0
    %8235 = vmatprep.subr.mxu0 0.0
    %8236 = vmatpush2.msra.mxu0 0.0
    %8237 = vmatprep.subr.mxu0 0.0
    %8238 = vmatpush2.msra.mxu0 0.0
    %8239 = vmatprep.subr.mxu0 0.0
    %8240 = vmatpush2.msra.mxu0 0.0
    %8241 = vmatprep.subr.mxu0 0.0
    %8242 = vmatpush2.msra.mxu0 0.0
    %8243 = vmatprep.subr.mxu0 0.0
    %8244 = vmatpush2.msra.mxu0 0.0
    %8245 = vmatprep.subr.mxu0 0.0
    %8246 = vmatpush2.msra.mxu0 0.0
    %8247 = vmatprep.subr.mxu0 0.0
    %8248 = vmatpush2.msra.mxu0 0.0
    %8249 = vmatprep.subr.mxu0 0.0
    %8250 = vmatpush2.msra.mxu0 0.0
    %8251 = vmatprep.subr.mxu0 0.0
    %8252 = vmatpush2.msra.mxu0 0.0
    %8253 = vmatprep.subr.mxu0 0.0
    %8254 = vmatpush2.msra.mxu0 0.0
    %8255 = vmatprep.subr.mxu0 0.0
    %8256 = vmatpush2.msra.mxu0 0.0
    %8257 = vmatprep.subr.mxu0 0.0
    %8258 = vmatpush2.msra.mxu0 0.0
    %8259 = vmatprep.mubr.f32.mxu0 0.0
    %8260 = vmatmul.mubr.f32.gmra.mxu0 %v6619
    %v8261 = vpop.f32.mrf.mxu0
    %v8262 = vadd.f32 0.0, %v8261
    %v8263 = vpop.f32.mrf.mxu0
    %8264 = vmatprep.mubr.f32.mxu0 0.0
    %8265 = vmatmul.mubr.f32.gmra.mxu0 %v6622
    %v8266 = vpop.f32.mrf.mxu0
    %v8267 = vadd.f32 0.0, %v8266
    %v8268 = vpop.f32.mrf.mxu0
    %8269 = vdwg.mxu0
    %v8270 = vadd.f32 %v8112, %v8262
    %v8271 = vadd.f32 %v8113, %v8267
    %v8272 = vmul.f32 %v7093, %v4663
    %v8273 = vmul.f32 %v7094, %v4663
    %8274 = vmatprep.subr.mxu0 0.0
    %8275 = vmatpush1.msra.mxu0 0.0
    %8276 = vmatprep.subr.mxu0 0.0
    %8277 = vmatpush1.msra.mxu0 0.0
    %8278 = vmatprep.subr.mxu0 0.0
    %8279 = vmatpush1.msra.mxu0 0.0
    %8280 = vmatprep.subr.mxu0 0.0
    %8281 = vmatpush1.msra.mxu0 0.0
    %8282 = vmatprep.subr.mxu0 0.0
    %8283 = vmatpush1.msra.mxu0 0.0
    %8284 = vmatprep.subr.mxu0 0.0
    %8285 = vmatpush1.msra.mxu0 0.0
    %8286 = vmatprep.subr.mxu0 0.0
    %8287 = vmatpush1.msra.mxu0 0.0
    %8288 = vmatprep.subr.mxu0 0.0
    %8289 = vmatpush1.msra.mxu0 0.0
    %8290 = vmatprep.subr.mxu0 0.0
    %8291 = vmatpush1.msra.mxu0 0.0
    %8292 = vmatprep.subr.mxu0 0.0
    %8293 = vmatpush1.msra.mxu0 0.0
    %8294 = vmatprep.subr.mxu0 0.0
    %8295 = vmatpush1.msra.mxu0 0.0
    %8296 = vmatprep.subr.mxu0 0.0
    %8297 = vmatpush1.msra.mxu0 0.0
    %8298 = vmatprep.subr.mxu0 0.0
    %8299 = vmatpush1.msra.mxu0 0.0
    %8300 = vmatprep.subr.mxu0 0.0
    %8301 = vmatpush1.msra.mxu0 0.0
    %8302 = vmatprep.subr.mxu0 0.0
    %8303 = vmatpush1.msra.mxu0 %v8273
    %8304 = vmatprep.subr.mxu0 0.0
    %8305 = vmatpush1.msra.mxu0 %v8272
    %8306 = vmatprep.subr.mxu0 0.0
    %8307 = vmatpush2.msra.mxu0 0.0
    %8308 = vmatprep.subr.mxu0 0.0
    %8309 = vmatpush2.msra.mxu0 0.0
    %8310 = vmatprep.subr.mxu0 0.0
    %8311 = vmatpush2.msra.mxu0 0.0
    %8312 = vmatprep.subr.mxu0 0.0
    %8313 = vmatpush2.msra.mxu0 0.0
    %8314 = vmatprep.subr.mxu0 0.0
    %8315 = vmatpush2.msra.mxu0 0.0
    %8316 = vmatprep.subr.mxu0 0.0
    %8317 = vmatpush2.msra.mxu0 0.0
    %8318 = vmatprep.subr.mxu0 0.0
    %8319 = vmatpush2.msra.mxu0 0.0
    %8320 = vmatprep.subr.mxu0 0.0
    %8321 = vmatpush2.msra.mxu0 0.0
    %8322 = vmatprep.subr.mxu0 0.0
    %8323 = vmatpush2.msra.mxu0 0.0
    %8324 = vmatprep.subr.mxu0 0.0
    %8325 = vmatpush2.msra.mxu0 0.0
    %8326 = vmatprep.subr.mxu0 0.0
    %8327 = vmatpush2.msra.mxu0 0.0
    %8328 = vmatprep.subr.mxu0 0.0
    %8329 = vmatpush2.msra.mxu0 0.0
    %8330 = vmatprep.subr.mxu0 0.0
    %8331 = vmatpush2.msra.mxu0 0.0
    %8332 = vmatprep.subr.mxu0 0.0
    %8333 = vmatpush2.msra.mxu0 0.0
    %8334 = vmatprep.subr.mxu0 0.0
    %8335 = vmatpush2.msra.mxu0 0.0
    %8336 = vmatprep.subr.mxu0 0.0
    %8337 = vmatpush2.msra.mxu0 0.0
    %8338 = vmatprep.mubr.f32.mxu0 0.0
    %8339 = vmatmul.mubr.f32.gmra.mxu0 %v6619
    %v8340 = vpop.f32.mrf.mxu0
    %v8341 = vadd.f32 0.0, %v8340
    %v8342 = vpop.f32.mrf.mxu0
    %8343 = vmatprep.mubr.f32.mxu0 0.0
    %8344 = vmatmul.mubr.f32.gmra.mxu0 %v6622
    %v8345 = vpop.f32.mrf.mxu0
    %v8346 = vadd.f32 0.0, %v8345
    %v8347 = vpop.f32.mrf.mxu0
    %8348 = vdwg.mxu0
    %v8349 = vadd.f32 %v8191, %v8341
    %v8350 = vadd.f32 %v8192, %v8346
    %v8351 = vmul.f32 %v7016, %v4825
    %v8352 = vmul.f32 %v7017, %v4825
    %8353 = vmatprep.subr.mxu0 0.0
    %8354 = vmatpush1.msra.mxu0 0.0
    %8355 = vmatprep.subr.mxu0 0.0
    %8356 = vmatpush1.msra.mxu0 0.0
    %8357 = vmatprep.subr.mxu0 0.0
    %8358 = vmatpush1.msra.mxu0 0.0
    %8359 = vmatprep.subr.mxu0 0.0
    %8360 = vmatpush1.msra.mxu0 0.0
    %8361 = vmatprep.subr.mxu0 0.0
    %8362 = vmatpush1.msra.mxu0 0.0
    %8363 = vmatprep.subr.mxu0 0.0
    %8364 = vmatpush1.msra.mxu0 0.0
    %8365 = vmatprep.subr.mxu0 0.0
    %8366 = vmatpush1.msra.mxu0 0.0
    %8367 = vmatprep.subr.mxu0 0.0
    %8368 = vmatpush1.msra.mxu0 0.0
    %8369 = vmatprep.subr.mxu0 0.0
    %8370 = vmatpush1.msra.mxu0 0.0
    %8371 = vmatprep.subr.mxu0 0.0
    %8372 = vmatpush1.msra.mxu0 0.0
    %8373 = vmatprep.subr.mxu0 0.0
    %8374 = vmatpush1.msra.mxu0 0.0
    %8375 = vmatprep.subr.mxu0 0.0
    %8376 = vmatpush1.msra.mxu0 0.0
    %8377 = vmatprep.subr.mxu0 0.0
    %8378 = vmatpush1.msra.mxu0 0.0
    %8379 = vmatprep.subr.mxu0 0.0
    %8380 = vmatpush1.msra.mxu0 0.0
    %8381 = vmatprep.subr.mxu0 0.0
    %8382 = vmatpush1.msra.mxu0 %v8352
    %8383 = vmatprep.subr.mxu0 0.0
    %8384 = vmatpush1.msra.mxu0 %v8351
    %8385 = vmatprep.subr.mxu0 0.0
    %8386 = vmatpush2.msra.mxu0 0.0
    %8387 = vmatprep.subr.mxu0 0.0
    %8388 = vmatpush2.msra.mxu0 0.0
    %8389 = vmatprep.subr.mxu0 0.0
    %8390 = vmatpush2.msra.mxu0 0.0
    %8391 = vmatprep.subr.mxu0 0.0
    %8392 = vmatpush2.msra.mxu0 0.0
    %8393 = vmatprep.subr.mxu0 0.0
    %8394 = vmatpush2.msra.mxu0 0.0
    %8395 = vmatprep.subr.mxu0 0.0
    %8396 = vmatpush2.msra.mxu0 0.0
    %8397 = vmatprep.subr.mxu0 0.0
    %8398 = vmatpush2.msra.mxu0 0.0
    %8399 = vmatprep.subr.mxu0 0.0
    %8400 = vmatpush2.msra.mxu0 0.0
    %8401 = vmatprep.subr.mxu0 0.0
    %8402 = vmatpush2.msra.mxu0 0.0
    %8403 = vmatprep.subr.mxu0 0.0
    %8404 = vmatpush2.msra.mxu0 0.0
    %8405 = vmatprep.subr.mxu0 0.0
    %8406 = vmatpush2.msra.mxu0 0.0
    %8407 = vmatprep.subr.mxu0 0.0
    %8408 = vmatpush2.msra.mxu0 0.0
    %8409 = vmatprep.subr.mxu0 0.0
    %8410 = vmatpush2.msra.mxu0 0.0
    %8411 = vmatprep.subr.mxu0 0.0
    %8412 = vmatpush2.msra.mxu0 0.0
    %8413 = vmatprep.subr.mxu0 0.0
    %8414 = vmatpush2.msra.mxu0 0.0
    %8415 = vmatprep.subr.mxu0 0.0
    %8416 = vmatpush2.msra.mxu0 0.0
    %8417 = vmatprep.mubr.f32.mxu0 0.0
    %8418 = vmatmul.mubr.f32.gmra.mxu0 %v6782
    %v8419 = vpop.f32.mrf.mxu0
    %v8420 = vadd.f32 0.0, %v8419
    %v8421 = vpop.f32.mrf.mxu0
    %8422 = vmatprep.mubr.f32.mxu0 0.0
    %8423 = vmatmul.mubr.f32.gmra.mxu0 %v6785
    %v8424 = vpop.f32.mrf.mxu0
    %v8425 = vadd.f32 0.0, %v8424
    %v8426 = vpop.f32.mrf.mxu0
    %8427 = vdwg.mxu0
    %v8428 = vadd.f32 %v8270, %v8420
    %v8429 = vadd.f32 %v8271, %v8425
    %v8430 = vmul.f32 %v7093, %v4825
    %v8431 = vmul.f32 %v7094, %v4825
    %8432 = vmatprep.subr.mxu0 0.0
    %8433 = vmatpush1.msra.mxu0 0.0
    %8434 = vmatprep.subr.mxu0 0.0
    %8435 = vmatpush1.msra.mxu0 0.0
    %8436 = vmatprep.subr.mxu0 0.0
    %8437 = vmatpush1.msra.mxu0 0.0
    %8438 = vmatprep.subr.mxu0 0.0
    %8439 = vmatpush1.msra.mxu0 0.0
    %8440 = vmatprep.subr.mxu0 0.0
    %8441 = vmatpush1.msra.mxu0 0.0
    %8442 = vmatprep.subr.mxu0 0.0
    %8443 = vmatpush1.msra.mxu0 0.0
    %8444 = vmatprep.subr.mxu0 0.0
    %8445 = vmatpush1.msra.mxu0 0.0
    %8446 = vmatprep.subr.mxu0 0.0
    %8447 = vmatpush1.msra.mxu0 0.0
    %8448 = vmatprep.subr.mxu0 0.0
    %8449 = vmatpush1.msra.mxu0 0.0
    %8450 = vmatprep.subr.mxu0 0.0
    %8451 = vmatpush1.msra.mxu0 0.0
    %8452 = vmatprep.subr.mxu0 0.0
    %8453 = vmatpush1.msra.mxu0 0.0
    %8454 = vmatprep.subr.mxu0 0.0
    %8455 = vmatpush1.msra.mxu0 0.0
    %8456 = vmatprep.subr.mxu0 0.0
    %8457 = vmatpush1.msra.mxu0 0.0
    %8458 = vmatprep.subr.mxu0 0.0
    %8459 = vmatpush1.msra.mxu0 0.0
    %8460 = vmatprep.subr.mxu0 0.0
    %8461 = vmatpush1.msra.mxu0 %v8431
    %8462 = vmatprep.subr.mxu0 0.0
    %8463 = vmatpush1.msra.mxu0 %v8430
    %8464 = vmatprep.subr.mxu0 0.0
    %8465 = vmatpush2.msra.mxu0 0.0
    %8466 = vmatprep.subr.mxu0 0.0
    %8467 = vmatpush2.msra.mxu0 0.0
    %8468 = vmatprep.subr.mxu0 0.0
    %8469 = vmatpush2.msra.mxu0 0.0
    %8470 = vmatprep.subr.mxu0 0.0
    %8471 = vmatpush2.msra.mxu0 0.0
    %8472 = vmatprep.subr.mxu0 0.0
    %8473 = vmatpush2.msra.mxu0 0.0
    %8474 = vmatprep.subr.mxu0 0.0
    %8475 = vmatpush2.msra.mxu0 0.0
    %8476 = vmatprep.subr.mxu0 0.0
    %8477 = vmatpush2.msra.mxu0 0.0
    %8478 = vmatprep.subr.mxu0 0.0
    %8479 = vmatpush2.msra.mxu0 0.0
    %8480 = vmatprep.subr.mxu0 0.0
    %8481 = vmatpush2.msra.mxu0 0.0
    %8482 = vmatprep.subr.mxu0 0.0
    %8483 = vmatpush2.msra.mxu0 0.0
    %8484 = vmatprep.subr.mxu0 0.0
    %8485 = vmatpush2.msra.mxu0 0.0
    %8486 = vmatprep.subr.mxu0 0.0
    %8487 = vmatpush2.msra.mxu0 0.0
    %8488 = vmatprep.subr.mxu0 0.0
    %8489 = vmatpush2.msra.mxu0 0.0
    %8490 = vmatprep.subr.mxu0 0.0
    %8491 = vmatpush2.msra.mxu0 0.0
    %8492 = vmatprep.subr.mxu0 0.0
    %8493 = vmatpush2.msra.mxu0 0.0
    %8494 = vmatprep.subr.mxu0 0.0
    %8495 = vmatpush2.msra.mxu0 0.0
    %8496 = vmatprep.mubr.f32.mxu0 0.0
    %8497 = vmatmul.mubr.f32.gmra.mxu0 %v6782
    %v8498 = vpop.f32.mrf.mxu0
    %v8499 = vadd.f32 0.0, %v8498
    %v8500 = vpop.f32.mrf.mxu0
    %8501 = vmatprep.mubr.f32.mxu0 0.0
    %8502 = vmatmul.mubr.f32.gmra.mxu0 %v6785
    %v8503 = vpop.f32.mrf.mxu0
    %v8504 = vadd.f32 0.0, %v8503
    %v8505 = vpop.f32.mrf.mxu0
    %8506 = vdwg.mxu0
    %v8507 = vadd.f32 %v8349, %v8499
    %v8508 = vadd.f32 %v8350, %v8504
    %8509 = vmatprep.subr.mxu0 0.0
    %8510 = vmatpush1.msra.mxu0 %v4999
    %8511 = vmatprep.subr.mxu0 0.0
    %8512 = vmatpush1.msra.mxu0 %v4998
    %8513 = vmatprep.subr.mxu0 0.0
    %8514 = vmatpush1.msra.mxu0 %v4997
    %8515 = vmatprep.subr.mxu0 0.0
    %8516 = vmatpush1.msra.mxu0 %v4996
    %8517 = vmatprep.subr.mxu0 0.0
    %8518 = vmatpush1.msra.mxu0 %v4995
    %8519 = vmatprep.subr.mxu0 0.0
    %8520 = vmatpush1.msra.mxu0 %v4994
    %8521 = vmatprep.subr.mxu0 0.0
    %8522 = vmatpush1.msra.mxu0 %v4993
    %8523 = vmatprep.subr.mxu0 0.0
    %8524 = vmatpush1.msra.mxu0 %v4992
    %8525 = vmatprep.subr.mxu0 0.0
    %8526 = vmatpush1.msra.mxu0 %v4991
    %8527 = vmatprep.subr.mxu0 0.0
    %8528 = vmatpush1.msra.mxu0 %v4990
    %8529 = vmatprep.subr.mxu0 0.0
    %8530 = vmatpush1.msra.mxu0 %v4989
    %8531 = vmatprep.subr.mxu0 0.0
    %8532 = vmatpush1.msra.mxu0 %v4988
    %8533 = vmatprep.subr.mxu0 0.0
    %8534 = vmatpush1.msra.mxu0 %v4987
    %8535 = vmatprep.subr.mxu0 0.0
    %8536 = vmatpush1.msra.mxu0 %v4986
    %8537 = vmatprep.subr.mxu0 0.0
    %8538 = vmatpush1.msra.mxu0 %v4985
    %8539 = vmatprep.subr.mxu0 0.0
    %8540 = vmatpush1.msra.mxu0 %v4984
    %8541 = vmatprep.subr.mxu0 0.0
    %8542 = vmatpush2.msra.mxu0 0.0
    %8543 = vmatprep.subr.mxu0 0.0
    %8544 = vmatpush2.msra.mxu0 0.0
    %8545 = vmatprep.subr.mxu0 0.0
    %8546 = vmatpush2.msra.mxu0 0.0
    %8547 = vmatprep.subr.mxu0 0.0
    %8548 = vmatpush2.msra.mxu0 0.0
    %8549 = vmatprep.subr.mxu0 0.0
    %8550 = vmatpush2.msra.mxu0 0.0
    %8551 = vmatprep.subr.mxu0 0.0
    %8552 = vmatpush2.msra.mxu0 0.0
    %8553 = vmatprep.subr.mxu0 0.0
    %8554 = vmatpush2.msra.mxu0 0.0
    %8555 = vmatprep.subr.mxu0 0.0
    %8556 = vmatpush2.msra.mxu0 0.0
    %8557 = vmatprep.subr.mxu0 0.0
    %8558 = vmatpush2.msra.mxu0 0.0
    %8559 = vmatprep.subr.mxu0 0.0
    %8560 = vmatpush2.msra.mxu0 0.0
    %8561 = vmatprep.subr.mxu0 0.0
    %8562 = vmatpush2.msra.mxu0 0.0
    %8563 = vmatprep.subr.mxu0 0.0
    %8564 = vmatpush2.msra.mxu0 0.0
    %8565 = vmatprep.subr.mxu0 0.0
    %8566 = vmatpush2.msra.mxu0 0.0
    %8567 = vmatprep.subr.mxu0 0.0
    %8568 = vmatpush2.msra.mxu0 0.0
    %8569 = vmatprep.subr.mxu0 0.0
    %8570 = vmatpush2.msra.mxu0 0.0
    %8571 = vmatprep.subr.mxu0 0.0
    %8572 = vmatpush2.msra.mxu0 0.0
    %8573 = vmatprep.mubr.f32.mxu0 0.0
    %8574 = vmatmul.mubr.f32.gmra.mxu0 %v8428
    %v8575 = vpop.f32.mrf.mxu0
    %v8576 = vadd.f32 %v5004, %v8575
    %v8577 = vpop.f32.mrf.mxu0
    %8578 = vmatprep.mubr.f32.mxu0 0.0
    %8579 = vmatmul.mubr.f32.gmra.mxu0 %v8429
    %v8580 = vpop.f32.mrf.mxu0
    %v8581 = vadd.f32 %v5004, %v8580
    %v8582 = vpop.f32.mrf.mxu0
    %8583 = vdwg.mxu0
    %v8584 = vmax.f32 %v8576, 0.0
    %v8585 = vmax.f32 %v8581, 0.0
    %8586 = vmatprep.subr.mxu0 0.0
    %8587 = vmatpush1.msra.mxu0 %v4999
    %8588 = vmatprep.subr.mxu0 0.0
    %8589 = vmatpush1.msra.mxu0 %v4998
    %8590 = vmatprep.subr.mxu0 0.0
    %8591 = vmatpush1.msra.mxu0 %v4997
    %8592 = vmatprep.subr.mxu0 0.0
    %8593 = vmatpush1.msra.mxu0 %v4996
    %8594 = vmatprep.subr.mxu0 0.0
    %8595 = vmatpush1.msra.mxu0 %v4995
    %8596 = vmatprep.subr.mxu0 0.0
    %8597 = vmatpush1.msra.mxu0 %v4994
    %8598 = vmatprep.subr.mxu0 0.0
    %8599 = vmatpush1.msra.mxu0 %v4993
    %8600 = vmatprep.subr.mxu0 0.0
    %8601 = vmatpush1.msra.mxu0 %v4992
    %8602 = vmatprep.subr.mxu0 0.0
    %8603 = vmatpush1.msra.mxu0 %v4991
    %8604 = vmatprep.subr.mxu0 0.0
    %8605 = vmatpush1.msra.mxu0 %v4990
    %8606 = vmatprep.subr.mxu0 0.0
    %8607 = vmatpush1.msra.mxu0 %v4989
    %8608 = vmatprep.subr.mxu0 0.0
    %8609 = vmatpush1.msra.mxu0 %v4988
    %8610 = vmatprep.subr.mxu0 0.0
    %8611 = vmatpush1.msra.mxu0 %v4987
    %8612 = vmatprep.subr.mxu0 0.0
    %8613 = vmatpush1.msra.mxu0 %v4986
    %8614 = vmatprep.subr.mxu0 0.0
    %8615 = vmatpush1.msra.mxu0 %v4985
    %8616 = vmatprep.subr.mxu0 0.0
    %8617 = vmatpush1.msra.mxu0 %v4984
    %8618 = vmatprep.subr.mxu0 0.0
    %8619 = vmatpush2.msra.mxu0 0.0
    %8620 = vmatprep.subr.mxu0 0.0
    %8621 = vmatpush2.msra.mxu0 0.0
    %8622 = vmatprep.subr.mxu0 0.0
    %8623 = vmatpush2.msra.mxu0 0.0
    %8624 = vmatprep.subr.mxu0 0.0
    %8625 = vmatpush2.msra.mxu0 0.0
    %8626 = vmatprep.subr.mxu0 0.0
    %8627 = vmatpush2.msra.mxu0 0.0
    %8628 = vmatprep.subr.mxu0 0.0
    %8629 = vmatpush2.msra.mxu0 0.0
    %8630 = vmatprep.subr.mxu0 0.0
    %8631 = vmatpush2.msra.mxu0 0.0
    %8632 = vmatprep.subr.mxu0 0.0
    %8633 = vmatpush2.msra.mxu0 0.0
    %8634 = vmatprep.subr.mxu0 0.0
    %8635 = vmatpush2.msra.mxu0 0.0
    %8636 = vmatprep.subr.mxu0 0.0
    %8637 = vmatpush2.msra.mxu0 0.0
    %8638 = vmatprep.subr.mxu0 0.0
    %8639 = vmatpush2.msra.mxu0 0.0
    %8640 = vmatprep.subr.mxu0 0.0
    %8641 = vmatpush2.msra.mxu0 0.0
    %8642 = vmatprep.subr.mxu0 0.0
    %8643 = vmatpush2.msra.mxu0 0.0
    %8644 = vmatprep.subr.mxu0 0.0
    %8645 = vmatpush2.msra.mxu0 0.0
    %8646 = vmatprep.subr.mxu0 0.0
    %8647 = vmatpush2.msra.mxu0 0.0
    %8648 = vmatprep.subr.mxu0 0.0
    %8649 = vmatpush2.msra.mxu0 0.0
    %8650 = vmatprep.mubr.f32.mxu0 0.0
    %8651 = vmatmul.mubr.f32.gmra.mxu0 %v8507
    %v8652 = vpop.f32.mrf.mxu0
    %v8653 = vadd.f32 %v5004, %v8652
    %v8654 = vpop.f32.mrf.mxu0
    %8655 = vmatprep.mubr.f32.mxu0 0.0
    %8656 = vmatmul.mubr.f32.gmra.mxu0 %v8508
    %v8657 = vpop.f32.mrf.mxu0
    %v8658 = vadd.f32 %v5004, %v8657
    %v8659 = vpop.f32.mrf.mxu0
    %8660 = vdwg.mxu0
    %v8661 = vmax.f32 %v8653, 0.0
    %v8662 = vmax.f32 %v8658, 0.0
    %8663 = vmatprep.subr.mxu0 0.0
    %8664 = vmatpush1.msra.mxu0 0.0
    %8665 = vmatprep.subr.mxu0 0.0
    %8666 = vmatpush1.msra.mxu0 0.0
    %8667 = vmatprep.subr.mxu0 0.0
    %8668 = vmatpush1.msra.mxu0 0.0
    %8669 = vmatprep.subr.mxu0 0.0
    %8670 = vmatpush1.msra.mxu0 0.0
    %8671 = vmatprep.subr.mxu0 0.0
    %8672 = vmatpush1.msra.mxu0 0.0
    %8673 = vmatprep.subr.mxu0 0.0
    %8674 = vmatpush1.msra.mxu0 0.0
    %8675 = vmatprep.subr.mxu0 0.0
    %8676 = vmatpush1.msra.mxu0 0.0
    %8677 = vmatprep.subr.mxu0 0.0
    %8678 = vmatpush1.msra.mxu0 0.0
    %8679 = vmatprep.subr.mxu0 0.0
    %8680 = vmatpush1.msra.mxu0 0.0
    %8681 = vmatprep.subr.mxu0 0.0
    %8682 = vmatpush1.msra.mxu0 0.0
    %8683 = vmatprep.subr.mxu0 0.0
    %8684 = vmatpush1.msra.mxu0 0.0
    %8685 = vmatprep.subr.mxu0 0.0
    %8686 = vmatpush1.msra.mxu0 0.0
    %8687 = vmatprep.subr.mxu0 0.0
    %8688 = vmatpush1.msra.mxu0 0.0
    %8689 = vmatprep.subr.mxu0 0.0
    %8690 = vmatpush1.msra.mxu0 0.0
    %8691 = vmatprep.subr.mxu0 0.0
    %8692 = vmatpush1.msra.mxu0 %v8585
    %8693 = vmatprep.subr.mxu0 0.0
    %8694 = vmatpush1.msra.mxu0 %v8584
    %8695 = vmatprep.subr.mxu0 0.0
    %8696 = vmatpush2.msra.mxu0 0.0
    %8697 = vmatprep.subr.mxu0 0.0
    %8698 = vmatpush2.msra.mxu0 0.0
    %8699 = vmatprep.subr.mxu0 0.0
    %8700 = vmatpush2.msra.mxu0 0.0
    %8701 = vmatprep.subr.mxu0 0.0
    %8702 = vmatpush2.msra.mxu0 0.0
    %8703 = vmatprep.subr.mxu0 0.0
    %8704 = vmatpush2.msra.mxu0 0.0
    %8705 = vmatprep.subr.mxu0 0.0
    %8706 = vmatpush2.msra.mxu0 0.0
    %8707 = vmatprep.subr.mxu0 0.0
    %8708 = vmatpush2.msra.mxu0 0.0
    %8709 = vmatprep.subr.mxu0 0.0
    %8710 = vmatpush2.msra.mxu0 0.0
    %8711 = vmatprep.subr.mxu0 0.0
    %8712 = vmatpush2.msra.mxu0 0.0
    %8713 = vmatprep.subr.mxu0 0.0
    %8714 = vmatpush2.msra.mxu0 0.0
    %8715 = vmatprep.subr.mxu0 0.0
    %8716 = vmatpush2.msra.mxu0 0.0
    %8717 = vmatprep.subr.mxu0 0.0
    %8718 = vmatpush2.msra.mxu0 0.0
    %8719 = vmatprep.subr.mxu0 0.0
    %8720 = vmatpush2.msra.mxu0 0.0
    %8721 = vmatprep.subr.mxu0 0.0
    %8722 = vmatpush2.msra.mxu0 0.0
    %8723 = vmatprep.subr.mxu0 0.0
    %8724 = vmatpush2.msra.mxu0 0.0
    %8725 = vmatprep.subr.mxu0 0.0
    %8726 = vmatpush2.msra.mxu0 0.0
    %8727 = vmatprep.mubr.f32.mxu0 0.0
    %8728 = vmatmul.mubr.f32.gmra.mxu0 %v147
    %v8729 = vpop.f32.mrf.mxu0
    %v8730 = vadd.f32 0.0, %v8729
    %v8731 = vpop.f32.mrf.mxu0
    %8732 = vdwg.mxu0
    %v8733 = vmul.f32 %v8730, %v661
    %8734 = vmatprep.subr.mxu0 0.0
    %8735 = vmatpush1.msra.mxu0 0.0
    %8736 = vmatprep.subr.mxu0 0.0
    %8737 = vmatpush1.msra.mxu0 0.0
    %8738 = vmatprep.subr.mxu0 0.0
    %8739 = vmatpush1.msra.mxu0 0.0
    %8740 = vmatprep.subr.mxu0 0.0
    %8741 = vmatpush1.msra.mxu0 0.0
    %8742 = vmatprep.subr.mxu0 0.0
    %8743 = vmatpush1.msra.mxu0 0.0
    %8744 = vmatprep.subr.mxu0 0.0
    %8745 = vmatpush1.msra.mxu0 0.0
    %8746 = vmatprep.subr.mxu0 0.0
    %8747 = vmatpush1.msra.mxu0 0.0
    %8748 = vmatprep.subr.mxu0 0.0
    %8749 = vmatpush1.msra.mxu0 0.0
    %8750 = vmatprep.subr.mxu0 0.0
    %8751 = vmatpush1.msra.mxu0 0.0
    %8752 = vmatprep.subr.mxu0 0.0
    %8753 = vmatpush1.msra.mxu0 0.0
    %8754 = vmatprep.subr.mxu0 0.0
    %8755 = vmatpush1.msra.mxu0 0.0
    %8756 = vmatprep.subr.mxu0 0.0
    %8757 = vmatpush1.msra.mxu0 0.0
    %8758 = vmatprep.subr.mxu0 0.0
    %8759 = vmatpush1.msra.mxu0 0.0
    %8760 = vmatprep.subr.mxu0 0.0
    %8761 = vmatpush1.msra.mxu0 0.0
    %8762 = vmatprep.subr.mxu0 0.0
    %8763 = vmatpush1.msra.mxu0 %v8662
    %8764 = vmatprep.subr.mxu0 0.0
    %8765 = vmatpush1.msra.mxu0 %v8661
    %8766 = vmatprep.subr.mxu0 0.0
    %8767 = vmatpush2.msra.mxu0 0.0
    %8768 = vmatprep.subr.mxu0 0.0
    %8769 = vmatpush2.msra.mxu0 0.0
    %8770 = vmatprep.subr.mxu0 0.0
    %8771 = vmatpush2.msra.mxu0 0.0
    %8772 = vmatprep.subr.mxu0 0.0
    %8773 = vmatpush2.msra.mxu0 0.0
    %8774 = vmatprep.subr.mxu0 0.0
    %8775 = vmatpush2.msra.mxu0 0.0
    %8776 = vmatprep.subr.mxu0 0.0
    %8777 = vmatpush2.msra.mxu0 0.0
    %8778 = vmatprep.subr.mxu0 0.0
    %8779 = vmatpush2.msra.mxu0 0.0
    %8780 = vmatprep.subr.mxu0 0.0
    %8781 = vmatpush2.msra.mxu0 0.0
    %8782 = vmatprep.subr.mxu0 0.0
    %8783 = vmatpush2.msra.mxu0 0.0
    %8784 = vmatprep.subr.mxu0 0.0
    %8785 = vmatpush2.msra.mxu0 0.0
    %8786 = vmatprep.subr.mxu0 0.0
    %8787 = vmatpush2.msra.mxu0 0.0
    %8788 = vmatprep.subr.mxu0 0.0
    %8789 = vmatpush2.msra.mxu0 0.0
    %8790 = vmatprep.subr.mxu0 0.0
    %8791 = vmatpush2.msra.mxu0 0.0
    %8792 = vmatprep.subr.mxu0 0.0
    %8793 = vmatpush2.msra.mxu0 0.0
    %8794 = vmatprep.subr.mxu0 0.0
    %8795 = vmatpush2.msra.mxu0 0.0
    %8796 = vmatprep.subr.mxu0 0.0
    %8797 = vmatpush2.msra.mxu0 0.0
    %8798 = vmatprep.mubr.f32.mxu0 0.0
    %8799 = vmatmul.mubr.f32.gmra.mxu0 %v74
    %v8800 = vpop.f32.mrf.mxu0
    %v8801 = vadd.f32 0.0, %v8800
    %v8802 = vpop.f32.mrf.mxu0
    %8803 = vdwg.mxu0
    %v8804 = vmul.f32 %v8801, %v661
    %8805 = vmatprep.subr.mxu0 0.0
    %8806 = vmatpush1.msra.mxu0 %v5316
    %8807 = vmatprep.subr.mxu0 0.0
    %8808 = vmatpush1.msra.mxu0 %v5315
    %8809 = vmatprep.subr.mxu0 0.0
    %8810 = vmatpush1.msra.mxu0 %v5314
    %8811 = vmatprep.subr.mxu0 0.0
    %8812 = vmatpush1.msra.mxu0 %v5313
    %8813 = vmatprep.subr.mxu0 0.0
    %8814 = vmatpush1.msra.mxu0 %v5312
    %8815 = vmatprep.subr.mxu0 0.0
    %8816 = vmatpush1.msra.mxu0 %v5311
    %8817 = vmatprep.subr.mxu0 0.0
    %8818 = vmatpush1.msra.mxu0 %v5310
    %8819 = vmatprep.subr.mxu0 0.0
    %8820 = vmatpush1.msra.mxu0 %v5309
    %8821 = vmatprep.subr.mxu0 0.0
    %8822 = vmatpush1.msra.mxu0 %v5308
    %8823 = vmatprep.subr.mxu0 0.0
    %8824 = vmatpush1.msra.mxu0 %v5307
    %8825 = vmatprep.subr.mxu0 0.0
    %8826 = vmatpush1.msra.mxu0 %v5306
    %8827 = vmatprep.subr.mxu0 0.0
    %8828 = vmatpush1.msra.mxu0 %v5305
    %8829 = vmatprep.subr.mxu0 0.0
    %8830 = vmatpush1.msra.mxu0 %v5304
    %8831 = vmatprep.subr.mxu0 0.0
    %8832 = vmatpush1.msra.mxu0 %v5303
    %8833 = vmatprep.subr.mxu0 0.0
    %8834 = vmatpush1.msra.mxu0 %v5302
    %8835 = vmatprep.subr.mxu0 0.0
    %8836 = vmatpush1.msra.mxu0 %v5301
    %8837 = vmatprep.subr.mxu0 0.0
    %8838 = vmatpush2.msra.mxu0 0.0
    %8839 = vmatprep.subr.mxu0 0.0
    %8840 = vmatpush2.msra.mxu0 0.0
    %8841 = vmatprep.subr.mxu0 0.0
    %8842 = vmatpush2.msra.mxu0 0.0
    %8843 = vmatprep.subr.mxu0 0.0
    %8844 = vmatpush2.msra.mxu0 0.0
    %8845 = vmatprep.subr.mxu0 0.0
    %8846 = vmatpush2.msra.mxu0 0.0
    %8847 = vmatprep.subr.mxu0 0.0
    %8848 = vmatpush2.msra.mxu0 0.0
    %8849 = vmatprep.subr.mxu0 0.0
    %8850 = vmatpush2.msra.mxu0 0.0
    %8851 = vmatprep.subr.mxu0 0.0
    %8852 = vmatpush2.msra.mxu0 0.0
    %8853 = vmatprep.subr.mxu0 0.0
    %8854 = vmatpush2.msra.mxu0 0.0
    %8855 = vmatprep.subr.mxu0 0.0
    %8856 = vmatpush2.msra.mxu0 0.0
    %8857 = vmatprep.subr.mxu0 0.0
    %8858 = vmatpush2.msra.mxu0 0.0
    %8859 = vmatprep.subr.mxu0 0.0
    %8860 = vmatpush2.msra.mxu0 0.0
    %8861 = vmatprep.subr.mxu0 0.0
    %8862 = vmatpush2.msra.mxu0 0.0
    %8863 = vmatprep.subr.mxu0 0.0
    %8864 = vmatpush2.msra.mxu0 0.0
    %8865 = vmatprep.subr.mxu0 0.0
    %8866 = vmatpush2.msra.mxu0 0.0
    %8867 = vmatprep.subr.mxu0 0.0
    %8868 = vmatpush2.msra.mxu0 0.0
    %8869 = vmatprep.mubr.f32.mxu0 0.0
    %8870 = vmatmul.mubr.f32.gmra.mxu0 %v8733
    %v8871 = vpop.f32.mrf.mxu0
    %v8872 = vadd.f32 0.0, %v8871
    %v8873 = vpop.f32.mrf.mxu0
    %8874 = vdwg.mxu0
    %v8875 = vadd.f32 %v1828, %v8872
    %8876 = vmatprep.subr.mxu0 0.0
    %8877 = vmatpush1.msra.mxu0 %v5403
    %8878 = vmatprep.subr.mxu0 0.0
    %8879 = vmatpush1.msra.mxu0 %v5402
    %8880 = vmatprep.subr.mxu0 0.0
    %8881 = vmatpush1.msra.mxu0 %v5401
    %8882 = vmatprep.subr.mxu0 0.0
    %8883 = vmatpush1.msra.mxu0 %v5400
    %8884 = vmatprep.subr.mxu0 0.0
    %8885 = vmatpush1.msra.mxu0 %v5399
    %8886 = vmatprep.subr.mxu0 0.0
    %8887 = vmatpush1.msra.mxu0 %v5398
    %8888 = vmatprep.subr.mxu0 0.0
    %8889 = vmatpush1.msra.mxu0 %v5397
    %8890 = vmatprep.subr.mxu0 0.0
    %8891 = vmatpush1.msra.mxu0 %v5396
    %8892 = vmatprep.subr.mxu0 0.0
    %8893 = vmatpush1.msra.mxu0 %v5395
    %8894 = vmatprep.subr.mxu0 0.0
    %8895 = vmatpush1.msra.mxu0 %v5394
    %8896 = vmatprep.subr.mxu0 0.0
    %8897 = vmatpush1.msra.mxu0 %v5393
    %8898 = vmatprep.subr.mxu0 0.0
    %8899 = vmatpush1.msra.mxu0 %v5392
    %8900 = vmatprep.subr.mxu0 0.0
    %8901 = vmatpush1.msra.mxu0 %v5391
    %8902 = vmatprep.subr.mxu0 0.0
    %8903 = vmatpush1.msra.mxu0 %v5390
    %8904 = vmatprep.subr.mxu0 0.0
    %8905 = vmatpush1.msra.mxu0 %v5389
    %8906 = vmatprep.subr.mxu0 0.0
    %8907 = vmatpush1.msra.mxu0 %v5388
    %8908 = vmatprep.subr.mxu0 0.0
    %8909 = vmatpush2.msra.mxu0 0.0
    %8910 = vmatprep.subr.mxu0 0.0
    %8911 = vmatpush2.msra.mxu0 0.0
    %8912 = vmatprep.subr.mxu0 0.0
    %8913 = vmatpush2.msra.mxu0 0.0
    %8914 = vmatprep.subr.mxu0 0.0
    %8915 = vmatpush2.msra.mxu0 0.0
    %8916 = vmatprep.subr.mxu0 0.0
    %8917 = vmatpush2.msra.mxu0 0.0
    %8918 = vmatprep.subr.mxu0 0.0
    %8919 = vmatpush2.msra.mxu0 0.0
    %8920 = vmatprep.subr.mxu0 0.0
    %8921 = vmatpush2.msra.mxu0 0.0
    %8922 = vmatprep.subr.mxu0 0.0
    %8923 = vmatpush2.msra.mxu0 0.0
    %8924 = vmatprep.subr.mxu0 0.0
    %8925 = vmatpush2.msra.mxu0 0.0
    %8926 = vmatprep.subr.mxu0 0.0
    %8927 = vmatpush2.msra.mxu0 0.0
    %8928 = vmatprep.subr.mxu0 0.0
    %8929 = vmatpush2.msra.mxu0 0.0
    %8930 = vmatprep.subr.mxu0 0.0
    %8931 = vmatpush2.msra.mxu0 0.0
    %8932 = vmatprep.subr.mxu0 0.0
    %8933 = vmatpush2.msra.mxu0 0.0
    %8934 = vmatprep.subr.mxu0 0.0
    %8935 = vmatpush2.msra.mxu0 0.0
    %8936 = vmatprep.subr.mxu0 0.0
    %8937 = vmatpush2.msra.mxu0 0.0
    %8938 = vmatprep.subr.mxu0 0.0
    %8939 = vmatpush2.msra.mxu0 0.0
    %8940 = vmatprep.mubr.f32.mxu0 0.0
    %8941 = vmatmul.mubr.f32.gmra.mxu0 %v8804
    %v8942 = vpop.f32.mrf.mxu0
    %v8943 = vadd.f32 0.0, %v8942
    %v8944 = vpop.f32.mrf.mxu0
    %8945 = vdwg.mxu0
    %v8946 = vadd.f32 %v8875, %v8943
    %8947 = vset.pattern.permute.xlu0 1
    %8948 = vperm.xlu0 %8947, %v660
    %v8949 = vpop.permute.xlu0 %8948
    %v8951 = vmul.f32 %v8949, %v8946
    %v8952 = vadd.f32 %v5481, %v8951
    %8953 = vst [vmem:[%s4] sm:$0xff] %v8952
    // Predicated region
    $region22: #{moe_forward.1} parent=1 // pred_check
      _
    $region23: #{moe_forward.1} parent=1 // pred_check_branch
      %8955 = sbr.rel (0) target = $region25
    $region24: #{moe_forward.1} parent=1 // pred_region
      _
    $region25: #{moe_forward.1} parent=1 // pred_fallthru
      _
    // Predicated region
    $region26: #{moe_forward.1} parent=1 // pred_check
      _
    $region27: #{moe_forward.1} parent=1 // pred_check_branch
      %8957 = sbr.rel (0) target = $region29
    $region28: #{moe_forward.1} parent=1 // pred_region
      _
    $region29: #{moe_forward.1} parent=1 // pred_fallthru
      _
    %8958 = vsyncpa [#allocation3], 1

</llo_original>
